<compile_context>
chip_gen: v7x
topology: tpu7x:2x2x1
jax: 0.10.0
libtpu: 0.0.40
codegen_flags: <defaults>
</compile_context>

<pallas_src>
import numpy as np
import jax
import jax.numpy as jnp
from jax.experimental import pallas as pl
from jax.experimental.pallas import tpu as pltpu


HIGHEST = jax.lax.Precision.HIGHEST


# ---------------------------------------------------------------------------
# Fused forward pass: ONE grid-less pallas_call, everything VMEM resident
# ---------------------------------------------------------------------------
def pkdp_forward(x_nlc, kp):
    """x_nlc: (B, L, Cin) channels-last input. kp: prepared kernel params."""
    B, L, Cin = x_nlc.shape
    has_prior = kp["has_prior"]
    k_gen, k_pri = kp["k_gen"], kp["k_pri"]
    Lf = kp["Lf"]
    out_dim = kp["out_dim"]
    fc1_relu = kp["fc1_relu"]

    assert L % 8 == 0, "three MaxPool1d(2) stages require L % 8 == 0"
    for k in tuple(k_gen) + tuple(k_pri):
        assert k % 2 == 1, "odd kernel sizes required for 'same' padding"

    # Batched channels-last activations, rows b-major: (B*L, Cin).
    x2 = x_nlc.reshape(B * L, Cin)

    inputs = [x2]
    if has_prior:
        inputs.append(jnp.tile(kp["mask"], (B, 1)))          # (B*L, Cin)
    for (w, t) in kp["general"]:
        inputs += [w, t]
    if has_prior:
        for (w, t) in kp["prior"]:
            inputs += [w, t]
        inputs += [kp["fusion_wg"], kp["fusion_wp"], kp["fusion_b"]]
    inputs += [kp["fc1_w"], kp["fc1_b"]]
    for (w, b) in kp["fc_rest"]:
        inputs += [w, b]
    n_in = len(inputs)

    # Pooling scratch: widest conv-output channel count.
    all_blocks = kp["general"] + (kp["prior"] if has_prior else [])
    c_max = max(w.shape[1] for (w, _) in all_blocks)
    Ls = (L, L // 2, L // 4)

    def kernel(*args):
        refs = args[:n_in]
        out_ref = args[n_in]
        pool_sc = args[n_in + 1]

        idx = 0
        x_ref = refs[idx]; idx += 1
        if has_prior:
            m_ref = refs[idx]; idx += 1
        g_wt = []
        for _ in range(3):
            g_wt.append((refs[idx], refs[idx + 1])); idx += 2
        if has_prior:
            p_wt = []
            for _ in range(3):
                p_wt.append((refs[idx], refs[idx + 1])); idx += 2
            fwg_ref, fwp_ref, fb_ref = refs[idx], refs[idx + 1], refs[idx + 2]
            idx += 3
        fc1_w_ref, fc1_b_ref = refs[idx], refs[idx + 1]; idx += 2
        rest = []
        while idx < len(refs):
            rest.append((refs[idx], refs[idx + 1])); idx += 2

        def conv_block(a, w_ref, t_ref, K, Lcur):
            """Conv1d('same') + eval-BN + ReLU + MaxPool1d(2), batched over B.

            a: (B*Lcur, Cin) rows b-major.  One MXU matmul for the whole batch;
            pooling is a VPU max of even/odd rows (stride-2 VMEM reads).
            """
            w = w_ref[...]                                   # (K*Cin, Cout)
            shift = t_ref[...]                               # (1, Cout)
            KC, Cout = w.shape
            Cin_b = KC // K
            pad = K // 2
            Lh = Lcur // 2
            zp = jnp.zeros((pad, Cin_b), jnp.float32)
            rows = []
            for b in range(B):                               # contiguous 2D slices only
                ab = a[b * Lcur:(b + 1) * Lcur, :]
                apb = jnp.concatenate([zp, ab, zp], axis=0)  # (Lcur+2p, Cin)
                rows.append(jnp.concatenate(
                    [apb[k:k + Lcur, :] for k in range(K)], axis=1))
            im2col = rows[0] if B == 1 else jnp.concatenate(rows, axis=0)
            y = jnp.dot(im2col, w, preferred_element_type=jnp.float32,
                        precision=HIGHEST) + shift
            y = jnp.maximum(y, 0.0)                          # (B*Lcur, Cout)
            # MaxPool1d(2): even/odd row max on the VPU via strided VMEM loads
            # (rows are b-major and Lcur is even, so global even/odd rows are
            # exactly per-sample even/odd positions).
            pool_sc[pl.ds(0, B * Lcur), pl.ds(0, Cout)] = y
            ye = pool_sc[pl.ds(0, B * Lh, stride=2), pl.ds(0, Cout)]
            yo = pool_sc[pl.ds(1, B * Lh, stride=2), pl.ds(0, Cout)]
            return jnp.maximum(ye, yo)                       # (B*Lh, Cout)

        x = x_ref[...]                                       # (B*L, Cin)
        if has_prior:
            m = m_ref[...]
            g = x * (1.0 - m)                                # general: prior positions zeroed
            p = x * m                                        # prior: only prior positions
        else:
            g = x

        for i, (w_ref, t_ref) in enumerate(g_wt):
            g = conv_block(g, w_ref, t_ref, k_gen[i], Ls[i])
        if has_prior:
            for i, (w_ref, t_ref) in enumerate(p_wt):
                p = conv_block(p, w_ref, t_ref, k_pri[i], Ls[i])
            # 1x1 fusion conv; channel concat folded into two batched matmuls.
            fused = (jnp.dot(g, fwg_ref[...], preferred_element_type=jnp.float32,
                             precision=HIGHEST)
                     + jnp.dot(p, fwp_ref[...], preferred_element_type=jnp.float32,
                               precision=HIGHEST)
                     + fb_ref[...])                          # (B*Lf, C3)
        else:
            fused = g                                        # (B*Lf, C3)

        # fc1 as ONE matmul: flatten each sample's Lf contiguous rows into one
        # (1, Lf*C3) lane-major row (fc1 weight was permuted offline to match
        # torch's channel-major flatten order).
        flat_rows = []
        for b in range(B):
            segs = [fused[b * Lf + l: b * Lf + l + 1, :] for l in range(Lf)]
            flat_rows.append(segs[0] if Lf == 1 else jnp.concatenate(segs, axis=1))
        flat = flat_rows[0] if B == 1 else jnp.concatenate(flat_rows, axis=0)
        h = jnp.dot(flat, fc1_w_ref[...], preferred_element_type=jnp.float32,
                    precision=HIGHEST) + fc1_b_ref[...]
        if fc1_relu:
            h = jnp.maximum(h, 0.0)

        # Remaining FC stack (Dropout == identity at inference).
        for j, (w_ref, b_ref) in enumerate(rest):
            h = jnp.dot(h, w_ref[...], preferred_element_type=jnp.float32,
                        precision=HIGHEST) + b_ref[...]
            if j < len(rest) - 1:
                h = jnp.maximum(h, 0.0)
        out_ref[...] = h

    return pl.pallas_call(
        kernel,
        out_shape=jax.ShapeDtypeStruct((B, out_dim), jnp.float32),
        scratch_shapes=[pltpu.VMEM((B * L, c_max), jnp.float32)],
    )(*inputs)


# ---------------------------------------------------------------------------
# Pure-JAX reference (for correctness check)
# ---------------------------------------------------------------------------
def _conv_block_ref(x, w_kio, scale, shift):
    B, L, _ = x.shape
    K = w_kio.shape[0]
    pad = K // 2
    xp = jnp.pad(x, ((0, 0), (pad, pad), (0, 0)))
    acc = jnp.zeros((B, L, w_kio.shape[-1]), jnp.float32)
    for k in range(K):
        acc = acc + jnp.einsum("bli,io->blo", xp[:, k:k + L, :], w_kio[k],
                               precision=HIGHEST)
    y = jnp.maximum(acc * scale[None] + shift[None], 0.0)
    return jnp.maximum(y[:, 0::2, :], y[:, 1::2, :])


def pkdp_reference(x_nlc, params):
    B = x_nlc.shape[0]
    if params["has_prior"]:
        m = params["prior_mask"]
        gen, pri = x_nlc * (1.0 - m), x_nlc * m
    else:
        gen = x_nlc
    g = gen
    for (w, s, t) in params["general"]:
        g = _conv_block_ref(g, w, s, t)
    if params["has_prior"]:
        p = pri
        for (w, s, t) in params["prior"]:
            p = _conv_block_ref(p, w, s, t)
        comb = jnp.concatenate([g, p], axis=-1)
        fused = jnp.einsum("blc,co->blo", comb, params["fusion_w"],
                           precision=HIGHEST) + params["fusion_b"]
    else:
        fused = g
    h = jnp.transpose(fused, (0, 2, 1)).reshape(B, -1)   # torch NCL flatten order
    for (w, b) in params["fc_hidden"]:
        h = jnp.maximum(jnp.dot(h, w, precision=HIGHEST) + b, 0.0)
    return jnp.dot(h, params["fc_out_w"], precision=HIGHEST) + params["fc_out_b"]


# ---------------------------------------------------------------------------
# Deterministic parameter construction (shapes from PKDP.__init__)
# ---------------------------------------------------------------------------
def build_params(key, cfg):
    in_ch = cfg["in_channels"]
    L = cfg["input_length"]
    keys = iter(jax.random.split(key, 64))

    def conv_bn(cin, cout, K):
        bound = 1.0 / np.sqrt(cin * K)
        w = jax.random.uniform(next(keys), (cout, cin, K), jnp.float32, -bound, bound)
        b = jax.random.uniform(next(keys), (cout,), jnp.float32, -bound, bound)
        gamma = 1.0 + 0.2 * jax.random.uniform(next(keys), (cout,), jnp.float32, -1.0, 1.0)
        beta = 0.1 * jax.random.uniform(next(keys), (cout,), jnp.float32, -1.0, 1.0)
        rmean = 0.1 * jax.random.uniform(next(keys), (cout,), jnp.float32, -1.0, 1.0)
        rvar = 1.0 + 0.3 * jax.random.uniform(next(keys), (cout,), jnp.float32, -1.0, 1.0)
        eps = 1e-5
        scale = gamma / jnp.sqrt(rvar + eps)           # eval-mode BN
        shift = beta + (b - rmean) * scale
        return (jnp.transpose(w, (2, 1, 0)),           # (K, Cin, Cout)
                scale.reshape(1, cout), shift.reshape(1, cout))

    def linear(din, dout):
        bound = 1.0 / np.sqrt(din)
        w = jax.random.uniform(next(keys), (dout, din), jnp.float32, -bound, bound)
        b = jax.random.uniform(next(keys), (dout,), jnp.float32, -bound, bound)
        return jnp.transpose(w), b.reshape(1, dout)

    oc, pc = cfg["out_channels"], cfg["prior_channels"]
    ks, pks = cfg["kernel_sizes"], cfg["prior_kernel_sizes"]

    params = {}
    params["general"] = [conv_bn(in_ch, oc[0], ks[0]),
                         conv_bn(oc[0], oc[1], ks[1]),
                         conv_bn(oc[1], oc[2], ks[2])]
    params["prior"] = [conv_bn(in_ch, pc[0], pks[0]),
                       conv_bn(pc[0], pc[1], pks[1]),
                       conv_bn(pc[1], pc[2], pks[2])]

    comb = oc[2] + pc[2]
    bound = 1.0 / np.sqrt(comb)
    wf = jax.random.uniform(next(keys), (oc[2], comb, 1), jnp.float32, -bound, bound)
    bf = jax.random.uniform(next(keys), (oc[2],), jnp.float32, -bound, bound)
    params["fusion_w"] = jnp.transpose(wf[:, :, 0])    # (comb, oc3)
    params["fusion_b"] = bf.reshape(1, oc[2])

    idx = cfg["prior_indices"]
    params["has_prior"] = len(idx) > 0
    mask_l = jnp.zeros((L,), jnp.float32)
    if idx:
        mask_l = mask_l.at[jnp.array(idx)].set(1.0)
    params["prior_mask"] = jnp.tile(mask_l[None, :, None], (1, 1, in_ch))  # (1,L,C)

    din = oc[2] * (L // 8)                             # torch _to_linear
    fc_hidden = []
    for i in range(cfg["fc_layers"]):
        units = cfg["fc_units"][i] if i < len(cfg["fc_units"]) else cfg["fc_units"][-1]
        fc_hidden.append(linear(din, units))
        din = units
    params["fc_hidden"] = fc_hidden
    params["fc_out_w"], params["fc_out_b"] = linear(din, cfg["out_dim"])
    return params


def prepare_kernel_params(params, cfg):
    """One-time offline folding / re-layout into the forms the fused kernel uses."""
    L = cfg["input_length"]
    oc3 = cfg["out_channels"][2]
    Lf = L // 8

    kp = {"has_prior": params["has_prior"],
          "k_gen": tuple(cfg["kernel_sizes"]),
          "k_pri": tuple(cfg["prior_kernel_sizes"]),
          "Lf": Lf, "out_dim": cfg["out_dim"],
          "fc1_relu": cfg["fc_layers"] >= 1}

    def fold(block):                                   # BN scale folded into weights
        w_kio, scale, shift = block
        K, cin, cout = w_kio.shape
        w_flat = (w_kio * scale.reshape(1, 1, cout)).reshape(K * cin, cout)
        return (w_flat, shift)

    kp["general"] = [fold(blk) for blk in params["general"]]
    kp["prior"] = [fold(blk) for blk in params["prior"]]

    kp["fusion_wg"] = params["fusion_w"][:oc3, :]      # split 1x1 fusion weight
    kp["fusion_wp"] = params["fusion_w"][oc3:, :]
    kp["fusion_b"] = params["fusion_b"]

    kp["mask"] = params["prior_mask"][0]               # (L, Cin)

    # First FC weight: permute rows from torch flatten order (c*Lf + l) into
    # l-major order (l*C3 + c) so the kernel's lane-concat flatten feeds one
    # single matmul with no transpose/reshape at runtime.
    if cfg["fc_layers"] >= 1:
        fc_all = list(params["fc_hidden"]) + [(params["fc_out_w"], params["fc_out_b"])]
    else:
        fc_all = [(params["fc_out_w"], params["fc_out_b"])]
    w1, b1 = fc_all[0]
    u1 = w1.shape[1]
    kp["fc1_w"] = jnp.transpose(w1.reshape(oc3, Lf, u1), (1, 0, 2)).reshape(Lf * oc3, u1)
    kp["fc1_b"] = b1
    kp["fc_rest"] = fc_all[1:]
    return kp


if __name__ == "__main__":
    cfg = dict(
        in_channels=4,
        out_channels=(8, 8, 16),
        prior_channels=(8, 8, 8),
        fc_layers=2,
        fc_units=[32, 16],
        out_dim=3,
        input_length=16,
        kernel_sizes=[11, 11, 11],        # PKDP defaults (odd)
        prior_kernel_sizes=[7, 7, 7],     # PKDP defaults (odd)
        prior_indices=[0, 3, 5, 10],      # matched prior feature positions
    )
    root = jax.random.PRNGKey(0)
    kparam, kx = jax.random.split(root)
    params = build_params(kparam, cfg)
    kp = prepare_kernel_params(params, cfg)

    B = 2
    x_ncl = jax.random.normal(kx, (B, cfg["in_channels"], cfg["input_length"]),
                              jnp.float32)             # PyTorch NCL input
    x_nlc = jnp.transpose(x_ncl, (0, 2, 1))            # channels-last for the kernel

    out = pkdp_forward(x_nlc, kp)
    out = jax.block_until_ready(out)

    ref = pkdp_reference(x_nlc, params)
    assert out.shape == (B, cfg["out_dim"]), out.shape
    assert bool(jnp.all(jnp.isfinite(out)))
    assert bool(jnp.allclose(out, ref, rtol=2e-2, atol=2e-2)), (out, ref)
    print("KERNEL_OK")
</pallas_src>

<mosaic_0001>
module attributes {stable_mosaic.version = 11 : i64} {
  func.func @kernel(%arg0: memref<32x4xf32, #tpu.memory_space<vmem>>, %arg1: memref<32x4xf32, #tpu.memory_space<vmem>>, %arg2: memref<44x8xf32, #tpu.memory_space<vmem>>, %arg3: memref<1x8xf32, #tpu.memory_space<vmem>>, %arg4: memref<88x8xf32, #tpu.memory_space<vmem>>, %arg5: memref<1x8xf32, #tpu.memory_space<vmem>>, %arg6: memref<88x16xf32, #tpu.memory_space<vmem>>, %arg7: memref<1x16xf32, #tpu.memory_space<vmem>>, %arg8: memref<28x8xf32, #tpu.memory_space<vmem>>, %arg9: memref<1x8xf32, #tpu.memory_space<vmem>>, %arg10: memref<56x8xf32, #tpu.memory_space<vmem>>, %arg11: memref<1x8xf32, #tpu.memory_space<vmem>>, %arg12: memref<56x8xf32, #tpu.memory_space<vmem>>, %arg13: memref<1x8xf32, #tpu.memory_space<vmem>>, %arg14: memref<16x16xf32, #tpu.memory_space<vmem>>, %arg15: memref<8x16xf32, #tpu.memory_space<vmem>>, %arg16: memref<1x16xf32, #tpu.memory_space<vmem>>, %arg17: memref<32x32xf32, #tpu.memory_space<vmem>>, %arg18: memref<1x32xf32, #tpu.memory_space<vmem>>, %arg19: memref<32x16xf32, #tpu.memory_space<vmem>>, %arg20: memref<1x16xf32, #tpu.memory_space<vmem>>, %arg21: memref<16x3xf32, #tpu.memory_space<vmem>>, %arg22: memref<1x3xf32, #tpu.memory_space<vmem>>, %arg23: memref<2x3xf32, #tpu.memory_space<vmem>>, %arg24: memref<32x16xf32, #tpu.memory_space<vmem>>) attributes {dimension_semantics = [], scalar_prefetch = 0 : i64, scratch_operands = 1 : i64, tpu.core_type = #tpu.core_type<tc>} {
    %c0 = arith.constant 0 : index
    %c0_0 = arith.constant 0 : index
    %0 = vector.load %arg0[%c0, %c0_0] : memref<32x4xf32, #tpu.memory_space<vmem>>, vector<32x4xf32>
    %c0_1 = arith.constant 0 : index
    %c0_2 = arith.constant 0 : index
    %1 = vector.load %arg1[%c0_1, %c0_2] : memref<32x4xf32, #tpu.memory_space<vmem>>, vector<32x4xf32>
    %cst = arith.constant 1.000000e+00 : f32
    %2 = vector.broadcast %cst : f32 to vector<32x4xf32>
    %3 = arith.subf %2, %1 : vector<32x4xf32>
    %4 = arith.mulf %0, %3 : vector<32x4xf32>
    %5 = arith.mulf %0, %1 : vector<32x4xf32>
    %c0_3 = arith.constant 0 : index
    %c0_4 = arith.constant 0 : index
    %6 = vector.load %arg2[%c0_3, %c0_4] : memref<44x8xf32, #tpu.memory_space<vmem>>, vector<44x8xf32>
    %c0_5 = arith.constant 0 : index
    %c0_6 = arith.constant 0 : index
    %7 = vector.load %arg3[%c0_5, %c0_6] : memref<1x8xf32, #tpu.memory_space<vmem>>, vector<1x8xf32>
    %cst_7 = arith.constant 0.000000e+00 : f32
    %8 = vector.broadcast %cst_7 : f32 to vector<5x4xf32>
    %9 = vector.extract_strided_slice %4 {offsets = [0, 0], sizes = [16, 4], strides = [1, 1]} : vector<32x4xf32> to vector<16x4xf32>
    %10 = tpu.concatenate %8, %9, %8 in 0 : vector<5x4xf32>, vector<16x4xf32>, vector<5x4xf32> -> vector<26x4xf32>
    %11 = vector.extract_strided_slice %10 {offsets = [0, 0], sizes = [16, 4], strides = [1, 1]} : vector<26x4xf32> to vector<16x4xf32>
    %12 = vector.extract_strided_slice %10 {offsets = [1, 0], sizes = [16, 4], strides = [1, 1]} : vector<26x4xf32> to vector<16x4xf32>
    %13 = vector.extract_strided_slice %10 {offsets = [2, 0], sizes = [16, 4], strides = [1, 1]} : vector<26x4xf32> to vector<16x4xf32>
    %14 = vector.extract_strided_slice %10 {offsets = [3, 0], sizes = [16, 4], strides = [1, 1]} : vector<26x4xf32> to vector<16x4xf32>
    %15 = vector.extract_strided_slice %10 {offsets = [4, 0], sizes = [16, 4], strides = [1, 1]} : vector<26x4xf32> to vector<16x4xf32>
    %16 = vector.extract_strided_slice %10 {offsets = [5, 0], sizes = [16, 4], strides = [1, 1]} : vector<26x4xf32> to vector<16x4xf32>
    %17 = vector.extract_strided_slice %10 {offsets = [6, 0], sizes = [16, 4], strides = [1, 1]} : vector<26x4xf32> to vector<16x4xf32>
    %18 = vector.extract_strided_slice %10 {offsets = [7, 0], sizes = [16, 4], strides = [1, 1]} : vector<26x4xf32> to vector<16x4xf32>
    %19 = vector.extract_strided_slice %10 {offsets = [8, 0], sizes = [16, 4], strides = [1, 1]} : vector<26x4xf32> to vector<16x4xf32>
    %20 = vector.extract_strided_slice %10 {offsets = [9, 0], sizes = [16, 4], strides = [1, 1]} : vector<26x4xf32> to vector<16x4xf32>
    %21 = vector.extract_strided_slice %10 {offsets = [10, 0], sizes = [16, 4], strides = [1, 1]} : vector<26x4xf32> to vector<16x4xf32>
    %22 = tpu.concatenate %11, %12, %13, %14, %15, %16, %17, %18, %19, %20, %21 in 1 : vector<16x4xf32>, vector<16x4xf32>, vector<16x4xf32>, vector<16x4xf32>, vector<16x4xf32>, vector<16x4xf32>, vector<16x4xf32>, vector<16x4xf32>, vector<16x4xf32>, vector<16x4xf32>, vector<16x4xf32> -> vector<16x44xf32>
    %23 = vector.extract_strided_slice %4 {offsets = [16, 0], sizes = [16, 4], strides = [1, 1]} : vector<32x4xf32> to vector<16x4xf32>
    %24 = tpu.concatenate %8, %23, %8 in 0 : vector<5x4xf32>, vector<16x4xf32>, vector<5x4xf32> -> vector<26x4xf32>
    %25 = vector.extract_strided_slice %24 {offsets = [0, 0], sizes = [16, 4], strides = [1, 1]} : vector<26x4xf32> to vector<16x4xf32>
    %26 = vector.extract_strided_slice %24 {offsets = [1, 0], sizes = [16, 4], strides = [1, 1]} : vector<26x4xf32> to vector<16x4xf32>
    %27 = vector.extract_strided_slice %24 {offsets = [2, 0], sizes = [16, 4], strides = [1, 1]} : vector<26x4xf32> to vector<16x4xf32>
    %28 = vector.extract_strided_slice %24 {offsets = [3, 0], sizes = [16, 4], strides = [1, 1]} : vector<26x4xf32> to vector<16x4xf32>
    %29 = vector.extract_strided_slice %24 {offsets = [4, 0], sizes = [16, 4], strides = [1, 1]} : vector<26x4xf32> to vector<16x4xf32>
    %30 = vector.extract_strided_slice %24 {offsets = [5, 0], sizes = [16, 4], strides = [1, 1]} : vector<26x4xf32> to vector<16x4xf32>
    %31 = vector.extract_strided_slice %24 {offsets = [6, 0], sizes = [16, 4], strides = [1, 1]} : vector<26x4xf32> to vector<16x4xf32>
    %32 = vector.extract_strided_slice %24 {offsets = [7, 0], sizes = [16, 4], strides = [1, 1]} : vector<26x4xf32> to vector<16x4xf32>
    %33 = vector.extract_strided_slice %24 {offsets = [8, 0], sizes = [16, 4], strides = [1, 1]} : vector<26x4xf32> to vector<16x4xf32>
    %34 = vector.extract_strided_slice %24 {offsets = [9, 0], sizes = [16, 4], strides = [1, 1]} : vector<26x4xf32> to vector<16x4xf32>
    %35 = vector.extract_strided_slice %24 {offsets = [10, 0], sizes = [16, 4], strides = [1, 1]} : vector<26x4xf32> to vector<16x4xf32>
    %36 = tpu.concatenate %25, %26, %27, %28, %29, %30, %31, %32, %33, %34, %35 in 1 : vector<16x4xf32>, vector<16x4xf32>, vector<16x4xf32>, vector<16x4xf32>, vector<16x4xf32>, vector<16x4xf32>, vector<16x4xf32>, vector<16x4xf32>, vector<16x4xf32>, vector<16x4xf32>, vector<16x4xf32> -> vector<16x44xf32>
    %37 = tpu.concatenate %22, %36 in 0 : vector<16x44xf32>, vector<16x44xf32> -> vector<32x44xf32>
    %cst_8 = arith.constant dense<0.000000e+00> : vector<32x8xf32>
    %38 = tpu.matmul %37, %6, %cst_8 {dimension_numbers = #tpu.dot_dimension_numbers<[1], [0], [0], [1], [0, 0, 1, 1], [], []>, precision = #tpu.contract_precision<fp32>} : vector<32x44xf32>, vector<44x8xf32>, vector<32x8xf32> -> vector<32x8xf32>
    %39 = vector.broadcast %7 : vector<1x8xf32> to vector<32x8xf32>
    %40 = arith.addf %38, %39 : vector<32x8xf32>
    %cst_9 = arith.constant 0.000000e+00 : f32
    %41 = vector.broadcast %cst_9 : f32 to vector<32x8xf32>
    %42 = arith.maximumf %40, %41 : vector<32x8xf32>
    %c0_10 = arith.constant 0 : index
    %c0_11 = arith.constant 0 : index
    %43 = vector.load %arg24[%c0_10, %c0_11] : memref<32x16xf32, #tpu.memory_space<vmem>>, vector<32x8xf32>
    tpu.vector_store %arg24[%c0_10, %c0_11], %42 {strides = array<i32>} : memref<32x16xf32, #tpu.memory_space<vmem>>, vector<32x8xf32>,
    %c0_12 = arith.constant 0 : index
    %c0_13 = arith.constant 0 : index
    %44 = tpu.strided_load %arg24[%c0_12, %c0_13] {strides = array<i32: 2, 1>} : memref<32x16xf32, #tpu.memory_space<vmem>>, vector<16x8xf32>
    %c1 = arith.constant 1 : index
    %c0_14 = arith.constant 0 : index
    %45 = tpu.strided_load %arg24[%c1, %c0_14] {strides = array<i32: 2, 1>} : memref<32x16xf32, #tpu.memory_space<vmem>>, vector<16x8xf32>
    %46 = arith.maximumf %44, %45 : vector<16x8xf32>
    %c0_15 = arith.constant 0 : index
    %c0_16 = arith.constant 0 : index
    %47 = vector.load %arg4[%c0_15, %c0_16] : memref<88x8xf32, #tpu.memory_space<vmem>>, vector<88x8xf32>
    %c0_17 = arith.constant 0 : index
    %c0_18 = arith.constant 0 : index
    %48 = vector.load %arg5[%c0_17, %c0_18] : memref<1x8xf32, #tpu.memory_space<vmem>>, vector<1x8xf32>
    %cst_19 = arith.constant 0.000000e+00 : f32
    %49 = vector.broadcast %cst_19 : f32 to vector<5x8xf32>
    %50 = vector.extract_strided_slice %46 {offsets = [0, 0], sizes = [8, 8], strides = [1, 1]} : vector<16x8xf32> to vector<8x8xf32>
    %51 = tpu.concatenate %49, %50, %49 in 0 : vector<5x8xf32>, vector<8x8xf32>, vector<5x8xf32> -> vector<18x8xf32>
    %52 = vector.extract_strided_slice %51 {offsets = [0, 0], sizes = [8, 8], strides = [1, 1]} : vector<18x8xf32> to vector<8x8xf32>
    %53 = vector.extract_strided_slice %51 {offsets = [1, 0], sizes = [8, 8], strides = [1, 1]} : vector<18x8xf32> to vector<8x8xf32>
    %54 = vector.extract_strided_slice %51 {offsets = [2, 0], sizes = [8, 8], strides = [1, 1]} : vector<18x8xf32> to vector<8x8xf32>
    %55 = vector.extract_strided_slice %51 {offsets = [3, 0], sizes = [8, 8], strides = [1, 1]} : vector<18x8xf32> to vector<8x8xf32>
    %56 = vector.extract_strided_slice %51 {offsets = [4, 0], sizes = [8, 8], strides = [1, 1]} : vector<18x8xf32> to vector<8x8xf32>
    %57 = vector.extract_strided_slice %51 {offsets = [5, 0], sizes = [8, 8], strides = [1, 1]} : vector<18x8xf32> to vector<8x8xf32>
    %58 = vector.extract_strided_slice %51 {offsets = [6, 0], sizes = [8, 8], strides = [1, 1]} : vector<18x8xf32> to vector<8x8xf32>
    %59 = vector.extract_strided_slice %51 {offsets = [7, 0], sizes = [8, 8], strides = [1, 1]} : vector<18x8xf32> to vector<8x8xf32>
    %60 = vector.extract_strided_slice %51 {offsets = [8, 0], sizes = [8, 8], strides = [1, 1]} : vector<18x8xf32> to vector<8x8xf32>
    %61 = vector.extract_strided_slice %51 {offsets = [9, 0], sizes = [8, 8], strides = [1, 1]} : vector<18x8xf32> to vector<8x8xf32>
    %62 = vector.extract_strided_slice %51 {offsets = [10, 0], sizes = [8, 8], strides = [1, 1]} : vector<18x8xf32> to vector<8x8xf32>
    %63 = tpu.concatenate %52, %53, %54, %55, %56, %57, %58, %59, %60, %61, %62 in 1 : vector<8x8xf32>, vector<8x8xf32>, vector<8x8xf32>, vector<8x8xf32>, vector<8x8xf32>, vector<8x8xf32>, vector<8x8xf32>, vector<8x8xf32>, vector<8x8xf32>, vector<8x8xf32>, vector<8x8xf32> -> vector<8x88xf32>
    %64 = vector.extract_strided_slice %46 {offsets = [8, 0], sizes = [8, 8], strides = [1, 1]} : vector<16x8xf32> to vector<8x8xf32>
    %65 = tpu.concatenate %49, %64, %49 in 0 : vector<5x8xf32>, vector<8x8xf32>, vector<5x8xf32> -> vector<18x8xf32>
    %66 = vector.extract_strided_slice %65 {offsets = [0, 0], sizes = [8, 8], strides = [1, 1]} : vector<18x8xf32> to vector<8x8xf32>
    %67 = vector.extract_strided_slice %65 {offsets = [1, 0], sizes = [8, 8], strides = [1, 1]} : vector<18x8xf32> to vector<8x8xf32>
    %68 = vector.extract_strided_slice %65 {offsets = [2, 0], sizes = [8, 8], strides = [1, 1]} : vector<18x8xf32> to vector<8x8xf32>
    %69 = vector.extract_strided_slice %65 {offsets = [3, 0], sizes = [8, 8], strides = [1, 1]} : vector<18x8xf32> to vector<8x8xf32>
    %70 = vector.extract_strided_slice %65 {offsets = [4, 0], sizes = [8, 8], strides = [1, 1]} : vector<18x8xf32> to vector<8x8xf32>
    %71 = vector.extract_strided_slice %65 {offsets = [5, 0], sizes = [8, 8], strides = [1, 1]} : vector<18x8xf32> to vector<8x8xf32>
    %72 = vector.extract_strided_slice %65 {offsets = [6, 0], sizes = [8, 8], strides = [1, 1]} : vector<18x8xf32> to vector<8x8xf32>
    %73 = vector.extract_strided_slice %65 {offsets = [7, 0], sizes = [8, 8], strides = [1, 1]} : vector<18x8xf32> to vector<8x8xf32>
    %74 = vector.extract_strided_slice %65 {offsets = [8, 0], sizes = [8, 8], strides = [1, 1]} : vector<18x8xf32> to vector<8x8xf32>
    %75 = vector.extract_strided_slice %65 {offsets = [9, 0], sizes = [8, 8], strides = [1, 1]} : vector<18x8xf32> to vector<8x8xf32>
    %76 = vector.extract_strided_slice %65 {offsets = [10, 0], sizes = [8, 8], strides = [1, 1]} : vector<18x8xf32> to vector<8x8xf32>
    %77 = tpu.concatenate %66, %67, %68, %69, %70, %71, %72, %73, %74, %75, %76 in 1 : vector<8x8xf32>, vector<8x8xf32>, vector<8x8xf32>, vector<8x8xf32>, vector<8x8xf32>, vector<8x8xf32>, vector<8x8xf32>, vector<8x8xf32>, vector<8x8xf32>, vector<8x8xf32>, vector<8x8xf32> -> vector<8x88xf32>
    %78 = tpu.concatenate %63, %77 in 0 : vector<8x88xf32>, vector<8x88xf32> -> vector<16x88xf32>
    %cst_20 = arith.constant dense<0.000000e+00> : vector<16x8xf32>
    %79 = tpu.matmul %78, %47, %cst_20 {dimension_numbers = #tpu.dot_dimension_numbers<[1], [0], [0], [1], [0, 0, 1, 1], [], []>, precision = #tpu.contract_precision<fp32>} : vector<16x88xf32>, vector<88x8xf32>, vector<16x8xf32> -> vector<16x8xf32>
    %80 = vector.broadcast %48 : vector<1x8xf32> to vector<16x8xf32>
    %81 = arith.addf %79, %80 : vector<16x8xf32>
    %cst_21 = arith.constant 0.000000e+00 : f32
    %82 = vector.broadcast %cst_21 : f32 to vector<16x8xf32>
    %83 = arith.maximumf %81, %82 : vector<16x8xf32>
    %c0_22 = arith.constant 0 : index
    %c0_23 = arith.constant 0 : index
    %84 = vector.load %arg24[%c0_22, %c0_23] : memref<32x16xf32, #tpu.memory_space<vmem>>, vector<16x8xf32>
    tpu.vector_store %arg24[%c0_22, %c0_23], %83 {strides = array<i32>} : memref<32x16xf32, #tpu.memory_space<vmem>>, vector<16x8xf32>,
    %c0_24 = arith.constant 0 : index
    %c0_25 = arith.constant 0 : index
    %85 = tpu.strided_load %arg24[%c0_24, %c0_25] {strides = array<i32: 2, 1>} : memref<32x16xf32, #tpu.memory_space<vmem>>, vector<8x8xf32>
    %c1_26 = arith.constant 1 : index
    %c0_27 = arith.constant 0 : index
    %86 = tpu.strided_load %arg24[%c1_26, %c0_27] {strides = array<i32: 2, 1>} : memref<32x16xf32, #tpu.memory_space<vmem>>, vector<8x8xf32>
    %87 = arith.maximumf %85, %86 : vector<8x8xf32>
    %c0_28 = arith.constant 0 : index
    %c0_29 = arith.constant 0 : index
    %88 = vector.load %arg6[%c0_28, %c0_29] : memref<88x16xf32, #tpu.memory_space<vmem>>, vector<88x16xf32>
    %c0_30 = arith.constant 0 : index
    %c0_31 = arith.constant 0 : index
    %89 = vector.load %arg7[%c0_30, %c0_31] : memref<1x16xf32, #tpu.memory_space<vmem>>, vector<1x16xf32>
    %cst_32 = arith.constant 0.000000e+00 : f32
    %90 = vector.broadcast %cst_32 : f32 to vector<5x8xf32>
    %91 = vector.extract_strided_slice %87 {offsets = [0, 0], sizes = [4, 8], strides = [1, 1]} : vector<8x8xf32> to vector<4x8xf32>
    %92 = tpu.concatenate %90, %91, %90 in 0 : vector<5x8xf32>, vector<4x8xf32>, vector<5x8xf32> -> vector<14x8xf32>
    %93 = vector.extract_strided_slice %92 {offsets = [0, 0], sizes = [4, 8], strides = [1, 1]} : vector<14x8xf32> to vector<4x8xf32>
    %94 = vector.extract_strided_slice %92 {offsets = [1, 0], sizes = [4, 8], strides = [1, 1]} : vector<14x8xf32> to vector<4x8xf32>
    %95 = vector.extract_strided_slice %92 {offsets = [2, 0], sizes = [4, 8], strides = [1, 1]} : vector<14x8xf32> to vector<4x8xf32>
    %96 = vector.extract_strided_slice %92 {offsets = [3, 0], sizes = [4, 8], strides = [1, 1]} : vector<14x8xf32> to vector<4x8xf32>
    %97 = vector.extract_strided_slice %92 {offsets = [4, 0], sizes = [4, 8], strides = [1, 1]} : vector<14x8xf32> to vector<4x8xf32>
    %98 = vector.extract_strided_slice %92 {offsets = [5, 0], sizes = [4, 8], strides = [1, 1]} : vector<14x8xf32> to vector<4x8xf32>
    %99 = vector.extract_strided_slice %92 {offsets = [6, 0], sizes = [4, 8], strides = [1, 1]} : vector<14x8xf32> to vector<4x8xf32>
    %100 = vector.extract_strided_slice %92 {offsets = [7, 0], sizes = [4, 8], strides = [1, 1]} : vector<14x8xf32> to vector<4x8xf32>
    %101 = vector.extract_strided_slice %92 {offsets = [8, 0], sizes = [4, 8], strides = [1, 1]} : vector<14x8xf32> to vector<4x8xf32>
    %102 = vector.extract_strided_slice %92 {offsets = [9, 0], sizes = [4, 8], strides = [1, 1]} : vector<14x8xf32> to vector<4x8xf32>
    %103 = vector.extract_strided_slice %92 {offsets = [10, 0], sizes = [4, 8], strides = [1, 1]} : vector<14x8xf32> to vector<4x8xf32>
    %104 = tpu.concatenate %93, %94, %95, %96, %97, %98, %99, %100, %101, %102, %103 in 1 : vector<4x8xf32>, vector<4x8xf32>, vector<4x8xf32>, vector<4x8xf32>, vector<4x8xf32>, vector<4x8xf32>, vector<4x8xf32>, vector<4x8xf32>, vector<4x8xf32>, vector<4x8xf32>, vector<4x8xf32> -> vector<4x88xf32>
    %105 = vector.extract_strided_slice %87 {offsets = [4, 0], sizes = [4, 8], strides = [1, 1]} : vector<8x8xf32> to vector<4x8xf32>
    %106 = tpu.concatenate %90, %105, %90 in 0 : vector<5x8xf32>, vector<4x8xf32>, vector<5x8xf32> -> vector<14x8xf32>
    %107 = vector.extract_strided_slice %106 {offsets = [0, 0], sizes = [4, 8], strides = [1, 1]} : vector<14x8xf32> to vector<4x8xf32>
    %108 = vector.extract_strided_slice %106 {offsets = [1, 0], sizes = [4, 8], strides = [1, 1]} : vector<14x8xf32> to vector<4x8xf32>
    %109 = vector.extract_strided_slice %106 {offsets = [2, 0], sizes = [4, 8], strides = [1, 1]} : vector<14x8xf32> to vector<4x8xf32>
    %110 = vector.extract_strided_slice %106 {offsets = [3, 0], sizes = [4, 8], strides = [1, 1]} : vector<14x8xf32> to vector<4x8xf32>
    %111 = vector.extract_strided_slice %106 {offsets = [4, 0], sizes = [4, 8], strides = [1, 1]} : vector<14x8xf32> to vector<4x8xf32>
    %112 = vector.extract_strided_slice %106 {offsets = [5, 0], sizes = [4, 8], strides = [1, 1]} : vector<14x8xf32> to vector<4x8xf32>
    %113 = vector.extract_strided_slice %106 {offsets = [6, 0], sizes = [4, 8], strides = [1, 1]} : vector<14x8xf32> to vector<4x8xf32>
    %114 = vector.extract_strided_slice %106 {offsets = [7, 0], sizes = [4, 8], strides = [1, 1]} : vector<14x8xf32> to vector<4x8xf32>
    %115 = vector.extract_strided_slice %106 {offsets = [8, 0], sizes = [4, 8], strides = [1, 1]} : vector<14x8xf32> to vector<4x8xf32>
    %116 = vector.extract_strided_slice %106 {offsets = [9, 0], sizes = [4, 8], strides = [1, 1]} : vector<14x8xf32> to vector<4x8xf32>
    %117 = vector.extract_strided_slice %106 {offsets = [10, 0], sizes = [4, 8], strides = [1, 1]} : vector<14x8xf32> to vector<4x8xf32>
    %118 = tpu.concatenate %107, %108, %109, %110, %111, %112, %113, %114, %115, %116, %117 in 1 : vector<4x8xf32>, vector<4x8xf32>, vector<4x8xf32>, vector<4x8xf32>, vector<4x8xf32>, vector<4x8xf32>, vector<4x8xf32>, vector<4x8xf32>, vector<4x8xf32>, vector<4x8xf32>, vector<4x8xf32> -> vector<4x88xf32>
    %119 = tpu.concatenate %104, %118 in 0 : vector<4x88xf32>, vector<4x88xf32> -> vector<8x88xf32>
    %cst_33 = arith.constant dense<0.000000e+00> : vector<8x16xf32>
    %120 = tpu.matmul %119, %88, %cst_33 {dimension_numbers = #tpu.dot_dimension_numbers<[1], [0], [0], [1], [0, 0, 1, 1], [], []>, precision = #tpu.contract_precision<fp32>} : vector<8x88xf32>, vector<88x16xf32>, vector<8x16xf32> -> vector<8x16xf32>
    %121 = vector.broadcast %89 : vector<1x16xf32> to vector<8x16xf32>
    %122 = arith.addf %120, %121 : vector<8x16xf32>
    %cst_34 = arith.constant 0.000000e+00 : f32
    %123 = vector.broadcast %cst_34 : f32 to vector<8x16xf32>
    %124 = arith.maximumf %122, %123 : vector<8x16xf32>
    %c0_35 = arith.constant 0 : index
    %c0_36 = arith.constant 0 : index
    %125 = vector.load %arg24[%c0_35, %c0_36] : memref<32x16xf32, #tpu.memory_space<vmem>>, vector<8x16xf32>
    tpu.vector_store %arg24[%c0_35, %c0_36], %124 {strides = array<i32>} : memref<32x16xf32, #tpu.memory_space<vmem>>, vector<8x16xf32>,
    %c0_37 = arith.constant 0 : index
    %c0_38 = arith.constant 0 : index
    %126 = tpu.strided_load %arg24[%c0_37, %c0_38] {strides = array<i32: 2, 1>} : memref<32x16xf32, #tpu.memory_space<vmem>>, vector<4x16xf32>
    %c1_39 = arith.constant 1 : index
    %c0_40 = arith.constant 0 : index
    %127 = tpu.strided_load %arg24[%c1_39, %c0_40] {strides = array<i32: 2, 1>} : memref<32x16xf32, #tpu.memory_space<vmem>>, vector<4x16xf32>
    %128 = arith.maximumf %126, %127 : vector<4x16xf32>
    %c0_41 = arith.constant 0 : index
    %c0_42 = arith.constant 0 : index
    %129 = vector.load %arg8[%c0_41, %c0_42] : memref<28x8xf32, #tpu.memory_space<vmem>>, vector<28x8xf32>
    %c0_43 = arith.constant 0 : index
    %c0_44 = arith.constant 0 : index
    %130 = vector.load %arg9[%c0_43, %c0_44] : memref<1x8xf32, #tpu.memory_space<vmem>>, vector<1x8xf32>
    %cst_45 = arith.constant 0.000000e+00 : f32
    %131 = vector.broadcast %cst_45 : f32 to vector<3x4xf32>
    %132 = vector.extract_strided_slice %5 {offsets = [0, 0], sizes = [16, 4], strides = [1, 1]} : vector<32x4xf32> to vector<16x4xf32>
    %133 = tpu.concatenate %131, %132, %131 in 0 : vector<3x4xf32>, vector<16x4xf32>, vector<3x4xf32> -> vector<22x4xf32>
    %134 = vector.extract_strided_slice %133 {offsets = [0, 0], sizes = [16, 4], strides = [1, 1]} : vector<22x4xf32> to vector<16x4xf32>
    %135 = vector.extract_strided_slice %133 {offsets = [1, 0], sizes = [16, 4], strides = [1, 1]} : vector<22x4xf32> to vector<16x4xf32>
    %136 = vector.extract_strided_slice %133 {offsets = [2, 0], sizes = [16, 4], strides = [1, 1]} : vector<22x4xf32> to vector<16x4xf32>
    %137 = vector.extract_strided_slice %133 {offsets = [3, 0], sizes = [16, 4], strides = [1, 1]} : vector<22x4xf32> to vector<16x4xf32>
    %138 = vector.extract_strided_slice %133 {offsets = [4, 0], sizes = [16, 4], strides = [1, 1]} : vector<22x4xf32> to vector<16x4xf32>
    %139 = vector.extract_strided_slice %133 {offsets = [5, 0], sizes = [16, 4], strides = [1, 1]} : vector<22x4xf32> to vector<16x4xf32>
    %140 = vector.extract_strided_slice %133 {offsets = [6, 0], sizes = [16, 4], strides = [1, 1]} : vector<22x4xf32> to vector<16x4xf32>
    %141 = tpu.concatenate %134, %135, %136, %137, %138, %139, %140 in 1 : vector<16x4xf32>, vector<16x4xf32>, vector<16x4xf32>, vector<16x4xf32>, vector<16x4xf32>, vector<16x4xf32>, vector<16x4xf32> -> vector<16x28xf32>
    %142 = vector.extract_strided_slice %5 {offsets = [16, 0], sizes = [16, 4], strides = [1, 1]} : vector<32x4xf32> to vector<16x4xf32>
    %143 = tpu.concatenate %131, %142, %131 in 0 : vector<3x4xf32>, vector<16x4xf32>, vector<3x4xf32> -> vector<22x4xf32>
    %144 = vector.extract_strided_slice %143 {offsets = [0, 0], sizes = [16, 4], strides = [1, 1]} : vector<22x4xf32> to vector<16x4xf32>
    %145 = vector.extract_strided_slice %143 {offsets = [1, 0], sizes = [16, 4], strides = [1, 1]} : vector<22x4xf32> to vector<16x4xf32>
    %146 = vector.extract_strided_slice %143 {offsets = [2, 0], sizes = [16, 4], strides = [1, 1]} : vector<22x4xf32> to vector<16x4xf32>
    %147 = vector.extract_strided_slice %143 {offsets = [3, 0], sizes = [16, 4], strides = [1, 1]} : vector<22x4xf32> to vector<16x4xf32>
    %148 = vector.extract_strided_slice %143 {offsets = [4, 0], sizes = [16, 4], strides = [1, 1]} : vector<22x4xf32> to vector<16x4xf32>
    %149 = vector.extract_strided_slice %143 {offsets = [5, 0], sizes = [16, 4], strides = [1, 1]} : vector<22x4xf32> to vector<16x4xf32>
    %150 = vector.extract_strided_slice %143 {offsets = [6, 0], sizes = [16, 4], strides = [1, 1]} : vector<22x4xf32> to vector<16x4xf32>
    %151 = tpu.concatenate %144, %145, %146, %147, %148, %149, %150 in 1 : vector<16x4xf32>, vector<16x4xf32>, vector<16x4xf32>, vector<16x4xf32>, vector<16x4xf32>, vector<16x4xf32>, vector<16x4xf32> -> vector<16x28xf32>
    %152 = tpu.concatenate %141, %151 in 0 : vector<16x28xf32>, vector<16x28xf32> -> vector<32x28xf32>
    %cst_46 = arith.constant dense<0.000000e+00> : vector<32x8xf32>
    %153 = tpu.matmul %152, %129, %cst_46 {dimension_numbers = #tpu.dot_dimension_numbers<[1], [0], [0], [1], [0, 0, 1, 1], [], []>, precision = #tpu.contract_precision<fp32>} : vector<32x28xf32>, vector<28x8xf32>, vector<32x8xf32> -> vector<32x8xf32>
    %154 = vector.broadcast %130 : vector<1x8xf32> to vector<32x8xf32>
    %155 = arith.addf %153, %154 : vector<32x8xf32>
    %cst_47 = arith.constant 0.000000e+00 : f32
    %156 = vector.broadcast %cst_47 : f32 to vector<32x8xf32>
    %157 = arith.maximumf %155, %156 : vector<32x8xf32>
    %c0_48 = arith.constant 0 : index
    %c0_49 = arith.constant 0 : index
    %158 = vector.load %arg24[%c0_48, %c0_49] : memref<32x16xf32, #tpu.memory_space<vmem>>, vector<32x8xf32>
    tpu.vector_store %arg24[%c0_48, %c0_49], %157 {strides = array<i32>} : memref<32x16xf32, #tpu.memory_space<vmem>>, vector<32x8xf32>,
    %c0_50 = arith.constant 0 : index
    %c0_51 = arith.constant 0 : index
    %159 = tpu.strided_load %arg24[%c0_50, %c0_51] {strides = array<i32: 2, 1>} : memref<32x16xf32, #tpu.memory_space<vmem>>, vector<16x8xf32>
    %c1_52 = arith.constant 1 : index
    %c0_53 = arith.constant 0 : index
    %160 = tpu.strided_load %arg24[%c1_52, %c0_53] {strides = array<i32: 2, 1>} : memref<32x16xf32, #tpu.memory_space<vmem>>, vector<16x8xf32>
    %161 = arith.maximumf %159, %160 : vector<16x8xf32>
    %c0_54 = arith.constant 0 : index
    %c0_55 = arith.constant 0 : index
    %162 = vector.load %arg10[%c0_54, %c0_55] : memref<56x8xf32, #tpu.memory_space<vmem>>, vector<56x8xf32>
    %c0_56 = arith.constant 0 : index
    %c0_57 = arith.constant 0 : index
    %163 = vector.load %arg11[%c0_56, %c0_57] : memref<1x8xf32, #tpu.memory_space<vmem>>, vector<1x8xf32>
    %cst_58 = arith.constant 0.000000e+00 : f32
    %164 = vector.broadcast %cst_58 : f32 to vector<3x8xf32>
    %165 = vector.extract_strided_slice %161 {offsets = [0, 0], sizes = [8, 8], strides = [1, 1]} : vector<16x8xf32> to vector<8x8xf32>
    %166 = tpu.concatenate %164, %165, %164 in 0 : vector<3x8xf32>, vector<8x8xf32>, vector<3x8xf32> -> vector<14x8xf32>
    %167 = vector.extract_strided_slice %166 {offsets = [0, 0], sizes = [8, 8], strides = [1, 1]} : vector<14x8xf32> to vector<8x8xf32>
    %168 = vector.extract_strided_slice %166 {offsets = [1, 0], sizes = [8, 8], strides = [1, 1]} : vector<14x8xf32> to vector<8x8xf32>
    %169 = vector.extract_strided_slice %166 {offsets = [2, 0], sizes = [8, 8], strides = [1, 1]} : vector<14x8xf32> to vector<8x8xf32>
    %170 = vector.extract_strided_slice %166 {offsets = [3, 0], sizes = [8, 8], strides = [1, 1]} : vector<14x8xf32> to vector<8x8xf32>
    %171 = vector.extract_strided_slice %166 {offsets = [4, 0], sizes = [8, 8], strides = [1, 1]} : vector<14x8xf32> to vector<8x8xf32>
    %172 = vector.extract_strided_slice %166 {offsets = [5, 0], sizes = [8, 8], strides = [1, 1]} : vector<14x8xf32> to vector<8x8xf32>
    %173 = vector.extract_strided_slice %166 {offsets = [6, 0], sizes = [8, 8], strides = [1, 1]} : vector<14x8xf32> to vector<8x8xf32>
    %174 = tpu.concatenate %167, %168, %169, %170, %171, %172, %173 in 1 : vector<8x8xf32>, vector<8x8xf32>, vector<8x8xf32>, vector<8x8xf32>, vector<8x8xf32>, vector<8x8xf32>, vector<8x8xf32> -> vector<8x56xf32>
    %175 = vector.extract_strided_slice %161 {offsets = [8, 0], sizes = [8, 8], strides = [1, 1]} : vector<16x8xf32> to vector<8x8xf32>
    %176 = tpu.concatenate %164, %175, %164 in 0 : vector<3x8xf32>, vector<8x8xf32>, vector<3x8xf32> -> vector<14x8xf32>
    %177 = vector.extract_strided_slice %176 {offsets = [0, 0], sizes = [8, 8], strides = [1, 1]} : vector<14x8xf32> to vector<8x8xf32>
    %178 = vector.extract_strided_slice %176 {offsets = [1, 0], sizes = [8, 8], strides = [1, 1]} : vector<14x8xf32> to vector<8x8xf32>
    %179 = vector.extract_strided_slice %176 {offsets = [2, 0], sizes = [8, 8], strides = [1, 1]} : vector<14x8xf32> to vector<8x8xf32>
    %180 = vector.extract_strided_slice %176 {offsets = [3, 0], sizes = [8, 8], strides = [1, 1]} : vector<14x8xf32> to vector<8x8xf32>
    %181 = vector.extract_strided_slice %176 {offsets = [4, 0], sizes = [8, 8], strides = [1, 1]} : vector<14x8xf32> to vector<8x8xf32>
    %182 = vector.extract_strided_slice %176 {offsets = [5, 0], sizes = [8, 8], strides = [1, 1]} : vector<14x8xf32> to vector<8x8xf32>
    %183 = vector.extract_strided_slice %176 {offsets = [6, 0], sizes = [8, 8], strides = [1, 1]} : vector<14x8xf32> to vector<8x8xf32>
    %184 = tpu.concatenate %177, %178, %179, %180, %181, %182, %183 in 1 : vector<8x8xf32>, vector<8x8xf32>, vector<8x8xf32>, vector<8x8xf32>, vector<8x8xf32>, vector<8x8xf32>, vector<8x8xf32> -> vector<8x56xf32>
    %185 = tpu.concatenate %174, %184 in 0 : vector<8x56xf32>, vector<8x56xf32> -> vector<16x56xf32>
    %cst_59 = arith.constant dense<0.000000e+00> : vector<16x8xf32>
    %186 = tpu.matmul %185, %162, %cst_59 {dimension_numbers = #tpu.dot_dimension_numbers<[1], [0], [0], [1], [0, 0, 1, 1], [], []>, precision = #tpu.contract_precision<fp32>} : vector<16x56xf32>, vector<56x8xf32>, vector<16x8xf32> -> vector<16x8xf32>
    %187 = vector.broadcast %163 : vector<1x8xf32> to vector<16x8xf32>
    %188 = arith.addf %186, %187 : vector<16x8xf32>
    %cst_60 = arith.constant 0.000000e+00 : f32
    %189 = vector.broadcast %cst_60 : f32 to vector<16x8xf32>
    %190 = arith.maximumf %188, %189 : vector<16x8xf32>
    %c0_61 = arith.constant 0 : index
    %c0_62 = arith.constant 0 : index
    %191 = vector.load %arg24[%c0_61, %c0_62] : memref<32x16xf32, #tpu.memory_space<vmem>>, vector<16x8xf32>
    tpu.vector_store %arg24[%c0_61, %c0_62], %190 {strides = array<i32>} : memref<32x16xf32, #tpu.memory_space<vmem>>, vector<16x8xf32>,
    %c0_63 = arith.constant 0 : index
    %c0_64 = arith.constant 0 : index
    %192 = tpu.strided_load %arg24[%c0_63, %c0_64] {strides = array<i32: 2, 1>} : memref<32x16xf32, #tpu.memory_space<vmem>>, vector<8x8xf32>
    %c1_65 = arith.constant 1 : index
    %c0_66 = arith.constant 0 : index
    %193 = tpu.strided_load %arg24[%c1_65, %c0_66] {strides = array<i32: 2, 1>} : memref<32x16xf32, #tpu.memory_space<vmem>>, vector<8x8xf32>
    %194 = arith.maximumf %192, %193 : vector<8x8xf32>
    %c0_67 = arith.constant 0 : index
    %c0_68 = arith.constant 0 : index
    %195 = vector.load %arg12[%c0_67, %c0_68] : memref<56x8xf32, #tpu.memory_space<vmem>>, vector<56x8xf32>
    %c0_69 = arith.constant 0 : index
    %c0_70 = arith.constant 0 : index
    %196 = vector.load %arg13[%c0_69, %c0_70] : memref<1x8xf32, #tpu.memory_space<vmem>>, vector<1x8xf32>
    %cst_71 = arith.constant 0.000000e+00 : f32
    %197 = vector.broadcast %cst_71 : f32 to vector<3x8xf32>
    %198 = vector.extract_strided_slice %194 {offsets = [0, 0], sizes = [4, 8], strides = [1, 1]} : vector<8x8xf32> to vector<4x8xf32>
    %199 = tpu.concatenate %197, %198, %197 in 0 : vector<3x8xf32>, vector<4x8xf32>, vector<3x8xf32> -> vector<10x8xf32>
    %200 = vector.extract_strided_slice %199 {offsets = [0, 0], sizes = [4, 8], strides = [1, 1]} : vector<10x8xf32> to vector<4x8xf32>
    %201 = vector.extract_strided_slice %199 {offsets = [1, 0], sizes = [4, 8], strides = [1, 1]} : vector<10x8xf32> to vector<4x8xf32>
    %202 = vector.extract_strided_slice %199 {offsets = [2, 0], sizes = [4, 8], strides = [1, 1]} : vector<10x8xf32> to vector<4x8xf32>
    %203 = vector.extract_strided_slice %199 {offsets = [3, 0], sizes = [4, 8], strides = [1, 1]} : vector<10x8xf32> to vector<4x8xf32>
    %204 = vector.extract_strided_slice %199 {offsets = [4, 0], sizes = [4, 8], strides = [1, 1]} : vector<10x8xf32> to vector<4x8xf32>
    %205 = vector.extract_strided_slice %199 {offsets = [5, 0], sizes = [4, 8], strides = [1, 1]} : vector<10x8xf32> to vector<4x8xf32>
    %206 = vector.extract_strided_slice %199 {offsets = [6, 0], sizes = [4, 8], strides = [1, 1]} : vector<10x8xf32> to vector<4x8xf32>
    %207 = tpu.concatenate %200, %201, %202, %203, %204, %205, %206 in 1 : vector<4x8xf32>, vector<4x8xf32>, vector<4x8xf32>, vector<4x8xf32>, vector<4x8xf32>, vector<4x8xf32>, vector<4x8xf32> -> vector<4x56xf32>
    %208 = vector.extract_strided_slice %194 {offsets = [4, 0], sizes = [4, 8], strides = [1, 1]} : vector<8x8xf32> to vector<4x8xf32>
    %209 = tpu.concatenate %197, %208, %197 in 0 : vector<3x8xf32>, vector<4x8xf32>, vector<3x8xf32> -> vector<10x8xf32>
    %210 = vector.extract_strided_slice %209 {offsets = [0, 0], sizes = [4, 8], strides = [1, 1]} : vector<10x8xf32> to vector<4x8xf32>
    %211 = vector.extract_strided_slice %209 {offsets = [1, 0], sizes = [4, 8], strides = [1, 1]} : vector<10x8xf32> to vector<4x8xf32>
    %212 = vector.extract_strided_slice %209 {offsets = [2, 0], sizes = [4, 8], strides = [1, 1]} : vector<10x8xf32> to vector<4x8xf32>
    %213 = vector.extract_strided_slice %209 {offsets = [3, 0], sizes = [4, 8], strides = [1, 1]} : vector<10x8xf32> to vector<4x8xf32>
    %214 = vector.extract_strided_slice %209 {offsets = [4, 0], sizes = [4, 8], strides = [1, 1]} : vector<10x8xf32> to vector<4x8xf32>
    %215 = vector.extract_strided_slice %209 {offsets = [5, 0], sizes = [4, 8], strides = [1, 1]} : vector<10x8xf32> to vector<4x8xf32>
    %216 = vector.extract_strided_slice %209 {offsets = [6, 0], sizes = [4, 8], strides = [1, 1]} : vector<10x8xf32> to vector<4x8xf32>
    %217 = tpu.concatenate %210, %211, %212, %213, %214, %215, %216 in 1 : vector<4x8xf32>, vector<4x8xf32>, vector<4x8xf32>, vector<4x8xf32>, vector<4x8xf32>, vector<4x8xf32>, vector<4x8xf32> -> vector<4x56xf32>
    %218 = tpu.concatenate %207, %217 in 0 : vector<4x56xf32>, vector<4x56xf32> -> vector<8x56xf32>
    %cst_72 = arith.constant dense<0.000000e+00> : vector<8x8xf32>
    %219 = tpu.matmul %218, %195, %cst_72 {dimension_numbers = #tpu.dot_dimension_numbers<[1], [0], [0], [1], [0, 0, 1, 1], [], []>, precision = #tpu.contract_precision<fp32>} : vector<8x56xf32>, vector<56x8xf32>, vector<8x8xf32> -> vector<8x8xf32>
    %220 = vector.broadcast %196 : vector<1x8xf32> to vector<8x8xf32>
    %221 = arith.addf %219, %220 : vector<8x8xf32>
    %cst_73 = arith.constant 0.000000e+00 : f32
    %222 = vector.broadcast %cst_73 : f32 to vector<8x8xf32>
    %223 = arith.maximumf %221, %222 : vector<8x8xf32>
    %c0_74 = arith.constant 0 : index
    %c0_75 = arith.constant 0 : index
    %224 = vector.load %arg24[%c0_74, %c0_75] : memref<32x16xf32, #tpu.memory_space<vmem>>, vector<8x8xf32>
    tpu.vector_store %arg24[%c0_74, %c0_75], %223 {strides = array<i32>} : memref<32x16xf32, #tpu.memory_space<vmem>>, vector<8x8xf32>,
    %c0_76 = arith.constant 0 : index
    %c0_77 = arith.constant 0 : index
    %225 = tpu.strided_load %arg24[%c0_76, %c0_77] {strides = array<i32: 2, 1>} : memref<32x16xf32, #tpu.memory_space<vmem>>, vector<4x8xf32>
    %c1_78 = arith.constant 1 : index
    %c0_79 = arith.constant 0 : index
    %226 = tpu.strided_load %arg24[%c1_78, %c0_79] {strides = array<i32: 2, 1>} : memref<32x16xf32, #tpu.memory_space<vmem>>, vector<4x8xf32>
    %227 = arith.maximumf %225, %226 : vector<4x8xf32>
    %c0_80 = arith.constant 0 : index
    %c0_81 = arith.constant 0 : index
    %228 = vector.load %arg14[%c0_80, %c0_81] : memref<16x16xf32, #tpu.memory_space<vmem>>, vector<16x16xf32>
    %cst_82 = arith.constant dense<0.000000e+00> : vector<4x16xf32>
    %229 = tpu.matmul %128, %228, %cst_82 {dimension_numbers = #tpu.dot_dimension_numbers<[1], [0], [0], [1], [0, 0, 1, 1], [], []>, precision = #tpu.contract_precision<fp32>} : vector<4x16xf32>, vector<16x16xf32>, vector<4x16xf32> -> vector<4x16xf32>
    %c0_83 = arith.constant 0 : index
    %c0_84 = arith.constant 0 : index
    %230 = vector.load %arg15[%c0_83, %c0_84] : memref<8x16xf32, #tpu.memory_space<vmem>>, vector<8x16xf32>
    %cst_85 = arith.constant dense<0.000000e+00> : vector<4x16xf32>
    %231 = tpu.matmul %227, %230, %cst_85 {dimension_numbers = #tpu.dot_dimension_numbers<[1], [0], [0], [1], [0, 0, 1, 1], [], []>, precision = #tpu.contract_precision<fp32>} : vector<4x8xf32>, vector<8x16xf32>, vector<4x16xf32> -> vector<4x16xf32>
    %232 = arith.addf %229, %231 : vector<4x16xf32>
    %c0_86 = arith.constant 0 : index
    %c0_87 = arith.constant 0 : index
    %233 = vector.load %arg16[%c0_86, %c0_87] : memref<1x16xf32, #tpu.memory_space<vmem>>, vector<1x16xf32>
    %234 = vector.broadcast %233 : vector<1x16xf32> to vector<4x16xf32>
    %235 = arith.addf %232, %234 : vector<4x16xf32>
    %236 = vector.extract_strided_slice %235 {offsets = [0, 0], sizes = [1, 16], strides = [1, 1]} : vector<4x16xf32> to vector<1x16xf32>
    %237 = vector.extract_strided_slice %235 {offsets = [1, 0], sizes = [1, 16], strides = [1, 1]} : vector<4x16xf32> to vector<1x16xf32>
    %238 = tpu.concatenate %236, %237 in 1 : vector<1x16xf32>, vector<1x16xf32> -> vector<1x32xf32>
    %239 = vector.extract_strided_slice %235 {offsets = [2, 0], sizes = [1, 16], strides = [1, 1]} : vector<4x16xf32> to vector<1x16xf32>
    %240 = vector.extract_strided_slice %235 {offsets = [3, 0], sizes = [1, 16], strides = [1, 1]} : vector<4x16xf32> to vector<1x16xf32>
    %241 = tpu.concatenate %239, %240 in 1 : vector<1x16xf32>, vector<1x16xf32> -> vector<1x32xf32>
    %242 = tpu.concatenate %238, %241 in 0 : vector<1x32xf32>, vector<1x32xf32> -> vector<2x32xf32>
    %c0_88 = arith.constant 0 : index
    %c0_89 = arith.constant 0 : index
    %243 = vector.load %arg17[%c0_88, %c0_89] : memref<32x32xf32, #tpu.memory_space<vmem>>, vector<32x32xf32>
    %cst_90 = arith.constant dense<0.000000e+00> : vector<2x32xf32>
    %244 = tpu.matmul %242, %243, %cst_90 {dimension_numbers = #tpu.dot_dimension_numbers<[1], [0], [0], [1], [0, 0, 1, 1], [], []>, precision = #tpu.contract_precision<fp32>} : vector<2x32xf32>, vector<32x32xf32>, vector<2x32xf32> -> vector<2x32xf32>
    %c0_91 = arith.constant 0 : index
    %c0_92 = arith.constant 0 : index
    %245 = vector.load %arg18[%c0_91, %c0_92] : memref<1x32xf32, #tpu.memory_space<vmem>>, vector<1x32xf32>
    %246 = vector.broadcast %245 : vector<1x32xf32> to vector<2x32xf32>
    %247 = arith.addf %244, %246 : vector<2x32xf32>
    %cst_93 = arith.constant 0.000000e+00 : f32
    %248 = vector.broadcast %cst_93 : f32 to vector<2x32xf32>
    %249 = arith.maximumf %247, %248 : vector<2x32xf32>
    %c0_94 = arith.constant 0 : index
    %c0_95 = arith.constant 0 : index
    %250 = vector.load %arg19[%c0_94, %c0_95] : memref<32x16xf32, #tpu.memory_space<vmem>>, vector<32x16xf32>
    %cst_96 = arith.constant dense<0.000000e+00> : vector<2x16xf32>
    %251 = tpu.matmul %249, %250, %cst_96 {dimension_numbers = #tpu.dot_dimension_numbers<[1], [0], [0], [1], [0, 0, 1, 1], [], []>, precision = #tpu.contract_precision<fp32>} : vector<2x32xf32>, vector<32x16xf32>, vector<2x16xf32> -> vector<2x16xf32>
    %c0_97 = arith.constant 0 : index
    %c0_98 = arith.constant 0 : index
    %252 = vector.load %arg20[%c0_97, %c0_98] : memref<1x16xf32, #tpu.memory_space<vmem>>, vector<1x16xf32>
    %253 = vector.broadcast %252 : vector<1x16xf32> to vector<2x16xf32>
    %254 = arith.addf %251, %253 : vector<2x16xf32>
    %cst_99 = arith.constant 0.000000e+00 : f32
    %255 = vector.broadcast %cst_99 : f32 to vector<2x16xf32>
    %256 = arith.maximumf %254, %255 : vector<2x16xf32>
    %c0_100 = arith.constant 0 : index
    %c0_101 = arith.constant 0 : index
    %257 = vector.load %arg21[%c0_100, %c0_101] : memref<16x3xf32, #tpu.memory_space<vmem>>, vector<16x3xf32>
    %cst_102 = arith.constant dense<0.000000e+00> : vector<2x3xf32>
    %258 = tpu.matmul %256, %257, %cst_102 {dimension_numbers = #tpu.dot_dimension_numbers<[1], [0], [0], [1], [0, 0, 1, 1], [], []>, precision = #tpu.contract_precision<fp32>} : vector<2x16xf32>, vector<16x3xf32>, vector<2x3xf32> -> vector<2x3xf32>
    %c0_103 = arith.constant 0 : index
    %c0_104 = arith.constant 0 : index
    %259 = vector.load %arg22[%c0_103, %c0_104] : memref<1x3xf32, #tpu.memory_space<vmem>>, vector<1x3xf32>
    %260 = vector.broadcast %259 : vector<1x3xf32> to vector<2x3xf32>
    %261 = arith.addf %258, %260 : vector<2x3xf32>
    %c0_105 = arith.constant 0 : index
    %c0_106 = arith.constant 0 : index
    %262 = vector.load %arg23[%c0_105, %c0_106] : memref<2x3xf32, #tpu.memory_space<vmem>>, vector<2x3xf32>
    tpu.vector_store %arg23[%c0_105, %c0_106], %261 {strides = array<i32>} : memref<2x3xf32, #tpu.memory_space<vmem>>, vector<2x3xf32>,
    return
  }
}

</mosaic_0001>

<llo_original>
// kernel: tpu_custom_call.1
$region0: #{tpu_custom_call.1}
  #allocation0 [shape = 'u32[]', space=smem, size = 0x4, offset = 0x4, fixed_abs, tag = 'smem constant byte address 0x4 - core index']
  #allocation1 [shape = 'u32[144,128]{1,0:T(1,128)}', space=vmem, size = 0x12000, scoped, tag = 'internal scratch']
  #allocation2 [shape = 'f32[32,16]{1,0:T(8,128)}', space=vmem, size = 0x4000, scoped, tag = 'scratch operand']
  %s0 = inlined_call_operand.vmem [shape: f32[32,4], index: 0, kind: input, shape index: {}]
  %s1 = inlined_call_operand.vmem [shape: f32[32,4], index: 1, kind: input, shape index: {}]
  %s2 = inlined_call_operand.vmem [shape: f32[44,8], index: 2, kind: input, shape index: {}]
  %s3 = inlined_call_operand.vmem [shape: f32[1,8], index: 3, kind: input, shape index: {}]
  %s4 = inlined_call_operand.vmem [shape: f32[88,8], index: 4, kind: input, shape index: {}]
  %s5 = inlined_call_operand.vmem [shape: f32[1,8], index: 5, kind: input, shape index: {}]
  %s6 = inlined_call_operand.vmem [shape: f32[88,16], index: 6, kind: input, shape index: {}]
  %s7 = inlined_call_operand.vmem [shape: f32[1,16], index: 7, kind: input, shape index: {}]
  %s8 = inlined_call_operand.vmem [shape: f32[28,8], index: 8, kind: input, shape index: {}]
  %s9 = inlined_call_operand.vmem [shape: f32[1,8], index: 9, kind: input, shape index: {}]
  %s10 = inlined_call_operand.vmem [shape: f32[56,8], index: 10, kind: input, shape index: {}]
  %s11 = inlined_call_operand.vmem [shape: f32[1,8], index: 11, kind: input, shape index: {}]
  %s12 = inlined_call_operand.vmem [shape: f32[56,8], index: 12, kind: input, shape index: {}]
  %s13 = inlined_call_operand.vmem [shape: f32[1,8], index: 13, kind: input, shape index: {}]
  %s14 = inlined_call_operand.vmem [shape: f32[16,16], index: 14, kind: input, shape index: {}]
  %s15 = inlined_call_operand.vmem [shape: f32[8,16], index: 15, kind: input, shape index: {}]
  %s16 = inlined_call_operand.vmem [shape: f32[1,16], index: 16, kind: input, shape index: {}]
  %s17 = inlined_call_operand.vmem [shape: f32[32,32], index: 17, kind: input, shape index: {}]
  %s18 = inlined_call_operand.vmem [shape: f32[1,32], index: 18, kind: input, shape index: {}]
  %s19 = inlined_call_operand.vmem [shape: f32[32,16], index: 19, kind: input, shape index: {}]
  %s20 = inlined_call_operand.vmem [shape: f32[1,16], index: 20, kind: input, shape index: {}]
  %s21 = inlined_call_operand.vmem [shape: f32[16,3], index: 21, kind: input, shape index: {}]
  %s22 = inlined_call_operand.vmem [shape: f32[1,3], index: 22, kind: input, shape index: {}]
  %s23 = inlined_call_operand.hbm [shape: f32[2,3], index: 23, kind: output, shape index: {}]
  %s24 = sld [smem:[#allocation0]]
  $region102: #{tpu_custom_call.1} parent=0
    _
  %s26 = ssub.s32 1, %s24
  %s27 = scalar_select 0, %s26, %s24
  $region1: #{tpu_custom_call.1} parent=0
    #allocation3 [shape = 'u8[1024]{0}', space=vmem, size = 0x400, scoped, tag = 'output window, operand 0, single buffered']
    #allocation4 [shape = 's32[1]{0}', space=sflag, size = 0x4, scoped, tag = 'scoped memory for tpu_custom_call.1']
    %28 = vsyncpa [#allocation4], 0
    // Predicated region
    $region2: #{tpu_custom_call.1} parent=1 // pred_check
      _
    $region3: #{tpu_custom_call.1} parent=1 // pred_check_branch
      %30 = sbr.rel (0) target = $region5
    $region4: #{tpu_custom_call.1} parent=1 // pred_region
      _
    $region5: #{tpu_custom_call.1} parent=1 // pred_fallthru
      _
    // Predicated region
    $region6: #{tpu_custom_call.1} parent=1 // pred_check
      _
    $region7: #{tpu_custom_call.1} parent=1 // pred_check_branch
      %32 = sbr.rel (0) target = $region9
    $region8: #{tpu_custom_call.1} parent=1 // pred_region
      _
    $region9: #{tpu_custom_call.1} parent=1 // pred_fallthru
      _
    // Predicated region
    $region10: #{tpu_custom_call.1} parent=1 // pred_check
      _
    $region11: #{tpu_custom_call.1} parent=1 // pred_check_branch
      %34 = sbr.rel (0) target = $region13
    $region12: #{tpu_custom_call.1} parent=1 // pred_region
      _
    $region13: #{tpu_custom_call.1} parent=1 // pred_fallthru
      _
    // Predicated region
    $region14: #{tpu_custom_call.1} parent=1 // pred_check
      _
    $region15: #{tpu_custom_call.1} parent=1 // pred_check_branch
      %36 = sbr.rel (0) target = $region17
    $region16: #{tpu_custom_call.1} parent=1 // pred_region
      _
    $region17: #{tpu_custom_call.1} parent=1 // pred_fallthru
      _
    // Predicated region
    $region18: #{tpu_custom_call.1} parent=1 // pred_check
      _
    $region19: #{tpu_custom_call.1} parent=1 // pred_check_branch
      %38 = sbr.rel (0) target = $region21
    $region20: #{tpu_custom_call.1} parent=1 // pred_region
      _
    $region21: #{tpu_custom_call.1} parent=1 // pred_fallthru
      _
    // Predicated region
    $region22: #{tpu_custom_call.1} parent=1 // pred_check
      _
    $region23: #{tpu_custom_call.1} parent=1 // pred_check_branch
      %40 = sbr.rel (0) target = $region25
    $region24: #{tpu_custom_call.1} parent=1 // pred_region
      _
    $region25: #{tpu_custom_call.1} parent=1 // pred_fallthru
      _
    // Predicated region
    $region26: #{tpu_custom_call.1} parent=1 // pred_check
      _
    $region27: #{tpu_custom_call.1} parent=1 // pred_check_branch
      %42 = sbr.rel (0) target = $region29
    $region28: #{tpu_custom_call.1} parent=1 // pred_region
      _
    $region29: #{tpu_custom_call.1} parent=1 // pred_fallthru
      _
    // Predicated region
    $region30: #{tpu_custom_call.1} parent=1 // pred_check
      _
    $region31: #{tpu_custom_call.1} parent=1 // pred_check_branch
      %44 = sbr.rel (0) target = $region33
    $region32: #{tpu_custom_call.1} parent=1 // pred_region
      _
    $region33: #{tpu_custom_call.1} parent=1 // pred_fallthru
      _
    // Predicated region
    $region34: #{tpu_custom_call.1} parent=1 // pred_check
      _
    $region35: #{tpu_custom_call.1} parent=1 // pred_check_branch
      %46 = sbr.rel (0) target = $region37
    $region36: #{tpu_custom_call.1} parent=1 // pred_region
      _
    $region37: #{tpu_custom_call.1} parent=1 // pred_fallthru
      _
    // Predicated region
    $region38: #{tpu_custom_call.1} parent=1 // pred_check
      _
    $region39: #{tpu_custom_call.1} parent=1 // pred_check_branch
      %48 = sbr.rel (0) target = $region41
    $region40: #{tpu_custom_call.1} parent=1 // pred_region
      _
    $region41: #{tpu_custom_call.1} parent=1 // pred_fallthru
      _
    // Predicated region
    $region42: #{tpu_custom_call.1} parent=1 // pred_check
      _
    $region43: #{tpu_custom_call.1} parent=1 // pred_check_branch
      %50 = sbr.rel (0) target = $region45
    $region44: #{tpu_custom_call.1} parent=1 // pred_region
      _
    $region45: #{tpu_custom_call.1} parent=1 // pred_fallthru
      _
    // Predicated region
    $region46: #{tpu_custom_call.1} parent=1 // pred_check
      _
    $region47: #{tpu_custom_call.1} parent=1 // pred_check_branch
      %52 = sbr.rel (0) target = $region49
    $region48: #{tpu_custom_call.1} parent=1 // pred_region
      _
    $region49: #{tpu_custom_call.1} parent=1 // pred_fallthru
      _
    // Predicated region
    $region50: #{tpu_custom_call.1} parent=1 // pred_check
      _
    $region51: #{tpu_custom_call.1} parent=1 // pred_check_branch
      %54 = sbr.rel (0) target = $region53
    $region52: #{tpu_custom_call.1} parent=1 // pred_region
      _
    $region53: #{tpu_custom_call.1} parent=1 // pred_fallthru
      _
    // Predicated region
    $region54: #{tpu_custom_call.1} parent=1 // pred_check
      _
    $region55: #{tpu_custom_call.1} parent=1 // pred_check_branch
      %56 = sbr.rel (0) target = $region57
    $region56: #{tpu_custom_call.1} parent=1 // pred_region
      _
    $region57: #{tpu_custom_call.1} parent=1 // pred_fallthru
      _
    // Predicated region
    $region58: #{tpu_custom_call.1} parent=1 // pred_check
      _
    $region59: #{tpu_custom_call.1} parent=1 // pred_check_branch
      %58 = sbr.rel (0) target = $region61
    $region60: #{tpu_custom_call.1} parent=1 // pred_region
      _
    $region61: #{tpu_custom_call.1} parent=1 // pred_fallthru
      _
    // Predicated region
    $region62: #{tpu_custom_call.1} parent=1 // pred_check
      _
    $region63: #{tpu_custom_call.1} parent=1 // pred_check_branch
      %60 = sbr.rel (0) target = $region65
    $region64: #{tpu_custom_call.1} parent=1 // pred_region
      _
    $region65: #{tpu_custom_call.1} parent=1 // pred_fallthru
      _
    // Predicated region
    $region66: #{tpu_custom_call.1} parent=1 // pred_check
      _
    $region67: #{tpu_custom_call.1} parent=1 // pred_check_branch
      %62 = sbr.rel (0) target = $region69
    $region68: #{tpu_custom_call.1} parent=1 // pred_region
      _
    $region69: #{tpu_custom_call.1} parent=1 // pred_fallthru
      _
    // Predicated region
    $region70: #{tpu_custom_call.1} parent=1 // pred_check
      _
    $region71: #{tpu_custom_call.1} parent=1 // pred_check_branch
      %64 = sbr.rel (0) target = $region73
    $region72: #{tpu_custom_call.1} parent=1 // pred_region
      _
    $region73: #{tpu_custom_call.1} parent=1 // pred_fallthru
      _
    // Predicated region
    $region74: #{tpu_custom_call.1} parent=1 // pred_check
      _
    $region75: #{tpu_custom_call.1} parent=1 // pred_check_branch
      %66 = sbr.rel (0) target = $region77
    $region76: #{tpu_custom_call.1} parent=1 // pred_region
      _
    $region77: #{tpu_custom_call.1} parent=1 // pred_fallthru
      _
    // Predicated region
    $region78: #{tpu_custom_call.1} parent=1 // pred_check
      _
    $region79: #{tpu_custom_call.1} parent=1 // pred_check_branch
      %68 = sbr.rel (0) target = $region81
    $region80: #{tpu_custom_call.1} parent=1 // pred_region
      _
    $region81: #{tpu_custom_call.1} parent=1 // pred_fallthru
      _
    // Predicated region
    $region82: #{tpu_custom_call.1} parent=1 // pred_check
      _
    $region83: #{tpu_custom_call.1} parent=1 // pred_check_branch
      %70 = sbr.rel (0) target = $region85
    $region84: #{tpu_custom_call.1} parent=1 // pred_region
      _
    $region85: #{tpu_custom_call.1} parent=1 // pred_fallthru
      _
    // Predicated region
    $region86: #{tpu_custom_call.1} parent=1 // pred_check
      _
    $region87: #{tpu_custom_call.1} parent=1 // pred_check_branch
      %72 = sbr.rel (0) target = $region89
    $region88: #{tpu_custom_call.1} parent=1 // pred_region
      _
    $region89: #{tpu_custom_call.1} parent=1 // pred_fallthru
      _
    // Predicated region
    $region90: #{tpu_custom_call.1} parent=1 // pred_check
      _
    $region91: #{tpu_custom_call.1} parent=1 // pred_check_branch
      %74 = sbr.rel (0) target = $region93
    $region92: #{tpu_custom_call.1} parent=1 // pred_region
      _
    $region93: #{tpu_custom_call.1} parent=1 // pred_fallthru
      _
    %v75 = vld [vmem:[%s0] sm:$0xff]
    %v76 = vld [vmem:[%s0 + $0x8] sm:$0xff]
    %v77 = vld [vmem:[%s0 + $0x10] sm:$0xff]
    %v78 = vld [vmem:[%s0 + $0x18] sm:$0xff]
    %v79 = vld [vmem:[%s1] sm:$0xff]
    %v80 = vld [vmem:[%s1 + $0x8] sm:$0xff]
    %v81 = vld [vmem:[%s1 + $0x10] sm:$0xff]
    %v82 = vld [vmem:[%s1 + $0x18] sm:$0xff]
    %v83 = vsub.f32 1.0, %v79
    %v84 = vsub.f32 1.0, %v80
    %v85 = vsub.f32 1.0, %v81
    %v86 = vsub.f32 1.0, %v82
    %v87 = vmul.f32 %v75, %v83
    %v88 = vmul.f32 %v76, %v84
    %v89 = vmul.f32 %v77, %v85
    %v90 = vmul.f32 %v78, %v86
    %v91 = vmul.f32 %v75, %v79
    %v92 = vmul.f32 %v76, %v80
    %v93 = vmul.f32 %v77, %v81
    %v94 = vmul.f32 %v78, %v82
    %v95 = vld [vmem:[%s2] sm:$0xff]
    %v96 = vld [vmem:[%s2 + $0x8] sm:$0xff]
    %v97 = vld [vmem:[%s2 + $0x10] sm:$0xff]
    %v98 = vld [vmem:[%s2 + $0x18] sm:$0xff]
    %v99 = vld [vmem:[%s2 + $0x20] sm:$0xff]
    %v100 = vld [vmem:[%s2 + $0x28] sm:$0xf]
    %v101 = vld [vmem:[%s3] sm:$0x1]
    %vm104 = vcmask 1044480
    %v105 = vrot.slane %v87, 3
    %v106 = vrot.slane %v88, 3
    %v107 = vsel %vm104, %v105, %v106
    %v111 = vsel %vm104, 0.0, %v105
    %v112 = vsel %vm104, %v106, 0.0
    %vm115 = vcmask 1046528
    %v116 = vrot.slane %v111, 1
    %v117 = vrot.slane %v107, 1
    %v118 = vsel %vm115, %v116, %v117
    %v119 = vrot.slane %v112, 1
    %v120 = vsel %vm115, %v117, %v119
    %121 = vrot.lane.b32.xlu0 %v118, 4
    %v122 = vpop.permute.xlu0 %121
    %123 = vrot.lane.b32.xlu0 %v120, 4
    %v124 = vpop.permute.xlu0 %123
    %vm127 = vcmask 1045504
    %v128 = vrot.slane %v111, 2
    %v129 = vrot.slane %v107, 2
    %v130 = vsel %vm127, %v128, %v129
    %v131 = vrot.slane %v112, 2
    %v132 = vsel %vm127, %v129, %v131
    %133 = vrot.lane.b32.xlu0 %v130, 8
    %v134 = vpop.permute.xlu0 %133
    %135 = vrot.lane.b32.xlu0 %v132, 8
    %v136 = vpop.permute.xlu0 %135
    %v139 = vrot.slane %v111, 3
    %v140 = vrot.slane %v107, 3
    %v141 = vsel %vm104, %v139, %v140
    %v142 = vrot.slane %v112, 3
    %v143 = vsel %vm104, %v140, %v142
    %144 = vrot.lane.b32.xlu0 %v141, 12
    %v145 = vpop.permute.xlu0 %144
    %146 = vrot.lane.b32.xlu0 %v143, 12
    %v147 = vpop.permute.xlu0 %146
    %vm150 = vcmask 1043456
    %v151 = vrot.slane %v111, 4
    %v152 = vrot.slane %v107, 4
    %v153 = vsel %vm150, %v151, %v152
    %v154 = vrot.slane %v112, 4
    %v155 = vsel %vm150, %v152, %v154
    %156 = vrot.lane.b32.xlu0 %v153, 16
    %v157 = vpop.permute.xlu0 %156
    %158 = vrot.lane.b32.xlu0 %v155, 16
    %v159 = vpop.permute.xlu0 %158
    %vm162 = vcmask 1042432
    %v163 = vrot.slane %v111, 5
    %v164 = vrot.slane %v107, 5
    %v165 = vsel %vm162, %v163, %v164
    %v166 = vrot.slane %v112, 5
    %v167 = vsel %vm162, %v164, %v166
    %168 = vrot.lane.b32.xlu0 %v165, 20
    %v169 = vpop.permute.xlu0 %168
    %170 = vrot.lane.b32.xlu0 %v167, 20
    %v171 = vpop.permute.xlu0 %170
    %vm174 = vcmask 1041408
    %v175 = vrot.slane %v111, 6
    %v176 = vrot.slane %v107, 6
    %v177 = vsel %vm174, %v175, %v176
    %v178 = vrot.slane %v112, 6
    %v179 = vsel %vm174, %v176, %v178
    %180 = vrot.lane.b32.xlu0 %v177, 24
    %v181 = vpop.permute.xlu0 %180
    %182 = vrot.lane.b32.xlu0 %v179, 24
    %v183 = vpop.permute.xlu0 %182
    %vm186 = vcmask 1040384
    %v187 = vrot.slane %v111, 7
    %v188 = vrot.slane %v107, 7
    %v189 = vsel %vm186, %v187, %v188
    %v190 = vrot.slane %v112, 7
    %v191 = vsel %vm186, %v188, %v190
    %192 = vrot.lane.b32.xlu0 %v189, 28
    %v193 = vpop.permute.xlu0 %192
    %194 = vrot.lane.b32.xlu0 %v191, 28
    %v195 = vpop.permute.xlu0 %194
    %198 = vrot.lane.b32.xlu0 %v107, 32
    %v199 = vpop.permute.xlu0 %198
    %200 = vrot.lane.b32.xlu0 %v112, 32
    %v201 = vpop.permute.xlu0 %200
    %v205 = vrot.slane 0.0, 1
    %v206 = vsel %vm115, %v119, %v205
    %207 = vrot.lane.b32.xlu0 %v120, 36
    %v208 = vpop.permute.xlu0 %207
    %209 = vrot.lane.b32.xlu0 %v206, 36
    %v210 = vpop.permute.xlu0 %209
    %v213 = vrot.slane 0.0, 2
    %v214 = vsel %vm127, %v131, %v213
    %215 = vrot.lane.b32.xlu0 %v132, 40
    %v216 = vpop.permute.xlu0 %215
    %217 = vrot.lane.b32.xlu0 %v214, 40
    %v218 = vpop.permute.xlu0 %217
    %vm221 = vcmask 31744
    %v222 = vsel %vm221, %v111, %v122
    %v223 = vsel %vm221, %v107, %v124
    %vm224 = vcmask 64512
    %v225 = vsel %vm224, %v222, %v134
    %v226 = vsel %vm224, %v223, %v136
    %vm227 = vcmask 97280
    %v228 = vsel %vm227, %v225, %v145
    %v229 = vsel %vm227, %v226, %v147
    %vm230 = vcmask 130048
    %v231 = vsel %vm230, %v228, %v157
    %v232 = vsel %vm230, %v229, %v159
    %vm233 = vcmask 162816
    %v234 = vsel %vm233, %v231, %v169
    %v235 = vsel %vm233, %v232, %v171
    %vm236 = vcmask 195584
    %v237 = vsel %vm236, %v234, %v181
    %v238 = vsel %vm236, %v235, %v183
    %vm239 = vcmask 228352
    %v240 = vsel %vm239, %v237, %v193
    %v241 = vsel %vm239, %v238, %v195
    %vm242 = vcmask 261120
    %v243 = vsel %vm242, %v240, %v199
    %v244 = vsel %vm242, %v241, %v201
    %vm245 = vcmask 293888
    %v246 = vsel %vm245, %v243, %v208
    %v247 = vsel %vm245, %v244, %v210
    %vm248 = vcmask 326656
    %v249 = vsel %vm248, %v246, %v216
    %v250 = vsel %vm248, %v247, %v218
    %v253 = vrot.slane %v89, 3
    %v254 = vrot.slane %v90, 3
    %v255 = vsel %vm104, %v253, %v254
    %v259 = vsel %vm104, 0.0, %v253
    %v260 = vsel %vm104, %v254, 0.0
    %v263 = vrot.slane %v259, 1
    %v264 = vrot.slane %v255, 1
    %v265 = vsel %vm115, %v263, %v264
    %v266 = vrot.slane %v260, 1
    %v267 = vsel %vm115, %v264, %v266
    %268 = vrot.lane.b32.xlu0 %v265, 4
    %v269 = vpop.permute.xlu0 %268
    %270 = vrot.lane.b32.xlu0 %v267, 4
    %v271 = vpop.permute.xlu0 %270
    %v274 = vrot.slane %v259, 2
    %v275 = vrot.slane %v255, 2
    %v276 = vsel %vm127, %v274, %v275
    %v277 = vrot.slane %v260, 2
    %v278 = vsel %vm127, %v275, %v277
    %279 = vrot.lane.b32.xlu0 %v276, 8
    %v280 = vpop.permute.xlu0 %279
    %281 = vrot.lane.b32.xlu0 %v278, 8
    %v282 = vpop.permute.xlu0 %281
    %v285 = vrot.slane %v259, 3
    %v286 = vrot.slane %v255, 3
    %v287 = vsel %vm104, %v285, %v286
    %v288 = vrot.slane %v260, 3
    %v289 = vsel %vm104, %v286, %v288
    %290 = vrot.lane.b32.xlu0 %v287, 12
    %v291 = vpop.permute.xlu0 %290
    %292 = vrot.lane.b32.xlu0 %v289, 12
    %v293 = vpop.permute.xlu0 %292
    %v296 = vrot.slane %v259, 4
    %v297 = vrot.slane %v255, 4
    %v298 = vsel %vm150, %v296, %v297
    %v299 = vrot.slane %v260, 4
    %v300 = vsel %vm150, %v297, %v299
    %301 = vrot.lane.b32.xlu0 %v298, 16
    %v302 = vpop.permute.xlu0 %301
    %303 = vrot.lane.b32.xlu0 %v300, 16
    %v304 = vpop.permute.xlu0 %303
    %v307 = vrot.slane %v259, 5
    %v308 = vrot.slane %v255, 5
    %v309 = vsel %vm162, %v307, %v308
    %v310 = vrot.slane %v260, 5
    %v311 = vsel %vm162, %v308, %v310
    %312 = vrot.lane.b32.xlu0 %v309, 20
    %v313 = vpop.permute.xlu0 %312
    %314 = vrot.lane.b32.xlu0 %v311, 20
    %v315 = vpop.permute.xlu0 %314
    %v318 = vrot.slane %v259, 6
    %v319 = vrot.slane %v255, 6
    %v320 = vsel %vm174, %v318, %v319
    %v321 = vrot.slane %v260, 6
    %v322 = vsel %vm174, %v319, %v321
    %323 = vrot.lane.b32.xlu0 %v320, 24
    %v324 = vpop.permute.xlu0 %323
    %325 = vrot.lane.b32.xlu0 %v322, 24
    %v326 = vpop.permute.xlu0 %325
    %v329 = vrot.slane %v259, 7
    %v330 = vrot.slane %v255, 7
    %v331 = vsel %vm186, %v329, %v330
    %v332 = vrot.slane %v260, 7
    %v333 = vsel %vm186, %v330, %v332
    %334 = vrot.lane.b32.xlu0 %v331, 28
    %v335 = vpop.permute.xlu0 %334
    %336 = vrot.lane.b32.xlu0 %v333, 28
    %v337 = vpop.permute.xlu0 %336
    %340 = vrot.lane.b32.xlu0 %v255, 32
    %v341 = vpop.permute.xlu0 %340
    %342 = vrot.lane.b32.xlu0 %v260, 32
    %v343 = vpop.permute.xlu0 %342
    %v346 = vsel %vm115, %v266, %v205
    %347 = vrot.lane.b32.xlu0 %v267, 36
    %v348 = vpop.permute.xlu0 %347
    %349 = vrot.lane.b32.xlu0 %v346, 36
    %v350 = vpop.permute.xlu0 %349
    %v353 = vsel %vm127, %v277, %v213
    %354 = vrot.lane.b32.xlu0 %v278, 40
    %v355 = vpop.permute.xlu0 %354
    %356 = vrot.lane.b32.xlu0 %v353, 40
    %v357 = vpop.permute.xlu0 %356
    %v360 = vsel %vm221, %v259, %v269
    %v361 = vsel %vm221, %v255, %v271
    %v362 = vsel %vm224, %v360, %v280
    %v363 = vsel %vm224, %v361, %v282
    %v364 = vsel %vm227, %v362, %v291
    %v365 = vsel %vm227, %v363, %v293
    %v366 = vsel %vm230, %v364, %v302
    %v367 = vsel %vm230, %v365, %v304
    %v368 = vsel %vm233, %v366, %v313
    %v369 = vsel %vm233, %v367, %v315
    %v370 = vsel %vm236, %v368, %v324
    %v371 = vsel %vm236, %v369, %v326
    %v372 = vsel %vm239, %v370, %v335
    %v373 = vsel %vm239, %v371, %v337
    %v374 = vsel %vm242, %v372, %v341
    %v375 = vsel %vm242, %v373, %v343
    %v376 = vsel %vm245, %v374, %v348
    %v377 = vsel %vm245, %v375, %v350
    %v378 = vsel %vm248, %v376, %v355
    %v379 = vsel %vm248, %v377, %v357
    %v381 = vlaneseq
    %v382 = vshrl.u32 %v381, 7
    %v383 = vsub.s32 0, %v382
    %v384 = vrot.slane %v101, %v383
    %vm386 = vcmask 359424
    %v388 = vsel %vm386, %v249, 0
    %v391 = vsel %vm386, %v250, 0
    %v394 = vsel %vm386, %v378, 0
    %v397 = vsel %vm386, %v379, 0
    %v400 = vsel %vm150, %v100, 0
    %402 = vmatprep.subr.mxu0 0.0
    %v403 = vand.u32 %v95, 4294901760
    %404 = vmatpush1.msra.mxu0 %v403
    %405 = vmatprep.subr.mxu0 0.0
    %v406 = vand.u32 %v96, 4294901760
    %407 = vmatpush1.msra.mxu0 %v406
    %408 = vmatprep.subr.mxu0 0.0
    %v409 = vand.u32 %v97, 4294901760
    %410 = vmatpush1.msra.mxu0 %v409
    %411 = vmatprep.subr.mxu0 0.0
    %v412 = vand.u32 %v98, 4294901760
    %413 = vmatpush1.msra.mxu0 %v412
    %414 = vmatprep.subr.mxu0 0.0
    %v415 = vand.u32 %v99, 4294901760
    %416 = vmatpush1.msra.mxu0 %v415
    %417 = vmatprep.subr.mxu0 0.0
    %v418 = vand.u32 %v400, 4294901760
    %419 = vmatpush1.msra.mxu0 %v418
    %420 = vmatprep.subr.mxu0 0.0
    %421 = vmatpush1.msra.mxu0 0.0
    %422 = vmatprep.subr.mxu0 0.0
    %423 = vmatpush1.msra.mxu0 0.0
    %424 = vmatprep.subr.mxu0 0.0
    %425 = vmatpush1.msra.mxu0 0.0
    %426 = vmatprep.subr.mxu0 0.0
    %427 = vmatpush1.msra.mxu0 0.0
    %428 = vmatprep.subr.mxu0 0.0
    %429 = vmatpush1.msra.mxu0 0.0
    %430 = vmatprep.subr.mxu0 0.0
    %431 = vmatpush1.msra.mxu0 0.0
    %432 = vmatprep.subr.mxu0 0.0
    %433 = vmatpush1.msra.mxu0 0.0
    %434 = vmatprep.subr.mxu0 0.0
    %435 = vmatpush1.msra.mxu0 0.0
    %436 = vmatprep.subr.mxu0 0.0
    %437 = vmatpush1.msra.mxu0 0.0
    %438 = vmatprep.subr.mxu0 0.0
    %439 = vmatpush1.msra.mxu0 0.0
    %440 = vmatprep.subr.mxu0 0.0
    %441 = vmatpush1.msra.mxu0 0.0
    %442 = vmatprep.subr.mxu0 0.0
    %443 = vmatpush1.msra.mxu0 0.0
    %444 = vmatprep.subr.mxu0 0.0
    %445 = vmatpush1.msra.mxu0 0.0
    %446 = vmatprep.subr.mxu0 0.0
    %447 = vmatpush1.msra.mxu0 0.0
    %448 = vmatprep.subr.mxu0 0.0
    %449 = vmatpush1.msra.mxu0 0.0
    %450 = vmatprep.subr.mxu0 0.0
    %451 = vmatpush1.msra.mxu0 0.0
    %452 = vmatprep.subr.mxu0 0.0
    %453 = vmatpush1.msra.mxu0 0.0
    %454 = vmatprep.subr.mxu0 0.0
    %455 = vmatpush1.msra.mxu0 0.0
    %456 = vmatprep.subr.mxu0 0.0
    %457 = vmatpush1.msra.mxu0 0.0
    %458 = vmatprep.subr.mxu0 0.0
    %459 = vmatpush1.msra.mxu0 0.0
    %460 = vmatprep.subr.mxu0 0.0
    %461 = vmatpush1.msra.mxu0 0.0
    %462 = vmatprep.subr.mxu0 0.0
    %463 = vmatpush1.msra.mxu0 0.0
    %464 = vmatprep.subr.mxu0 0.0
    %465 = vmatpush1.msra.mxu0 0.0
    %466 = vmatprep.subr.mxu0 0.0
    %467 = vmatpush1.msra.mxu0 0.0
    %468 = vmatprep.subr.mxu0 0.0
    %469 = vmatpush1.msra.mxu0 0.0
    %470 = vmatprep.subr.mxu0 0.0
    %471 = vmatpush1.msra.mxu0 0.0
    %472 = vmatprep.mubr.f32.mxu0 0.0
    %v473 = vand.u32 %v388, 4294901760
    %v474 = vsub.f32 %v388, %v473
    %v475 = vand.u32 %v474, 4294901760
    %v476 = vsub.f32 %v474, %v475
    %v477 = vand.u32 %v476, 4294901760
    %478 = vmatmul.mubr.f32.gmra.mrb[0].mxu0 %v477
    %v479 = vpop.f32.mrb[0].mxu0
    %v480 = vadd.f32 %v384, %v479
    %v481 = vpop.f32.mrb[0].mxu0
    %482 = vmatprep.mubr.f32.mxu0 0.0
    %v483 = vand.u32 %v391, 4294901760
    %v484 = vsub.f32 %v391, %v483
    %v485 = vand.u32 %v484, 4294901760
    %v486 = vsub.f32 %v484, %v485
    %v487 = vand.u32 %v486, 4294901760
    %488 = vmatmul.mubr.f32.gmra.mrb[0].mxu0 %v487
    %v489 = vpop.f32.mrb[0].mxu0
    %v490 = vadd.f32 %v384, %v489
    %v491 = vpop.f32.mrb[0].mxu0
    %492 = vmatprep.mubr.f32.mxu0 0.0
    %v493 = vand.u32 %v394, 4294901760
    %v494 = vsub.f32 %v394, %v493
    %v495 = vand.u32 %v494, 4294901760
    %v496 = vsub.f32 %v494, %v495
    %v497 = vand.u32 %v496, 4294901760
    %498 = vmatmul.mubr.f32.gmra.mrb[0].mxu0 %v497
    %v499 = vpop.f32.mrb[0].mxu0
    %v500 = vadd.f32 %v384, %v499
    %v501 = vpop.f32.mrb[0].mxu0
    %502 = vmatprep.mubr.f32.mxu0 0.0
    %v503 = vand.u32 %v397, 4294901760
    %v504 = vsub.f32 %v397, %v503
    %v505 = vand.u32 %v504, 4294901760
    %v506 = vsub.f32 %v504, %v505
    %v507 = vand.u32 %v506, 4294901760
    %508 = vmatmul.mubr.f32.gmra.mrb[0].mxu0 %v507
    %v509 = vpop.f32.mrb[0].mxu0
    %v510 = vadd.f32 %v384, %v509
    %v511 = vpop.f32.mrb[0].mxu0
    %512 = vdwg.mxu0
    %513 = vmatprep.subr.mxu0 0.0
    %v514 = vand.u32 %v95, 4294901760
    %v515 = vsub.f32 %v95, %v514
    %v516 = vand.u32 %v515, 4294901760
    %v517 = vsub.f32 %v515, %v516
    %v518 = vand.u32 %v517, 4294901760
    %519 = vmatpush1.msra.mxu0 %v518
    %520 = vmatprep.subr.mxu0 0.0
    %v521 = vand.u32 %v96, 4294901760
    %v522 = vsub.f32 %v96, %v521
    %v523 = vand.u32 %v522, 4294901760
    %v524 = vsub.f32 %v522, %v523
    %v525 = vand.u32 %v524, 4294901760
    %526 = vmatpush1.msra.mxu0 %v525
    %527 = vmatprep.subr.mxu0 0.0
    %v528 = vand.u32 %v97, 4294901760
    %v529 = vsub.f32 %v97, %v528
    %v530 = vand.u32 %v529, 4294901760
    %v531 = vsub.f32 %v529, %v530
    %v532 = vand.u32 %v531, 4294901760
    %533 = vmatpush1.msra.mxu0 %v532
    %534 = vmatprep.subr.mxu0 0.0
    %v535 = vand.u32 %v98, 4294901760
    %v536 = vsub.f32 %v98, %v535
    %v537 = vand.u32 %v536, 4294901760
    %v538 = vsub.f32 %v536, %v537
    %v539 = vand.u32 %v538, 4294901760
    %540 = vmatpush1.msra.mxu0 %v539
    %541 = vmatprep.subr.mxu0 0.0
    %v542 = vand.u32 %v99, 4294901760
    %v543 = vsub.f32 %v99, %v542
    %v544 = vand.u32 %v543, 4294901760
    %v545 = vsub.f32 %v543, %v544
    %v546 = vand.u32 %v545, 4294901760
    %547 = vmatpush1.msra.mxu0 %v546
    %548 = vmatprep.subr.mxu0 0.0
    %v549 = vand.u32 %v400, 4294901760
    %v550 = vsub.f32 %v400, %v549
    %v551 = vand.u32 %v550, 4294901760
    %v552 = vsub.f32 %v550, %v551
    %v553 = vand.u32 %v552, 4294901760
    %554 = vmatpush1.msra.mxu0 %v553
    %555 = vmatprep.subr.mxu0 0.0
    %556 = vmatpush1.msra.mxu0 0.0
    %557 = vmatprep.subr.mxu0 0.0
    %558 = vmatpush1.msra.mxu0 0.0
    %559 = vmatprep.subr.mxu0 0.0
    %560 = vmatpush1.msra.mxu0 0.0
    %561 = vmatprep.subr.mxu0 0.0
    %562 = vmatpush1.msra.mxu0 0.0
    %563 = vmatprep.subr.mxu0 0.0
    %564 = vmatpush1.msra.mxu0 0.0
    %565 = vmatprep.subr.mxu0 0.0
    %566 = vmatpush1.msra.mxu0 0.0
    %567 = vmatprep.subr.mxu0 0.0
    %568 = vmatpush1.msra.mxu0 0.0
    %569 = vmatprep.subr.mxu0 0.0
    %570 = vmatpush1.msra.mxu0 0.0
    %571 = vmatprep.subr.mxu0 0.0
    %572 = vmatpush1.msra.mxu0 0.0
    %573 = vmatprep.subr.mxu0 0.0
    %574 = vmatpush1.msra.mxu0 0.0
    %575 = vmatprep.subr.mxu0 0.0
    %576 = vmatpush1.msra.mxu0 0.0
    %577 = vmatprep.subr.mxu0 0.0
    %578 = vmatpush1.msra.mxu0 0.0
    %579 = vmatprep.subr.mxu0 0.0
    %580 = vmatpush1.msra.mxu0 0.0
    %581 = vmatprep.subr.mxu0 0.0
    %582 = vmatpush1.msra.mxu0 0.0
    %583 = vmatprep.subr.mxu0 0.0
    %584 = vmatpush1.msra.mxu0 0.0
    %585 = vmatprep.subr.mxu0 0.0
    %586 = vmatpush1.msra.mxu0 0.0
    %587 = vmatprep.subr.mxu0 0.0
    %588 = vmatpush1.msra.mxu0 0.0
    %589 = vmatprep.subr.mxu0 0.0
    %590 = vmatpush1.msra.mxu0 0.0
    %591 = vmatprep.subr.mxu0 0.0
    %592 = vmatpush1.msra.mxu0 0.0
    %593 = vmatprep.subr.mxu0 0.0
    %594 = vmatpush1.msra.mxu0 0.0
    %595 = vmatprep.subr.mxu0 0.0
    %596 = vmatpush1.msra.mxu0 0.0
    %597 = vmatprep.subr.mxu0 0.0
    %598 = vmatpush1.msra.mxu0 0.0
    %599 = vmatprep.subr.mxu0 0.0
    %600 = vmatpush1.msra.mxu0 0.0
    %601 = vmatprep.subr.mxu0 0.0
    %602 = vmatpush1.msra.mxu0 0.0
    %603 = vmatprep.subr.mxu0 0.0
    %604 = vmatpush1.msra.mxu0 0.0
    %605 = vmatprep.subr.mxu0 0.0
    %606 = vmatpush1.msra.mxu0 0.0
    %607 = vmatprep.mubr.f32.mxu0 0.0
    %v608 = vand.u32 %v388, 4294901760
    %609 = vmatmul.mubr.f32.gmra.mrb[0].mxu0 %v608
    %v610 = vpop.f32.mrb[0].mxu0
    %v611 = vadd.f32 %v480, %v610
    %v612 = vpop.f32.mrb[0].mxu0
    %613 = vmatprep.mubr.f32.mxu0 0.0
    %v614 = vand.u32 %v391, 4294901760
    %615 = vmatmul.mubr.f32.gmra.mrb[0].mxu0 %v614
    %v616 = vpop.f32.mrb[0].mxu0
    %v617 = vadd.f32 %v490, %v616
    %v618 = vpop.f32.mrb[0].mxu0
    %619 = vmatprep.mubr.f32.mxu0 0.0
    %v620 = vand.u32 %v394, 4294901760
    %621 = vmatmul.mubr.f32.gmra.mrb[0].mxu0 %v620
    %v622 = vpop.f32.mrb[0].mxu0
    %v623 = vadd.f32 %v500, %v622
    %v624 = vpop.f32.mrb[0].mxu0
    %625 = vmatprep.mubr.f32.mxu0 0.0
    %v626 = vand.u32 %v397, 4294901760
    %627 = vmatmul.mubr.f32.gmra.mrb[0].mxu0 %v626
    %v628 = vpop.f32.mrb[0].mxu0
    %v629 = vadd.f32 %v510, %v628
    %v630 = vpop.f32.mrb[0].mxu0
    %631 = vdwg.mxu0
    %632 = vmatprep.subr.mxu0 0.0
    %v633 = vand.u32 %v95, 4294901760
    %v634 = vsub.f32 %v95, %v633
    %635 = vmatpush1.msra.mxu0 %v634
    %636 = vmatprep.subr.mxu0 0.0
    %v637 = vand.u32 %v96, 4294901760
    %v638 = vsub.f32 %v96, %v637
    %639 = vmatpush1.msra.mxu0 %v638
    %640 = vmatprep.subr.mxu0 0.0
    %v641 = vand.u32 %v97, 4294901760
    %v642 = vsub.f32 %v97, %v641
    %643 = vmatpush1.msra.mxu0 %v642
    %644 = vmatprep.subr.mxu0 0.0
    %v645 = vand.u32 %v98, 4294901760
    %v646 = vsub.f32 %v98, %v645
    %647 = vmatpush1.msra.mxu0 %v646
    %648 = vmatprep.subr.mxu0 0.0
    %v649 = vand.u32 %v99, 4294901760
    %v650 = vsub.f32 %v99, %v649
    %651 = vmatpush1.msra.mxu0 %v650
    %652 = vmatprep.subr.mxu0 0.0
    %v653 = vand.u32 %v400, 4294901760
    %v654 = vsub.f32 %v400, %v653
    %655 = vmatpush1.msra.mxu0 %v654
    %656 = vmatprep.subr.mxu0 0.0
    %657 = vmatpush1.msra.mxu0 0.0
    %658 = vmatprep.subr.mxu0 0.0
    %659 = vmatpush1.msra.mxu0 0.0
    %660 = vmatprep.subr.mxu0 0.0
    %661 = vmatpush1.msra.mxu0 0.0
    %662 = vmatprep.subr.mxu0 0.0
    %663 = vmatpush1.msra.mxu0 0.0
    %664 = vmatprep.subr.mxu0 0.0
    %665 = vmatpush1.msra.mxu0 0.0
    %666 = vmatprep.subr.mxu0 0.0
    %667 = vmatpush1.msra.mxu0 0.0
    %668 = vmatprep.subr.mxu0 0.0
    %669 = vmatpush1.msra.mxu0 0.0
    %670 = vmatprep.subr.mxu0 0.0
    %671 = vmatpush1.msra.mxu0 0.0
    %672 = vmatprep.subr.mxu0 0.0
    %673 = vmatpush1.msra.mxu0 0.0
    %674 = vmatprep.subr.mxu0 0.0
    %675 = vmatpush1.msra.mxu0 0.0
    %676 = vmatprep.subr.mxu0 0.0
    %677 = vmatpush1.msra.mxu0 0.0
    %678 = vmatprep.subr.mxu0 0.0
    %679 = vmatpush1.msra.mxu0 0.0
    %680 = vmatprep.subr.mxu0 0.0
    %681 = vmatpush1.msra.mxu0 0.0
    %682 = vmatprep.subr.mxu0 0.0
    %683 = vmatpush1.msra.mxu0 0.0
    %684 = vmatprep.subr.mxu0 0.0
    %685 = vmatpush1.msra.mxu0 0.0
    %686 = vmatprep.subr.mxu0 0.0
    %687 = vmatpush1.msra.mxu0 0.0
    %688 = vmatprep.subr.mxu0 0.0
    %689 = vmatpush1.msra.mxu0 0.0
    %690 = vmatprep.subr.mxu0 0.0
    %691 = vmatpush1.msra.mxu0 0.0
    %692 = vmatprep.subr.mxu0 0.0
    %693 = vmatpush1.msra.mxu0 0.0
    %694 = vmatprep.subr.mxu0 0.0
    %695 = vmatpush1.msra.mxu0 0.0
    %696 = vmatprep.subr.mxu0 0.0
    %697 = vmatpush1.msra.mxu0 0.0
    %698 = vmatprep.subr.mxu0 0.0
    %699 = vmatpush1.msra.mxu0 0.0
    %700 = vmatprep.subr.mxu0 0.0
    %701 = vmatpush1.msra.mxu0 0.0
    %702 = vmatprep.subr.mxu0 0.0
    %703 = vmatpush1.msra.mxu0 0.0
    %704 = vmatprep.subr.mxu0 0.0
    %705 = vmatpush1.msra.mxu0 0.0
    %706 = vmatprep.subr.mxu0 0.0
    %707 = vmatpush1.msra.mxu0 0.0
    %708 = vmatprep.mubr.f32.mxu0 0.0
    %v709 = vand.u32 %v388, 4294901760
    %v710 = vsub.f32 %v388, %v709
    %711 = vmatmul.mubr.f32.gmra.mrb[0].mxu0 %v710
    %v712 = vpop.f32.mrb[0].mxu0
    %v713 = vadd.f32 %v611, %v712
    %v714 = vpop.f32.mrb[0].mxu0
    %715 = vmatprep.mubr.f32.mxu0 0.0
    %v716 = vand.u32 %v391, 4294901760
    %v717 = vsub.f32 %v391, %v716
    %718 = vmatmul.mubr.f32.gmra.mrb[0].mxu0 %v717
    %v719 = vpop.f32.mrb[0].mxu0
    %v720 = vadd.f32 %v617, %v719
    %v721 = vpop.f32.mrb[0].mxu0
    %722 = vmatprep.mubr.f32.mxu0 0.0
    %v723 = vand.u32 %v394, 4294901760
    %v724 = vsub.f32 %v394, %v723
    %725 = vmatmul.mubr.f32.gmra.mrb[0].mxu0 %v724
    %v726 = vpop.f32.mrb[0].mxu0
    %v727 = vadd.f32 %v623, %v726
    %v728 = vpop.f32.mrb[0].mxu0
    %729 = vmatprep.mubr.f32.mxu0 0.0
    %v730 = vand.u32 %v397, 4294901760
    %v731 = vsub.f32 %v397, %v730
    %732 = vmatmul.mubr.f32.gmra.mrb[0].mxu0 %v731
    %v733 = vpop.f32.mrb[0].mxu0
    %v734 = vadd.f32 %v629, %v733
    %v735 = vpop.f32.mrb[0].mxu0
    %736 = vdwg.mxu0
    %737 = vmatprep.subr.mxu0 0.0
    %v738 = vand.u32 %v95, 4294901760
    %739 = vmatpush1.msra.mxu0 %v738
    %740 = vmatprep.subr.mxu0 0.0
    %v741 = vand.u32 %v96, 4294901760
    %742 = vmatpush1.msra.mxu0 %v741
    %743 = vmatprep.subr.mxu0 0.0
    %v744 = vand.u32 %v97, 4294901760
    %745 = vmatpush1.msra.mxu0 %v744
    %746 = vmatprep.subr.mxu0 0.0
    %v747 = vand.u32 %v98, 4294901760
    %748 = vmatpush1.msra.mxu0 %v747
    %749 = vmatprep.subr.mxu0 0.0
    %v750 = vand.u32 %v99, 4294901760
    %751 = vmatpush1.msra.mxu0 %v750
    %752 = vmatprep.subr.mxu0 0.0
    %v753 = vand.u32 %v400, 4294901760
    %754 = vmatpush1.msra.mxu0 %v753
    %755 = vmatprep.subr.mxu0 0.0
    %756 = vmatpush1.msra.mxu0 0.0
    %757 = vmatprep.subr.mxu0 0.0
    %758 = vmatpush1.msra.mxu0 0.0
    %759 = vmatprep.subr.mxu0 0.0
    %760 = vmatpush1.msra.mxu0 0.0
    %761 = vmatprep.subr.mxu0 0.0
    %762 = vmatpush1.msra.mxu0 0.0
    %763 = vmatprep.subr.mxu0 0.0
    %764 = vmatpush1.msra.mxu0 0.0
    %765 = vmatprep.subr.mxu0 0.0
    %766 = vmatpush1.msra.mxu0 0.0
    %767 = vmatprep.subr.mxu0 0.0
    %768 = vmatpush1.msra.mxu0 0.0
    %769 = vmatprep.subr.mxu0 0.0
    %770 = vmatpush1.msra.mxu0 0.0
    %771 = vmatprep.subr.mxu0 0.0
    %772 = vmatpush1.msra.mxu0 0.0
    %773 = vmatprep.subr.mxu0 0.0
    %774 = vmatpush1.msra.mxu0 0.0
    %775 = vmatprep.subr.mxu0 0.0
    %776 = vmatpush1.msra.mxu0 0.0
    %777 = vmatprep.subr.mxu0 0.0
    %778 = vmatpush1.msra.mxu0 0.0
    %779 = vmatprep.subr.mxu0 0.0
    %780 = vmatpush1.msra.mxu0 0.0
    %781 = vmatprep.subr.mxu0 0.0
    %782 = vmatpush1.msra.mxu0 0.0
    %783 = vmatprep.subr.mxu0 0.0
    %784 = vmatpush1.msra.mxu0 0.0
    %785 = vmatprep.subr.mxu0 0.0
    %786 = vmatpush1.msra.mxu0 0.0
    %787 = vmatprep.subr.mxu0 0.0
    %788 = vmatpush1.msra.mxu0 0.0
    %789 = vmatprep.subr.mxu0 0.0
    %790 = vmatpush1.msra.mxu0 0.0
    %791 = vmatprep.subr.mxu0 0.0
    %792 = vmatpush1.msra.mxu0 0.0
    %793 = vmatprep.subr.mxu0 0.0
    %794 = vmatpush1.msra.mxu0 0.0
    %795 = vmatprep.subr.mxu0 0.0
    %796 = vmatpush1.msra.mxu0 0.0
    %797 = vmatprep.subr.mxu0 0.0
    %798 = vmatpush1.msra.mxu0 0.0
    %799 = vmatprep.subr.mxu0 0.0
    %800 = vmatpush1.msra.mxu0 0.0
    %801 = vmatprep.subr.mxu0 0.0
    %802 = vmatpush1.msra.mxu0 0.0
    %803 = vmatprep.subr.mxu0 0.0
    %804 = vmatpush1.msra.mxu0 0.0
    %805 = vmatprep.subr.mxu0 0.0
    %806 = vmatpush1.msra.mxu0 0.0
    %807 = vmatprep.mubr.f32.mxu0 0.0
    %v808 = vand.u32 %v388, 4294901760
    %v809 = vsub.f32 %v388, %v808
    %v810 = vand.u32 %v809, 4294901760
    %811 = vmatmul.mubr.f32.gmra.mrb[0].mxu0 %v810
    %v812 = vpop.f32.mrb[0].mxu0
    %v813 = vadd.f32 %v713, %v812
    %v814 = vpop.f32.mrb[0].mxu0
    %815 = vmatprep.mubr.f32.mxu0 0.0
    %v816 = vand.u32 %v391, 4294901760
    %v817 = vsub.f32 %v391, %v816
    %v818 = vand.u32 %v817, 4294901760
    %819 = vmatmul.mubr.f32.gmra.mrb[0].mxu0 %v818
    %v820 = vpop.f32.mrb[0].mxu0
    %v821 = vadd.f32 %v720, %v820
    %v822 = vpop.f32.mrb[0].mxu0
    %823 = vmatprep.mubr.f32.mxu0 0.0
    %v824 = vand.u32 %v394, 4294901760
    %v825 = vsub.f32 %v394, %v824
    %v826 = vand.u32 %v825, 4294901760
    %827 = vmatmul.mubr.f32.gmra.mrb[0].mxu0 %v826
    %v828 = vpop.f32.mrb[0].mxu0
    %v829 = vadd.f32 %v727, %v828
    %v830 = vpop.f32.mrb[0].mxu0
    %831 = vmatprep.mubr.f32.mxu0 0.0
    %v832 = vand.u32 %v397, 4294901760
    %v833 = vsub.f32 %v397, %v832
    %v834 = vand.u32 %v833, 4294901760
    %835 = vmatmul.mubr.f32.gmra.mrb[0].mxu0 %v834
    %v836 = vpop.f32.mrb[0].mxu0
    %v837 = vadd.f32 %v734, %v836
    %v838 = vpop.f32.mrb[0].mxu0
    %839 = vdwg.mxu0
    %840 = vmatprep.subr.mxu0 0.0
    %v841 = vand.u32 %v95, 4294901760
    %v842 = vsub.f32 %v95, %v841
    %v843 = vand.u32 %v842, 4294901760
    %844 = vmatpush1.msra.mxu0 %v843
    %845 = vmatprep.subr.mxu0 0.0
    %v846 = vand.u32 %v96, 4294901760
    %v847 = vsub.f32 %v96, %v846
    %v848 = vand.u32 %v847, 4294901760
    %849 = vmatpush1.msra.mxu0 %v848
    %850 = vmatprep.subr.mxu0 0.0
    %v851 = vand.u32 %v97, 4294901760
    %v852 = vsub.f32 %v97, %v851
    %v853 = vand.u32 %v852, 4294901760
    %854 = vmatpush1.msra.mxu0 %v853
    %855 = vmatprep.subr.mxu0 0.0
    %v856 = vand.u32 %v98, 4294901760
    %v857 = vsub.f32 %v98, %v856
    %v858 = vand.u32 %v857, 4294901760
    %859 = vmatpush1.msra.mxu0 %v858
    %860 = vmatprep.subr.mxu0 0.0
    %v861 = vand.u32 %v99, 4294901760
    %v862 = vsub.f32 %v99, %v861
    %v863 = vand.u32 %v862, 4294901760
    %864 = vmatpush1.msra.mxu0 %v863
    %865 = vmatprep.subr.mxu0 0.0
    %v866 = vand.u32 %v400, 4294901760
    %v867 = vsub.f32 %v400, %v866
    %v868 = vand.u32 %v867, 4294901760
    %869 = vmatpush1.msra.mxu0 %v868
    %870 = vmatprep.subr.mxu0 0.0
    %871 = vmatpush1.msra.mxu0 0.0
    %872 = vmatprep.subr.mxu0 0.0
    %873 = vmatpush1.msra.mxu0 0.0
    %874 = vmatprep.subr.mxu0 0.0
    %875 = vmatpush1.msra.mxu0 0.0
    %876 = vmatprep.subr.mxu0 0.0
    %877 = vmatpush1.msra.mxu0 0.0
    %878 = vmatprep.subr.mxu0 0.0
    %879 = vmatpush1.msra.mxu0 0.0
    %880 = vmatprep.subr.mxu0 0.0
    %881 = vmatpush1.msra.mxu0 0.0
    %882 = vmatprep.subr.mxu0 0.0
    %883 = vmatpush1.msra.mxu0 0.0
    %884 = vmatprep.subr.mxu0 0.0
    %885 = vmatpush1.msra.mxu0 0.0
    %886 = vmatprep.subr.mxu0 0.0
    %887 = vmatpush1.msra.mxu0 0.0
    %888 = vmatprep.subr.mxu0 0.0
    %889 = vmatpush1.msra.mxu0 0.0
    %890 = vmatprep.subr.mxu0 0.0
    %891 = vmatpush1.msra.mxu0 0.0
    %892 = vmatprep.subr.mxu0 0.0
    %893 = vmatpush1.msra.mxu0 0.0
    %894 = vmatprep.subr.mxu0 0.0
    %895 = vmatpush1.msra.mxu0 0.0
    %896 = vmatprep.subr.mxu0 0.0
    %897 = vmatpush1.msra.mxu0 0.0
    %898 = vmatprep.subr.mxu0 0.0
    %899 = vmatpush1.msra.mxu0 0.0
    %900 = vmatprep.subr.mxu0 0.0
    %901 = vmatpush1.msra.mxu0 0.0
    %902 = vmatprep.subr.mxu0 0.0
    %903 = vmatpush1.msra.mxu0 0.0
    %904 = vmatprep.subr.mxu0 0.0
    %905 = vmatpush1.msra.mxu0 0.0
    %906 = vmatprep.subr.mxu0 0.0
    %907 = vmatpush1.msra.mxu0 0.0
    %908 = vmatprep.subr.mxu0 0.0
    %909 = vmatpush1.msra.mxu0 0.0
    %910 = vmatprep.subr.mxu0 0.0
    %911 = vmatpush1.msra.mxu0 0.0
    %912 = vmatprep.subr.mxu0 0.0
    %913 = vmatpush1.msra.mxu0 0.0
    %914 = vmatprep.subr.mxu0 0.0
    %915 = vmatpush1.msra.mxu0 0.0
    %916 = vmatprep.subr.mxu0 0.0
    %917 = vmatpush1.msra.mxu0 0.0
    %918 = vmatprep.subr.mxu0 0.0
    %919 = vmatpush1.msra.mxu0 0.0
    %920 = vmatprep.subr.mxu0 0.0
    %921 = vmatpush1.msra.mxu0 0.0
    %922 = vmatprep.mubr.f32.mxu0 0.0
    %v923 = vand.u32 %v388, 4294901760
    %924 = vmatmul.mubr.f32.gmra.mrb[0].mxu0 %v923
    %v925 = vpop.f32.mrb[0].mxu0
    %v926 = vadd.f32 %v813, %v925
    %v927 = vpop.f32.mrb[0].mxu0
    %928 = vmatprep.mubr.f32.mxu0 0.0
    %v929 = vand.u32 %v391, 4294901760
    %930 = vmatmul.mubr.f32.gmra.mrb[0].mxu0 %v929
    %v931 = vpop.f32.mrb[0].mxu0
    %v932 = vadd.f32 %v821, %v931
    %v933 = vpop.f32.mrb[0].mxu0
    %934 = vmatprep.mubr.f32.mxu0 0.0
    %v935 = vand.u32 %v394, 4294901760
    %936 = vmatmul.mubr.f32.gmra.mrb[0].mxu0 %v935
    %v937 = vpop.f32.mrb[0].mxu0
    %v938 = vadd.f32 %v829, %v937
    %v939 = vpop.f32.mrb[0].mxu0
    %940 = vmatprep.mubr.f32.mxu0 0.0
    %v941 = vand.u32 %v397, 4294901760
    %942 = vmatmul.mubr.f32.gmra.mrb[0].mxu0 %v941
    %v943 = vpop.f32.mrb[0].mxu0
    %v944 = vadd.f32 %v837, %v943
    %v945 = vpop.f32.mrb[0].mxu0
    %946 = vdwg.mxu0
    %947 = vmatprep.subr.mxu0 0.0
    %v948 = vand.u32 %v95, 4294901760
    %949 = vmatpush1.msra.mxu0 %v948
    %950 = vmatprep.subr.mxu0 0.0
    %v951 = vand.u32 %v96, 4294901760
    %952 = vmatpush1.msra.mxu0 %v951
    %953 = vmatprep.subr.mxu0 0.0
    %v954 = vand.u32 %v97, 4294901760
    %955 = vmatpush1.msra.mxu0 %v954
    %956 = vmatprep.subr.mxu0 0.0
    %v957 = vand.u32 %v98, 4294901760
    %958 = vmatpush1.msra.mxu0 %v957
    %959 = vmatprep.subr.mxu0 0.0
    %v960 = vand.u32 %v99, 4294901760
    %961 = vmatpush1.msra.mxu0 %v960
    %962 = vmatprep.subr.mxu0 0.0
    %v963 = vand.u32 %v400, 4294901760
    %964 = vmatpush1.msra.mxu0 %v963
    %965 = vmatprep.subr.mxu0 0.0
    %966 = vmatpush1.msra.mxu0 0.0
    %967 = vmatprep.subr.mxu0 0.0
    %968 = vmatpush1.msra.mxu0 0.0
    %969 = vmatprep.subr.mxu0 0.0
    %970 = vmatpush1.msra.mxu0 0.0
    %971 = vmatprep.subr.mxu0 0.0
    %972 = vmatpush1.msra.mxu0 0.0
    %973 = vmatprep.subr.mxu0 0.0
    %974 = vmatpush1.msra.mxu0 0.0
    %975 = vmatprep.subr.mxu0 0.0
    %976 = vmatpush1.msra.mxu0 0.0
    %977 = vmatprep.subr.mxu0 0.0
    %978 = vmatpush1.msra.mxu0 0.0
    %979 = vmatprep.subr.mxu0 0.0
    %980 = vmatpush1.msra.mxu0 0.0
    %981 = vmatprep.subr.mxu0 0.0
    %982 = vmatpush1.msra.mxu0 0.0
    %983 = vmatprep.subr.mxu0 0.0
    %984 = vmatpush1.msra.mxu0 0.0
    %985 = vmatprep.subr.mxu0 0.0
    %986 = vmatpush1.msra.mxu0 0.0
    %987 = vmatprep.subr.mxu0 0.0
    %988 = vmatpush1.msra.mxu0 0.0
    %989 = vmatprep.subr.mxu0 0.0
    %990 = vmatpush1.msra.mxu0 0.0
    %991 = vmatprep.subr.mxu0 0.0
    %992 = vmatpush1.msra.mxu0 0.0
    %993 = vmatprep.subr.mxu0 0.0
    %994 = vmatpush1.msra.mxu0 0.0
    %995 = vmatprep.subr.mxu0 0.0
    %996 = vmatpush1.msra.mxu0 0.0
    %997 = vmatprep.subr.mxu0 0.0
    %998 = vmatpush1.msra.mxu0 0.0
    %999 = vmatprep.subr.mxu0 0.0
    %1000 = vmatpush1.msra.mxu0 0.0
    %1001 = vmatprep.subr.mxu0 0.0
    %1002 = vmatpush1.msra.mxu0 0.0
    %1003 = vmatprep.subr.mxu0 0.0
    %1004 = vmatpush1.msra.mxu0 0.0
    %1005 = vmatprep.subr.mxu0 0.0
    %1006 = vmatpush1.msra.mxu0 0.0
    %1007 = vmatprep.subr.mxu0 0.0
    %1008 = vmatpush1.msra.mxu0 0.0
    %1009 = vmatprep.subr.mxu0 0.0
    %1010 = vmatpush1.msra.mxu0 0.0
    %1011 = vmatprep.subr.mxu0 0.0
    %1012 = vmatpush1.msra.mxu0 0.0
    %1013 = vmatprep.subr.mxu0 0.0
    %1014 = vmatpush1.msra.mxu0 0.0
    %1015 = vmatprep.subr.mxu0 0.0
    %1016 = vmatpush1.msra.mxu0 0.0
    %1017 = vmatprep.mubr.f32.mxu0 0.0
    %v1018 = vand.u32 %v388, 4294901760
    %1019 = vmatmul.mubr.f32.gmra.mrb[0].mxu0 %v1018
    %v1020 = vpop.f32.mrb[0].mxu0
    %v1021 = vadd.f32 %v926, %v1020
    %v1022 = vpop.f32.mrb[0].mxu0
    %1023 = vmatprep.mubr.f32.mxu0 0.0
    %v1024 = vand.u32 %v391, 4294901760
    %1025 = vmatmul.mubr.f32.gmra.mrb[0].mxu0 %v1024
    %v1026 = vpop.f32.mrb[0].mxu0
    %v1027 = vadd.f32 %v932, %v1026
    %v1028 = vpop.f32.mrb[0].mxu0
    %1029 = vmatprep.mubr.f32.mxu0 0.0
    %v1030 = vand.u32 %v394, 4294901760
    %1031 = vmatmul.mubr.f32.gmra.mrb[0].mxu0 %v1030
    %v1032 = vpop.f32.mrb[0].mxu0
    %v1033 = vadd.f32 %v938, %v1032
    %v1034 = vpop.f32.mrb[0].mxu0
    %1035 = vmatprep.mubr.f32.mxu0 0.0
    %v1036 = vand.u32 %v397, 4294901760
    %1037 = vmatmul.mubr.f32.gmra.mrb[0].mxu0 %v1036
    %v1038 = vpop.f32.mrb[0].mxu0
    %v1039 = vadd.f32 %v944, %v1038
    %v1040 = vpop.f32.mrb[0].mxu0
    %1041 = vdwg.mxu0
    %v1042 = vmax.f32 %v1021, 0.0
    %v1043 = vmax.f32 %v1027, 0.0
    %v1044 = vmax.f32 %v1033, 0.0
    %v1045 = vmax.f32 %v1039, 0.0
    %1046 = vst.msk [vmem:[#allocation2] sm:$0xff] %vm224, %v1042
    %1047 = vst.msk [vmem:[#allocation2 + $0x8] sm:$0xff] %vm224, %v1043
    %1048 = vst.msk [vmem:[#allocation2 + $0x10] sm:$0xff] %vm224, %v1044
    %1049 = vst.msk [vmem:[#allocation2 + $0x18] sm:$0xff] %vm224, %v1045
    %v1050 = vld [vmem:[#allocation2] ss:$2 sm:$0xff]
    %s1051 = scalar_lea.vmem [#allocation2], 16
    %v1052 = vld [vmem:[%s1051] ss:$2 sm:$0xff]
    %s1053 = scalar_lea.vmem [#allocation2], 1
    %v1054 = vld [vmem:[%s1053] ss:$2 sm:$0xff]
    %s1055 = scalar_lea.vmem [#allocation2], 17
    %v1056 = vld [vmem:[%s1055] ss:$2 sm:$0xff]
    %v1057 = vmax.f32 %v1050, %v1054
    %v1058 = vmax.f32 %v1052, %v1056
    %v1059 = vld [vmem:[%s4] sm:$0xff]
    %v1060 = vld [vmem:[%s4 + $0x8] sm:$0xff]
    %v1061 = vld [vmem:[%s4 + $0x10] sm:$0xff]
    %v1062 = vld [vmem:[%s4 + $0x18] sm:$0xff]
    %v1063 = vld [vmem:[%s4 + $0x20] sm:$0xff]
    %v1064 = vld [vmem:[%s4 + $0x28] sm:$0xff]
    %v1065 = vld [vmem:[%s4 + $0x30] sm:$0xff]
    %v1066 = vld [vmem:[%s4 + $0x38] sm:$0xff]
    %v1067 = vld [vmem:[%s4 + $0x40] sm:$0xff]
    %v1068 = vld [vmem:[%s4 + $0x48] sm:$0xff]
    %v1069 = vld [vmem:[%s4 + $0x50] sm:$0xff]
    %v1070 = vld [vmem:[%s5] sm:$0x1]
    %v1072 = vrot.slane %v1057, 3
    %v1074 = vsel %vm104, 0.0, %v1072
    %v1075 = vsel %vm104, %v1072, 0.0
    %v1078 = vrot.slane %v1074, 1
    %v1079 = vrot.slane %v1075, 1
    %v1080 = vsel %vm115, %v1078, %v1079
    %1081 = vrot.lane.b32.xlu0 %v1080, 8
    %v1082 = vpop.permute.xlu0 %1081
    %v1084 = vrot.slane %v1074, 2
    %v1085 = vrot.slane %v1075, 2
    %v1086 = vsel %vm127, %v1084, %v1085
    %1087 = vrot.lane.b32.xlu0 %v1086, 16
    %v1088 = vpop.permute.xlu0 %1087
    %v1090 = vrot.slane %v1074, 3
    %v1091 = vrot.slane %v1075, 3
    %v1092 = vsel %vm104, %v1090, %v1091
    %1093 = vrot.lane.b32.xlu0 %v1092, 24
    %v1094 = vpop.permute.xlu0 %1093
    %v1096 = vrot.slane %v1074, 4
    %v1097 = vrot.slane %v1075, 4
    %v1098 = vsel %vm150, %v1096, %v1097
    %1099 = vrot.lane.b32.xlu0 %v1098, 32
    %v1100 = vpop.permute.xlu0 %1099
    %v1102 = vrot.slane %v1074, 5
    %v1103 = vrot.slane %v1075, 5
    %v1104 = vsel %vm162, %v1102, %v1103
    %1105 = vrot.lane.b32.xlu0 %v1104, 40
    %v1106 = vpop.permute.xlu0 %1105
    %v1108 = vrot.slane %v1074, 6
    %v1109 = vrot.slane %v1075, 6
    %v1110 = vsel %vm174, %v1108, %v1109
    %1111 = vrot.lane.b32.xlu0 %v1110, 48
    %v1112 = vpop.permute.xlu0 %1111
    %v1114 = vrot.slane %v1074, 7
    %v1115 = vrot.slane %v1075, 7
    %v1116 = vsel %vm186, %v1114, %v1115
    %1117 = vrot.lane.b32.xlu0 %v1116, 56
    %v1118 = vpop.permute.xlu0 %1117
    %1120 = vrot.lane.b32.xlu0 %v1075, 64
    %v1121 = vpop.permute.xlu0 %1120
    %v1123 = vsel %vm115, %v1079, %v205
    %1124 = vrot.lane.b32.xlu0 %v1123, 72
    %v1125 = vpop.permute.xlu0 %1124
    %v1127 = vsel %vm127, %v1085, %v213
    %1128 = vrot.lane.b32.xlu0 %v1127, 80
    %v1129 = vpop.permute.xlu0 %1128
    %v1131 = vsel %vm224, %v1074, %v1082
    %v1132 = vsel %vm230, %v1131, %v1088
    %v1133 = vsel %vm236, %v1132, %v1094
    %v1134 = vsel %vm242, %v1133, %v1100
    %v1135 = vsel %vm248, %v1134, %v1106
    %vm1136 = vcmask 392192
    %v1137 = vsel %vm1136, %v1135, %v1112
    %vm1138 = vcmask 457728
    %v1139 = vsel %vm1138, %v1137, %v1118
    %vm1140 = vcmask 523264
    %v1141 = vsel %vm1140, %v1139, %v1121
    %vm1142 = vcmask 588800
    %v1143 = vsel %vm1142, %v1141, %v1125
    %vm1144 = vcmask 654336
    %v1145 = vsel %vm1144, %v1143, %v1129
    %v1147 = vrot.slane %v1058, 3
    %v1149 = vsel %vm104, 0.0, %v1147
    %v1150 = vsel %vm104, %v1147, 0.0
    %v1153 = vrot.slane %v1149, 1
    %v1154 = vrot.slane %v1150, 1
    %v1155 = vsel %vm115, %v1153, %v1154
    %1156 = vrot.lane.b32.xlu0 %v1155, 8
    %v1157 = vpop.permute.xlu0 %1156
    %v1159 = vrot.slane %v1149, 2
    %v1160 = vrot.slane %v1150, 2
    %v1161 = vsel %vm127, %v1159, %v1160
    %1162 = vrot.lane.b32.xlu0 %v1161, 16
    %v1163 = vpop.permute.xlu0 %1162
    %v1165 = vrot.slane %v1149, 3
    %v1166 = vrot.slane %v1150, 3
    %v1167 = vsel %vm104, %v1165, %v1166
    %1168 = vrot.lane.b32.xlu0 %v1167, 24
    %v1169 = vpop.permute.xlu0 %1168
    %v1171 = vrot.slane %v1149, 4
    %v1172 = vrot.slane %v1150, 4
    %v1173 = vsel %vm150, %v1171, %v1172
    %1174 = vrot.lane.b32.xlu0 %v1173, 32
    %v1175 = vpop.permute.xlu0 %1174
    %v1177 = vrot.slane %v1149, 5
    %v1178 = vrot.slane %v1150, 5
    %v1179 = vsel %vm162, %v1177, %v1178
    %1180 = vrot.lane.b32.xlu0 %v1179, 40
    %v1181 = vpop.permute.xlu0 %1180
    %v1183 = vrot.slane %v1149, 6
    %v1184 = vrot.slane %v1150, 6
    %v1185 = vsel %vm174, %v1183, %v1184
    %1186 = vrot.lane.b32.xlu0 %v1185, 48
    %v1187 = vpop.permute.xlu0 %1186
    %v1189 = vrot.slane %v1149, 7
    %v1190 = vrot.slane %v1150, 7
    %v1191 = vsel %vm186, %v1189, %v1190
    %1192 = vrot.lane.b32.xlu0 %v1191, 56
    %v1193 = vpop.permute.xlu0 %1192
    %1195 = vrot.lane.b32.xlu0 %v1150, 64
    %v1196 = vpop.permute.xlu0 %1195
    %v1198 = vsel %vm115, %v1154, %v205
    %1199 = vrot.lane.b32.xlu0 %v1198, 72
    %v1200 = vpop.permute.xlu0 %1199
    %v1202 = vsel %vm127, %v1160, %v213
    %1203 = vrot.lane.b32.xlu0 %v1202, 80
    %v1204 = vpop.permute.xlu0 %1203
    %v1206 = vsel %vm224, %v1149, %v1157
    %v1207 = vsel %vm230, %v1206, %v1163
    %v1208 = vsel %vm236, %v1207, %v1169
    %v1209 = vsel %vm242, %v1208, %v1175
    %v1210 = vsel %vm248, %v1209, %v1181
    %v1211 = vsel %vm1136, %v1210, %v1187
    %v1212 = vsel %vm1138, %v1211, %v1193
    %v1213 = vsel %vm1140, %v1212, %v1196
    %v1214 = vsel %vm1142, %v1213, %v1200
    %v1215 = vsel %vm1144, %v1214, %v1204
    %v1217 = vlaneseq
    %v1218 = vshrl.u32 %v1217, 7
    %v1219 = vsub.s32 0, %v1218
    %v1220 = vrot.slane %v1070, %v1219
    %vm1222 = vcmask 719872
    %v1224 = vsel %vm1222, %v1145, 0
    %v1227 = vsel %vm1222, %v1215, 0
    %1229 = vmatprep.subr.mxu0 0.0
    %v1230 = vand.u32 %v1059, 4294901760
    %1231 = vmatpush1.msra.mxu0 %v1230
    %1232 = vmatprep.subr.mxu0 0.0
    %v1233 = vand.u32 %v1060, 4294901760
    %1234 = vmatpush1.msra.mxu0 %v1233
    %1235 = vmatprep.subr.mxu0 0.0
    %v1236 = vand.u32 %v1061, 4294901760
    %1237 = vmatpush1.msra.mxu0 %v1236
    %1238 = vmatprep.subr.mxu0 0.0
    %v1239 = vand.u32 %v1062, 4294901760
    %1240 = vmatpush1.msra.mxu0 %v1239
    %1241 = vmatprep.subr.mxu0 0.0
    %v1242 = vand.u32 %v1063, 4294901760
    %1243 = vmatpush1.msra.mxu0 %v1242
    %1244 = vmatprep.subr.mxu0 0.0
    %v1245 = vand.u32 %v1064, 4294901760
    %1246 = vmatpush1.msra.mxu0 %v1245
    %1247 = vmatprep.subr.mxu0 0.0
    %v1248 = vand.u32 %v1065, 4294901760
    %1249 = vmatpush1.msra.mxu0 %v1248
    %1250 = vmatprep.subr.mxu0 0.0
    %v1251 = vand.u32 %v1066, 4294901760
    %1252 = vmatpush1.msra.mxu0 %v1251
    %1253 = vmatprep.subr.mxu0 0.0
    %v1254 = vand.u32 %v1067, 4294901760
    %1255 = vmatpush1.msra.mxu0 %v1254
    %1256 = vmatprep.subr.mxu0 0.0
    %v1257 = vand.u32 %v1068, 4294901760
    %1258 = vmatpush1.msra.mxu0 %v1257
    %1259 = vmatprep.subr.mxu0 0.0
    %v1260 = vand.u32 %v1069, 4294901760
    %1261 = vmatpush1.msra.mxu0 %v1260
    %1262 = vmatprep.subr.mxu0 0.0
    %1263 = vmatpush1.msra.mxu0 0.0
    %1264 = vmatprep.subr.mxu0 0.0
    %1265 = vmatpush1.msra.mxu0 0.0
    %1266 = vmatprep.subr.mxu0 0.0
    %1267 = vmatpush1.msra.mxu0 0.0
    %1268 = vmatprep.subr.mxu0 0.0
    %1269 = vmatpush1.msra.mxu0 0.0
    %1270 = vmatprep.subr.mxu0 0.0
    %1271 = vmatpush1.msra.mxu0 0.0
    %1272 = vmatprep.subr.mxu0 0.0
    %1273 = vmatpush1.msra.mxu0 0.0
    %1274 = vmatprep.subr.mxu0 0.0
    %1275 = vmatpush1.msra.mxu0 0.0
    %1276 = vmatprep.subr.mxu0 0.0
    %1277 = vmatpush1.msra.mxu0 0.0
    %1278 = vmatprep.subr.mxu0 0.0
    %1279 = vmatpush1.msra.mxu0 0.0
    %1280 = vmatprep.subr.mxu0 0.0
    %1281 = vmatpush1.msra.mxu0 0.0
    %1282 = vmatprep.subr.mxu0 0.0
    %1283 = vmatpush1.msra.mxu0 0.0
    %1284 = vmatprep.subr.mxu0 0.0
    %1285 = vmatpush1.msra.mxu0 0.0
    %1286 = vmatprep.subr.mxu0 0.0
    %1287 = vmatpush1.msra.mxu0 0.0
    %1288 = vmatprep.subr.mxu0 0.0
    %1289 = vmatpush1.msra.mxu0 0.0
    %1290 = vmatprep.subr.mxu0 0.0
    %1291 = vmatpush1.msra.mxu0 0.0
    %1292 = vmatprep.subr.mxu0 0.0
    %1293 = vmatpush1.msra.mxu0 0.0
    %1294 = vmatprep.subr.mxu0 0.0
    %1295 = vmatpush1.msra.mxu0 0.0
    %1296 = vmatprep.subr.mxu0 0.0
    %1297 = vmatpush1.msra.mxu0 0.0
    %1298 = vmatprep.subr.mxu0 0.0
    %1299 = vmatpush1.msra.mxu0 0.0
    %1300 = vmatprep.subr.mxu0 0.0
    %1301 = vmatpush1.msra.mxu0 0.0
    %1302 = vmatprep.subr.mxu0 0.0
    %1303 = vmatpush1.msra.mxu0 0.0
    %1304 = vmatprep.mubr.f32.mxu0 0.0
    %v1305 = vand.u32 %v1224, 4294901760
    %v1306 = vsub.f32 %v1224, %v1305
    %v1307 = vand.u32 %v1306, 4294901760
    %v1308 = vsub.f32 %v1306, %v1307
    %v1309 = vand.u32 %v1308, 4294901760
    %1310 = vmatmul.mubr.f32.gmra.mrb[0].mxu0 %v1309
    %v1311 = vpop.f32.mrb[0].mxu0
    %v1312 = vadd.f32 %v1220, %v1311
    %v1313 = vpop.f32.mrb[0].mxu0
    %1314 = vmatprep.mubr.f32.mxu0 0.0
    %v1315 = vand.u32 %v1227, 4294901760
    %v1316 = vsub.f32 %v1227, %v1315
    %v1317 = vand.u32 %v1316, 4294901760
    %v1318 = vsub.f32 %v1316, %v1317
    %v1319 = vand.u32 %v1318, 4294901760
    %1320 = vmatmul.mubr.f32.gmra.mrb[0].mxu0 %v1319
    %v1321 = vpop.f32.mrb[0].mxu0
    %v1322 = vadd.f32 %v1220, %v1321
    %v1323 = vpop.f32.mrb[0].mxu0
    %1324 = vdwg.mxu0
    %1325 = vmatprep.subr.mxu0 0.0
    %v1326 = vand.u32 %v1059, 4294901760
    %v1327 = vsub.f32 %v1059, %v1326
    %v1328 = vand.u32 %v1327, 4294901760
    %v1329 = vsub.f32 %v1327, %v1328
    %v1330 = vand.u32 %v1329, 4294901760
    %1331 = vmatpush1.msra.mxu0 %v1330
    %1332 = vmatprep.subr.mxu0 0.0
    %v1333 = vand.u32 %v1060, 4294901760
    %v1334 = vsub.f32 %v1060, %v1333
    %v1335 = vand.u32 %v1334, 4294901760
    %v1336 = vsub.f32 %v1334, %v1335
    %v1337 = vand.u32 %v1336, 4294901760
    %1338 = vmatpush1.msra.mxu0 %v1337
    %1339 = vmatprep.subr.mxu0 0.0
    %v1340 = vand.u32 %v1061, 4294901760
    %v1341 = vsub.f32 %v1061, %v1340
    %v1342 = vand.u32 %v1341, 4294901760
    %v1343 = vsub.f32 %v1341, %v1342
    %v1344 = vand.u32 %v1343, 4294901760
    %1345 = vmatpush1.msra.mxu0 %v1344
    %1346 = vmatprep.subr.mxu0 0.0
    %v1347 = vand.u32 %v1062, 4294901760
    %v1348 = vsub.f32 %v1062, %v1347
    %v1349 = vand.u32 %v1348, 4294901760
    %v1350 = vsub.f32 %v1348, %v1349
    %v1351 = vand.u32 %v1350, 4294901760
    %1352 = vmatpush1.msra.mxu0 %v1351
    %1353 = vmatprep.subr.mxu0 0.0
    %v1354 = vand.u32 %v1063, 4294901760
    %v1355 = vsub.f32 %v1063, %v1354
    %v1356 = vand.u32 %v1355, 4294901760
    %v1357 = vsub.f32 %v1355, %v1356
    %v1358 = vand.u32 %v1357, 4294901760
    %1359 = vmatpush1.msra.mxu0 %v1358
    %1360 = vmatprep.subr.mxu0 0.0
    %v1361 = vand.u32 %v1064, 4294901760
    %v1362 = vsub.f32 %v1064, %v1361
    %v1363 = vand.u32 %v1362, 4294901760
    %v1364 = vsub.f32 %v1362, %v1363
    %v1365 = vand.u32 %v1364, 4294901760
    %1366 = vmatpush1.msra.mxu0 %v1365
    %1367 = vmatprep.subr.mxu0 0.0
    %v1368 = vand.u32 %v1065, 4294901760
    %v1369 = vsub.f32 %v1065, %v1368
    %v1370 = vand.u32 %v1369, 4294901760
    %v1371 = vsub.f32 %v1369, %v1370
    %v1372 = vand.u32 %v1371, 4294901760
    %1373 = vmatpush1.msra.mxu0 %v1372
    %1374 = vmatprep.subr.mxu0 0.0
    %v1375 = vand.u32 %v1066, 4294901760
    %v1376 = vsub.f32 %v1066, %v1375
    %v1377 = vand.u32 %v1376, 4294901760
    %v1378 = vsub.f32 %v1376, %v1377
    %v1379 = vand.u32 %v1378, 4294901760
    %1380 = vmatpush1.msra.mxu0 %v1379
    %1381 = vmatprep.subr.mxu0 0.0
    %v1382 = vand.u32 %v1067, 4294901760
    %v1383 = vsub.f32 %v1067, %v1382
    %v1384 = vand.u32 %v1383, 4294901760
    %v1385 = vsub.f32 %v1383, %v1384
    %v1386 = vand.u32 %v1385, 4294901760
    %1387 = vmatpush1.msra.mxu0 %v1386
    %1388 = vmatprep.subr.mxu0 0.0
    %v1389 = vand.u32 %v1068, 4294901760
    %v1390 = vsub.f32 %v1068, %v1389
    %v1391 = vand.u32 %v1390, 4294901760
    %v1392 = vsub.f32 %v1390, %v1391
    %v1393 = vand.u32 %v1392, 4294901760
    %1394 = vmatpush1.msra.mxu0 %v1393
    %1395 = vmatprep.subr.mxu0 0.0
    %v1396 = vand.u32 %v1069, 4294901760
    %v1397 = vsub.f32 %v1069, %v1396
    %v1398 = vand.u32 %v1397, 4294901760
    %v1399 = vsub.f32 %v1397, %v1398
    %v1400 = vand.u32 %v1399, 4294901760
    %1401 = vmatpush1.msra.mxu0 %v1400
    %1402 = vmatprep.subr.mxu0 0.0
    %1403 = vmatpush1.msra.mxu0 0.0
    %1404 = vmatprep.subr.mxu0 0.0
    %1405 = vmatpush1.msra.mxu0 0.0
    %1406 = vmatprep.subr.mxu0 0.0
    %1407 = vmatpush1.msra.mxu0 0.0
    %1408 = vmatprep.subr.mxu0 0.0
    %1409 = vmatpush1.msra.mxu0 0.0
    %1410 = vmatprep.subr.mxu0 0.0
    %1411 = vmatpush1.msra.mxu0 0.0
    %1412 = vmatprep.subr.mxu0 0.0
    %1413 = vmatpush1.msra.mxu0 0.0
    %1414 = vmatprep.subr.mxu0 0.0
    %1415 = vmatpush1.msra.mxu0 0.0
    %1416 = vmatprep.subr.mxu0 0.0
    %1417 = vmatpush1.msra.mxu0 0.0
    %1418 = vmatprep.subr.mxu0 0.0
    %1419 = vmatpush1.msra.mxu0 0.0
    %1420 = vmatprep.subr.mxu0 0.0
    %1421 = vmatpush1.msra.mxu0 0.0
    %1422 = vmatprep.subr.mxu0 0.0
    %1423 = vmatpush1.msra.mxu0 0.0
    %1424 = vmatprep.subr.mxu0 0.0
    %1425 = vmatpush1.msra.mxu0 0.0
    %1426 = vmatprep.subr.mxu0 0.0
    %1427 = vmatpush1.msra.mxu0 0.0
    %1428 = vmatprep.subr.mxu0 0.0
    %1429 = vmatpush1.msra.mxu0 0.0
    %1430 = vmatprep.subr.mxu0 0.0
    %1431 = vmatpush1.msra.mxu0 0.0
    %1432 = vmatprep.subr.mxu0 0.0
    %1433 = vmatpush1.msra.mxu0 0.0
    %1434 = vmatprep.subr.mxu0 0.0
    %1435 = vmatpush1.msra.mxu0 0.0
    %1436 = vmatprep.subr.mxu0 0.0
    %1437 = vmatpush1.msra.mxu0 0.0
    %1438 = vmatprep.subr.mxu0 0.0
    %1439 = vmatpush1.msra.mxu0 0.0
    %1440 = vmatprep.subr.mxu0 0.0
    %1441 = vmatpush1.msra.mxu0 0.0
    %1442 = vmatprep.subr.mxu0 0.0
    %1443 = vmatpush1.msra.mxu0 0.0
    %1444 = vmatprep.mubr.f32.mxu0 0.0
    %v1445 = vand.u32 %v1224, 4294901760
    %1446 = vmatmul.mubr.f32.gmra.mrb[0].mxu0 %v1445
    %v1447 = vpop.f32.mrb[0].mxu0
    %v1448 = vadd.f32 %v1312, %v1447
    %v1449 = vpop.f32.mrb[0].mxu0
    %1450 = vmatprep.mubr.f32.mxu0 0.0
    %v1451 = vand.u32 %v1227, 4294901760
    %1452 = vmatmul.mubr.f32.gmra.mrb[0].mxu0 %v1451
    %v1453 = vpop.f32.mrb[0].mxu0
    %v1454 = vadd.f32 %v1322, %v1453
    %v1455 = vpop.f32.mrb[0].mxu0
    %1456 = vdwg.mxu0
    %1457 = vmatprep.subr.mxu0 0.0
    %v1458 = vand.u32 %v1059, 4294901760
    %v1459 = vsub.f32 %v1059, %v1458
    %1460 = vmatpush1.msra.mxu0 %v1459
    %1461 = vmatprep.subr.mxu0 0.0
    %v1462 = vand.u32 %v1060, 4294901760
    %v1463 = vsub.f32 %v1060, %v1462
    %1464 = vmatpush1.msra.mxu0 %v1463
    %1465 = vmatprep.subr.mxu0 0.0
    %v1466 = vand.u32 %v1061, 4294901760
    %v1467 = vsub.f32 %v1061, %v1466
    %1468 = vmatpush1.msra.mxu0 %v1467
    %1469 = vmatprep.subr.mxu0 0.0
    %v1470 = vand.u32 %v1062, 4294901760
    %v1471 = vsub.f32 %v1062, %v1470
    %1472 = vmatpush1.msra.mxu0 %v1471
    %1473 = vmatprep.subr.mxu0 0.0
    %v1474 = vand.u32 %v1063, 4294901760
    %v1475 = vsub.f32 %v1063, %v1474
    %1476 = vmatpush1.msra.mxu0 %v1475
    %1477 = vmatprep.subr.mxu0 0.0
    %v1478 = vand.u32 %v1064, 4294901760
    %v1479 = vsub.f32 %v1064, %v1478
    %1480 = vmatpush1.msra.mxu0 %v1479
    %1481 = vmatprep.subr.mxu0 0.0
    %v1482 = vand.u32 %v1065, 4294901760
    %v1483 = vsub.f32 %v1065, %v1482
    %1484 = vmatpush1.msra.mxu0 %v1483
    %1485 = vmatprep.subr.mxu0 0.0
    %v1486 = vand.u32 %v1066, 4294901760
    %v1487 = vsub.f32 %v1066, %v1486
    %1488 = vmatpush1.msra.mxu0 %v1487
    %1489 = vmatprep.subr.mxu0 0.0
    %v1490 = vand.u32 %v1067, 4294901760
    %v1491 = vsub.f32 %v1067, %v1490
    %1492 = vmatpush1.msra.mxu0 %v1491
    %1493 = vmatprep.subr.mxu0 0.0
    %v1494 = vand.u32 %v1068, 4294901760
    %v1495 = vsub.f32 %v1068, %v1494
    %1496 = vmatpush1.msra.mxu0 %v1495
    %1497 = vmatprep.subr.mxu0 0.0
    %v1498 = vand.u32 %v1069, 4294901760
    %v1499 = vsub.f32 %v1069, %v1498
    %1500 = vmatpush1.msra.mxu0 %v1499
    %1501 = vmatprep.subr.mxu0 0.0
    %1502 = vmatpush1.msra.mxu0 0.0
    %1503 = vmatprep.subr.mxu0 0.0
    %1504 = vmatpush1.msra.mxu0 0.0
    %1505 = vmatprep.subr.mxu0 0.0
    %1506 = vmatpush1.msra.mxu0 0.0
    %1507 = vmatprep.subr.mxu0 0.0
    %1508 = vmatpush1.msra.mxu0 0.0
    %1509 = vmatprep.subr.mxu0 0.0
    %1510 = vmatpush1.msra.mxu0 0.0
    %1511 = vmatprep.subr.mxu0 0.0
    %1512 = vmatpush1.msra.mxu0 0.0
    %1513 = vmatprep.subr.mxu0 0.0
    %1514 = vmatpush1.msra.mxu0 0.0
    %1515 = vmatprep.subr.mxu0 0.0
    %1516 = vmatpush1.msra.mxu0 0.0
    %1517 = vmatprep.subr.mxu0 0.0
    %1518 = vmatpush1.msra.mxu0 0.0
    %1519 = vmatprep.subr.mxu0 0.0
    %1520 = vmatpush1.msra.mxu0 0.0
    %1521 = vmatprep.subr.mxu0 0.0
    %1522 = vmatpush1.msra.mxu0 0.0
    %1523 = vmatprep.subr.mxu0 0.0
    %1524 = vmatpush1.msra.mxu0 0.0
    %1525 = vmatprep.subr.mxu0 0.0
    %1526 = vmatpush1.msra.mxu0 0.0
    %1527 = vmatprep.subr.mxu0 0.0
    %1528 = vmatpush1.msra.mxu0 0.0
    %1529 = vmatprep.subr.mxu0 0.0
    %1530 = vmatpush1.msra.mxu0 0.0
    %1531 = vmatprep.subr.mxu0 0.0
    %1532 = vmatpush1.msra.mxu0 0.0
    %1533 = vmatprep.subr.mxu0 0.0
    %1534 = vmatpush1.msra.mxu0 0.0
    %1535 = vmatprep.subr.mxu0 0.0
    %1536 = vmatpush1.msra.mxu0 0.0
    %1537 = vmatprep.subr.mxu0 0.0
    %1538 = vmatpush1.msra.mxu0 0.0
    %1539 = vmatprep.subr.mxu0 0.0
    %1540 = vmatpush1.msra.mxu0 0.0
    %1541 = vmatprep.subr.mxu0 0.0
    %1542 = vmatpush1.msra.mxu0 0.0
    %1543 = vmatprep.mubr.f32.mxu0 0.0
    %v1544 = vand.u32 %v1224, 4294901760
    %v1545 = vsub.f32 %v1224, %v1544
    %1546 = vmatmul.mubr.f32.gmra.mrb[0].mxu0 %v1545
    %v1547 = vpop.f32.mrb[0].mxu0
    %v1548 = vadd.f32 %v1448, %v1547
    %v1549 = vpop.f32.mrb[0].mxu0
    %1550 = vmatprep.mubr.f32.mxu0 0.0
    %v1551 = vand.u32 %v1227, 4294901760
    %v1552 = vsub.f32 %v1227, %v1551
    %1553 = vmatmul.mubr.f32.gmra.mrb[0].mxu0 %v1552
    %v1554 = vpop.f32.mrb[0].mxu0
    %v1555 = vadd.f32 %v1454, %v1554
    %v1556 = vpop.f32.mrb[0].mxu0
    %1557 = vdwg.mxu0
    %1558 = vmatprep.subr.mxu0 0.0
    %v1559 = vand.u32 %v1059, 4294901760
    %1560 = vmatpush1.msra.mxu0 %v1559
    %1561 = vmatprep.subr.mxu0 0.0
    %v1562 = vand.u32 %v1060, 4294901760
    %1563 = vmatpush1.msra.mxu0 %v1562
    %1564 = vmatprep.subr.mxu0 0.0
    %v1565 = vand.u32 %v1061, 4294901760
    %1566 = vmatpush1.msra.mxu0 %v1565
    %1567 = vmatprep.subr.mxu0 0.0
    %v1568 = vand.u32 %v1062, 4294901760
    %1569 = vmatpush1.msra.mxu0 %v1568
    %1570 = vmatprep.subr.mxu0 0.0
    %v1571 = vand.u32 %v1063, 4294901760
    %1572 = vmatpush1.msra.mxu0 %v1571
    %1573 = vmatprep.subr.mxu0 0.0
    %v1574 = vand.u32 %v1064, 4294901760
    %1575 = vmatpush1.msra.mxu0 %v1574
    %1576 = vmatprep.subr.mxu0 0.0
    %v1577 = vand.u32 %v1065, 4294901760
    %1578 = vmatpush1.msra.mxu0 %v1577
    %1579 = vmatprep.subr.mxu0 0.0
    %v1580 = vand.u32 %v1066, 4294901760
    %1581 = vmatpush1.msra.mxu0 %v1580
    %1582 = vmatprep.subr.mxu0 0.0
    %v1583 = vand.u32 %v1067, 4294901760
    %1584 = vmatpush1.msra.mxu0 %v1583
    %1585 = vmatprep.subr.mxu0 0.0
    %v1586 = vand.u32 %v1068, 4294901760
    %1587 = vmatpush1.msra.mxu0 %v1586
    %1588 = vmatprep.subr.mxu0 0.0
    %v1589 = vand.u32 %v1069, 4294901760
    %1590 = vmatpush1.msra.mxu0 %v1589
    %1591 = vmatprep.subr.mxu0 0.0
    %1592 = vmatpush1.msra.mxu0 0.0
    %1593 = vmatprep.subr.mxu0 0.0
    %1594 = vmatpush1.msra.mxu0 0.0
    %1595 = vmatprep.subr.mxu0 0.0
    %1596 = vmatpush1.msra.mxu0 0.0
    %1597 = vmatprep.subr.mxu0 0.0
    %1598 = vmatpush1.msra.mxu0 0.0
    %1599 = vmatprep.subr.mxu0 0.0
    %1600 = vmatpush1.msra.mxu0 0.0
    %1601 = vmatprep.subr.mxu0 0.0
    %1602 = vmatpush1.msra.mxu0 0.0
    %1603 = vmatprep.subr.mxu0 0.0
    %1604 = vmatpush1.msra.mxu0 0.0
    %1605 = vmatprep.subr.mxu0 0.0
    %1606 = vmatpush1.msra.mxu0 0.0
    %1607 = vmatprep.subr.mxu0 0.0
    %1608 = vmatpush1.msra.mxu0 0.0
    %1609 = vmatprep.subr.mxu0 0.0
    %1610 = vmatpush1.msra.mxu0 0.0
    %1611 = vmatprep.subr.mxu0 0.0
    %1612 = vmatpush1.msra.mxu0 0.0
    %1613 = vmatprep.subr.mxu0 0.0
    %1614 = vmatpush1.msra.mxu0 0.0
    %1615 = vmatprep.subr.mxu0 0.0
    %1616 = vmatpush1.msra.mxu0 0.0
    %1617 = vmatprep.subr.mxu0 0.0
    %1618 = vmatpush1.msra.mxu0 0.0
    %1619 = vmatprep.subr.mxu0 0.0
    %1620 = vmatpush1.msra.mxu0 0.0
    %1621 = vmatprep.subr.mxu0 0.0
    %1622 = vmatpush1.msra.mxu0 0.0
    %1623 = vmatprep.subr.mxu0 0.0
    %1624 = vmatpush1.msra.mxu0 0.0
    %1625 = vmatprep.subr.mxu0 0.0
    %1626 = vmatpush1.msra.mxu0 0.0
    %1627 = vmatprep.subr.mxu0 0.0
    %1628 = vmatpush1.msra.mxu0 0.0
    %1629 = vmatprep.subr.mxu0 0.0
    %1630 = vmatpush1.msra.mxu0 0.0
    %1631 = vmatprep.subr.mxu0 0.0
    %1632 = vmatpush1.msra.mxu0 0.0
    %1633 = vmatprep.mubr.f32.mxu0 0.0
    %v1634 = vand.u32 %v1224, 4294901760
    %v1635 = vsub.f32 %v1224, %v1634
    %v1636 = vand.u32 %v1635, 4294901760
    %1637 = vmatmul.mubr.f32.gmra.mrb[0].mxu0 %v1636
    %v1638 = vpop.f32.mrb[0].mxu0
    %v1639 = vadd.f32 %v1548, %v1638
    %v1640 = vpop.f32.mrb[0].mxu0
    %1641 = vmatprep.mubr.f32.mxu0 0.0
    %v1642 = vand.u32 %v1227, 4294901760
    %v1643 = vsub.f32 %v1227, %v1642
    %v1644 = vand.u32 %v1643, 4294901760
    %1645 = vmatmul.mubr.f32.gmra.mrb[0].mxu0 %v1644
    %v1646 = vpop.f32.mrb[0].mxu0
    %v1647 = vadd.f32 %v1555, %v1646
    %v1648 = vpop.f32.mrb[0].mxu0
    %1649 = vdwg.mxu0
    %1650 = vmatprep.subr.mxu0 0.0
    %v1651 = vand.u32 %v1059, 4294901760
    %v1652 = vsub.f32 %v1059, %v1651
    %v1653 = vand.u32 %v1652, 4294901760
    %1654 = vmatpush1.msra.mxu0 %v1653
    %1655 = vmatprep.subr.mxu0 0.0
    %v1656 = vand.u32 %v1060, 4294901760
    %v1657 = vsub.f32 %v1060, %v1656
    %v1658 = vand.u32 %v1657, 4294901760
    %1659 = vmatpush1.msra.mxu0 %v1658
    %1660 = vmatprep.subr.mxu0 0.0
    %v1661 = vand.u32 %v1061, 4294901760
    %v1662 = vsub.f32 %v1061, %v1661
    %v1663 = vand.u32 %v1662, 4294901760
    %1664 = vmatpush1.msra.mxu0 %v1663
    %1665 = vmatprep.subr.mxu0 0.0
    %v1666 = vand.u32 %v1062, 4294901760
    %v1667 = vsub.f32 %v1062, %v1666
    %v1668 = vand.u32 %v1667, 4294901760
    %1669 = vmatpush1.msra.mxu0 %v1668
    %1670 = vmatprep.subr.mxu0 0.0
    %v1671 = vand.u32 %v1063, 4294901760
    %v1672 = vsub.f32 %v1063, %v1671
    %v1673 = vand.u32 %v1672, 4294901760
    %1674 = vmatpush1.msra.mxu0 %v1673
    %1675 = vmatprep.subr.mxu0 0.0
    %v1676 = vand.u32 %v1064, 4294901760
    %v1677 = vsub.f32 %v1064, %v1676
    %v1678 = vand.u32 %v1677, 4294901760
    %1679 = vmatpush1.msra.mxu0 %v1678
    %1680 = vmatprep.subr.mxu0 0.0
    %v1681 = vand.u32 %v1065, 4294901760
    %v1682 = vsub.f32 %v1065, %v1681
    %v1683 = vand.u32 %v1682, 4294901760
    %1684 = vmatpush1.msra.mxu0 %v1683
    %1685 = vmatprep.subr.mxu0 0.0
    %v1686 = vand.u32 %v1066, 4294901760
    %v1687 = vsub.f32 %v1066, %v1686
    %v1688 = vand.u32 %v1687, 4294901760
    %1689 = vmatpush1.msra.mxu0 %v1688
    %1690 = vmatprep.subr.mxu0 0.0
    %v1691 = vand.u32 %v1067, 4294901760
    %v1692 = vsub.f32 %v1067, %v1691
    %v1693 = vand.u32 %v1692, 4294901760
    %1694 = vmatpush1.msra.mxu0 %v1693
    %1695 = vmatprep.subr.mxu0 0.0
    %v1696 = vand.u32 %v1068, 4294901760
    %v1697 = vsub.f32 %v1068, %v1696
    %v1698 = vand.u32 %v1697, 4294901760
    %1699 = vmatpush1.msra.mxu0 %v1698
    %1700 = vmatprep.subr.mxu0 0.0
    %v1701 = vand.u32 %v1069, 4294901760
    %v1702 = vsub.f32 %v1069, %v1701
    %v1703 = vand.u32 %v1702, 4294901760
    %1704 = vmatpush1.msra.mxu0 %v1703
    %1705 = vmatprep.subr.mxu0 0.0
    %1706 = vmatpush1.msra.mxu0 0.0
    %1707 = vmatprep.subr.mxu0 0.0
    %1708 = vmatpush1.msra.mxu0 0.0
    %1709 = vmatprep.subr.mxu0 0.0
    %1710 = vmatpush1.msra.mxu0 0.0
    %1711 = vmatprep.subr.mxu0 0.0
    %1712 = vmatpush1.msra.mxu0 0.0
    %1713 = vmatprep.subr.mxu0 0.0
    %1714 = vmatpush1.msra.mxu0 0.0
    %1715 = vmatprep.subr.mxu0 0.0
    %1716 = vmatpush1.msra.mxu0 0.0
    %1717 = vmatprep.subr.mxu0 0.0
    %1718 = vmatpush1.msra.mxu0 0.0
    %1719 = vmatprep.subr.mxu0 0.0
    %1720 = vmatpush1.msra.mxu0 0.0
    %1721 = vmatprep.subr.mxu0 0.0
    %1722 = vmatpush1.msra.mxu0 0.0
    %1723 = vmatprep.subr.mxu0 0.0
    %1724 = vmatpush1.msra.mxu0 0.0
    %1725 = vmatprep.subr.mxu0 0.0
    %1726 = vmatpush1.msra.mxu0 0.0
    %1727 = vmatprep.subr.mxu0 0.0
    %1728 = vmatpush1.msra.mxu0 0.0
    %1729 = vmatprep.subr.mxu0 0.0
    %1730 = vmatpush1.msra.mxu0 0.0
    %1731 = vmatprep.subr.mxu0 0.0
    %1732 = vmatpush1.msra.mxu0 0.0
    %1733 = vmatprep.subr.mxu0 0.0
    %1734 = vmatpush1.msra.mxu0 0.0
    %1735 = vmatprep.subr.mxu0 0.0
    %1736 = vmatpush1.msra.mxu0 0.0
    %1737 = vmatprep.subr.mxu0 0.0
    %1738 = vmatpush1.msra.mxu0 0.0
    %1739 = vmatprep.subr.mxu0 0.0
    %1740 = vmatpush1.msra.mxu0 0.0
    %1741 = vmatprep.subr.mxu0 0.0
    %1742 = vmatpush1.msra.mxu0 0.0
    %1743 = vmatprep.subr.mxu0 0.0
    %1744 = vmatpush1.msra.mxu0 0.0
    %1745 = vmatprep.subr.mxu0 0.0
    %1746 = vmatpush1.msra.mxu0 0.0
    %1747 = vmatprep.mubr.f32.mxu0 0.0
    %v1748 = vand.u32 %v1224, 4294901760
    %1749 = vmatmul.mubr.f32.gmra.mrb[0].mxu0 %v1748
    %v1750 = vpop.f32.mrb[0].mxu0
    %v1751 = vadd.f32 %v1639, %v1750
    %v1752 = vpop.f32.mrb[0].mxu0
    %1753 = vmatprep.mubr.f32.mxu0 0.0
    %v1754 = vand.u32 %v1227, 4294901760
    %1755 = vmatmul.mubr.f32.gmra.mrb[0].mxu0 %v1754
    %v1756 = vpop.f32.mrb[0].mxu0
    %v1757 = vadd.f32 %v1647, %v1756
    %v1758 = vpop.f32.mrb[0].mxu0
    %1759 = vdwg.mxu0
    %1760 = vmatprep.subr.mxu0 0.0
    %v1761 = vand.u32 %v1059, 4294901760
    %1762 = vmatpush1.msra.mxu0 %v1761
    %1763 = vmatprep.subr.mxu0 0.0
    %v1764 = vand.u32 %v1060, 4294901760
    %1765 = vmatpush1.msra.mxu0 %v1764
    %1766 = vmatprep.subr.mxu0 0.0
    %v1767 = vand.u32 %v1061, 4294901760
    %1768 = vmatpush1.msra.mxu0 %v1767
    %1769 = vmatprep.subr.mxu0 0.0
    %v1770 = vand.u32 %v1062, 4294901760
    %1771 = vmatpush1.msra.mxu0 %v1770
    %1772 = vmatprep.subr.mxu0 0.0
    %v1773 = vand.u32 %v1063, 4294901760
    %1774 = vmatpush1.msra.mxu0 %v1773
    %1775 = vmatprep.subr.mxu0 0.0
    %v1776 = vand.u32 %v1064, 4294901760
    %1777 = vmatpush1.msra.mxu0 %v1776
    %1778 = vmatprep.subr.mxu0 0.0
    %v1779 = vand.u32 %v1065, 4294901760
    %1780 = vmatpush1.msra.mxu0 %v1779
    %1781 = vmatprep.subr.mxu0 0.0
    %v1782 = vand.u32 %v1066, 4294901760
    %1783 = vmatpush1.msra.mxu0 %v1782
    %1784 = vmatprep.subr.mxu0 0.0
    %v1785 = vand.u32 %v1067, 4294901760
    %1786 = vmatpush1.msra.mxu0 %v1785
    %1787 = vmatprep.subr.mxu0 0.0
    %v1788 = vand.u32 %v1068, 4294901760
    %1789 = vmatpush1.msra.mxu0 %v1788
    %1790 = vmatprep.subr.mxu0 0.0
    %v1791 = vand.u32 %v1069, 4294901760
    %1792 = vmatpush1.msra.mxu0 %v1791
    %1793 = vmatprep.subr.mxu0 0.0
    %1794 = vmatpush1.msra.mxu0 0.0
    %1795 = vmatprep.subr.mxu0 0.0
    %1796 = vmatpush1.msra.mxu0 0.0
    %1797 = vmatprep.subr.mxu0 0.0
    %1798 = vmatpush1.msra.mxu0 0.0
    %1799 = vmatprep.subr.mxu0 0.0
    %1800 = vmatpush1.msra.mxu0 0.0
    %1801 = vmatprep.subr.mxu0 0.0
    %1802 = vmatpush1.msra.mxu0 0.0
    %1803 = vmatprep.subr.mxu0 0.0
    %1804 = vmatpush1.msra.mxu0 0.0
    %1805 = vmatprep.subr.mxu0 0.0
    %1806 = vmatpush1.msra.mxu0 0.0
    %1807 = vmatprep.subr.mxu0 0.0
    %1808 = vmatpush1.msra.mxu0 0.0
    %1809 = vmatprep.subr.mxu0 0.0
    %1810 = vmatpush1.msra.mxu0 0.0
    %1811 = vmatprep.subr.mxu0 0.0
    %1812 = vmatpush1.msra.mxu0 0.0
    %1813 = vmatprep.subr.mxu0 0.0
    %1814 = vmatpush1.msra.mxu0 0.0
    %1815 = vmatprep.subr.mxu0 0.0
    %1816 = vmatpush1.msra.mxu0 0.0
    %1817 = vmatprep.subr.mxu0 0.0
    %1818 = vmatpush1.msra.mxu0 0.0
    %1819 = vmatprep.subr.mxu0 0.0
    %1820 = vmatpush1.msra.mxu0 0.0
    %1821 = vmatprep.subr.mxu0 0.0
    %1822 = vmatpush1.msra.mxu0 0.0
    %1823 = vmatprep.subr.mxu0 0.0
    %1824 = vmatpush1.msra.mxu0 0.0
    %1825 = vmatprep.subr.mxu0 0.0
    %1826 = vmatpush1.msra.mxu0 0.0
    %1827 = vmatprep.subr.mxu0 0.0
    %1828 = vmatpush1.msra.mxu0 0.0
    %1829 = vmatprep.subr.mxu0 0.0
    %1830 = vmatpush1.msra.mxu0 0.0
    %1831 = vmatprep.subr.mxu0 0.0
    %1832 = vmatpush1.msra.mxu0 0.0
    %1833 = vmatprep.subr.mxu0 0.0
    %1834 = vmatpush1.msra.mxu0 0.0
    %1835 = vmatprep.mubr.f32.mxu0 0.0
    %v1836 = vand.u32 %v1224, 4294901760
    %1837 = vmatmul.mubr.f32.gmra.mrb[0].mxu0 %v1836
    %v1838 = vpop.f32.mrb[0].mxu0
    %v1839 = vadd.f32 %v1751, %v1838
    %v1840 = vpop.f32.mrb[0].mxu0
    %1841 = vmatprep.mubr.f32.mxu0 0.0
    %v1842 = vand.u32 %v1227, 4294901760
    %1843 = vmatmul.mubr.f32.gmra.mrb[0].mxu0 %v1842
    %v1844 = vpop.f32.mrb[0].mxu0
    %v1845 = vadd.f32 %v1757, %v1844
    %v1846 = vpop.f32.mrb[0].mxu0
    %1847 = vdwg.mxu0
    %v1848 = vmax.f32 %v1839, 0.0
    %v1849 = vmax.f32 %v1845, 0.0
    %1850 = vst.msk [vmem:[#allocation2] sm:$0xff] %vm224, %v1848
    %1851 = vst.msk [vmem:[#allocation2 + $0x8] sm:$0xff] %vm224, %v1849
    %v1852 = vld [vmem:[#allocation2] ss:$2 sm:$0xff]
    %v1853 = vld [vmem:[%s1053] ss:$2 sm:$0xff]
    %v1854 = vmax.f32 %v1852, %v1853
    %v1855 = vld [vmem:[%s6] sm:$0xff]
    %v1856 = vld [vmem:[%s6 + $0x8] sm:$0xff]
    %v1857 = vld [vmem:[%s6 + $0x10] sm:$0xff]
    %v1858 = vld [vmem:[%s6 + $0x18] sm:$0xff]
    %v1859 = vld [vmem:[%s6 + $0x20] sm:$0xff]
    %v1860 = vld [vmem:[%s6 + $0x28] sm:$0xff]
    %v1861 = vld [vmem:[%s6 + $0x30] sm:$0xff]
    %v1862 = vld [vmem:[%s6 + $0x38] sm:$0xff]
    %v1863 = vld [vmem:[%s6 + $0x40] sm:$0xff]
    %v1864 = vld [vmem:[%s6 + $0x48] sm:$0xff]
    %v1865 = vld [vmem:[%s6 + $0x50] sm:$0xff]
    %v1866 = vld [vmem:[%s7] sm:$0x1]
    %v1868 = vrot.slane %v1854, 3
    %v1870 = vsel %vm104, 0.0, %v1868
    %v1871 = vsel %vm186, %v1868, 0.0
    %v1873 = vrot.slane %v1870, 1
    %1874 = vrot.lane.b32.xlu0 %v1873, 8
    %v1875 = vpop.permute.xlu0 %1874
    %v1877 = vrot.slane %v1870, 2
    %1878 = vrot.lane.b32.xlu0 %v1877, 16
    %v1879 = vpop.permute.xlu0 %1878
    %v1881 = vrot.slane %v1870, 3
    %1882 = vrot.lane.b32.xlu0 %v1881, 24
    %v1883 = vpop.permute.xlu0 %1882
    %v1885 = vrot.slane %v1870, 4
    %1886 = vrot.lane.b32.xlu0 %v1885, 32
    %v1887 = vpop.permute.xlu0 %1886
    %v1890 = vrot.slane %v1870, 5
    %v1891 = vrot.slane %v1871, 5
    %v1892 = vsel %vm162, %v1890, %v1891
    %1893 = vrot.lane.b32.xlu0 %v1892, 40
    %v1894 = vpop.permute.xlu0 %1893
    %v1896 = vrot.slane %v1870, 6
    %v1897 = vrot.slane %v1871, 6
    %v1898 = vsel %vm174, %v1896, %v1897
    %1899 = vrot.lane.b32.xlu0 %v1898, 48
    %v1900 = vpop.permute.xlu0 %1899
    %v1902 = vrot.slane %v1870, 7
    %v1903 = vrot.slane %v1871, 7
    %v1904 = vsel %vm186, %v1902, %v1903
    %1905 = vrot.lane.b32.xlu0 %v1904, 56
    %v1906 = vpop.permute.xlu0 %1905
    %1908 = vrot.lane.b32.xlu0 %v1871, 64
    %v1909 = vpop.permute.xlu0 %1908
    %v1911 = vrot.slane %v1871, 1
    %1912 = vrot.lane.b32.xlu0 %v1911, 72
    %v1913 = vpop.permute.xlu0 %1912
    %v1915 = vrot.slane %v1871, 2
    %1916 = vrot.lane.b32.xlu0 %v1915, 80
    %v1917 = vpop.permute.xlu0 %1916
    %v1919 = vsel %vm224, %v1870, %v1875
    %v1920 = vsel %vm230, %v1919, %v1879
    %v1921 = vsel %vm236, %v1920, %v1883
    %v1922 = vsel %vm242, %v1921, %v1887
    %v1923 = vsel %vm248, %v1922, %v1894
    %v1924 = vsel %vm1136, %v1923, %v1900
    %v1925 = vsel %vm1138, %v1924, %v1906
    %v1926 = vsel %vm1140, %v1925, %v1909
    %v1927 = vsel %vm1142, %v1926, %v1913
    %v1928 = vsel %vm1144, %v1927, %v1917
    %v1929 = vrot.slane %v1854, 7
    %v1931 = vsel %vm104, 0.0, %v1929
    %v1932 = vsel %vm186, %v1929, 0.0
    %v1934 = vrot.slane %v1931, 1
    %1935 = vrot.lane.b32.xlu0 %v1934, 8
    %v1936 = vpop.permute.xlu0 %1935
    %v1938 = vrot.slane %v1931, 2
    %1939 = vrot.lane.b32.xlu0 %v1938, 16
    %v1940 = vpop.permute.xlu0 %1939
    %v1942 = vrot.slane %v1931, 3
    %1943 = vrot.lane.b32.xlu0 %v1942, 24
    %v1944 = vpop.permute.xlu0 %1943
    %v1946 = vrot.slane %v1931, 4
    %1947 = vrot.lane.b32.xlu0 %v1946, 32
    %v1948 = vpop.permute.xlu0 %1947
    %v1951 = vrot.slane %v1931, 5
    %v1952 = vrot.slane %v1932, 5
    %v1953 = vsel %vm162, %v1951, %v1952
    %1954 = vrot.lane.b32.xlu0 %v1953, 40
    %v1955 = vpop.permute.xlu0 %1954
    %v1957 = vrot.slane %v1931, 6
    %v1958 = vrot.slane %v1932, 6
    %v1959 = vsel %vm174, %v1957, %v1958
    %1960 = vrot.lane.b32.xlu0 %v1959, 48
    %v1961 = vpop.permute.xlu0 %1960
    %v1963 = vrot.slane %v1931, 7
    %v1964 = vrot.slane %v1932, 7
    %v1965 = vsel %vm186, %v1963, %v1964
    %1966 = vrot.lane.b32.xlu0 %v1965, 56
    %v1967 = vpop.permute.xlu0 %1966
    %1969 = vrot.lane.b32.xlu0 %v1932, 64
    %v1970 = vpop.permute.xlu0 %1969
    %v1972 = vrot.slane %v1932, 1
    %1973 = vrot.lane.b32.xlu0 %v1972, 72
    %v1974 = vpop.permute.xlu0 %1973
    %v1976 = vrot.slane %v1932, 2
    %1977 = vrot.lane.b32.xlu0 %v1976, 80
    %v1978 = vpop.permute.xlu0 %1977
    %v1980 = vsel %vm224, %v1931, %v1936
    %v1981 = vsel %vm230, %v1980, %v1940
    %v1982 = vsel %vm236, %v1981, %v1944
    %v1983 = vsel %vm242, %v1982, %v1948
    %v1984 = vsel %vm248, %v1983, %v1955
    %v1985 = vsel %vm1136, %v1984, %v1961
    %v1986 = vsel %vm1138, %v1985, %v1967
    %v1987 = vsel %vm1140, %v1986, %v1970
    %v1988 = vsel %vm1142, %v1987, %v1974
    %v1989 = vsel %vm1144, %v1988, %v1978
    %v1991 = vrot.slane %v1989, 4
    %v1993 = vsel %vm150, %v1928, %v1991
    %v1995 = vlaneseq
    %v1996 = vshrl.u32 %v1995, 7
    %v1997 = vsub.s32 0, %v1996
    %v1998 = vrot.slane %v1866, %v1997
    %v2001 = vsel %vm1222, %v1993, 0
    %2003 = vmatprep.subr.mxu0 0.0
    %v2004 = vand.u32 %v1855, 4294901760
    %2005 = vmatpush1.msra.mxu0 %v2004
    %2006 = vmatprep.subr.mxu0 0.0
    %v2007 = vand.u32 %v1856, 4294901760
    %2008 = vmatpush1.msra.mxu0 %v2007
    %2009 = vmatprep.subr.mxu0 0.0
    %v2010 = vand.u32 %v1857, 4294901760
    %2011 = vmatpush1.msra.mxu0 %v2010
    %2012 = vmatprep.subr.mxu0 0.0
    %v2013 = vand.u32 %v1858, 4294901760
    %2014 = vmatpush1.msra.mxu0 %v2013
    %2015 = vmatprep.subr.mxu0 0.0
    %v2016 = vand.u32 %v1859, 4294901760
    %2017 = vmatpush1.msra.mxu0 %v2016
    %2018 = vmatprep.subr.mxu0 0.0
    %v2019 = vand.u32 %v1860, 4294901760
    %2020 = vmatpush1.msra.mxu0 %v2019
    %2021 = vmatprep.subr.mxu0 0.0
    %v2022 = vand.u32 %v1861, 4294901760
    %2023 = vmatpush1.msra.mxu0 %v2022
    %2024 = vmatprep.subr.mxu0 0.0
    %v2025 = vand.u32 %v1862, 4294901760
    %2026 = vmatpush1.msra.mxu0 %v2025
    %2027 = vmatprep.subr.mxu0 0.0
    %v2028 = vand.u32 %v1863, 4294901760
    %2029 = vmatpush1.msra.mxu0 %v2028
    %2030 = vmatprep.subr.mxu0 0.0
    %v2031 = vand.u32 %v1864, 4294901760
    %2032 = vmatpush1.msra.mxu0 %v2031
    %2033 = vmatprep.subr.mxu0 0.0
    %v2034 = vand.u32 %v1865, 4294901760
    %2035 = vmatpush1.msra.mxu0 %v2034
    %2036 = vmatprep.subr.mxu0 0.0
    %2037 = vmatpush1.msra.mxu0 0.0
    %2038 = vmatprep.subr.mxu0 0.0
    %2039 = vmatpush1.msra.mxu0 0.0
    %2040 = vmatprep.subr.mxu0 0.0
    %2041 = vmatpush1.msra.mxu0 0.0
    %2042 = vmatprep.subr.mxu0 0.0
    %2043 = vmatpush1.msra.mxu0 0.0
    %2044 = vmatprep.subr.mxu0 0.0
    %2045 = vmatpush1.msra.mxu0 0.0
    %2046 = vmatprep.subr.mxu0 0.0
    %2047 = vmatpush1.msra.mxu0 0.0
    %2048 = vmatprep.subr.mxu0 0.0
    %2049 = vmatpush1.msra.mxu0 0.0
    %2050 = vmatprep.subr.mxu0 0.0
    %2051 = vmatpush1.msra.mxu0 0.0
    %2052 = vmatprep.subr.mxu0 0.0
    %2053 = vmatpush1.msra.mxu0 0.0
    %2054 = vmatprep.subr.mxu0 0.0
    %2055 = vmatpush1.msra.mxu0 0.0
    %2056 = vmatprep.subr.mxu0 0.0
    %2057 = vmatpush1.msra.mxu0 0.0
    %2058 = vmatprep.subr.mxu0 0.0
    %2059 = vmatpush1.msra.mxu0 0.0
    %2060 = vmatprep.subr.mxu0 0.0
    %2061 = vmatpush1.msra.mxu0 0.0
    %2062 = vmatprep.subr.mxu0 0.0
    %2063 = vmatpush1.msra.mxu0 0.0
    %2064 = vmatprep.subr.mxu0 0.0
    %2065 = vmatpush1.msra.mxu0 0.0
    %2066 = vmatprep.subr.mxu0 0.0
    %2067 = vmatpush1.msra.mxu0 0.0
    %2068 = vmatprep.subr.mxu0 0.0
    %2069 = vmatpush1.msra.mxu0 0.0
    %2070 = vmatprep.subr.mxu0 0.0
    %2071 = vmatpush1.msra.mxu0 0.0
    %2072 = vmatprep.subr.mxu0 0.0
    %2073 = vmatpush1.msra.mxu0 0.0
    %2074 = vmatprep.subr.mxu0 0.0
    %2075 = vmatpush1.msra.mxu0 0.0
    %2076 = vmatprep.subr.mxu0 0.0
    %2077 = vmatpush1.msra.mxu0 0.0
    %2078 = vmatprep.mubr.f32.mxu0 0.0
    %v2079 = vand.u32 %v2001, 4294901760
    %v2080 = vsub.f32 %v2001, %v2079
    %v2081 = vand.u32 %v2080, 4294901760
    %v2082 = vsub.f32 %v2080, %v2081
    %v2083 = vand.u32 %v2082, 4294901760
    %2084 = vmatmul.mubr.f32.gmra.mrb[0].mxu0 %v2083
    %v2085 = vpop.f32.mrb[0].mxu0
    %v2086 = vadd.f32 %v1998, %v2085
    %v2087 = vpop.f32.mrb[0].mxu0
    %2088 = vdwg.mxu0
    %2089 = vmatprep.subr.mxu0 0.0
    %v2090 = vand.u32 %v1855, 4294901760
    %v2091 = vsub.f32 %v1855, %v2090
    %v2092 = vand.u32 %v2091, 4294901760
    %v2093 = vsub.f32 %v2091, %v2092
    %v2094 = vand.u32 %v2093, 4294901760
    %2095 = vmatpush1.msra.mxu0 %v2094
    %2096 = vmatprep.subr.mxu0 0.0
    %v2097 = vand.u32 %v1856, 4294901760
    %v2098 = vsub.f32 %v1856, %v2097
    %v2099 = vand.u32 %v2098, 4294901760
    %v2100 = vsub.f32 %v2098, %v2099
    %v2101 = vand.u32 %v2100, 4294901760
    %2102 = vmatpush1.msra.mxu0 %v2101
    %2103 = vmatprep.subr.mxu0 0.0
    %v2104 = vand.u32 %v1857, 4294901760
    %v2105 = vsub.f32 %v1857, %v2104
    %v2106 = vand.u32 %v2105, 4294901760
    %v2107 = vsub.f32 %v2105, %v2106
    %v2108 = vand.u32 %v2107, 4294901760
    %2109 = vmatpush1.msra.mxu0 %v2108
    %2110 = vmatprep.subr.mxu0 0.0
    %v2111 = vand.u32 %v1858, 4294901760
    %v2112 = vsub.f32 %v1858, %v2111
    %v2113 = vand.u32 %v2112, 4294901760
    %v2114 = vsub.f32 %v2112, %v2113
    %v2115 = vand.u32 %v2114, 4294901760
    %2116 = vmatpush1.msra.mxu0 %v2115
    %2117 = vmatprep.subr.mxu0 0.0
    %v2118 = vand.u32 %v1859, 4294901760
    %v2119 = vsub.f32 %v1859, %v2118
    %v2120 = vand.u32 %v2119, 4294901760
    %v2121 = vsub.f32 %v2119, %v2120
    %v2122 = vand.u32 %v2121, 4294901760
    %2123 = vmatpush1.msra.mxu0 %v2122
    %2124 = vmatprep.subr.mxu0 0.0
    %v2125 = vand.u32 %v1860, 4294901760
    %v2126 = vsub.f32 %v1860, %v2125
    %v2127 = vand.u32 %v2126, 4294901760
    %v2128 = vsub.f32 %v2126, %v2127
    %v2129 = vand.u32 %v2128, 4294901760
    %2130 = vmatpush1.msra.mxu0 %v2129
    %2131 = vmatprep.subr.mxu0 0.0
    %v2132 = vand.u32 %v1861, 4294901760
    %v2133 = vsub.f32 %v1861, %v2132
    %v2134 = vand.u32 %v2133, 4294901760
    %v2135 = vsub.f32 %v2133, %v2134
    %v2136 = vand.u32 %v2135, 4294901760
    %2137 = vmatpush1.msra.mxu0 %v2136
    %2138 = vmatprep.subr.mxu0 0.0
    %v2139 = vand.u32 %v1862, 4294901760
    %v2140 = vsub.f32 %v1862, %v2139
    %v2141 = vand.u32 %v2140, 4294901760
    %v2142 = vsub.f32 %v2140, %v2141
    %v2143 = vand.u32 %v2142, 4294901760
    %2144 = vmatpush1.msra.mxu0 %v2143
    %2145 = vmatprep.subr.mxu0 0.0
    %v2146 = vand.u32 %v1863, 4294901760
    %v2147 = vsub.f32 %v1863, %v2146
    %v2148 = vand.u32 %v2147, 4294901760
    %v2149 = vsub.f32 %v2147, %v2148
    %v2150 = vand.u32 %v2149, 4294901760
    %2151 = vmatpush1.msra.mxu0 %v2150
    %2152 = vmatprep.subr.mxu0 0.0
    %v2153 = vand.u32 %v1864, 4294901760
    %v2154 = vsub.f32 %v1864, %v2153
    %v2155 = vand.u32 %v2154, 4294901760
    %v2156 = vsub.f32 %v2154, %v2155
    %v2157 = vand.u32 %v2156, 4294901760
    %2158 = vmatpush1.msra.mxu0 %v2157
    %2159 = vmatprep.subr.mxu0 0.0
    %v2160 = vand.u32 %v1865, 4294901760
    %v2161 = vsub.f32 %v1865, %v2160
    %v2162 = vand.u32 %v2161, 4294901760
    %v2163 = vsub.f32 %v2161, %v2162
    %v2164 = vand.u32 %v2163, 4294901760
    %2165 = vmatpush1.msra.mxu0 %v2164
    %2166 = vmatprep.subr.mxu0 0.0
    %2167 = vmatpush1.msra.mxu0 0.0
    %2168 = vmatprep.subr.mxu0 0.0
    %2169 = vmatpush1.msra.mxu0 0.0
    %2170 = vmatprep.subr.mxu0 0.0
    %2171 = vmatpush1.msra.mxu0 0.0
    %2172 = vmatprep.subr.mxu0 0.0
    %2173 = vmatpush1.msra.mxu0 0.0
    %2174 = vmatprep.subr.mxu0 0.0
    %2175 = vmatpush1.msra.mxu0 0.0
    %2176 = vmatprep.subr.mxu0 0.0
    %2177 = vmatpush1.msra.mxu0 0.0
    %2178 = vmatprep.subr.mxu0 0.0
    %2179 = vmatpush1.msra.mxu0 0.0
    %2180 = vmatprep.subr.mxu0 0.0
    %2181 = vmatpush1.msra.mxu0 0.0
    %2182 = vmatprep.subr.mxu0 0.0
    %2183 = vmatpush1.msra.mxu0 0.0
    %2184 = vmatprep.subr.mxu0 0.0
    %2185 = vmatpush1.msra.mxu0 0.0
    %2186 = vmatprep.subr.mxu0 0.0
    %2187 = vmatpush1.msra.mxu0 0.0
    %2188 = vmatprep.subr.mxu0 0.0
    %2189 = vmatpush1.msra.mxu0 0.0
    %2190 = vmatprep.subr.mxu0 0.0
    %2191 = vmatpush1.msra.mxu0 0.0
    %2192 = vmatprep.subr.mxu0 0.0
    %2193 = vmatpush1.msra.mxu0 0.0
    %2194 = vmatprep.subr.mxu0 0.0
    %2195 = vmatpush1.msra.mxu0 0.0
    %2196 = vmatprep.subr.mxu0 0.0
    %2197 = vmatpush1.msra.mxu0 0.0
    %2198 = vmatprep.subr.mxu0 0.0
    %2199 = vmatpush1.msra.mxu0 0.0
    %2200 = vmatprep.subr.mxu0 0.0
    %2201 = vmatpush1.msra.mxu0 0.0
    %2202 = vmatprep.subr.mxu0 0.0
    %2203 = vmatpush1.msra.mxu0 0.0
    %2204 = vmatprep.subr.mxu0 0.0
    %2205 = vmatpush1.msra.mxu0 0.0
    %2206 = vmatprep.subr.mxu0 0.0
    %2207 = vmatpush1.msra.mxu0 0.0
    %2208 = vmatprep.mubr.f32.mxu0 0.0
    %v2209 = vand.u32 %v2001, 4294901760
    %2210 = vmatmul.mubr.f32.gmra.mrb[0].mxu0 %v2209
    %v2211 = vpop.f32.mrb[0].mxu0
    %v2212 = vadd.f32 %v2086, %v2211
    %v2213 = vpop.f32.mrb[0].mxu0
    %2214 = vdwg.mxu0
    %2215 = vmatprep.subr.mxu0 0.0
    %v2216 = vand.u32 %v1855, 4294901760
    %v2217 = vsub.f32 %v1855, %v2216
    %2218 = vmatpush1.msra.mxu0 %v2217
    %2219 = vmatprep.subr.mxu0 0.0
    %v2220 = vand.u32 %v1856, 4294901760
    %v2221 = vsub.f32 %v1856, %v2220
    %2222 = vmatpush1.msra.mxu0 %v2221
    %2223 = vmatprep.subr.mxu0 0.0
    %v2224 = vand.u32 %v1857, 4294901760
    %v2225 = vsub.f32 %v1857, %v2224
    %2226 = vmatpush1.msra.mxu0 %v2225
    %2227 = vmatprep.subr.mxu0 0.0
    %v2228 = vand.u32 %v1858, 4294901760
    %v2229 = vsub.f32 %v1858, %v2228
    %2230 = vmatpush1.msra.mxu0 %v2229
    %2231 = vmatprep.subr.mxu0 0.0
    %v2232 = vand.u32 %v1859, 4294901760
    %v2233 = vsub.f32 %v1859, %v2232
    %2234 = vmatpush1.msra.mxu0 %v2233
    %2235 = vmatprep.subr.mxu0 0.0
    %v2236 = vand.u32 %v1860, 4294901760
    %v2237 = vsub.f32 %v1860, %v2236
    %2238 = vmatpush1.msra.mxu0 %v2237
    %2239 = vmatprep.subr.mxu0 0.0
    %v2240 = vand.u32 %v1861, 4294901760
    %v2241 = vsub.f32 %v1861, %v2240
    %2242 = vmatpush1.msra.mxu0 %v2241
    %2243 = vmatprep.subr.mxu0 0.0
    %v2244 = vand.u32 %v1862, 4294901760
    %v2245 = vsub.f32 %v1862, %v2244
    %2246 = vmatpush1.msra.mxu0 %v2245
    %2247 = vmatprep.subr.mxu0 0.0
    %v2248 = vand.u32 %v1863, 4294901760
    %v2249 = vsub.f32 %v1863, %v2248
    %2250 = vmatpush1.msra.mxu0 %v2249
    %2251 = vmatprep.subr.mxu0 0.0
    %v2252 = vand.u32 %v1864, 4294901760
    %v2253 = vsub.f32 %v1864, %v2252
    %2254 = vmatpush1.msra.mxu0 %v2253
    %2255 = vmatprep.subr.mxu0 0.0
    %v2256 = vand.u32 %v1865, 4294901760
    %v2257 = vsub.f32 %v1865, %v2256
    %2258 = vmatpush1.msra.mxu0 %v2257
    %2259 = vmatprep.subr.mxu0 0.0
    %2260 = vmatpush1.msra.mxu0 0.0
    %2261 = vmatprep.subr.mxu0 0.0
    %2262 = vmatpush1.msra.mxu0 0.0
    %2263 = vmatprep.subr.mxu0 0.0
    %2264 = vmatpush1.msra.mxu0 0.0
    %2265 = vmatprep.subr.mxu0 0.0
    %2266 = vmatpush1.msra.mxu0 0.0
    %2267 = vmatprep.subr.mxu0 0.0
    %2268 = vmatpush1.msra.mxu0 0.0
    %2269 = vmatprep.subr.mxu0 0.0
    %2270 = vmatpush1.msra.mxu0 0.0
    %2271 = vmatprep.subr.mxu0 0.0
    %2272 = vmatpush1.msra.mxu0 0.0
    %2273 = vmatprep.subr.mxu0 0.0
    %2274 = vmatpush1.msra.mxu0 0.0
    %2275 = vmatprep.subr.mxu0 0.0
    %2276 = vmatpush1.msra.mxu0 0.0
    %2277 = vmatprep.subr.mxu0 0.0
    %2278 = vmatpush1.msra.mxu0 0.0
    %2279 = vmatprep.subr.mxu0 0.0
    %2280 = vmatpush1.msra.mxu0 0.0
    %2281 = vmatprep.subr.mxu0 0.0
    %2282 = vmatpush1.msra.mxu0 0.0
    %2283 = vmatprep.subr.mxu0 0.0
    %2284 = vmatpush1.msra.mxu0 0.0
    %2285 = vmatprep.subr.mxu0 0.0
    %2286 = vmatpush1.msra.mxu0 0.0
    %2287 = vmatprep.subr.mxu0 0.0
    %2288 = vmatpush1.msra.mxu0 0.0
    %2289 = vmatprep.subr.mxu0 0.0
    %2290 = vmatpush1.msra.mxu0 0.0
    %2291 = vmatprep.subr.mxu0 0.0
    %2292 = vmatpush1.msra.mxu0 0.0
    %2293 = vmatprep.subr.mxu0 0.0
    %2294 = vmatpush1.msra.mxu0 0.0
    %2295 = vmatprep.subr.mxu0 0.0
    %2296 = vmatpush1.msra.mxu0 0.0
    %2297 = vmatprep.subr.mxu0 0.0
    %2298 = vmatpush1.msra.mxu0 0.0
    %2299 = vmatprep.subr.mxu0 0.0
    %2300 = vmatpush1.msra.mxu0 0.0
    %2301 = vmatprep.mubr.f32.mxu0 0.0
    %v2302 = vand.u32 %v2001, 4294901760
    %v2303 = vsub.f32 %v2001, %v2302
    %2304 = vmatmul.mubr.f32.gmra.mrb[0].mxu0 %v2303
    %v2305 = vpop.f32.mrb[0].mxu0
    %v2306 = vadd.f32 %v2212, %v2305
    %v2307 = vpop.f32.mrb[0].mxu0
    %2308 = vdwg.mxu0
    %2309 = vmatprep.subr.mxu0 0.0
    %v2310 = vand.u32 %v1855, 4294901760
    %2311 = vmatpush1.msra.mxu0 %v2310
    %2312 = vmatprep.subr.mxu0 0.0
    %v2313 = vand.u32 %v1856, 4294901760
    %2314 = vmatpush1.msra.mxu0 %v2313
    %2315 = vmatprep.subr.mxu0 0.0
    %v2316 = vand.u32 %v1857, 4294901760
    %2317 = vmatpush1.msra.mxu0 %v2316
    %2318 = vmatprep.subr.mxu0 0.0
    %v2319 = vand.u32 %v1858, 4294901760
    %2320 = vmatpush1.msra.mxu0 %v2319
    %2321 = vmatprep.subr.mxu0 0.0
    %v2322 = vand.u32 %v1859, 4294901760
    %2323 = vmatpush1.msra.mxu0 %v2322
    %2324 = vmatprep.subr.mxu0 0.0
    %v2325 = vand.u32 %v1860, 4294901760
    %2326 = vmatpush1.msra.mxu0 %v2325
    %2327 = vmatprep.subr.mxu0 0.0
    %v2328 = vand.u32 %v1861, 4294901760
    %2329 = vmatpush1.msra.mxu0 %v2328
    %2330 = vmatprep.subr.mxu0 0.0
    %v2331 = vand.u32 %v1862, 4294901760
    %2332 = vmatpush1.msra.mxu0 %v2331
    %2333 = vmatprep.subr.mxu0 0.0
    %v2334 = vand.u32 %v1863, 4294901760
    %2335 = vmatpush1.msra.mxu0 %v2334
    %2336 = vmatprep.subr.mxu0 0.0
    %v2337 = vand.u32 %v1864, 4294901760
    %2338 = vmatpush1.msra.mxu0 %v2337
    %2339 = vmatprep.subr.mxu0 0.0
    %v2340 = vand.u32 %v1865, 4294901760
    %2341 = vmatpush1.msra.mxu0 %v2340
    %2342 = vmatprep.subr.mxu0 0.0
    %2343 = vmatpush1.msra.mxu0 0.0
    %2344 = vmatprep.subr.mxu0 0.0
    %2345 = vmatpush1.msra.mxu0 0.0
    %2346 = vmatprep.subr.mxu0 0.0
    %2347 = vmatpush1.msra.mxu0 0.0
    %2348 = vmatprep.subr.mxu0 0.0
    %2349 = vmatpush1.msra.mxu0 0.0
    %2350 = vmatprep.subr.mxu0 0.0
    %2351 = vmatpush1.msra.mxu0 0.0
    %2352 = vmatprep.subr.mxu0 0.0
    %2353 = vmatpush1.msra.mxu0 0.0
    %2354 = vmatprep.subr.mxu0 0.0
    %2355 = vmatpush1.msra.mxu0 0.0
    %2356 = vmatprep.subr.mxu0 0.0
    %2357 = vmatpush1.msra.mxu0 0.0
    %2358 = vmatprep.subr.mxu0 0.0
    %2359 = vmatpush1.msra.mxu0 0.0
    %2360 = vmatprep.subr.mxu0 0.0
    %2361 = vmatpush1.msra.mxu0 0.0
    %2362 = vmatprep.subr.mxu0 0.0
    %2363 = vmatpush1.msra.mxu0 0.0
    %2364 = vmatprep.subr.mxu0 0.0
    %2365 = vmatpush1.msra.mxu0 0.0
    %2366 = vmatprep.subr.mxu0 0.0
    %2367 = vmatpush1.msra.mxu0 0.0
    %2368 = vmatprep.subr.mxu0 0.0
    %2369 = vmatpush1.msra.mxu0 0.0
    %2370 = vmatprep.subr.mxu0 0.0
    %2371 = vmatpush1.msra.mxu0 0.0
    %2372 = vmatprep.subr.mxu0 0.0
    %2373 = vmatpush1.msra.mxu0 0.0
    %2374 = vmatprep.subr.mxu0 0.0
    %2375 = vmatpush1.msra.mxu0 0.0
    %2376 = vmatprep.subr.mxu0 0.0
    %2377 = vmatpush1.msra.mxu0 0.0
    %2378 = vmatprep.subr.mxu0 0.0
    %2379 = vmatpush1.msra.mxu0 0.0
    %2380 = vmatprep.subr.mxu0 0.0
    %2381 = vmatpush1.msra.mxu0 0.0
    %2382 = vmatprep.subr.mxu0 0.0
    %2383 = vmatpush1.msra.mxu0 0.0
    %2384 = vmatprep.mubr.f32.mxu0 0.0
    %v2385 = vand.u32 %v2001, 4294901760
    %v2386 = vsub.f32 %v2001, %v2385
    %v2387 = vand.u32 %v2386, 4294901760
    %2388 = vmatmul.mubr.f32.gmra.mrb[0].mxu0 %v2387
    %v2389 = vpop.f32.mrb[0].mxu0
    %v2390 = vadd.f32 %v2306, %v2389
    %v2391 = vpop.f32.mrb[0].mxu0
    %2392 = vdwg.mxu0
    %2393 = vmatprep.subr.mxu0 0.0
    %v2394 = vand.u32 %v1855, 4294901760
    %v2395 = vsub.f32 %v1855, %v2394
    %v2396 = vand.u32 %v2395, 4294901760
    %2397 = vmatpush1.msra.mxu0 %v2396
    %2398 = vmatprep.subr.mxu0 0.0
    %v2399 = vand.u32 %v1856, 4294901760
    %v2400 = vsub.f32 %v1856, %v2399
    %v2401 = vand.u32 %v2400, 4294901760
    %2402 = vmatpush1.msra.mxu0 %v2401
    %2403 = vmatprep.subr.mxu0 0.0
    %v2404 = vand.u32 %v1857, 4294901760
    %v2405 = vsub.f32 %v1857, %v2404
    %v2406 = vand.u32 %v2405, 4294901760
    %2407 = vmatpush1.msra.mxu0 %v2406
    %2408 = vmatprep.subr.mxu0 0.0
    %v2409 = vand.u32 %v1858, 4294901760
    %v2410 = vsub.f32 %v1858, %v2409
    %v2411 = vand.u32 %v2410, 4294901760
    %2412 = vmatpush1.msra.mxu0 %v2411
    %2413 = vmatprep.subr.mxu0 0.0
    %v2414 = vand.u32 %v1859, 4294901760
    %v2415 = vsub.f32 %v1859, %v2414
    %v2416 = vand.u32 %v2415, 4294901760
    %2417 = vmatpush1.msra.mxu0 %v2416
    %2418 = vmatprep.subr.mxu0 0.0
    %v2419 = vand.u32 %v1860, 4294901760
    %v2420 = vsub.f32 %v1860, %v2419
    %v2421 = vand.u32 %v2420, 4294901760
    %2422 = vmatpush1.msra.mxu0 %v2421
    %2423 = vmatprep.subr.mxu0 0.0
    %v2424 = vand.u32 %v1861, 4294901760
    %v2425 = vsub.f32 %v1861, %v2424
    %v2426 = vand.u32 %v2425, 4294901760
    %2427 = vmatpush1.msra.mxu0 %v2426
    %2428 = vmatprep.subr.mxu0 0.0
    %v2429 = vand.u32 %v1862, 4294901760
    %v2430 = vsub.f32 %v1862, %v2429
    %v2431 = vand.u32 %v2430, 4294901760
    %2432 = vmatpush1.msra.mxu0 %v2431
    %2433 = vmatprep.subr.mxu0 0.0
    %v2434 = vand.u32 %v1863, 4294901760
    %v2435 = vsub.f32 %v1863, %v2434
    %v2436 = vand.u32 %v2435, 4294901760
    %2437 = vmatpush1.msra.mxu0 %v2436
    %2438 = vmatprep.subr.mxu0 0.0
    %v2439 = vand.u32 %v1864, 4294901760
    %v2440 = vsub.f32 %v1864, %v2439
    %v2441 = vand.u32 %v2440, 4294901760
    %2442 = vmatpush1.msra.mxu0 %v2441
    %2443 = vmatprep.subr.mxu0 0.0
    %v2444 = vand.u32 %v1865, 4294901760
    %v2445 = vsub.f32 %v1865, %v2444
    %v2446 = vand.u32 %v2445, 4294901760
    %2447 = vmatpush1.msra.mxu0 %v2446
    %2448 = vmatprep.subr.mxu0 0.0
    %2449 = vmatpush1.msra.mxu0 0.0
    %2450 = vmatprep.subr.mxu0 0.0
    %2451 = vmatpush1.msra.mxu0 0.0
    %2452 = vmatprep.subr.mxu0 0.0
    %2453 = vmatpush1.msra.mxu0 0.0
    %2454 = vmatprep.subr.mxu0 0.0
    %2455 = vmatpush1.msra.mxu0 0.0
    %2456 = vmatprep.subr.mxu0 0.0
    %2457 = vmatpush1.msra.mxu0 0.0
    %2458 = vmatprep.subr.mxu0 0.0
    %2459 = vmatpush1.msra.mxu0 0.0
    %2460 = vmatprep.subr.mxu0 0.0
    %2461 = vmatpush1.msra.mxu0 0.0
    %2462 = vmatprep.subr.mxu0 0.0
    %2463 = vmatpush1.msra.mxu0 0.0
    %2464 = vmatprep.subr.mxu0 0.0
    %2465 = vmatpush1.msra.mxu0 0.0
    %2466 = vmatprep.subr.mxu0 0.0
    %2467 = vmatpush1.msra.mxu0 0.0
    %2468 = vmatprep.subr.mxu0 0.0
    %2469 = vmatpush1.msra.mxu0 0.0
    %2470 = vmatprep.subr.mxu0 0.0
    %2471 = vmatpush1.msra.mxu0 0.0
    %2472 = vmatprep.subr.mxu0 0.0
    %2473 = vmatpush1.msra.mxu0 0.0
    %2474 = vmatprep.subr.mxu0 0.0
    %2475 = vmatpush1.msra.mxu0 0.0
    %2476 = vmatprep.subr.mxu0 0.0
    %2477 = vmatpush1.msra.mxu0 0.0
    %2478 = vmatprep.subr.mxu0 0.0
    %2479 = vmatpush1.msra.mxu0 0.0
    %2480 = vmatprep.subr.mxu0 0.0
    %2481 = vmatpush1.msra.mxu0 0.0
    %2482 = vmatprep.subr.mxu0 0.0
    %2483 = vmatpush1.msra.mxu0 0.0
    %2484 = vmatprep.subr.mxu0 0.0
    %2485 = vmatpush1.msra.mxu0 0.0
    %2486 = vmatprep.subr.mxu0 0.0
    %2487 = vmatpush1.msra.mxu0 0.0
    %2488 = vmatprep.subr.mxu0 0.0
    %2489 = vmatpush1.msra.mxu0 0.0
    %2490 = vmatprep.mubr.f32.mxu0 0.0
    %v2491 = vand.u32 %v2001, 4294901760
    %2492 = vmatmul.mubr.f32.gmra.mrb[0].mxu0 %v2491
    %v2493 = vpop.f32.mrb[0].mxu0
    %v2494 = vadd.f32 %v2390, %v2493
    %v2495 = vpop.f32.mrb[0].mxu0
    %2496 = vdwg.mxu0
    %2497 = vmatprep.subr.mxu0 0.0
    %v2498 = vand.u32 %v1855, 4294901760
    %2499 = vmatpush1.msra.mxu0 %v2498
    %2500 = vmatprep.subr.mxu0 0.0
    %v2501 = vand.u32 %v1856, 4294901760
    %2502 = vmatpush1.msra.mxu0 %v2501
    %2503 = vmatprep.subr.mxu0 0.0
    %v2504 = vand.u32 %v1857, 4294901760
    %2505 = vmatpush1.msra.mxu0 %v2504
    %2506 = vmatprep.subr.mxu0 0.0
    %v2507 = vand.u32 %v1858, 4294901760
    %2508 = vmatpush1.msra.mxu0 %v2507
    %2509 = vmatprep.subr.mxu0 0.0
    %v2510 = vand.u32 %v1859, 4294901760
    %2511 = vmatpush1.msra.mxu0 %v2510
    %2512 = vmatprep.subr.mxu0 0.0
    %v2513 = vand.u32 %v1860, 4294901760
    %2514 = vmatpush1.msra.mxu0 %v2513
    %2515 = vmatprep.subr.mxu0 0.0
    %v2516 = vand.u32 %v1861, 4294901760
    %2517 = vmatpush1.msra.mxu0 %v2516
    %2518 = vmatprep.subr.mxu0 0.0
    %v2519 = vand.u32 %v1862, 4294901760
    %2520 = vmatpush1.msra.mxu0 %v2519
    %2521 = vmatprep.subr.mxu0 0.0
    %v2522 = vand.u32 %v1863, 4294901760
    %2523 = vmatpush1.msra.mxu0 %v2522
    %2524 = vmatprep.subr.mxu0 0.0
    %v2525 = vand.u32 %v1864, 4294901760
    %2526 = vmatpush1.msra.mxu0 %v2525
    %2527 = vmatprep.subr.mxu0 0.0
    %v2528 = vand.u32 %v1865, 4294901760
    %2529 = vmatpush1.msra.mxu0 %v2528
    %2530 = vmatprep.subr.mxu0 0.0
    %2531 = vmatpush1.msra.mxu0 0.0
    %2532 = vmatprep.subr.mxu0 0.0
    %2533 = vmatpush1.msra.mxu0 0.0
    %2534 = vmatprep.subr.mxu0 0.0
    %2535 = vmatpush1.msra.mxu0 0.0
    %2536 = vmatprep.subr.mxu0 0.0
    %2537 = vmatpush1.msra.mxu0 0.0
    %2538 = vmatprep.subr.mxu0 0.0
    %2539 = vmatpush1.msra.mxu0 0.0
    %2540 = vmatprep.subr.mxu0 0.0
    %2541 = vmatpush1.msra.mxu0 0.0
    %2542 = vmatprep.subr.mxu0 0.0
    %2543 = vmatpush1.msra.mxu0 0.0
    %2544 = vmatprep.subr.mxu0 0.0
    %2545 = vmatpush1.msra.mxu0 0.0
    %2546 = vmatprep.subr.mxu0 0.0
    %2547 = vmatpush1.msra.mxu0 0.0
    %2548 = vmatprep.subr.mxu0 0.0
    %2549 = vmatpush1.msra.mxu0 0.0
    %2550 = vmatprep.subr.mxu0 0.0
    %2551 = vmatpush1.msra.mxu0 0.0
    %2552 = vmatprep.subr.mxu0 0.0
    %2553 = vmatpush1.msra.mxu0 0.0
    %2554 = vmatprep.subr.mxu0 0.0
    %2555 = vmatpush1.msra.mxu0 0.0
    %2556 = vmatprep.subr.mxu0 0.0
    %2557 = vmatpush1.msra.mxu0 0.0
    %2558 = vmatprep.subr.mxu0 0.0
    %2559 = vmatpush1.msra.mxu0 0.0
    %2560 = vmatprep.subr.mxu0 0.0
    %2561 = vmatpush1.msra.mxu0 0.0
    %2562 = vmatprep.subr.mxu0 0.0
    %2563 = vmatpush1.msra.mxu0 0.0
    %2564 = vmatprep.subr.mxu0 0.0
    %2565 = vmatpush1.msra.mxu0 0.0
    %2566 = vmatprep.subr.mxu0 0.0
    %2567 = vmatpush1.msra.mxu0 0.0
    %2568 = vmatprep.subr.mxu0 0.0
    %2569 = vmatpush1.msra.mxu0 0.0
    %2570 = vmatprep.subr.mxu0 0.0
    %2571 = vmatpush1.msra.mxu0 0.0
    %2572 = vmatprep.mubr.f32.mxu0 0.0
    %v2573 = vand.u32 %v2001, 4294901760
    %2574 = vmatmul.mubr.f32.gmra.mrb[0].mxu0 %v2573
    %v2575 = vpop.f32.mrb[0].mxu0
    %v2576 = vadd.f32 %v2494, %v2575
    %v2577 = vpop.f32.mrb[0].mxu0
    %2578 = vdwg.mxu0
    %v2579 = vmax.f32 %v2576, 0.0
    %2580 = vst.msk [vmem:[#allocation2] sm:$0xff] %vm230, %v2579
    %v2581 = vld [vmem:[#allocation2] ss:$2 sm:$0xf]
    %v2582 = vld [vmem:[%s1053] ss:$2 sm:$0xf]
    %v2583 = vmax.f32 %v2581, %v2582
    %v2584 = vld [vmem:[%s8] sm:$0xff]
    %v2585 = vld [vmem:[%s8 + $0x8] sm:$0xff]
    %v2586 = vld [vmem:[%s8 + $0x10] sm:$0xff]
    %v2587 = vld [vmem:[%s8 + $0x18] sm:$0xf]
    %v2588 = vld [vmem:[%s9] sm:$0x1]
    %v2591 = vrot.slane %v91, 5
    %v2592 = vrot.slane %v92, 5
    %v2593 = vsel %vm162, %v2591, %v2592
    %v2597 = vsel %vm162, 0.0, %v2591
    %v2598 = vsel %vm162, %v2592, 0.0
    %v2601 = vrot.slane %v2597, 1
    %v2602 = vrot.slane %v2593, 1
    %v2603 = vsel %vm115, %v2601, %v2602
    %v2604 = vrot.slane %v2598, 1
    %v2605 = vsel %vm115, %v2602, %v2604
    %2606 = vrot.lane.b32.xlu0 %v2603, 4
    %v2607 = vpop.permute.xlu0 %2606
    %2608 = vrot.lane.b32.xlu0 %v2605, 4
    %v2609 = vpop.permute.xlu0 %2608
    %v2612 = vrot.slane %v2597, 2
    %v2613 = vrot.slane %v2593, 2
    %v2614 = vsel %vm127, %v2612, %v2613
    %v2615 = vrot.slane %v2598, 2
    %v2616 = vsel %vm127, %v2613, %v2615
    %2617 = vrot.lane.b32.xlu0 %v2614, 8
    %v2618 = vpop.permute.xlu0 %2617
    %2619 = vrot.lane.b32.xlu0 %v2616, 8
    %v2620 = vpop.permute.xlu0 %2619
    %v2623 = vrot.slane %v2597, 3
    %v2624 = vrot.slane %v2593, 3
    %v2625 = vsel %vm104, %v2623, %v2624
    %v2626 = vrot.slane %v2598, 3
    %v2627 = vsel %vm104, %v2624, %v2626
    %2628 = vrot.lane.b32.xlu0 %v2625, 12
    %v2629 = vpop.permute.xlu0 %2628
    %2630 = vrot.lane.b32.xlu0 %v2627, 12
    %v2631 = vpop.permute.xlu0 %2630
    %v2634 = vrot.slane %v2597, 4
    %v2635 = vrot.slane %v2593, 4
    %v2636 = vsel %vm150, %v2634, %v2635
    %v2637 = vrot.slane %v2598, 4
    %v2638 = vsel %vm150, %v2635, %v2637
    %2639 = vrot.lane.b32.xlu0 %v2636, 16
    %v2640 = vpop.permute.xlu0 %2639
    %2641 = vrot.lane.b32.xlu0 %v2638, 16
    %v2642 = vpop.permute.xlu0 %2641
    %v2645 = vrot.slane %v2597, 5
    %v2646 = vrot.slane %v2593, 5
    %v2647 = vsel %vm162, %v2645, %v2646
    %v2648 = vrot.slane %v2598, 5
    %v2649 = vsel %vm162, %v2646, %v2648
    %2650 = vrot.lane.b32.xlu0 %v2647, 20
    %v2651 = vpop.permute.xlu0 %2650
    %2652 = vrot.lane.b32.xlu0 %v2649, 20
    %v2653 = vpop.permute.xlu0 %2652
    %v2656 = vrot.slane %v2597, 6
    %v2657 = vrot.slane %v2593, 6
    %v2658 = vsel %vm174, %v2656, %v2657
    %v2659 = vrot.slane %v2598, 6
    %v2660 = vsel %vm174, %v2657, %v2659
    %2661 = vrot.lane.b32.xlu0 %v2658, 24
    %v2662 = vpop.permute.xlu0 %2661
    %2663 = vrot.lane.b32.xlu0 %v2660, 24
    %v2664 = vpop.permute.xlu0 %2663
    %v2667 = vsel %vm221, %v2597, %v2607
    %v2668 = vsel %vm221, %v2593, %v2609
    %v2669 = vsel %vm224, %v2667, %v2618
    %v2670 = vsel %vm224, %v2668, %v2620
    %v2671 = vsel %vm227, %v2669, %v2629
    %v2672 = vsel %vm227, %v2670, %v2631
    %v2673 = vsel %vm230, %v2671, %v2640
    %v2674 = vsel %vm230, %v2672, %v2642
    %v2675 = vsel %vm233, %v2673, %v2651
    %v2676 = vsel %vm233, %v2674, %v2653
    %v2677 = vsel %vm236, %v2675, %v2662
    %v2678 = vsel %vm236, %v2676, %v2664
    %v2681 = vrot.slane %v93, 5
    %v2682 = vrot.slane %v94, 5
    %v2683 = vsel %vm162, %v2681, %v2682
    %v2687 = vsel %vm162, 0.0, %v2681
    %v2688 = vsel %vm162, %v2682, 0.0
    %v2691 = vrot.slane %v2687, 1
    %v2692 = vrot.slane %v2683, 1
    %v2693 = vsel %vm115, %v2691, %v2692
    %v2694 = vrot.slane %v2688, 1
    %v2695 = vsel %vm115, %v2692, %v2694
    %2696 = vrot.lane.b32.xlu0 %v2693, 4
    %v2697 = vpop.permute.xlu0 %2696
    %2698 = vrot.lane.b32.xlu0 %v2695, 4
    %v2699 = vpop.permute.xlu0 %2698
    %v2702 = vrot.slane %v2687, 2
    %v2703 = vrot.slane %v2683, 2
    %v2704 = vsel %vm127, %v2702, %v2703
    %v2705 = vrot.slane %v2688, 2
    %v2706 = vsel %vm127, %v2703, %v2705
    %2707 = vrot.lane.b32.xlu0 %v2704, 8
    %v2708 = vpop.permute.xlu0 %2707
    %2709 = vrot.lane.b32.xlu0 %v2706, 8
    %v2710 = vpop.permute.xlu0 %2709
    %v2713 = vrot.slane %v2687, 3
    %v2714 = vrot.slane %v2683, 3
    %v2715 = vsel %vm104, %v2713, %v2714
    %v2716 = vrot.slane %v2688, 3
    %v2717 = vsel %vm104, %v2714, %v2716
    %2718 = vrot.lane.b32.xlu0 %v2715, 12
    %v2719 = vpop.permute.xlu0 %2718
    %2720 = vrot.lane.b32.xlu0 %v2717, 12
    %v2721 = vpop.permute.xlu0 %2720
    %v2724 = vrot.slane %v2687, 4
    %v2725 = vrot.slane %v2683, 4
    %v2726 = vsel %vm150, %v2724, %v2725
    %v2727 = vrot.slane %v2688, 4
    %v2728 = vsel %vm150, %v2725, %v2727
    %2729 = vrot.lane.b32.xlu0 %v2726, 16
    %v2730 = vpop.permute.xlu0 %2729
    %2731 = vrot.lane.b32.xlu0 %v2728, 16
    %v2732 = vpop.permute.xlu0 %2731
    %v2735 = vrot.slane %v2687, 5
    %v2736 = vrot.slane %v2683, 5
    %v2737 = vsel %vm162, %v2735, %v2736
    %v2738 = vrot.slane %v2688, 5
    %v2739 = vsel %vm162, %v2736, %v2738
    %2740 = vrot.lane.b32.xlu0 %v2737, 20
    %v2741 = vpop.permute.xlu0 %2740
    %2742 = vrot.lane.b32.xlu0 %v2739, 20
    %v2743 = vpop.permute.xlu0 %2742
    %v2746 = vrot.slane %v2687, 6
    %v2747 = vrot.slane %v2683, 6
    %v2748 = vsel %vm174, %v2746, %v2747
    %v2749 = vrot.slane %v2688, 6
    %v2750 = vsel %vm174, %v2747, %v2749
    %2751 = vrot.lane.b32.xlu0 %v2748, 24
    %v2752 = vpop.permute.xlu0 %2751
    %2753 = vrot.lane.b32.xlu0 %v2750, 24
    %v2754 = vpop.permute.xlu0 %2753
    %v2757 = vsel %vm221, %v2687, %v2697
    %v2758 = vsel %vm221, %v2683, %v2699
    %v2759 = vsel %vm224, %v2757, %v2708
    %v2760 = vsel %vm224, %v2758, %v2710
    %v2761 = vsel %vm227, %v2759, %v2719
    %v2762 = vsel %vm227, %v2760, %v2721
    %v2763 = vsel %vm230, %v2761, %v2730
    %v2764 = vsel %vm230, %v2762, %v2732
    %v2765 = vsel %vm233, %v2763, %v2741
    %v2766 = vsel %vm233, %v2764, %v2743
    %v2767 = vsel %vm236, %v2765, %v2752
    %v2768 = vsel %vm236, %v2766, %v2754
    %v2770 = vlaneseq
    %v2771 = vshrl.u32 %v2770, 7
    %v2772 = vsub.s32 0, %v2771
    %v2773 = vrot.slane %v2588, %v2772
    %v2776 = vsel %vm239, %v2677, 0
    %v2779 = vsel %vm239, %v2678, 0
    %v2782 = vsel %vm239, %v2767, 0
    %v2785 = vsel %vm239, %v2768, 0
    %v2788 = vsel %vm150, %v2587, 0
    %2790 = vmatprep.subr.mxu0 0.0
    %v2791 = vand.u32 %v2584, 4294901760
    %2792 = vmatpush1.msra.mxu0 %v2791
    %2793 = vmatprep.subr.mxu0 0.0
    %v2794 = vand.u32 %v2585, 4294901760
    %2795 = vmatpush1.msra.mxu0 %v2794
    %2796 = vmatprep.subr.mxu0 0.0
    %v2797 = vand.u32 %v2586, 4294901760
    %2798 = vmatpush1.msra.mxu0 %v2797
    %2799 = vmatprep.subr.mxu0 0.0
    %v2800 = vand.u32 %v2788, 4294901760
    %2801 = vmatpush1.msra.mxu0 %v2800
    %2802 = vmatprep.subr.mxu0 0.0
    %2803 = vmatpush1.msra.mxu0 0.0
    %2804 = vmatprep.subr.mxu0 0.0
    %2805 = vmatpush1.msra.mxu0 0.0
    %2806 = vmatprep.subr.mxu0 0.0
    %2807 = vmatpush1.msra.mxu0 0.0
    %2808 = vmatprep.subr.mxu0 0.0
    %2809 = vmatpush1.msra.mxu0 0.0
    %2810 = vmatprep.subr.mxu0 0.0
    %2811 = vmatpush1.msra.mxu0 0.0
    %2812 = vmatprep.subr.mxu0 0.0
    %2813 = vmatpush1.msra.mxu0 0.0
    %2814 = vmatprep.subr.mxu0 0.0
    %2815 = vmatpush1.msra.mxu0 0.0
    %2816 = vmatprep.subr.mxu0 0.0
    %2817 = vmatpush1.msra.mxu0 0.0
    %2818 = vmatprep.subr.mxu0 0.0
    %2819 = vmatpush1.msra.mxu0 0.0
    %2820 = vmatprep.subr.mxu0 0.0
    %2821 = vmatpush1.msra.mxu0 0.0
    %2822 = vmatprep.subr.mxu0 0.0
    %2823 = vmatpush1.msra.mxu0 0.0
    %2824 = vmatprep.subr.mxu0 0.0
    %2825 = vmatpush1.msra.mxu0 0.0
    %2826 = vmatprep.subr.mxu0 0.0
    %2827 = vmatpush1.msra.mxu0 0.0
    %2828 = vmatprep.subr.mxu0 0.0
    %2829 = vmatpush1.msra.mxu0 0.0
    %2830 = vmatprep.subr.mxu0 0.0
    %2831 = vmatpush1.msra.mxu0 0.0
    %2832 = vmatprep.subr.mxu0 0.0
    %2833 = vmatpush1.msra.mxu0 0.0
    %2834 = vmatprep.subr.mxu0 0.0
    %2835 = vmatpush1.msra.mxu0 0.0
    %2836 = vmatprep.subr.mxu0 0.0
    %2837 = vmatpush1.msra.mxu0 0.0
    %2838 = vmatprep.subr.mxu0 0.0
    %2839 = vmatpush1.msra.mxu0 0.0
    %2840 = vmatprep.subr.mxu0 0.0
    %2841 = vmatpush1.msra.mxu0 0.0
    %2842 = vmatprep.subr.mxu0 0.0
    %2843 = vmatpush1.msra.mxu0 0.0
    %2844 = vmatprep.subr.mxu0 0.0
    %2845 = vmatpush1.msra.mxu0 0.0
    %2846 = vmatprep.subr.mxu0 0.0
    %2847 = vmatpush1.msra.mxu0 0.0
    %2848 = vmatprep.subr.mxu0 0.0
    %2849 = vmatpush1.msra.mxu0 0.0
    %2850 = vmatprep.subr.mxu0 0.0
    %2851 = vmatpush1.msra.mxu0 0.0
    %2852 = vmatprep.subr.mxu0 0.0
    %2853 = vmatpush1.msra.mxu0 0.0
    %2854 = vmatprep.subr.mxu0 0.0
    %2855 = vmatpush1.msra.mxu0 0.0
    %2856 = vmatprep.subr.mxu0 0.0
    %2857 = vmatpush1.msra.mxu0 0.0
    %2858 = vmatprep.mubr.f32.mxu0 0.0
    %v2859 = vand.u32 %v2776, 4294901760
    %v2860 = vsub.f32 %v2776, %v2859
    %v2861 = vand.u32 %v2860, 4294901760
    %v2862 = vsub.f32 %v2860, %v2861
    %v2863 = vand.u32 %v2862, 4294901760
    %2864 = vmatmul.mubr.f32.gmra.mrb[0].mxu0 %v2863
    %v2865 = vpop.f32.mrb[0].mxu0
    %v2866 = vadd.f32 %v2773, %v2865
    %v2867 = vpop.f32.mrb[0].mxu0
    %2868 = vmatprep.mubr.f32.mxu0 0.0
    %v2869 = vand.u32 %v2779, 4294901760
    %v2870 = vsub.f32 %v2779, %v2869
    %v2871 = vand.u32 %v2870, 4294901760
    %v2872 = vsub.f32 %v2870, %v2871
    %v2873 = vand.u32 %v2872, 4294901760
    %2874 = vmatmul.mubr.f32.gmra.mrb[0].mxu0 %v2873
    %v2875 = vpop.f32.mrb[0].mxu0
    %v2876 = vadd.f32 %v2773, %v2875
    %v2877 = vpop.f32.mrb[0].mxu0
    %2878 = vmatprep.mubr.f32.mxu0 0.0
    %v2879 = vand.u32 %v2782, 4294901760
    %v2880 = vsub.f32 %v2782, %v2879
    %v2881 = vand.u32 %v2880, 4294901760
    %v2882 = vsub.f32 %v2880, %v2881
    %v2883 = vand.u32 %v2882, 4294901760
    %2884 = vmatmul.mubr.f32.gmra.mrb[0].mxu0 %v2883
    %v2885 = vpop.f32.mrb[0].mxu0
    %v2886 = vadd.f32 %v2773, %v2885
    %v2887 = vpop.f32.mrb[0].mxu0
    %2888 = vmatprep.mubr.f32.mxu0 0.0
    %v2889 = vand.u32 %v2785, 4294901760
    %v2890 = vsub.f32 %v2785, %v2889
    %v2891 = vand.u32 %v2890, 4294901760
    %v2892 = vsub.f32 %v2890, %v2891
    %v2893 = vand.u32 %v2892, 4294901760
    %2894 = vmatmul.mubr.f32.gmra.mrb[0].mxu0 %v2893
    %v2895 = vpop.f32.mrb[0].mxu0
    %v2896 = vadd.f32 %v2773, %v2895
    %v2897 = vpop.f32.mrb[0].mxu0
    %2898 = vdwg.mxu0
    %2899 = vmatprep.subr.mxu0 0.0
    %v2900 = vand.u32 %v2584, 4294901760
    %v2901 = vsub.f32 %v2584, %v2900
    %v2902 = vand.u32 %v2901, 4294901760
    %v2903 = vsub.f32 %v2901, %v2902
    %v2904 = vand.u32 %v2903, 4294901760
    %2905 = vmatpush1.msra.mxu0 %v2904
    %2906 = vmatprep.subr.mxu0 0.0
    %v2907 = vand.u32 %v2585, 4294901760
    %v2908 = vsub.f32 %v2585, %v2907
    %v2909 = vand.u32 %v2908, 4294901760
    %v2910 = vsub.f32 %v2908, %v2909
    %v2911 = vand.u32 %v2910, 4294901760
    %2912 = vmatpush1.msra.mxu0 %v2911
    %2913 = vmatprep.subr.mxu0 0.0
    %v2914 = vand.u32 %v2586, 4294901760
    %v2915 = vsub.f32 %v2586, %v2914
    %v2916 = vand.u32 %v2915, 4294901760
    %v2917 = vsub.f32 %v2915, %v2916
    %v2918 = vand.u32 %v2917, 4294901760
    %2919 = vmatpush1.msra.mxu0 %v2918
    %2920 = vmatprep.subr.mxu0 0.0
    %v2921 = vand.u32 %v2788, 4294901760
    %v2922 = vsub.f32 %v2788, %v2921
    %v2923 = vand.u32 %v2922, 4294901760
    %v2924 = vsub.f32 %v2922, %v2923
    %v2925 = vand.u32 %v2924, 4294901760
    %2926 = vmatpush1.msra.mxu0 %v2925
    %2927 = vmatprep.subr.mxu0 0.0
    %2928 = vmatpush1.msra.mxu0 0.0
    %2929 = vmatprep.subr.mxu0 0.0
    %2930 = vmatpush1.msra.mxu0 0.0
    %2931 = vmatprep.subr.mxu0 0.0
    %2932 = vmatpush1.msra.mxu0 0.0
    %2933 = vmatprep.subr.mxu0 0.0
    %2934 = vmatpush1.msra.mxu0 0.0
    %2935 = vmatprep.subr.mxu0 0.0
    %2936 = vmatpush1.msra.mxu0 0.0
    %2937 = vmatprep.subr.mxu0 0.0
    %2938 = vmatpush1.msra.mxu0 0.0
    %2939 = vmatprep.subr.mxu0 0.0
    %2940 = vmatpush1.msra.mxu0 0.0
    %2941 = vmatprep.subr.mxu0 0.0
    %2942 = vmatpush1.msra.mxu0 0.0
    %2943 = vmatprep.subr.mxu0 0.0
    %2944 = vmatpush1.msra.mxu0 0.0
    %2945 = vmatprep.subr.mxu0 0.0
    %2946 = vmatpush1.msra.mxu0 0.0
    %2947 = vmatprep.subr.mxu0 0.0
    %2948 = vmatpush1.msra.mxu0 0.0
    %2949 = vmatprep.subr.mxu0 0.0
    %2950 = vmatpush1.msra.mxu0 0.0
    %2951 = vmatprep.subr.mxu0 0.0
    %2952 = vmatpush1.msra.mxu0 0.0
    %2953 = vmatprep.subr.mxu0 0.0
    %2954 = vmatpush1.msra.mxu0 0.0
    %2955 = vmatprep.subr.mxu0 0.0
    %2956 = vmatpush1.msra.mxu0 0.0
    %2957 = vmatprep.subr.mxu0 0.0
    %2958 = vmatpush1.msra.mxu0 0.0
    %2959 = vmatprep.subr.mxu0 0.0
    %2960 = vmatpush1.msra.mxu0 0.0
    %2961 = vmatprep.subr.mxu0 0.0
    %2962 = vmatpush1.msra.mxu0 0.0
    %2963 = vmatprep.subr.mxu0 0.0
    %2964 = vmatpush1.msra.mxu0 0.0
    %2965 = vmatprep.subr.mxu0 0.0
    %2966 = vmatpush1.msra.mxu0 0.0
    %2967 = vmatprep.subr.mxu0 0.0
    %2968 = vmatpush1.msra.mxu0 0.0
    %2969 = vmatprep.subr.mxu0 0.0
    %2970 = vmatpush1.msra.mxu0 0.0
    %2971 = vmatprep.subr.mxu0 0.0
    %2972 = vmatpush1.msra.mxu0 0.0
    %2973 = vmatprep.subr.mxu0 0.0
    %2974 = vmatpush1.msra.mxu0 0.0
    %2975 = vmatprep.subr.mxu0 0.0
    %2976 = vmatpush1.msra.mxu0 0.0
    %2977 = vmatprep.subr.mxu0 0.0
    %2978 = vmatpush1.msra.mxu0 0.0
    %2979 = vmatprep.subr.mxu0 0.0
    %2980 = vmatpush1.msra.mxu0 0.0
    %2981 = vmatprep.subr.mxu0 0.0
    %2982 = vmatpush1.msra.mxu0 0.0
    %2983 = vmatprep.mubr.f32.mxu0 0.0
    %v2984 = vand.u32 %v2776, 4294901760
    %2985 = vmatmul.mubr.f32.gmra.mrb[0].mxu0 %v2984
    %v2986 = vpop.f32.mrb[0].mxu0
    %v2987 = vadd.f32 %v2866, %v2986
    %v2988 = vpop.f32.mrb[0].mxu0
    %2989 = vmatprep.mubr.f32.mxu0 0.0
    %v2990 = vand.u32 %v2779, 4294901760
    %2991 = vmatmul.mubr.f32.gmra.mrb[0].mxu0 %v2990
    %v2992 = vpop.f32.mrb[0].mxu0
    %v2993 = vadd.f32 %v2876, %v2992
    %v2994 = vpop.f32.mrb[0].mxu0
    %2995 = vmatprep.mubr.f32.mxu0 0.0
    %v2996 = vand.u32 %v2782, 4294901760
    %2997 = vmatmul.mubr.f32.gmra.mrb[0].mxu0 %v2996
    %v2998 = vpop.f32.mrb[0].mxu0
    %v2999 = vadd.f32 %v2886, %v2998
    %v3000 = vpop.f32.mrb[0].mxu0
    %3001 = vmatprep.mubr.f32.mxu0 0.0
    %v3002 = vand.u32 %v2785, 4294901760
    %3003 = vmatmul.mubr.f32.gmra.mrb[0].mxu0 %v3002
    %v3004 = vpop.f32.mrb[0].mxu0
    %v3005 = vadd.f32 %v2896, %v3004
    %v3006 = vpop.f32.mrb[0].mxu0
    %3007 = vdwg.mxu0
    %3008 = vmatprep.subr.mxu0 0.0
    %v3009 = vand.u32 %v2584, 4294901760
    %v3010 = vsub.f32 %v2584, %v3009
    %3011 = vmatpush1.msra.mxu0 %v3010
    %3012 = vmatprep.subr.mxu0 0.0
    %v3013 = vand.u32 %v2585, 4294901760
    %v3014 = vsub.f32 %v2585, %v3013
    %3015 = vmatpush1.msra.mxu0 %v3014
    %3016 = vmatprep.subr.mxu0 0.0
    %v3017 = vand.u32 %v2586, 4294901760
    %v3018 = vsub.f32 %v2586, %v3017
    %3019 = vmatpush1.msra.mxu0 %v3018
    %3020 = vmatprep.subr.mxu0 0.0
    %v3021 = vand.u32 %v2788, 4294901760
    %v3022 = vsub.f32 %v2788, %v3021
    %3023 = vmatpush1.msra.mxu0 %v3022
    %3024 = vmatprep.subr.mxu0 0.0
    %3025 = vmatpush1.msra.mxu0 0.0
    %3026 = vmatprep.subr.mxu0 0.0
    %3027 = vmatpush1.msra.mxu0 0.0
    %3028 = vmatprep.subr.mxu0 0.0
    %3029 = vmatpush1.msra.mxu0 0.0
    %3030 = vmatprep.subr.mxu0 0.0
    %3031 = vmatpush1.msra.mxu0 0.0
    %3032 = vmatprep.subr.mxu0 0.0
    %3033 = vmatpush1.msra.mxu0 0.0
    %3034 = vmatprep.subr.mxu0 0.0
    %3035 = vmatpush1.msra.mxu0 0.0
    %3036 = vmatprep.subr.mxu0 0.0
    %3037 = vmatpush1.msra.mxu0 0.0
    %3038 = vmatprep.subr.mxu0 0.0
    %3039 = vmatpush1.msra.mxu0 0.0
    %3040 = vmatprep.subr.mxu0 0.0
    %3041 = vmatpush1.msra.mxu0 0.0
    %3042 = vmatprep.subr.mxu0 0.0
    %3043 = vmatpush1.msra.mxu0 0.0
    %3044 = vmatprep.subr.mxu0 0.0
    %3045 = vmatpush1.msra.mxu0 0.0
    %3046 = vmatprep.subr.mxu0 0.0
    %3047 = vmatpush1.msra.mxu0 0.0
    %3048 = vmatprep.subr.mxu0 0.0
    %3049 = vmatpush1.msra.mxu0 0.0
    %3050 = vmatprep.subr.mxu0 0.0
    %3051 = vmatpush1.msra.mxu0 0.0
    %3052 = vmatprep.subr.mxu0 0.0
    %3053 = vmatpush1.msra.mxu0 0.0
    %3054 = vmatprep.subr.mxu0 0.0
    %3055 = vmatpush1.msra.mxu0 0.0
    %3056 = vmatprep.subr.mxu0 0.0
    %3057 = vmatpush1.msra.mxu0 0.0
    %3058 = vmatprep.subr.mxu0 0.0
    %3059 = vmatpush1.msra.mxu0 0.0
    %3060 = vmatprep.subr.mxu0 0.0
    %3061 = vmatpush1.msra.mxu0 0.0
    %3062 = vmatprep.subr.mxu0 0.0
    %3063 = vmatpush1.msra.mxu0 0.0
    %3064 = vmatprep.subr.mxu0 0.0
    %3065 = vmatpush1.msra.mxu0 0.0
    %3066 = vmatprep.subr.mxu0 0.0
    %3067 = vmatpush1.msra.mxu0 0.0
    %3068 = vmatprep.subr.mxu0 0.0
    %3069 = vmatpush1.msra.mxu0 0.0
    %3070 = vmatprep.subr.mxu0 0.0
    %3071 = vmatpush1.msra.mxu0 0.0
    %3072 = vmatprep.subr.mxu0 0.0
    %3073 = vmatpush1.msra.mxu0 0.0
    %3074 = vmatprep.subr.mxu0 0.0
    %3075 = vmatpush1.msra.mxu0 0.0
    %3076 = vmatprep.subr.mxu0 0.0
    %3077 = vmatpush1.msra.mxu0 0.0
    %3078 = vmatprep.subr.mxu0 0.0
    %3079 = vmatpush1.msra.mxu0 0.0
    %3080 = vmatprep.mubr.f32.mxu0 0.0
    %v3081 = vand.u32 %v2776, 4294901760
    %v3082 = vsub.f32 %v2776, %v3081
    %3083 = vmatmul.mubr.f32.gmra.mrb[0].mxu0 %v3082
    %v3084 = vpop.f32.mrb[0].mxu0
    %v3085 = vadd.f32 %v2987, %v3084
    %v3086 = vpop.f32.mrb[0].mxu0
    %3087 = vmatprep.mubr.f32.mxu0 0.0
    %v3088 = vand.u32 %v2779, 4294901760
    %v3089 = vsub.f32 %v2779, %v3088
    %3090 = vmatmul.mubr.f32.gmra.mrb[0].mxu0 %v3089
    %v3091 = vpop.f32.mrb[0].mxu0
    %v3092 = vadd.f32 %v2993, %v3091
    %v3093 = vpop.f32.mrb[0].mxu0
    %3094 = vmatprep.mubr.f32.mxu0 0.0
    %v3095 = vand.u32 %v2782, 4294901760
    %v3096 = vsub.f32 %v2782, %v3095
    %3097 = vmatmul.mubr.f32.gmra.mrb[0].mxu0 %v3096
    %v3098 = vpop.f32.mrb[0].mxu0
    %v3099 = vadd.f32 %v2999, %v3098
    %v3100 = vpop.f32.mrb[0].mxu0
    %3101 = vmatprep.mubr.f32.mxu0 0.0
    %v3102 = vand.u32 %v2785, 4294901760
    %v3103 = vsub.f32 %v2785, %v3102
    %3104 = vmatmul.mubr.f32.gmra.mrb[0].mxu0 %v3103
    %v3105 = vpop.f32.mrb[0].mxu0
    %v3106 = vadd.f32 %v3005, %v3105
    %v3107 = vpop.f32.mrb[0].mxu0
    %3108 = vdwg.mxu0
    %3109 = vmatprep.subr.mxu0 0.0
    %v3110 = vand.u32 %v2584, 4294901760
    %3111 = vmatpush1.msra.mxu0 %v3110
    %3112 = vmatprep.subr.mxu0 0.0
    %v3113 = vand.u32 %v2585, 4294901760
    %3114 = vmatpush1.msra.mxu0 %v3113
    %3115 = vmatprep.subr.mxu0 0.0
    %v3116 = vand.u32 %v2586, 4294901760
    %3117 = vmatpush1.msra.mxu0 %v3116
    %3118 = vmatprep.subr.mxu0 0.0
    %v3119 = vand.u32 %v2788, 4294901760
    %3120 = vmatpush1.msra.mxu0 %v3119
    %3121 = vmatprep.subr.mxu0 0.0
    %3122 = vmatpush1.msra.mxu0 0.0
    %3123 = vmatprep.subr.mxu0 0.0
    %3124 = vmatpush1.msra.mxu0 0.0
    %3125 = vmatprep.subr.mxu0 0.0
    %3126 = vmatpush1.msra.mxu0 0.0
    %3127 = vmatprep.subr.mxu0 0.0
    %3128 = vmatpush1.msra.mxu0 0.0
    %3129 = vmatprep.subr.mxu0 0.0
    %3130 = vmatpush1.msra.mxu0 0.0
    %3131 = vmatprep.subr.mxu0 0.0
    %3132 = vmatpush1.msra.mxu0 0.0
    %3133 = vmatprep.subr.mxu0 0.0
    %3134 = vmatpush1.msra.mxu0 0.0
    %3135 = vmatprep.subr.mxu0 0.0
    %3136 = vmatpush1.msra.mxu0 0.0
    %3137 = vmatprep.subr.mxu0 0.0
    %3138 = vmatpush1.msra.mxu0 0.0
    %3139 = vmatprep.subr.mxu0 0.0
    %3140 = vmatpush1.msra.mxu0 0.0
    %3141 = vmatprep.subr.mxu0 0.0
    %3142 = vmatpush1.msra.mxu0 0.0
    %3143 = vmatprep.subr.mxu0 0.0
    %3144 = vmatpush1.msra.mxu0 0.0
    %3145 = vmatprep.subr.mxu0 0.0
    %3146 = vmatpush1.msra.mxu0 0.0
    %3147 = vmatprep.subr.mxu0 0.0
    %3148 = vmatpush1.msra.mxu0 0.0
    %3149 = vmatprep.subr.mxu0 0.0
    %3150 = vmatpush1.msra.mxu0 0.0
    %3151 = vmatprep.subr.mxu0 0.0
    %3152 = vmatpush1.msra.mxu0 0.0
    %3153 = vmatprep.subr.mxu0 0.0
    %3154 = vmatpush1.msra.mxu0 0.0
    %3155 = vmatprep.subr.mxu0 0.0
    %3156 = vmatpush1.msra.mxu0 0.0
    %3157 = vmatprep.subr.mxu0 0.0
    %3158 = vmatpush1.msra.mxu0 0.0
    %3159 = vmatprep.subr.mxu0 0.0
    %3160 = vmatpush1.msra.mxu0 0.0
    %3161 = vmatprep.subr.mxu0 0.0
    %3162 = vmatpush1.msra.mxu0 0.0
    %3163 = vmatprep.subr.mxu0 0.0
    %3164 = vmatpush1.msra.mxu0 0.0
    %3165 = vmatprep.subr.mxu0 0.0
    %3166 = vmatpush1.msra.mxu0 0.0
    %3167 = vmatprep.subr.mxu0 0.0
    %3168 = vmatpush1.msra.mxu0 0.0
    %3169 = vmatprep.subr.mxu0 0.0
    %3170 = vmatpush1.msra.mxu0 0.0
    %3171 = vmatprep.subr.mxu0 0.0
    %3172 = vmatpush1.msra.mxu0 0.0
    %3173 = vmatprep.subr.mxu0 0.0
    %3174 = vmatpush1.msra.mxu0 0.0
    %3175 = vmatprep.subr.mxu0 0.0
    %3176 = vmatpush1.msra.mxu0 0.0
    %3177 = vmatprep.mubr.f32.mxu0 0.0
    %v3178 = vand.u32 %v2776, 4294901760
    %v3179 = vsub.f32 %v2776, %v3178
    %v3180 = vand.u32 %v3179, 4294901760
    %3181 = vmatmul.mubr.f32.gmra.mrb[0].mxu0 %v3180
    %v3182 = vpop.f32.mrb[0].mxu0
    %v3183 = vadd.f32 %v3085, %v3182
    %v3184 = vpop.f32.mrb[0].mxu0
    %3185 = vmatprep.mubr.f32.mxu0 0.0
    %v3186 = vand.u32 %v2779, 4294901760
    %v3187 = vsub.f32 %v2779, %v3186
    %v3188 = vand.u32 %v3187, 4294901760
    %3189 = vmatmul.mubr.f32.gmra.mrb[0].mxu0 %v3188
    %v3190 = vpop.f32.mrb[0].mxu0
    %v3191 = vadd.f32 %v3092, %v3190
    %v3192 = vpop.f32.mrb[0].mxu0
    %3193 = vmatprep.mubr.f32.mxu0 0.0
    %v3194 = vand.u32 %v2782, 4294901760
    %v3195 = vsub.f32 %v2782, %v3194
    %v3196 = vand.u32 %v3195, 4294901760
    %3197 = vmatmul.mubr.f32.gmra.mrb[0].mxu0 %v3196
    %v3198 = vpop.f32.mrb[0].mxu0
    %v3199 = vadd.f32 %v3099, %v3198
    %v3200 = vpop.f32.mrb[0].mxu0
    %3201 = vmatprep.mubr.f32.mxu0 0.0
    %v3202 = vand.u32 %v2785, 4294901760
    %v3203 = vsub.f32 %v2785, %v3202
    %v3204 = vand.u32 %v3203, 4294901760
    %3205 = vmatmul.mubr.f32.gmra.mrb[0].mxu0 %v3204
    %v3206 = vpop.f32.mrb[0].mxu0
    %v3207 = vadd.f32 %v3106, %v3206
    %v3208 = vpop.f32.mrb[0].mxu0
    %3209 = vdwg.mxu0
    %3210 = vmatprep.subr.mxu0 0.0
    %v3211 = vand.u32 %v2584, 4294901760
    %v3212 = vsub.f32 %v2584, %v3211
    %v3213 = vand.u32 %v3212, 4294901760
    %3214 = vmatpush1.msra.mxu0 %v3213
    %3215 = vmatprep.subr.mxu0 0.0
    %v3216 = vand.u32 %v2585, 4294901760
    %v3217 = vsub.f32 %v2585, %v3216
    %v3218 = vand.u32 %v3217, 4294901760
    %3219 = vmatpush1.msra.mxu0 %v3218
    %3220 = vmatprep.subr.mxu0 0.0
    %v3221 = vand.u32 %v2586, 4294901760
    %v3222 = vsub.f32 %v2586, %v3221
    %v3223 = vand.u32 %v3222, 4294901760
    %3224 = vmatpush1.msra.mxu0 %v3223
    %3225 = vmatprep.subr.mxu0 0.0
    %v3226 = vand.u32 %v2788, 4294901760
    %v3227 = vsub.f32 %v2788, %v3226
    %v3228 = vand.u32 %v3227, 4294901760
    %3229 = vmatpush1.msra.mxu0 %v3228
    %3230 = vmatprep.subr.mxu0 0.0
    %3231 = vmatpush1.msra.mxu0 0.0
    %3232 = vmatprep.subr.mxu0 0.0
    %3233 = vmatpush1.msra.mxu0 0.0
    %3234 = vmatprep.subr.mxu0 0.0
    %3235 = vmatpush1.msra.mxu0 0.0
    %3236 = vmatprep.subr.mxu0 0.0
    %3237 = vmatpush1.msra.mxu0 0.0
    %3238 = vmatprep.subr.mxu0 0.0
    %3239 = vmatpush1.msra.mxu0 0.0
    %3240 = vmatprep.subr.mxu0 0.0
    %3241 = vmatpush1.msra.mxu0 0.0
    %3242 = vmatprep.subr.mxu0 0.0
    %3243 = vmatpush1.msra.mxu0 0.0
    %3244 = vmatprep.subr.mxu0 0.0
    %3245 = vmatpush1.msra.mxu0 0.0
    %3246 = vmatprep.subr.mxu0 0.0
    %3247 = vmatpush1.msra.mxu0 0.0
    %3248 = vmatprep.subr.mxu0 0.0
    %3249 = vmatpush1.msra.mxu0 0.0
    %3250 = vmatprep.subr.mxu0 0.0
    %3251 = vmatpush1.msra.mxu0 0.0
    %3252 = vmatprep.subr.mxu0 0.0
    %3253 = vmatpush1.msra.mxu0 0.0
    %3254 = vmatprep.subr.mxu0 0.0
    %3255 = vmatpush1.msra.mxu0 0.0
    %3256 = vmatprep.subr.mxu0 0.0
    %3257 = vmatpush1.msra.mxu0 0.0
    %3258 = vmatprep.subr.mxu0 0.0
    %3259 = vmatpush1.msra.mxu0 0.0
    %3260 = vmatprep.subr.mxu0 0.0
    %3261 = vmatpush1.msra.mxu0 0.0
    %3262 = vmatprep.subr.mxu0 0.0
    %3263 = vmatpush1.msra.mxu0 0.0
    %3264 = vmatprep.subr.mxu0 0.0
    %3265 = vmatpush1.msra.mxu0 0.0
    %3266 = vmatprep.subr.mxu0 0.0
    %3267 = vmatpush1.msra.mxu0 0.0
    %3268 = vmatprep.subr.mxu0 0.0
    %3269 = vmatpush1.msra.mxu0 0.0
    %3270 = vmatprep.subr.mxu0 0.0
    %3271 = vmatpush1.msra.mxu0 0.0
    %3272 = vmatprep.subr.mxu0 0.0
    %3273 = vmatpush1.msra.mxu0 0.0
    %3274 = vmatprep.subr.mxu0 0.0
    %3275 = vmatpush1.msra.mxu0 0.0
    %3276 = vmatprep.subr.mxu0 0.0
    %3277 = vmatpush1.msra.mxu0 0.0
    %3278 = vmatprep.subr.mxu0 0.0
    %3279 = vmatpush1.msra.mxu0 0.0
    %3280 = vmatprep.subr.mxu0 0.0
    %3281 = vmatpush1.msra.mxu0 0.0
    %3282 = vmatprep.subr.mxu0 0.0
    %3283 = vmatpush1.msra.mxu0 0.0
    %3284 = vmatprep.subr.mxu0 0.0
    %3285 = vmatpush1.msra.mxu0 0.0
    %3286 = vmatprep.mubr.f32.mxu0 0.0
    %v3287 = vand.u32 %v2776, 4294901760
    %3288 = vmatmul.mubr.f32.gmra.mrb[0].mxu0 %v3287
    %v3289 = vpop.f32.mrb[0].mxu0
    %v3290 = vadd.f32 %v3183, %v3289
    %v3291 = vpop.f32.mrb[0].mxu0
    %3292 = vmatprep.mubr.f32.mxu0 0.0
    %v3293 = vand.u32 %v2779, 4294901760
    %3294 = vmatmul.mubr.f32.gmra.mrb[0].mxu0 %v3293
    %v3295 = vpop.f32.mrb[0].mxu0
    %v3296 = vadd.f32 %v3191, %v3295
    %v3297 = vpop.f32.mrb[0].mxu0
    %3298 = vmatprep.mubr.f32.mxu0 0.0
    %v3299 = vand.u32 %v2782, 4294901760
    %3300 = vmatmul.mubr.f32.gmra.mrb[0].mxu0 %v3299
    %v3301 = vpop.f32.mrb[0].mxu0
    %v3302 = vadd.f32 %v3199, %v3301
    %v3303 = vpop.f32.mrb[0].mxu0
    %3304 = vmatprep.mubr.f32.mxu0 0.0
    %v3305 = vand.u32 %v2785, 4294901760
    %3306 = vmatmul.mubr.f32.gmra.mrb[0].mxu0 %v3305
    %v3307 = vpop.f32.mrb[0].mxu0
    %v3308 = vadd.f32 %v3207, %v3307
    %v3309 = vpop.f32.mrb[0].mxu0
    %3310 = vdwg.mxu0
    %3311 = vmatprep.subr.mxu0 0.0
    %v3312 = vand.u32 %v2584, 4294901760
    %3313 = vmatpush1.msra.mxu0 %v3312
    %3314 = vmatprep.subr.mxu0 0.0
    %v3315 = vand.u32 %v2585, 4294901760
    %3316 = vmatpush1.msra.mxu0 %v3315
    %3317 = vmatprep.subr.mxu0 0.0
    %v3318 = vand.u32 %v2586, 4294901760
    %3319 = vmatpush1.msra.mxu0 %v3318
    %3320 = vmatprep.subr.mxu0 0.0
    %v3321 = vand.u32 %v2788, 4294901760
    %3322 = vmatpush1.msra.mxu0 %v3321
    %3323 = vmatprep.subr.mxu0 0.0
    %3324 = vmatpush1.msra.mxu0 0.0
    %3325 = vmatprep.subr.mxu0 0.0
    %3326 = vmatpush1.msra.mxu0 0.0
    %3327 = vmatprep.subr.mxu0 0.0
    %3328 = vmatpush1.msra.mxu0 0.0
    %3329 = vmatprep.subr.mxu0 0.0
    %3330 = vmatpush1.msra.mxu0 0.0
    %3331 = vmatprep.subr.mxu0 0.0
    %3332 = vmatpush1.msra.mxu0 0.0
    %3333 = vmatprep.subr.mxu0 0.0
    %3334 = vmatpush1.msra.mxu0 0.0
    %3335 = vmatprep.subr.mxu0 0.0
    %3336 = vmatpush1.msra.mxu0 0.0
    %3337 = vmatprep.subr.mxu0 0.0
    %3338 = vmatpush1.msra.mxu0 0.0
    %3339 = vmatprep.subr.mxu0 0.0
    %3340 = vmatpush1.msra.mxu0 0.0
    %3341 = vmatprep.subr.mxu0 0.0
    %3342 = vmatpush1.msra.mxu0 0.0
    %3343 = vmatprep.subr.mxu0 0.0
    %3344 = vmatpush1.msra.mxu0 0.0
    %3345 = vmatprep.subr.mxu0 0.0
    %3346 = vmatpush1.msra.mxu0 0.0
    %3347 = vmatprep.subr.mxu0 0.0
    %3348 = vmatpush1.msra.mxu0 0.0
    %3349 = vmatprep.subr.mxu0 0.0
    %3350 = vmatpush1.msra.mxu0 0.0
    %3351 = vmatprep.subr.mxu0 0.0
    %3352 = vmatpush1.msra.mxu0 0.0
    %3353 = vmatprep.subr.mxu0 0.0
    %3354 = vmatpush1.msra.mxu0 0.0
    %3355 = vmatprep.subr.mxu0 0.0
    %3356 = vmatpush1.msra.mxu0 0.0
    %3357 = vmatprep.subr.mxu0 0.0
    %3358 = vmatpush1.msra.mxu0 0.0
    %3359 = vmatprep.subr.mxu0 0.0
    %3360 = vmatpush1.msra.mxu0 0.0
    %3361 = vmatprep.subr.mxu0 0.0
    %3362 = vmatpush1.msra.mxu0 0.0
    %3363 = vmatprep.subr.mxu0 0.0
    %3364 = vmatpush1.msra.mxu0 0.0
    %3365 = vmatprep.subr.mxu0 0.0
    %3366 = vmatpush1.msra.mxu0 0.0
    %3367 = vmatprep.subr.mxu0 0.0
    %3368 = vmatpush1.msra.mxu0 0.0
    %3369 = vmatprep.subr.mxu0 0.0
    %3370 = vmatpush1.msra.mxu0 0.0
    %3371 = vmatprep.subr.mxu0 0.0
    %3372 = vmatpush1.msra.mxu0 0.0
    %3373 = vmatprep.subr.mxu0 0.0
    %3374 = vmatpush1.msra.mxu0 0.0
    %3375 = vmatprep.subr.mxu0 0.0
    %3376 = vmatpush1.msra.mxu0 0.0
    %3377 = vmatprep.subr.mxu0 0.0
    %3378 = vmatpush1.msra.mxu0 0.0
    %3379 = vmatprep.mubr.f32.mxu0 0.0
    %v3380 = vand.u32 %v2776, 4294901760
    %3381 = vmatmul.mubr.f32.gmra.mrb[0].mxu0 %v3380
    %v3382 = vpop.f32.mrb[0].mxu0
    %v3383 = vadd.f32 %v3290, %v3382
    %v3384 = vpop.f32.mrb[0].mxu0
    %3385 = vmatprep.mubr.f32.mxu0 0.0
    %v3386 = vand.u32 %v2779, 4294901760
    %3387 = vmatmul.mubr.f32.gmra.mrb[0].mxu0 %v3386
    %v3388 = vpop.f32.mrb[0].mxu0
    %v3389 = vadd.f32 %v3296, %v3388
    %v3390 = vpop.f32.mrb[0].mxu0
    %3391 = vmatprep.mubr.f32.mxu0 0.0
    %v3392 = vand.u32 %v2782, 4294901760
    %3393 = vmatmul.mubr.f32.gmra.mrb[0].mxu0 %v3392
    %v3394 = vpop.f32.mrb[0].mxu0
    %v3395 = vadd.f32 %v3302, %v3394
    %v3396 = vpop.f32.mrb[0].mxu0
    %3397 = vmatprep.mubr.f32.mxu0 0.0
    %v3398 = vand.u32 %v2785, 4294901760
    %3399 = vmatmul.mubr.f32.gmra.mrb[0].mxu0 %v3398
    %v3400 = vpop.f32.mrb[0].mxu0
    %v3401 = vadd.f32 %v3308, %v3400
    %v3402 = vpop.f32.mrb[0].mxu0
    %3403 = vdwg.mxu0
    %v3404 = vmax.f32 %v3383, 0.0
    %v3405 = vmax.f32 %v3389, 0.0
    %v3406 = vmax.f32 %v3395, 0.0
    %v3407 = vmax.f32 %v3401, 0.0
    %3408 = vst.msk [vmem:[#allocation2] sm:$0xff] %vm224, %v3404
    %3409 = vst.msk [vmem:[#allocation2 + $0x8] sm:$0xff] %vm224, %v3405
    %3410 = vst.msk [vmem:[#allocation2 + $0x10] sm:$0xff] %vm224, %v3406
    %3411 = vst.msk [vmem:[#allocation2 + $0x18] sm:$0xff] %vm224, %v3407
    %v3412 = vld [vmem:[#allocation2] ss:$2 sm:$0xff]
    %v3413 = vld [vmem:[%s1051] ss:$2 sm:$0xff]
    %v3414 = vld [vmem:[%s1053] ss:$2 sm:$0xff]
    %v3415 = vld [vmem:[%s1055] ss:$2 sm:$0xff]
    %v3416 = vmax.f32 %v3412, %v3414
    %v3417 = vmax.f32 %v3413, %v3415
    %v3418 = vld [vmem:[%s10] sm:$0xff]
    %v3419 = vld [vmem:[%s10 + $0x8] sm:$0xff]
    %v3420 = vld [vmem:[%s10 + $0x10] sm:$0xff]
    %v3421 = vld [vmem:[%s10 + $0x18] sm:$0xff]
    %v3422 = vld [vmem:[%s10 + $0x20] sm:$0xff]
    %v3423 = vld [vmem:[%s10 + $0x28] sm:$0xff]
    %v3424 = vld [vmem:[%s10 + $0x30] sm:$0xff]
    %v3425 = vld [vmem:[%s11] sm:$0x1]
    %v3427 = vrot.slane %v3416, 5
    %v3429 = vsel %vm162, 0.0, %v3427
    %v3430 = vsel %vm162, %v3427, 0.0
    %v3433 = vrot.slane %v3429, 1
    %v3434 = vrot.slane %v3430, 1
    %v3435 = vsel %vm115, %v3433, %v3434
    %3436 = vrot.lane.b32.xlu0 %v3435, 8
    %v3437 = vpop.permute.xlu0 %3436
    %v3439 = vrot.slane %v3429, 2
    %v3440 = vrot.slane %v3430, 2
    %v3441 = vsel %vm127, %v3439, %v3440
    %3442 = vrot.lane.b32.xlu0 %v3441, 16
    %v3443 = vpop.permute.xlu0 %3442
    %v3445 = vrot.slane %v3429, 3
    %v3446 = vrot.slane %v3430, 3
    %v3447 = vsel %vm104, %v3445, %v3446
    %3448 = vrot.lane.b32.xlu0 %v3447, 24
    %v3449 = vpop.permute.xlu0 %3448
    %v3451 = vrot.slane %v3429, 4
    %v3452 = vrot.slane %v3430, 4
    %v3453 = vsel %vm150, %v3451, %v3452
    %3454 = vrot.lane.b32.xlu0 %v3453, 32
    %v3455 = vpop.permute.xlu0 %3454
    %v3457 = vrot.slane %v3429, 5
    %v3458 = vrot.slane %v3430, 5
    %v3459 = vsel %vm162, %v3457, %v3458
    %3460 = vrot.lane.b32.xlu0 %v3459, 40
    %v3461 = vpop.permute.xlu0 %3460
    %v3463 = vrot.slane %v3429, 6
    %v3464 = vrot.slane %v3430, 6
    %v3465 = vsel %vm174, %v3463, %v3464
    %3466 = vrot.lane.b32.xlu0 %v3465, 48
    %v3467 = vpop.permute.xlu0 %3466
    %v3469 = vsel %vm224, %v3429, %v3437
    %v3470 = vsel %vm230, %v3469, %v3443
    %v3471 = vsel %vm236, %v3470, %v3449
    %v3472 = vsel %vm242, %v3471, %v3455
    %v3473 = vsel %vm248, %v3472, %v3461
    %v3474 = vsel %vm1136, %v3473, %v3467
    %v3476 = vrot.slane %v3417, 5
    %v3478 = vsel %vm162, 0.0, %v3476
    %v3479 = vsel %vm162, %v3476, 0.0
    %v3482 = vrot.slane %v3478, 1
    %v3483 = vrot.slane %v3479, 1
    %v3484 = vsel %vm115, %v3482, %v3483
    %3485 = vrot.lane.b32.xlu0 %v3484, 8
    %v3486 = vpop.permute.xlu0 %3485
    %v3488 = vrot.slane %v3478, 2
    %v3489 = vrot.slane %v3479, 2
    %v3490 = vsel %vm127, %v3488, %v3489
    %3491 = vrot.lane.b32.xlu0 %v3490, 16
    %v3492 = vpop.permute.xlu0 %3491
    %v3494 = vrot.slane %v3478, 3
    %v3495 = vrot.slane %v3479, 3
    %v3496 = vsel %vm104, %v3494, %v3495
    %3497 = vrot.lane.b32.xlu0 %v3496, 24
    %v3498 = vpop.permute.xlu0 %3497
    %v3500 = vrot.slane %v3478, 4
    %v3501 = vrot.slane %v3479, 4
    %v3502 = vsel %vm150, %v3500, %v3501
    %3503 = vrot.lane.b32.xlu0 %v3502, 32
    %v3504 = vpop.permute.xlu0 %3503
    %v3506 = vrot.slane %v3478, 5
    %v3507 = vrot.slane %v3479, 5
    %v3508 = vsel %vm162, %v3506, %v3507
    %3509 = vrot.lane.b32.xlu0 %v3508, 40
    %v3510 = vpop.permute.xlu0 %3509
    %v3512 = vrot.slane %v3478, 6
    %v3513 = vrot.slane %v3479, 6
    %v3514 = vsel %vm174, %v3512, %v3513
    %3515 = vrot.lane.b32.xlu0 %v3514, 48
    %v3516 = vpop.permute.xlu0 %3515
    %v3518 = vsel %vm224, %v3478, %v3486
    %v3519 = vsel %vm230, %v3518, %v3492
    %v3520 = vsel %vm236, %v3519, %v3498
    %v3521 = vsel %vm242, %v3520, %v3504
    %v3522 = vsel %vm248, %v3521, %v3510
    %v3523 = vsel %vm1136, %v3522, %v3516
    %v3525 = vlaneseq
    %v3526 = vshrl.u32 %v3525, 7
    %v3527 = vsub.s32 0, %v3526
    %v3528 = vrot.slane %v3425, %v3527
    %v3531 = vsel %vm1138, %v3474, 0
    %v3534 = vsel %vm1138, %v3523, 0
    %3536 = vmatprep.subr.mxu0 0.0
    %v3537 = vand.u32 %v3418, 4294901760
    %3538 = vmatpush1.msra.mxu0 %v3537
    %3539 = vmatprep.subr.mxu0 0.0
    %v3540 = vand.u32 %v3419, 4294901760
    %3541 = vmatpush1.msra.mxu0 %v3540
    %3542 = vmatprep.subr.mxu0 0.0
    %v3543 = vand.u32 %v3420, 4294901760
    %3544 = vmatpush1.msra.mxu0 %v3543
    %3545 = vmatprep.subr.mxu0 0.0
    %v3546 = vand.u32 %v3421, 4294901760
    %3547 = vmatpush1.msra.mxu0 %v3546
    %3548 = vmatprep.subr.mxu0 0.0
    %v3549 = vand.u32 %v3422, 4294901760
    %3550 = vmatpush1.msra.mxu0 %v3549
    %3551 = vmatprep.subr.mxu0 0.0
    %v3552 = vand.u32 %v3423, 4294901760
    %3553 = vmatpush1.msra.mxu0 %v3552
    %3554 = vmatprep.subr.mxu0 0.0
    %v3555 = vand.u32 %v3424, 4294901760
    %3556 = vmatpush1.msra.mxu0 %v3555
    %3557 = vmatprep.subr.mxu0 0.0
    %3558 = vmatpush1.msra.mxu0 0.0
    %3559 = vmatprep.subr.mxu0 0.0
    %3560 = vmatpush1.msra.mxu0 0.0
    %3561 = vmatprep.subr.mxu0 0.0
    %3562 = vmatpush1.msra.mxu0 0.0
    %3563 = vmatprep.subr.mxu0 0.0
    %3564 = vmatpush1.msra.mxu0 0.0
    %3565 = vmatprep.subr.mxu0 0.0
    %3566 = vmatpush1.msra.mxu0 0.0
    %3567 = vmatprep.subr.mxu0 0.0
    %3568 = vmatpush1.msra.mxu0 0.0
    %3569 = vmatprep.subr.mxu0 0.0
    %3570 = vmatpush1.msra.mxu0 0.0
    %3571 = vmatprep.subr.mxu0 0.0
    %3572 = vmatpush1.msra.mxu0 0.0
    %3573 = vmatprep.subr.mxu0 0.0
    %3574 = vmatpush1.msra.mxu0 0.0
    %3575 = vmatprep.subr.mxu0 0.0
    %3576 = vmatpush1.msra.mxu0 0.0
    %3577 = vmatprep.subr.mxu0 0.0
    %3578 = vmatpush1.msra.mxu0 0.0
    %3579 = vmatprep.subr.mxu0 0.0
    %3580 = vmatpush1.msra.mxu0 0.0
    %3581 = vmatprep.subr.mxu0 0.0
    %3582 = vmatpush1.msra.mxu0 0.0
    %3583 = vmatprep.subr.mxu0 0.0
    %3584 = vmatpush1.msra.mxu0 0.0
    %3585 = vmatprep.subr.mxu0 0.0
    %3586 = vmatpush1.msra.mxu0 0.0
    %3587 = vmatprep.subr.mxu0 0.0
    %3588 = vmatpush1.msra.mxu0 0.0
    %3589 = vmatprep.subr.mxu0 0.0
    %3590 = vmatpush1.msra.mxu0 0.0
    %3591 = vmatprep.subr.mxu0 0.0
    %3592 = vmatpush1.msra.mxu0 0.0
    %3593 = vmatprep.subr.mxu0 0.0
    %3594 = vmatpush1.msra.mxu0 0.0
    %3595 = vmatprep.subr.mxu0 0.0
    %3596 = vmatpush1.msra.mxu0 0.0
    %3597 = vmatprep.subr.mxu0 0.0
    %3598 = vmatpush1.msra.mxu0 0.0
    %3599 = vmatprep.subr.mxu0 0.0
    %3600 = vmatpush1.msra.mxu0 0.0
    %3601 = vmatprep.subr.mxu0 0.0
    %3602 = vmatpush1.msra.mxu0 0.0
    %3603 = vmatprep.subr.mxu0 0.0
    %3604 = vmatpush1.msra.mxu0 0.0
    %3605 = vmatprep.subr.mxu0 0.0
    %3606 = vmatpush1.msra.mxu0 0.0
    %3607 = vmatprep.mubr.f32.mxu0 0.0
    %v3608 = vand.u32 %v3531, 4294901760
    %v3609 = vsub.f32 %v3531, %v3608
    %v3610 = vand.u32 %v3609, 4294901760
    %v3611 = vsub.f32 %v3609, %v3610
    %v3612 = vand.u32 %v3611, 4294901760
    %3613 = vmatmul.mubr.f32.gmra.mrb[0].mxu0 %v3612
    %v3614 = vpop.f32.mrb[0].mxu0
    %v3615 = vadd.f32 %v3528, %v3614
    %v3616 = vpop.f32.mrb[0].mxu0
    %3617 = vmatprep.mubr.f32.mxu0 0.0
    %v3618 = vand.u32 %v3534, 4294901760
    %v3619 = vsub.f32 %v3534, %v3618
    %v3620 = vand.u32 %v3619, 4294901760
    %v3621 = vsub.f32 %v3619, %v3620
    %v3622 = vand.u32 %v3621, 4294901760
    %3623 = vmatmul.mubr.f32.gmra.mrb[0].mxu0 %v3622
    %v3624 = vpop.f32.mrb[0].mxu0
    %v3625 = vadd.f32 %v3528, %v3624
    %v3626 = vpop.f32.mrb[0].mxu0
    %3627 = vdwg.mxu0
    %3628 = vmatprep.subr.mxu0 0.0
    %v3629 = vand.u32 %v3418, 4294901760
    %v3630 = vsub.f32 %v3418, %v3629
    %v3631 = vand.u32 %v3630, 4294901760
    %v3632 = vsub.f32 %v3630, %v3631
    %v3633 = vand.u32 %v3632, 4294901760
    %3634 = vmatpush1.msra.mxu0 %v3633
    %3635 = vmatprep.subr.mxu0 0.0
    %v3636 = vand.u32 %v3419, 4294901760
    %v3637 = vsub.f32 %v3419, %v3636
    %v3638 = vand.u32 %v3637, 4294901760
    %v3639 = vsub.f32 %v3637, %v3638
    %v3640 = vand.u32 %v3639, 4294901760
    %3641 = vmatpush1.msra.mxu0 %v3640
    %3642 = vmatprep.subr.mxu0 0.0
    %v3643 = vand.u32 %v3420, 4294901760
    %v3644 = vsub.f32 %v3420, %v3643
    %v3645 = vand.u32 %v3644, 4294901760
    %v3646 = vsub.f32 %v3644, %v3645
    %v3647 = vand.u32 %v3646, 4294901760
    %3648 = vmatpush1.msra.mxu0 %v3647
    %3649 = vmatprep.subr.mxu0 0.0
    %v3650 = vand.u32 %v3421, 4294901760
    %v3651 = vsub.f32 %v3421, %v3650
    %v3652 = vand.u32 %v3651, 4294901760
    %v3653 = vsub.f32 %v3651, %v3652
    %v3654 = vand.u32 %v3653, 4294901760
    %3655 = vmatpush1.msra.mxu0 %v3654
    %3656 = vmatprep.subr.mxu0 0.0
    %v3657 = vand.u32 %v3422, 4294901760
    %v3658 = vsub.f32 %v3422, %v3657
    %v3659 = vand.u32 %v3658, 4294901760
    %v3660 = vsub.f32 %v3658, %v3659
    %v3661 = vand.u32 %v3660, 4294901760
    %3662 = vmatpush1.msra.mxu0 %v3661
    %3663 = vmatprep.subr.mxu0 0.0
    %v3664 = vand.u32 %v3423, 4294901760
    %v3665 = vsub.f32 %v3423, %v3664
    %v3666 = vand.u32 %v3665, 4294901760
    %v3667 = vsub.f32 %v3665, %v3666
    %v3668 = vand.u32 %v3667, 4294901760
    %3669 = vmatpush1.msra.mxu0 %v3668
    %3670 = vmatprep.subr.mxu0 0.0
    %v3671 = vand.u32 %v3424, 4294901760
    %v3672 = vsub.f32 %v3424, %v3671
    %v3673 = vand.u32 %v3672, 4294901760
    %v3674 = vsub.f32 %v3672, %v3673
    %v3675 = vand.u32 %v3674, 4294901760
    %3676 = vmatpush1.msra.mxu0 %v3675
    %3677 = vmatprep.subr.mxu0 0.0
    %3678 = vmatpush1.msra.mxu0 0.0
    %3679 = vmatprep.subr.mxu0 0.0
    %3680 = vmatpush1.msra.mxu0 0.0
    %3681 = vmatprep.subr.mxu0 0.0
    %3682 = vmatpush1.msra.mxu0 0.0
    %3683 = vmatprep.subr.mxu0 0.0
    %3684 = vmatpush1.msra.mxu0 0.0
    %3685 = vmatprep.subr.mxu0 0.0
    %3686 = vmatpush1.msra.mxu0 0.0
    %3687 = vmatprep.subr.mxu0 0.0
    %3688 = vmatpush1.msra.mxu0 0.0
    %3689 = vmatprep.subr.mxu0 0.0
    %3690 = vmatpush1.msra.mxu0 0.0
    %3691 = vmatprep.subr.mxu0 0.0
    %3692 = vmatpush1.msra.mxu0 0.0
    %3693 = vmatprep.subr.mxu0 0.0
    %3694 = vmatpush1.msra.mxu0 0.0
    %3695 = vmatprep.subr.mxu0 0.0
    %3696 = vmatpush1.msra.mxu0 0.0
    %3697 = vmatprep.subr.mxu0 0.0
    %3698 = vmatpush1.msra.mxu0 0.0
    %3699 = vmatprep.subr.mxu0 0.0
    %3700 = vmatpush1.msra.mxu0 0.0
    %3701 = vmatprep.subr.mxu0 0.0
    %3702 = vmatpush1.msra.mxu0 0.0
    %3703 = vmatprep.subr.mxu0 0.0
    %3704 = vmatpush1.msra.mxu0 0.0
    %3705 = vmatprep.subr.mxu0 0.0
    %3706 = vmatpush1.msra.mxu0 0.0
    %3707 = vmatprep.subr.mxu0 0.0
    %3708 = vmatpush1.msra.mxu0 0.0
    %3709 = vmatprep.subr.mxu0 0.0
    %3710 = vmatpush1.msra.mxu0 0.0
    %3711 = vmatprep.subr.mxu0 0.0
    %3712 = vmatpush1.msra.mxu0 0.0
    %3713 = vmatprep.subr.mxu0 0.0
    %3714 = vmatpush1.msra.mxu0 0.0
    %3715 = vmatprep.subr.mxu0 0.0
    %3716 = vmatpush1.msra.mxu0 0.0
    %3717 = vmatprep.subr.mxu0 0.0
    %3718 = vmatpush1.msra.mxu0 0.0
    %3719 = vmatprep.subr.mxu0 0.0
    %3720 = vmatpush1.msra.mxu0 0.0
    %3721 = vmatprep.subr.mxu0 0.0
    %3722 = vmatpush1.msra.mxu0 0.0
    %3723 = vmatprep.subr.mxu0 0.0
    %3724 = vmatpush1.msra.mxu0 0.0
    %3725 = vmatprep.subr.mxu0 0.0
    %3726 = vmatpush1.msra.mxu0 0.0
    %3727 = vmatprep.mubr.f32.mxu0 0.0
    %v3728 = vand.u32 %v3531, 4294901760
    %3729 = vmatmul.mubr.f32.gmra.mrb[0].mxu0 %v3728
    %v3730 = vpop.f32.mrb[0].mxu0
    %v3731 = vadd.f32 %v3615, %v3730
    %v3732 = vpop.f32.mrb[0].mxu0
    %3733 = vmatprep.mubr.f32.mxu0 0.0
    %v3734 = vand.u32 %v3534, 4294901760
    %3735 = vmatmul.mubr.f32.gmra.mrb[0].mxu0 %v3734
    %v3736 = vpop.f32.mrb[0].mxu0
    %v3737 = vadd.f32 %v3625, %v3736
    %v3738 = vpop.f32.mrb[0].mxu0
    %3739 = vdwg.mxu0
    %3740 = vmatprep.subr.mxu0 0.0
    %v3741 = vand.u32 %v3418, 4294901760
    %v3742 = vsub.f32 %v3418, %v3741
    %3743 = vmatpush1.msra.mxu0 %v3742
    %3744 = vmatprep.subr.mxu0 0.0
    %v3745 = vand.u32 %v3419, 4294901760
    %v3746 = vsub.f32 %v3419, %v3745
    %3747 = vmatpush1.msra.mxu0 %v3746
    %3748 = vmatprep.subr.mxu0 0.0
    %v3749 = vand.u32 %v3420, 4294901760
    %v3750 = vsub.f32 %v3420, %v3749
    %3751 = vmatpush1.msra.mxu0 %v3750
    %3752 = vmatprep.subr.mxu0 0.0
    %v3753 = vand.u32 %v3421, 4294901760
    %v3754 = vsub.f32 %v3421, %v3753
    %3755 = vmatpush1.msra.mxu0 %v3754
    %3756 = vmatprep.subr.mxu0 0.0
    %v3757 = vand.u32 %v3422, 4294901760
    %v3758 = vsub.f32 %v3422, %v3757
    %3759 = vmatpush1.msra.mxu0 %v3758
    %3760 = vmatprep.subr.mxu0 0.0
    %v3761 = vand.u32 %v3423, 4294901760
    %v3762 = vsub.f32 %v3423, %v3761
    %3763 = vmatpush1.msra.mxu0 %v3762
    %3764 = vmatprep.subr.mxu0 0.0
    %v3765 = vand.u32 %v3424, 4294901760
    %v3766 = vsub.f32 %v3424, %v3765
    %3767 = vmatpush1.msra.mxu0 %v3766
    %3768 = vmatprep.subr.mxu0 0.0
    %3769 = vmatpush1.msra.mxu0 0.0
    %3770 = vmatprep.subr.mxu0 0.0
    %3771 = vmatpush1.msra.mxu0 0.0
    %3772 = vmatprep.subr.mxu0 0.0
    %3773 = vmatpush1.msra.mxu0 0.0
    %3774 = vmatprep.subr.mxu0 0.0
    %3775 = vmatpush1.msra.mxu0 0.0
    %3776 = vmatprep.subr.mxu0 0.0
    %3777 = vmatpush1.msra.mxu0 0.0
    %3778 = vmatprep.subr.mxu0 0.0
    %3779 = vmatpush1.msra.mxu0 0.0
    %3780 = vmatprep.subr.mxu0 0.0
    %3781 = vmatpush1.msra.mxu0 0.0
    %3782 = vmatprep.subr.mxu0 0.0
    %3783 = vmatpush1.msra.mxu0 0.0
    %3784 = vmatprep.subr.mxu0 0.0
    %3785 = vmatpush1.msra.mxu0 0.0
    %3786 = vmatprep.subr.mxu0 0.0
    %3787 = vmatpush1.msra.mxu0 0.0
    %3788 = vmatprep.subr.mxu0 0.0
    %3789 = vmatpush1.msra.mxu0 0.0
    %3790 = vmatprep.subr.mxu0 0.0
    %3791 = vmatpush1.msra.mxu0 0.0
    %3792 = vmatprep.subr.mxu0 0.0
    %3793 = vmatpush1.msra.mxu0 0.0
    %3794 = vmatprep.subr.mxu0 0.0
    %3795 = vmatpush1.msra.mxu0 0.0
    %3796 = vmatprep.subr.mxu0 0.0
    %3797 = vmatpush1.msra.mxu0 0.0
    %3798 = vmatprep.subr.mxu0 0.0
    %3799 = vmatpush1.msra.mxu0 0.0
    %3800 = vmatprep.subr.mxu0 0.0
    %3801 = vmatpush1.msra.mxu0 0.0
    %3802 = vmatprep.subr.mxu0 0.0
    %3803 = vmatpush1.msra.mxu0 0.0
    %3804 = vmatprep.subr.mxu0 0.0
    %3805 = vmatpush1.msra.mxu0 0.0
    %3806 = vmatprep.subr.mxu0 0.0
    %3807 = vmatpush1.msra.mxu0 0.0
    %3808 = vmatprep.subr.mxu0 0.0
    %3809 = vmatpush1.msra.mxu0 0.0
    %3810 = vmatprep.subr.mxu0 0.0
    %3811 = vmatpush1.msra.mxu0 0.0
    %3812 = vmatprep.subr.mxu0 0.0
    %3813 = vmatpush1.msra.mxu0 0.0
    %3814 = vmatprep.subr.mxu0 0.0
    %3815 = vmatpush1.msra.mxu0 0.0
    %3816 = vmatprep.subr.mxu0 0.0
    %3817 = vmatpush1.msra.mxu0 0.0
    %3818 = vmatprep.mubr.f32.mxu0 0.0
    %v3819 = vand.u32 %v3531, 4294901760
    %v3820 = vsub.f32 %v3531, %v3819
    %3821 = vmatmul.mubr.f32.gmra.mrb[0].mxu0 %v3820
    %v3822 = vpop.f32.mrb[0].mxu0
    %v3823 = vadd.f32 %v3731, %v3822
    %v3824 = vpop.f32.mrb[0].mxu0
    %3825 = vmatprep.mubr.f32.mxu0 0.0
    %v3826 = vand.u32 %v3534, 4294901760
    %v3827 = vsub.f32 %v3534, %v3826
    %3828 = vmatmul.mubr.f32.gmra.mrb[0].mxu0 %v3827
    %v3829 = vpop.f32.mrb[0].mxu0
    %v3830 = vadd.f32 %v3737, %v3829
    %v3831 = vpop.f32.mrb[0].mxu0
    %3832 = vdwg.mxu0
    %3833 = vmatprep.subr.mxu0 0.0
    %v3834 = vand.u32 %v3418, 4294901760
    %3835 = vmatpush1.msra.mxu0 %v3834
    %3836 = vmatprep.subr.mxu0 0.0
    %v3837 = vand.u32 %v3419, 4294901760
    %3838 = vmatpush1.msra.mxu0 %v3837
    %3839 = vmatprep.subr.mxu0 0.0
    %v3840 = vand.u32 %v3420, 4294901760
    %3841 = vmatpush1.msra.mxu0 %v3840
    %3842 = vmatprep.subr.mxu0 0.0
    %v3843 = vand.u32 %v3421, 4294901760
    %3844 = vmatpush1.msra.mxu0 %v3843
    %3845 = vmatprep.subr.mxu0 0.0
    %v3846 = vand.u32 %v3422, 4294901760
    %3847 = vmatpush1.msra.mxu0 %v3846
    %3848 = vmatprep.subr.mxu0 0.0
    %v3849 = vand.u32 %v3423, 4294901760
    %3850 = vmatpush1.msra.mxu0 %v3849
    %3851 = vmatprep.subr.mxu0 0.0
    %v3852 = vand.u32 %v3424, 4294901760
    %3853 = vmatpush1.msra.mxu0 %v3852
    %3854 = vmatprep.subr.mxu0 0.0
    %3855 = vmatpush1.msra.mxu0 0.0
    %3856 = vmatprep.subr.mxu0 0.0
    %3857 = vmatpush1.msra.mxu0 0.0
    %3858 = vmatprep.subr.mxu0 0.0
    %3859 = vmatpush1.msra.mxu0 0.0
    %3860 = vmatprep.subr.mxu0 0.0
    %3861 = vmatpush1.msra.mxu0 0.0
    %3862 = vmatprep.subr.mxu0 0.0
    %3863 = vmatpush1.msra.mxu0 0.0
    %3864 = vmatprep.subr.mxu0 0.0
    %3865 = vmatpush1.msra.mxu0 0.0
    %3866 = vmatprep.subr.mxu0 0.0
    %3867 = vmatpush1.msra.mxu0 0.0
    %3868 = vmatprep.subr.mxu0 0.0
    %3869 = vmatpush1.msra.mxu0 0.0
    %3870 = vmatprep.subr.mxu0 0.0
    %3871 = vmatpush1.msra.mxu0 0.0
    %3872 = vmatprep.subr.mxu0 0.0
    %3873 = vmatpush1.msra.mxu0 0.0
    %3874 = vmatprep.subr.mxu0 0.0
    %3875 = vmatpush1.msra.mxu0 0.0
    %3876 = vmatprep.subr.mxu0 0.0
    %3877 = vmatpush1.msra.mxu0 0.0
    %3878 = vmatprep.subr.mxu0 0.0
    %3879 = vmatpush1.msra.mxu0 0.0
    %3880 = vmatprep.subr.mxu0 0.0
    %3881 = vmatpush1.msra.mxu0 0.0
    %3882 = vmatprep.subr.mxu0 0.0
    %3883 = vmatpush1.msra.mxu0 0.0
    %3884 = vmatprep.subr.mxu0 0.0
    %3885 = vmatpush1.msra.mxu0 0.0
    %3886 = vmatprep.subr.mxu0 0.0
    %3887 = vmatpush1.msra.mxu0 0.0
    %3888 = vmatprep.subr.mxu0 0.0
    %3889 = vmatpush1.msra.mxu0 0.0
    %3890 = vmatprep.subr.mxu0 0.0
    %3891 = vmatpush1.msra.mxu0 0.0
    %3892 = vmatprep.subr.mxu0 0.0
    %3893 = vmatpush1.msra.mxu0 0.0
    %3894 = vmatprep.subr.mxu0 0.0
    %3895 = vmatpush1.msra.mxu0 0.0
    %3896 = vmatprep.subr.mxu0 0.0
    %3897 = vmatpush1.msra.mxu0 0.0
    %3898 = vmatprep.subr.mxu0 0.0
    %3899 = vmatpush1.msra.mxu0 0.0
    %3900 = vmatprep.subr.mxu0 0.0
    %3901 = vmatpush1.msra.mxu0 0.0
    %3902 = vmatprep.subr.mxu0 0.0
    %3903 = vmatpush1.msra.mxu0 0.0
    %3904 = vmatprep.mubr.f32.mxu0 0.0
    %v3905 = vand.u32 %v3531, 4294901760
    %v3906 = vsub.f32 %v3531, %v3905
    %v3907 = vand.u32 %v3906, 4294901760
    %3908 = vmatmul.mubr.f32.gmra.mrb[0].mxu0 %v3907
    %v3909 = vpop.f32.mrb[0].mxu0
    %v3910 = vadd.f32 %v3823, %v3909
    %v3911 = vpop.f32.mrb[0].mxu0
    %3912 = vmatprep.mubr.f32.mxu0 0.0
    %v3913 = vand.u32 %v3534, 4294901760
    %v3914 = vsub.f32 %v3534, %v3913
    %v3915 = vand.u32 %v3914, 4294901760
    %3916 = vmatmul.mubr.f32.gmra.mrb[0].mxu0 %v3915
    %v3917 = vpop.f32.mrb[0].mxu0
    %v3918 = vadd.f32 %v3830, %v3917
    %v3919 = vpop.f32.mrb[0].mxu0
    %3920 = vdwg.mxu0
    %3921 = vmatprep.subr.mxu0 0.0
    %v3922 = vand.u32 %v3418, 4294901760
    %v3923 = vsub.f32 %v3418, %v3922
    %v3924 = vand.u32 %v3923, 4294901760
    %3925 = vmatpush1.msra.mxu0 %v3924
    %3926 = vmatprep.subr.mxu0 0.0
    %v3927 = vand.u32 %v3419, 4294901760
    %v3928 = vsub.f32 %v3419, %v3927
    %v3929 = vand.u32 %v3928, 4294901760
    %3930 = vmatpush1.msra.mxu0 %v3929
    %3931 = vmatprep.subr.mxu0 0.0
    %v3932 = vand.u32 %v3420, 4294901760
    %v3933 = vsub.f32 %v3420, %v3932
    %v3934 = vand.u32 %v3933, 4294901760
    %3935 = vmatpush1.msra.mxu0 %v3934
    %3936 = vmatprep.subr.mxu0 0.0
    %v3937 = vand.u32 %v3421, 4294901760
    %v3938 = vsub.f32 %v3421, %v3937
    %v3939 = vand.u32 %v3938, 4294901760
    %3940 = vmatpush1.msra.mxu0 %v3939
    %3941 = vmatprep.subr.mxu0 0.0
    %v3942 = vand.u32 %v3422, 4294901760
    %v3943 = vsub.f32 %v3422, %v3942
    %v3944 = vand.u32 %v3943, 4294901760
    %3945 = vmatpush1.msra.mxu0 %v3944
    %3946 = vmatprep.subr.mxu0 0.0
    %v3947 = vand.u32 %v3423, 4294901760
    %v3948 = vsub.f32 %v3423, %v3947
    %v3949 = vand.u32 %v3948, 4294901760
    %3950 = vmatpush1.msra.mxu0 %v3949
    %3951 = vmatprep.subr.mxu0 0.0
    %v3952 = vand.u32 %v3424, 4294901760
    %v3953 = vsub.f32 %v3424, %v3952
    %v3954 = vand.u32 %v3953, 4294901760
    %3955 = vmatpush1.msra.mxu0 %v3954
    %3956 = vmatprep.subr.mxu0 0.0
    %3957 = vmatpush1.msra.mxu0 0.0
    %3958 = vmatprep.subr.mxu0 0.0
    %3959 = vmatpush1.msra.mxu0 0.0
    %3960 = vmatprep.subr.mxu0 0.0
    %3961 = vmatpush1.msra.mxu0 0.0
    %3962 = vmatprep.subr.mxu0 0.0
    %3963 = vmatpush1.msra.mxu0 0.0
    %3964 = vmatprep.subr.mxu0 0.0
    %3965 = vmatpush1.msra.mxu0 0.0
    %3966 = vmatprep.subr.mxu0 0.0
    %3967 = vmatpush1.msra.mxu0 0.0
    %3968 = vmatprep.subr.mxu0 0.0
    %3969 = vmatpush1.msra.mxu0 0.0
    %3970 = vmatprep.subr.mxu0 0.0
    %3971 = vmatpush1.msra.mxu0 0.0
    %3972 = vmatprep.subr.mxu0 0.0
    %3973 = vmatpush1.msra.mxu0 0.0
    %3974 = vmatprep.subr.mxu0 0.0
    %3975 = vmatpush1.msra.mxu0 0.0
    %3976 = vmatprep.subr.mxu0 0.0
    %3977 = vmatpush1.msra.mxu0 0.0
    %3978 = vmatprep.subr.mxu0 0.0
    %3979 = vmatpush1.msra.mxu0 0.0
    %3980 = vmatprep.subr.mxu0 0.0
    %3981 = vmatpush1.msra.mxu0 0.0
    %3982 = vmatprep.subr.mxu0 0.0
    %3983 = vmatpush1.msra.mxu0 0.0
    %3984 = vmatprep.subr.mxu0 0.0
    %3985 = vmatpush1.msra.mxu0 0.0
    %3986 = vmatprep.subr.mxu0 0.0
    %3987 = vmatpush1.msra.mxu0 0.0
    %3988 = vmatprep.subr.mxu0 0.0
    %3989 = vmatpush1.msra.mxu0 0.0
    %3990 = vmatprep.subr.mxu0 0.0
    %3991 = vmatpush1.msra.mxu0 0.0
    %3992 = vmatprep.subr.mxu0 0.0
    %3993 = vmatpush1.msra.mxu0 0.0
    %3994 = vmatprep.subr.mxu0 0.0
    %3995 = vmatpush1.msra.mxu0 0.0
    %3996 = vmatprep.subr.mxu0 0.0
    %3997 = vmatpush1.msra.mxu0 0.0
    %3998 = vmatprep.subr.mxu0 0.0
    %3999 = vmatpush1.msra.mxu0 0.0
    %4000 = vmatprep.subr.mxu0 0.0
    %4001 = vmatpush1.msra.mxu0 0.0
    %4002 = vmatprep.subr.mxu0 0.0
    %4003 = vmatpush1.msra.mxu0 0.0
    %4004 = vmatprep.subr.mxu0 0.0
    %4005 = vmatpush1.msra.mxu0 0.0
    %4006 = vmatprep.mubr.f32.mxu0 0.0
    %v4007 = vand.u32 %v3531, 4294901760
    %4008 = vmatmul.mubr.f32.gmra.mrb[0].mxu0 %v4007
    %v4009 = vpop.f32.mrb[0].mxu0
    %v4010 = vadd.f32 %v3910, %v4009
    %v4011 = vpop.f32.mrb[0].mxu0
    %4012 = vmatprep.mubr.f32.mxu0 0.0
    %v4013 = vand.u32 %v3534, 4294901760
    %4014 = vmatmul.mubr.f32.gmra.mrb[0].mxu0 %v4013
    %v4015 = vpop.f32.mrb[0].mxu0
    %v4016 = vadd.f32 %v3918, %v4015
    %v4017 = vpop.f32.mrb[0].mxu0
    %4018 = vdwg.mxu0
    %4019 = vmatprep.subr.mxu0 0.0
    %v4020 = vand.u32 %v3418, 4294901760
    %4021 = vmatpush1.msra.mxu0 %v4020
    %4022 = vmatprep.subr.mxu0 0.0
    %v4023 = vand.u32 %v3419, 4294901760
    %4024 = vmatpush1.msra.mxu0 %v4023
    %4025 = vmatprep.subr.mxu0 0.0
    %v4026 = vand.u32 %v3420, 4294901760
    %4027 = vmatpush1.msra.mxu0 %v4026
    %4028 = vmatprep.subr.mxu0 0.0
    %v4029 = vand.u32 %v3421, 4294901760
    %4030 = vmatpush1.msra.mxu0 %v4029
    %4031 = vmatprep.subr.mxu0 0.0
    %v4032 = vand.u32 %v3422, 4294901760
    %4033 = vmatpush1.msra.mxu0 %v4032
    %4034 = vmatprep.subr.mxu0 0.0
    %v4035 = vand.u32 %v3423, 4294901760
    %4036 = vmatpush1.msra.mxu0 %v4035
    %4037 = vmatprep.subr.mxu0 0.0
    %v4038 = vand.u32 %v3424, 4294901760
    %4039 = vmatpush1.msra.mxu0 %v4038
    %4040 = vmatprep.subr.mxu0 0.0
    %4041 = vmatpush1.msra.mxu0 0.0
    %4042 = vmatprep.subr.mxu0 0.0
    %4043 = vmatpush1.msra.mxu0 0.0
    %4044 = vmatprep.subr.mxu0 0.0
    %4045 = vmatpush1.msra.mxu0 0.0
    %4046 = vmatprep.subr.mxu0 0.0
    %4047 = vmatpush1.msra.mxu0 0.0
    %4048 = vmatprep.subr.mxu0 0.0
    %4049 = vmatpush1.msra.mxu0 0.0
    %4050 = vmatprep.subr.mxu0 0.0
    %4051 = vmatpush1.msra.mxu0 0.0
    %4052 = vmatprep.subr.mxu0 0.0
    %4053 = vmatpush1.msra.mxu0 0.0
    %4054 = vmatprep.subr.mxu0 0.0
    %4055 = vmatpush1.msra.mxu0 0.0
    %4056 = vmatprep.subr.mxu0 0.0
    %4057 = vmatpush1.msra.mxu0 0.0
    %4058 = vmatprep.subr.mxu0 0.0
    %4059 = vmatpush1.msra.mxu0 0.0
    %4060 = vmatprep.subr.mxu0 0.0
    %4061 = vmatpush1.msra.mxu0 0.0
    %4062 = vmatprep.subr.mxu0 0.0
    %4063 = vmatpush1.msra.mxu0 0.0
    %4064 = vmatprep.subr.mxu0 0.0
    %4065 = vmatpush1.msra.mxu0 0.0
    %4066 = vmatprep.subr.mxu0 0.0
    %4067 = vmatpush1.msra.mxu0 0.0
    %4068 = vmatprep.subr.mxu0 0.0
    %4069 = vmatpush1.msra.mxu0 0.0
    %4070 = vmatprep.subr.mxu0 0.0
    %4071 = vmatpush1.msra.mxu0 0.0
    %4072 = vmatprep.subr.mxu0 0.0
    %4073 = vmatpush1.msra.mxu0 0.0
    %4074 = vmatprep.subr.mxu0 0.0
    %4075 = vmatpush1.msra.mxu0 0.0
    %4076 = vmatprep.subr.mxu0 0.0
    %4077 = vmatpush1.msra.mxu0 0.0
    %4078 = vmatprep.subr.mxu0 0.0
    %4079 = vmatpush1.msra.mxu0 0.0
    %4080 = vmatprep.subr.mxu0 0.0
    %4081 = vmatpush1.msra.mxu0 0.0
    %4082 = vmatprep.subr.mxu0 0.0
    %4083 = vmatpush1.msra.mxu0 0.0
    %4084 = vmatprep.subr.mxu0 0.0
    %4085 = vmatpush1.msra.mxu0 0.0
    %4086 = vmatprep.subr.mxu0 0.0
    %4087 = vmatpush1.msra.mxu0 0.0
    %4088 = vmatprep.subr.mxu0 0.0
    %4089 = vmatpush1.msra.mxu0 0.0
    %4090 = vmatprep.mubr.f32.mxu0 0.0
    %v4091 = vand.u32 %v3531, 4294901760
    %4092 = vmatmul.mubr.f32.gmra.mrb[0].mxu0 %v4091
    %v4093 = vpop.f32.mrb[0].mxu0
    %v4094 = vadd.f32 %v4010, %v4093
    %v4095 = vpop.f32.mrb[0].mxu0
    %4096 = vmatprep.mubr.f32.mxu0 0.0
    %v4097 = vand.u32 %v3534, 4294901760
    %4098 = vmatmul.mubr.f32.gmra.mrb[0].mxu0 %v4097
    %v4099 = vpop.f32.mrb[0].mxu0
    %v4100 = vadd.f32 %v4016, %v4099
    %v4101 = vpop.f32.mrb[0].mxu0
    %4102 = vdwg.mxu0
    %v4103 = vmax.f32 %v4094, 0.0
    %v4104 = vmax.f32 %v4100, 0.0
    %4105 = vst.msk [vmem:[#allocation2] sm:$0xff] %vm224, %v4103
    %4106 = vst.msk [vmem:[#allocation2 + $0x8] sm:$0xff] %vm224, %v4104
    %v4107 = vld [vmem:[#allocation2] ss:$2 sm:$0xff]
    %v4108 = vld [vmem:[%s1053] ss:$2 sm:$0xff]
    %v4109 = vmax.f32 %v4107, %v4108
    %v4110 = vld [vmem:[%s12] sm:$0xff]
    %v4111 = vld [vmem:[%s12 + $0x8] sm:$0xff]
    %v4112 = vld [vmem:[%s12 + $0x10] sm:$0xff]
    %v4113 = vld [vmem:[%s12 + $0x18] sm:$0xff]
    %v4114 = vld [vmem:[%s12 + $0x20] sm:$0xff]
    %v4115 = vld [vmem:[%s12 + $0x28] sm:$0xff]
    %v4116 = vld [vmem:[%s12 + $0x30] sm:$0xff]
    %v4117 = vld [vmem:[%s13] sm:$0x1]
    %v4119 = vrot.slane %v4109, 5
    %v4121 = vsel %vm162, 0.0, %v4119
    %v4122 = vsel %vm115, %v4121, 0.0
    %v4124 = vrot.slane %v4122, 1
    %4125 = vrot.lane.b32.xlu0 %v4124, 8
    %v4126 = vpop.permute.xlu0 %4125
    %v4128 = vrot.slane %v4122, 2
    %4129 = vrot.lane.b32.xlu0 %v4128, 16
    %v4130 = vpop.permute.xlu0 %4129
    %v4132 = vrot.slane %v4122, 3
    %4133 = vrot.lane.b32.xlu0 %v4132, 24
    %v4134 = vpop.permute.xlu0 %4133
    %v4136 = vrot.slane %v4122, 4
    %4137 = vrot.lane.b32.xlu0 %v4136, 32
    %v4138 = vpop.permute.xlu0 %4137
    %v4140 = vrot.slane %v4122, 5
    %v4141 = vrot.slane 0.0, 5
    %v4142 = vsel %vm162, %v4140, %v4141
    %4143 = vrot.lane.b32.xlu0 %v4142, 40
    %v4144 = vpop.permute.xlu0 %4143
    %v4146 = vrot.slane %v4122, 6
    %v4147 = vrot.slane 0.0, 6
    %v4148 = vsel %vm174, %v4146, %v4147
    %4149 = vrot.lane.b32.xlu0 %v4148, 48
    %v4150 = vpop.permute.xlu0 %4149
    %v4152 = vsel %vm224, %v4122, %v4126
    %v4153 = vsel %vm230, %v4152, %v4130
    %v4154 = vsel %vm236, %v4153, %v4134
    %v4155 = vsel %vm242, %v4154, %v4138
    %v4156 = vsel %vm248, %v4155, %v4144
    %v4157 = vsel %vm1136, %v4156, %v4150
    %v4158 = vrot.slane %v4109, 1
    %v4160 = vsel %vm162, 0.0, %v4158
    %v4161 = vsel %vm115, %v4160, 0.0
    %v4163 = vrot.slane %v4161, 1
    %4164 = vrot.lane.b32.xlu0 %v4163, 8
    %v4165 = vpop.permute.xlu0 %4164
    %v4167 = vrot.slane %v4161, 2
    %4168 = vrot.lane.b32.xlu0 %v4167, 16
    %v4169 = vpop.permute.xlu0 %4168
    %v4171 = vrot.slane %v4161, 3
    %4172 = vrot.lane.b32.xlu0 %v4171, 24
    %v4173 = vpop.permute.xlu0 %4172
    %v4175 = vrot.slane %v4161, 4
    %4176 = vrot.lane.b32.xlu0 %v4175, 32
    %v4177 = vpop.permute.xlu0 %4176
    %v4179 = vrot.slane %v4161, 5
    %v4180 = vsel %vm162, %v4179, %v4141
    %4181 = vrot.lane.b32.xlu0 %v4180, 40
    %v4182 = vpop.permute.xlu0 %4181
    %v4184 = vrot.slane %v4161, 6
    %v4185 = vsel %vm174, %v4184, %v4147
    %4186 = vrot.lane.b32.xlu0 %v4185, 48
    %v4187 = vpop.permute.xlu0 %4186
    %v4189 = vsel %vm224, %v4161, %v4165
    %v4190 = vsel %vm230, %v4189, %v4169
    %v4191 = vsel %vm236, %v4190, %v4173
    %v4192 = vsel %vm242, %v4191, %v4177
    %v4193 = vsel %vm248, %v4192, %v4182
    %v4194 = vsel %vm1136, %v4193, %v4187
    %v4196 = vrot.slane %v4194, 4
    %v4198 = vsel %vm150, %v4157, %v4196
    %v4200 = vlaneseq
    %v4201 = vshrl.u32 %v4200, 7
    %v4202 = vsub.s32 0, %v4201
    %v4203 = vrot.slane %v4117, %v4202
    %v4206 = vsel %vm1138, %v4198, 0
    %4208 = vmatprep.subr.mxu0 0.0
    %v4209 = vand.u32 %v4110, 4294901760
    %4210 = vmatpush1.msra.mxu0 %v4209
    %4211 = vmatprep.subr.mxu0 0.0
    %v4212 = vand.u32 %v4111, 4294901760
    %4213 = vmatpush1.msra.mxu0 %v4212
    %4214 = vmatprep.subr.mxu0 0.0
    %v4215 = vand.u32 %v4112, 4294901760
    %4216 = vmatpush1.msra.mxu0 %v4215
    %4217 = vmatprep.subr.mxu0 0.0
    %v4218 = vand.u32 %v4113, 4294901760
    %4219 = vmatpush1.msra.mxu0 %v4218
    %4220 = vmatprep.subr.mxu0 0.0
    %v4221 = vand.u32 %v4114, 4294901760
    %4222 = vmatpush1.msra.mxu0 %v4221
    %4223 = vmatprep.subr.mxu0 0.0
    %v4224 = vand.u32 %v4115, 4294901760
    %4225 = vmatpush1.msra.mxu0 %v4224
    %4226 = vmatprep.subr.mxu0 0.0
    %v4227 = vand.u32 %v4116, 4294901760
    %4228 = vmatpush1.msra.mxu0 %v4227
    %4229 = vmatprep.subr.mxu0 0.0
    %4230 = vmatpush1.msra.mxu0 0.0
    %4231 = vmatprep.subr.mxu0 0.0
    %4232 = vmatpush1.msra.mxu0 0.0
    %4233 = vmatprep.subr.mxu0 0.0
    %4234 = vmatpush1.msra.mxu0 0.0
    %4235 = vmatprep.subr.mxu0 0.0
    %4236 = vmatpush1.msra.mxu0 0.0
    %4237 = vmatprep.subr.mxu0 0.0
    %4238 = vmatpush1.msra.mxu0 0.0
    %4239 = vmatprep.subr.mxu0 0.0
    %4240 = vmatpush1.msra.mxu0 0.0
    %4241 = vmatprep.subr.mxu0 0.0
    %4242 = vmatpush1.msra.mxu0 0.0
    %4243 = vmatprep.subr.mxu0 0.0
    %4244 = vmatpush1.msra.mxu0 0.0
    %4245 = vmatprep.subr.mxu0 0.0
    %4246 = vmatpush1.msra.mxu0 0.0
    %4247 = vmatprep.subr.mxu0 0.0
    %4248 = vmatpush1.msra.mxu0 0.0
    %4249 = vmatprep.subr.mxu0 0.0
    %4250 = vmatpush1.msra.mxu0 0.0
    %4251 = vmatprep.subr.mxu0 0.0
    %4252 = vmatpush1.msra.mxu0 0.0
    %4253 = vmatprep.subr.mxu0 0.0
    %4254 = vmatpush1.msra.mxu0 0.0
    %4255 = vmatprep.subr.mxu0 0.0
    %4256 = vmatpush1.msra.mxu0 0.0
    %4257 = vmatprep.subr.mxu0 0.0
    %4258 = vmatpush1.msra.mxu0 0.0
    %4259 = vmatprep.subr.mxu0 0.0
    %4260 = vmatpush1.msra.mxu0 0.0
    %4261 = vmatprep.subr.mxu0 0.0
    %4262 = vmatpush1.msra.mxu0 0.0
    %4263 = vmatprep.subr.mxu0 0.0
    %4264 = vmatpush1.msra.mxu0 0.0
    %4265 = vmatprep.subr.mxu0 0.0
    %4266 = vmatpush1.msra.mxu0 0.0
    %4267 = vmatprep.subr.mxu0 0.0
    %4268 = vmatpush1.msra.mxu0 0.0
    %4269 = vmatprep.subr.mxu0 0.0
    %4270 = vmatpush1.msra.mxu0 0.0
    %4271 = vmatprep.subr.mxu0 0.0
    %4272 = vmatpush1.msra.mxu0 0.0
    %4273 = vmatprep.subr.mxu0 0.0
    %4274 = vmatpush1.msra.mxu0 0.0
    %4275 = vmatprep.subr.mxu0 0.0
    %4276 = vmatpush1.msra.mxu0 0.0
    %4277 = vmatprep.subr.mxu0 0.0
    %4278 = vmatpush1.msra.mxu0 0.0
    %4279 = vmatprep.mubr.f32.mxu0 0.0
    %v4280 = vand.u32 %v4206, 4294901760
    %v4281 = vsub.f32 %v4206, %v4280
    %v4282 = vand.u32 %v4281, 4294901760
    %v4283 = vsub.f32 %v4281, %v4282
    %v4284 = vand.u32 %v4283, 4294901760
    %4285 = vmatmul.mubr.f32.gmra.mrb[0].mxu0 %v4284
    %v4286 = vpop.f32.mrb[0].mxu0
    %v4287 = vadd.f32 %v4203, %v4286
    %v4288 = vpop.f32.mrb[0].mxu0
    %4289 = vdwg.mxu0
    %4290 = vmatprep.subr.mxu0 0.0
    %v4291 = vand.u32 %v4110, 4294901760
    %v4292 = vsub.f32 %v4110, %v4291
    %v4293 = vand.u32 %v4292, 4294901760
    %v4294 = vsub.f32 %v4292, %v4293
    %v4295 = vand.u32 %v4294, 4294901760
    %4296 = vmatpush1.msra.mxu0 %v4295
    %4297 = vmatprep.subr.mxu0 0.0
    %v4298 = vand.u32 %v4111, 4294901760
    %v4299 = vsub.f32 %v4111, %v4298
    %v4300 = vand.u32 %v4299, 4294901760
    %v4301 = vsub.f32 %v4299, %v4300
    %v4302 = vand.u32 %v4301, 4294901760
    %4303 = vmatpush1.msra.mxu0 %v4302
    %4304 = vmatprep.subr.mxu0 0.0
    %v4305 = vand.u32 %v4112, 4294901760
    %v4306 = vsub.f32 %v4112, %v4305
    %v4307 = vand.u32 %v4306, 4294901760
    %v4308 = vsub.f32 %v4306, %v4307
    %v4309 = vand.u32 %v4308, 4294901760
    %4310 = vmatpush1.msra.mxu0 %v4309
    %4311 = vmatprep.subr.mxu0 0.0
    %v4312 = vand.u32 %v4113, 4294901760
    %v4313 = vsub.f32 %v4113, %v4312
    %v4314 = vand.u32 %v4313, 4294901760
    %v4315 = vsub.f32 %v4313, %v4314
    %v4316 = vand.u32 %v4315, 4294901760
    %4317 = vmatpush1.msra.mxu0 %v4316
    %4318 = vmatprep.subr.mxu0 0.0
    %v4319 = vand.u32 %v4114, 4294901760
    %v4320 = vsub.f32 %v4114, %v4319
    %v4321 = vand.u32 %v4320, 4294901760
    %v4322 = vsub.f32 %v4320, %v4321
    %v4323 = vand.u32 %v4322, 4294901760
    %4324 = vmatpush1.msra.mxu0 %v4323
    %4325 = vmatprep.subr.mxu0 0.0
    %v4326 = vand.u32 %v4115, 4294901760
    %v4327 = vsub.f32 %v4115, %v4326
    %v4328 = vand.u32 %v4327, 4294901760
    %v4329 = vsub.f32 %v4327, %v4328
    %v4330 = vand.u32 %v4329, 4294901760
    %4331 = vmatpush1.msra.mxu0 %v4330
    %4332 = vmatprep.subr.mxu0 0.0
    %v4333 = vand.u32 %v4116, 4294901760
    %v4334 = vsub.f32 %v4116, %v4333
    %v4335 = vand.u32 %v4334, 4294901760
    %v4336 = vsub.f32 %v4334, %v4335
    %v4337 = vand.u32 %v4336, 4294901760
    %4338 = vmatpush1.msra.mxu0 %v4337
    %4339 = vmatprep.subr.mxu0 0.0
    %4340 = vmatpush1.msra.mxu0 0.0
    %4341 = vmatprep.subr.mxu0 0.0
    %4342 = vmatpush1.msra.mxu0 0.0
    %4343 = vmatprep.subr.mxu0 0.0
    %4344 = vmatpush1.msra.mxu0 0.0
    %4345 = vmatprep.subr.mxu0 0.0
    %4346 = vmatpush1.msra.mxu0 0.0
    %4347 = vmatprep.subr.mxu0 0.0
    %4348 = vmatpush1.msra.mxu0 0.0
    %4349 = vmatprep.subr.mxu0 0.0
    %4350 = vmatpush1.msra.mxu0 0.0
    %4351 = vmatprep.subr.mxu0 0.0
    %4352 = vmatpush1.msra.mxu0 0.0
    %4353 = vmatprep.subr.mxu0 0.0
    %4354 = vmatpush1.msra.mxu0 0.0
    %4355 = vmatprep.subr.mxu0 0.0
    %4356 = vmatpush1.msra.mxu0 0.0
    %4357 = vmatprep.subr.mxu0 0.0
    %4358 = vmatpush1.msra.mxu0 0.0
    %4359 = vmatprep.subr.mxu0 0.0
    %4360 = vmatpush1.msra.mxu0 0.0
    %4361 = vmatprep.subr.mxu0 0.0
    %4362 = vmatpush1.msra.mxu0 0.0
    %4363 = vmatprep.subr.mxu0 0.0
    %4364 = vmatpush1.msra.mxu0 0.0
    %4365 = vmatprep.subr.mxu0 0.0
    %4366 = vmatpush1.msra.mxu0 0.0
    %4367 = vmatprep.subr.mxu0 0.0
    %4368 = vmatpush1.msra.mxu0 0.0
    %4369 = vmatprep.subr.mxu0 0.0
    %4370 = vmatpush1.msra.mxu0 0.0
    %4371 = vmatprep.subr.mxu0 0.0
    %4372 = vmatpush1.msra.mxu0 0.0
    %4373 = vmatprep.subr.mxu0 0.0
    %4374 = vmatpush1.msra.mxu0 0.0
    %4375 = vmatprep.subr.mxu0 0.0
    %4376 = vmatpush1.msra.mxu0 0.0
    %4377 = vmatprep.subr.mxu0 0.0
    %4378 = vmatpush1.msra.mxu0 0.0
    %4379 = vmatprep.subr.mxu0 0.0
    %4380 = vmatpush1.msra.mxu0 0.0
    %4381 = vmatprep.subr.mxu0 0.0
    %4382 = vmatpush1.msra.mxu0 0.0
    %4383 = vmatprep.subr.mxu0 0.0
    %4384 = vmatpush1.msra.mxu0 0.0
    %4385 = vmatprep.subr.mxu0 0.0
    %4386 = vmatpush1.msra.mxu0 0.0
    %4387 = vmatprep.subr.mxu0 0.0
    %4388 = vmatpush1.msra.mxu0 0.0
    %4389 = vmatprep.mubr.f32.mxu0 0.0
    %v4390 = vand.u32 %v4206, 4294901760
    %4391 = vmatmul.mubr.f32.gmra.mrb[0].mxu0 %v4390
    %v4392 = vpop.f32.mrb[0].mxu0
    %v4393 = vadd.f32 %v4287, %v4392
    %v4394 = vpop.f32.mrb[0].mxu0
    %4395 = vdwg.mxu0
    %4396 = vmatprep.subr.mxu0 0.0
    %v4397 = vand.u32 %v4110, 4294901760
    %v4398 = vsub.f32 %v4110, %v4397
    %4399 = vmatpush1.msra.mxu0 %v4398
    %4400 = vmatprep.subr.mxu0 0.0
    %v4401 = vand.u32 %v4111, 4294901760
    %v4402 = vsub.f32 %v4111, %v4401
    %4403 = vmatpush1.msra.mxu0 %v4402
    %4404 = vmatprep.subr.mxu0 0.0
    %v4405 = vand.u32 %v4112, 4294901760
    %v4406 = vsub.f32 %v4112, %v4405
    %4407 = vmatpush1.msra.mxu0 %v4406
    %4408 = vmatprep.subr.mxu0 0.0
    %v4409 = vand.u32 %v4113, 4294901760
    %v4410 = vsub.f32 %v4113, %v4409
    %4411 = vmatpush1.msra.mxu0 %v4410
    %4412 = vmatprep.subr.mxu0 0.0
    %v4413 = vand.u32 %v4114, 4294901760
    %v4414 = vsub.f32 %v4114, %v4413
    %4415 = vmatpush1.msra.mxu0 %v4414
    %4416 = vmatprep.subr.mxu0 0.0
    %v4417 = vand.u32 %v4115, 4294901760
    %v4418 = vsub.f32 %v4115, %v4417
    %4419 = vmatpush1.msra.mxu0 %v4418
    %4420 = vmatprep.subr.mxu0 0.0
    %v4421 = vand.u32 %v4116, 4294901760
    %v4422 = vsub.f32 %v4116, %v4421
    %4423 = vmatpush1.msra.mxu0 %v4422
    %4424 = vmatprep.subr.mxu0 0.0
    %4425 = vmatpush1.msra.mxu0 0.0
    %4426 = vmatprep.subr.mxu0 0.0
    %4427 = vmatpush1.msra.mxu0 0.0
    %4428 = vmatprep.subr.mxu0 0.0
    %4429 = vmatpush1.msra.mxu0 0.0
    %4430 = vmatprep.subr.mxu0 0.0
    %4431 = vmatpush1.msra.mxu0 0.0
    %4432 = vmatprep.subr.mxu0 0.0
    %4433 = vmatpush1.msra.mxu0 0.0
    %4434 = vmatprep.subr.mxu0 0.0
    %4435 = vmatpush1.msra.mxu0 0.0
    %4436 = vmatprep.subr.mxu0 0.0
    %4437 = vmatpush1.msra.mxu0 0.0
    %4438 = vmatprep.subr.mxu0 0.0
    %4439 = vmatpush1.msra.mxu0 0.0
    %4440 = vmatprep.subr.mxu0 0.0
    %4441 = vmatpush1.msra.mxu0 0.0
    %4442 = vmatprep.subr.mxu0 0.0
    %4443 = vmatpush1.msra.mxu0 0.0
    %4444 = vmatprep.subr.mxu0 0.0
    %4445 = vmatpush1.msra.mxu0 0.0
    %4446 = vmatprep.subr.mxu0 0.0
    %4447 = vmatpush1.msra.mxu0 0.0
    %4448 = vmatprep.subr.mxu0 0.0
    %4449 = vmatpush1.msra.mxu0 0.0
    %4450 = vmatprep.subr.mxu0 0.0
    %4451 = vmatpush1.msra.mxu0 0.0
    %4452 = vmatprep.subr.mxu0 0.0
    %4453 = vmatpush1.msra.mxu0 0.0
    %4454 = vmatprep.subr.mxu0 0.0
    %4455 = vmatpush1.msra.mxu0 0.0
    %4456 = vmatprep.subr.mxu0 0.0
    %4457 = vmatpush1.msra.mxu0 0.0
    %4458 = vmatprep.subr.mxu0 0.0
    %4459 = vmatpush1.msra.mxu0 0.0
    %4460 = vmatprep.subr.mxu0 0.0
    %4461 = vmatpush1.msra.mxu0 0.0
    %4462 = vmatprep.subr.mxu0 0.0
    %4463 = vmatpush1.msra.mxu0 0.0
    %4464 = vmatprep.subr.mxu0 0.0
    %4465 = vmatpush1.msra.mxu0 0.0
    %4466 = vmatprep.subr.mxu0 0.0
    %4467 = vmatpush1.msra.mxu0 0.0
    %4468 = vmatprep.subr.mxu0 0.0
    %4469 = vmatpush1.msra.mxu0 0.0
    %4470 = vmatprep.subr.mxu0 0.0
    %4471 = vmatpush1.msra.mxu0 0.0
    %4472 = vmatprep.subr.mxu0 0.0
    %4473 = vmatpush1.msra.mxu0 0.0
    %4474 = vmatprep.mubr.f32.mxu0 0.0
    %v4475 = vand.u32 %v4206, 4294901760
    %v4476 = vsub.f32 %v4206, %v4475
    %4477 = vmatmul.mubr.f32.gmra.mrb[0].mxu0 %v4476
    %v4478 = vpop.f32.mrb[0].mxu0
    %v4479 = vadd.f32 %v4393, %v4478
    %v4480 = vpop.f32.mrb[0].mxu0
    %4481 = vdwg.mxu0
    %4482 = vmatprep.subr.mxu0 0.0
    %v4483 = vand.u32 %v4110, 4294901760
    %4484 = vmatpush1.msra.mxu0 %v4483
    %4485 = vmatprep.subr.mxu0 0.0
    %v4486 = vand.u32 %v4111, 4294901760
    %4487 = vmatpush1.msra.mxu0 %v4486
    %4488 = vmatprep.subr.mxu0 0.0
    %v4489 = vand.u32 %v4112, 4294901760
    %4490 = vmatpush1.msra.mxu0 %v4489
    %4491 = vmatprep.subr.mxu0 0.0
    %v4492 = vand.u32 %v4113, 4294901760
    %4493 = vmatpush1.msra.mxu0 %v4492
    %4494 = vmatprep.subr.mxu0 0.0
    %v4495 = vand.u32 %v4114, 4294901760
    %4496 = vmatpush1.msra.mxu0 %v4495
    %4497 = vmatprep.subr.mxu0 0.0
    %v4498 = vand.u32 %v4115, 4294901760
    %4499 = vmatpush1.msra.mxu0 %v4498
    %4500 = vmatprep.subr.mxu0 0.0
    %v4501 = vand.u32 %v4116, 4294901760
    %4502 = vmatpush1.msra.mxu0 %v4501
    %4503 = vmatprep.subr.mxu0 0.0
    %4504 = vmatpush1.msra.mxu0 0.0
    %4505 = vmatprep.subr.mxu0 0.0
    %4506 = vmatpush1.msra.mxu0 0.0
    %4507 = vmatprep.subr.mxu0 0.0
    %4508 = vmatpush1.msra.mxu0 0.0
    %4509 = vmatprep.subr.mxu0 0.0
    %4510 = vmatpush1.msra.mxu0 0.0
    %4511 = vmatprep.subr.mxu0 0.0
    %4512 = vmatpush1.msra.mxu0 0.0
    %4513 = vmatprep.subr.mxu0 0.0
    %4514 = vmatpush1.msra.mxu0 0.0
    %4515 = vmatprep.subr.mxu0 0.0
    %4516 = vmatpush1.msra.mxu0 0.0
    %4517 = vmatprep.subr.mxu0 0.0
    %4518 = vmatpush1.msra.mxu0 0.0
    %4519 = vmatprep.subr.mxu0 0.0
    %4520 = vmatpush1.msra.mxu0 0.0
    %4521 = vmatprep.subr.mxu0 0.0
    %4522 = vmatpush1.msra.mxu0 0.0
    %4523 = vmatprep.subr.mxu0 0.0
    %4524 = vmatpush1.msra.mxu0 0.0
    %4525 = vmatprep.subr.mxu0 0.0
    %4526 = vmatpush1.msra.mxu0 0.0
    %4527 = vmatprep.subr.mxu0 0.0
    %4528 = vmatpush1.msra.mxu0 0.0
    %4529 = vmatprep.subr.mxu0 0.0
    %4530 = vmatpush1.msra.mxu0 0.0
    %4531 = vmatprep.subr.mxu0 0.0
    %4532 = vmatpush1.msra.mxu0 0.0
    %4533 = vmatprep.subr.mxu0 0.0
    %4534 = vmatpush1.msra.mxu0 0.0
    %4535 = vmatprep.subr.mxu0 0.0
    %4536 = vmatpush1.msra.mxu0 0.0
    %4537 = vmatprep.subr.mxu0 0.0
    %4538 = vmatpush1.msra.mxu0 0.0
    %4539 = vmatprep.subr.mxu0 0.0
    %4540 = vmatpush1.msra.mxu0 0.0
    %4541 = vmatprep.subr.mxu0 0.0
    %4542 = vmatpush1.msra.mxu0 0.0
    %4543 = vmatprep.subr.mxu0 0.0
    %4544 = vmatpush1.msra.mxu0 0.0
    %4545 = vmatprep.subr.mxu0 0.0
    %4546 = vmatpush1.msra.mxu0 0.0
    %4547 = vmatprep.subr.mxu0 0.0
    %4548 = vmatpush1.msra.mxu0 0.0
    %4549 = vmatprep.subr.mxu0 0.0
    %4550 = vmatpush1.msra.mxu0 0.0
    %4551 = vmatprep.subr.mxu0 0.0
    %4552 = vmatpush1.msra.mxu0 0.0
    %4553 = vmatprep.mubr.f32.mxu0 0.0
    %v4554 = vand.u32 %v4206, 4294901760
    %v4555 = vsub.f32 %v4206, %v4554
    %v4556 = vand.u32 %v4555, 4294901760
    %4557 = vmatmul.mubr.f32.gmra.mrb[0].mxu0 %v4556
    %v4558 = vpop.f32.mrb[0].mxu0
    %v4559 = vadd.f32 %v4479, %v4558
    %v4560 = vpop.f32.mrb[0].mxu0
    %4561 = vdwg.mxu0
    %4562 = vmatprep.subr.mxu0 0.0
    %v4563 = vand.u32 %v4110, 4294901760
    %v4564 = vsub.f32 %v4110, %v4563
    %v4565 = vand.u32 %v4564, 4294901760
    %4566 = vmatpush1.msra.mxu0 %v4565
    %4567 = vmatprep.subr.mxu0 0.0
    %v4568 = vand.u32 %v4111, 4294901760
    %v4569 = vsub.f32 %v4111, %v4568
    %v4570 = vand.u32 %v4569, 4294901760
    %4571 = vmatpush1.msra.mxu0 %v4570
    %4572 = vmatprep.subr.mxu0 0.0
    %v4573 = vand.u32 %v4112, 4294901760
    %v4574 = vsub.f32 %v4112, %v4573
    %v4575 = vand.u32 %v4574, 4294901760
    %4576 = vmatpush1.msra.mxu0 %v4575
    %4577 = vmatprep.subr.mxu0 0.0
    %v4578 = vand.u32 %v4113, 4294901760
    %v4579 = vsub.f32 %v4113, %v4578
    %v4580 = vand.u32 %v4579, 4294901760
    %4581 = vmatpush1.msra.mxu0 %v4580
    %4582 = vmatprep.subr.mxu0 0.0
    %v4583 = vand.u32 %v4114, 4294901760
    %v4584 = vsub.f32 %v4114, %v4583
    %v4585 = vand.u32 %v4584, 4294901760
    %4586 = vmatpush1.msra.mxu0 %v4585
    %4587 = vmatprep.subr.mxu0 0.0
    %v4588 = vand.u32 %v4115, 4294901760
    %v4589 = vsub.f32 %v4115, %v4588
    %v4590 = vand.u32 %v4589, 4294901760
    %4591 = vmatpush1.msra.mxu0 %v4590
    %4592 = vmatprep.subr.mxu0 0.0
    %v4593 = vand.u32 %v4116, 4294901760
    %v4594 = vsub.f32 %v4116, %v4593
    %v4595 = vand.u32 %v4594, 4294901760
    %4596 = vmatpush1.msra.mxu0 %v4595
    %4597 = vmatprep.subr.mxu0 0.0
    %4598 = vmatpush1.msra.mxu0 0.0
    %4599 = vmatprep.subr.mxu0 0.0
    %4600 = vmatpush1.msra.mxu0 0.0
    %4601 = vmatprep.subr.mxu0 0.0
    %4602 = vmatpush1.msra.mxu0 0.0
    %4603 = vmatprep.subr.mxu0 0.0
    %4604 = vmatpush1.msra.mxu0 0.0
    %4605 = vmatprep.subr.mxu0 0.0
    %4606 = vmatpush1.msra.mxu0 0.0
    %4607 = vmatprep.subr.mxu0 0.0
    %4608 = vmatpush1.msra.mxu0 0.0
    %4609 = vmatprep.subr.mxu0 0.0
    %4610 = vmatpush1.msra.mxu0 0.0
    %4611 = vmatprep.subr.mxu0 0.0
    %4612 = vmatpush1.msra.mxu0 0.0
    %4613 = vmatprep.subr.mxu0 0.0
    %4614 = vmatpush1.msra.mxu0 0.0
    %4615 = vmatprep.subr.mxu0 0.0
    %4616 = vmatpush1.msra.mxu0 0.0
    %4617 = vmatprep.subr.mxu0 0.0
    %4618 = vmatpush1.msra.mxu0 0.0
    %4619 = vmatprep.subr.mxu0 0.0
    %4620 = vmatpush1.msra.mxu0 0.0
    %4621 = vmatprep.subr.mxu0 0.0
    %4622 = vmatpush1.msra.mxu0 0.0
    %4623 = vmatprep.subr.mxu0 0.0
    %4624 = vmatpush1.msra.mxu0 0.0
    %4625 = vmatprep.subr.mxu0 0.0
    %4626 = vmatpush1.msra.mxu0 0.0
    %4627 = vmatprep.subr.mxu0 0.0
    %4628 = vmatpush1.msra.mxu0 0.0
    %4629 = vmatprep.subr.mxu0 0.0
    %4630 = vmatpush1.msra.mxu0 0.0
    %4631 = vmatprep.subr.mxu0 0.0
    %4632 = vmatpush1.msra.mxu0 0.0
    %4633 = vmatprep.subr.mxu0 0.0
    %4634 = vmatpush1.msra.mxu0 0.0
    %4635 = vmatprep.subr.mxu0 0.0
    %4636 = vmatpush1.msra.mxu0 0.0
    %4637 = vmatprep.subr.mxu0 0.0
    %4638 = vmatpush1.msra.mxu0 0.0
    %4639 = vmatprep.subr.mxu0 0.0
    %4640 = vmatpush1.msra.mxu0 0.0
    %4641 = vmatprep.subr.mxu0 0.0
    %4642 = vmatpush1.msra.mxu0 0.0
    %4643 = vmatprep.subr.mxu0 0.0
    %4644 = vmatpush1.msra.mxu0 0.0
    %4645 = vmatprep.subr.mxu0 0.0
    %4646 = vmatpush1.msra.mxu0 0.0
    %4647 = vmatprep.mubr.f32.mxu0 0.0
    %v4648 = vand.u32 %v4206, 4294901760
    %4649 = vmatmul.mubr.f32.gmra.mrb[0].mxu0 %v4648
    %v4650 = vpop.f32.mrb[0].mxu0
    %v4651 = vadd.f32 %v4559, %v4650
    %v4652 = vpop.f32.mrb[0].mxu0
    %4653 = vdwg.mxu0
    %4654 = vmatprep.subr.mxu0 0.0
    %v4655 = vand.u32 %v4110, 4294901760
    %4656 = vmatpush1.msra.mxu0 %v4655
    %4657 = vmatprep.subr.mxu0 0.0
    %v4658 = vand.u32 %v4111, 4294901760
    %4659 = vmatpush1.msra.mxu0 %v4658
    %4660 = vmatprep.subr.mxu0 0.0
    %v4661 = vand.u32 %v4112, 4294901760
    %4662 = vmatpush1.msra.mxu0 %v4661
    %4663 = vmatprep.subr.mxu0 0.0
    %v4664 = vand.u32 %v4113, 4294901760
    %4665 = vmatpush1.msra.mxu0 %v4664
    %4666 = vmatprep.subr.mxu0 0.0
    %v4667 = vand.u32 %v4114, 4294901760
    %4668 = vmatpush1.msra.mxu0 %v4667
    %4669 = vmatprep.subr.mxu0 0.0
    %v4670 = vand.u32 %v4115, 4294901760
    %4671 = vmatpush1.msra.mxu0 %v4670
    %4672 = vmatprep.subr.mxu0 0.0
    %v4673 = vand.u32 %v4116, 4294901760
    %4674 = vmatpush1.msra.mxu0 %v4673
    %4675 = vmatprep.subr.mxu0 0.0
    %4676 = vmatpush1.msra.mxu0 0.0
    %4677 = vmatprep.subr.mxu0 0.0
    %4678 = vmatpush1.msra.mxu0 0.0
    %4679 = vmatprep.subr.mxu0 0.0
    %4680 = vmatpush1.msra.mxu0 0.0
    %4681 = vmatprep.subr.mxu0 0.0
    %4682 = vmatpush1.msra.mxu0 0.0
    %4683 = vmatprep.subr.mxu0 0.0
    %4684 = vmatpush1.msra.mxu0 0.0
    %4685 = vmatprep.subr.mxu0 0.0
    %4686 = vmatpush1.msra.mxu0 0.0
    %4687 = vmatprep.subr.mxu0 0.0
    %4688 = vmatpush1.msra.mxu0 0.0
    %4689 = vmatprep.subr.mxu0 0.0
    %4690 = vmatpush1.msra.mxu0 0.0
    %4691 = vmatprep.subr.mxu0 0.0
    %4692 = vmatpush1.msra.mxu0 0.0
    %4693 = vmatprep.subr.mxu0 0.0
    %4694 = vmatpush1.msra.mxu0 0.0
    %4695 = vmatprep.subr.mxu0 0.0
    %4696 = vmatpush1.msra.mxu0 0.0
    %4697 = vmatprep.subr.mxu0 0.0
    %4698 = vmatpush1.msra.mxu0 0.0
    %4699 = vmatprep.subr.mxu0 0.0
    %4700 = vmatpush1.msra.mxu0 0.0
    %4701 = vmatprep.subr.mxu0 0.0
    %4702 = vmatpush1.msra.mxu0 0.0
    %4703 = vmatprep.subr.mxu0 0.0
    %4704 = vmatpush1.msra.mxu0 0.0
    %4705 = vmatprep.subr.mxu0 0.0
    %4706 = vmatpush1.msra.mxu0 0.0
    %4707 = vmatprep.subr.mxu0 0.0
    %4708 = vmatpush1.msra.mxu0 0.0
    %4709 = vmatprep.subr.mxu0 0.0
    %4710 = vmatpush1.msra.mxu0 0.0
    %4711 = vmatprep.subr.mxu0 0.0
    %4712 = vmatpush1.msra.mxu0 0.0
    %4713 = vmatprep.subr.mxu0 0.0
    %4714 = vmatpush1.msra.mxu0 0.0
    %4715 = vmatprep.subr.mxu0 0.0
    %4716 = vmatpush1.msra.mxu0 0.0
    %4717 = vmatprep.subr.mxu0 0.0
    %4718 = vmatpush1.msra.mxu0 0.0
    %4719 = vmatprep.subr.mxu0 0.0
    %4720 = vmatpush1.msra.mxu0 0.0
    %4721 = vmatprep.subr.mxu0 0.0
    %4722 = vmatpush1.msra.mxu0 0.0
    %4723 = vmatprep.subr.mxu0 0.0
    %4724 = vmatpush1.msra.mxu0 0.0
    %4725 = vmatprep.mubr.f32.mxu0 0.0
    %v4726 = vand.u32 %v4206, 4294901760
    %4727 = vmatmul.mubr.f32.gmra.mrb[0].mxu0 %v4726
    %v4728 = vpop.f32.mrb[0].mxu0
    %v4729 = vadd.f32 %v4651, %v4728
    %v4730 = vpop.f32.mrb[0].mxu0
    %4731 = vdwg.mxu0
    %v4732 = vmax.f32 %v4729, 0.0
    %4733 = vst.msk [vmem:[#allocation2] sm:$0xff] %vm224, %v4732
    %v4734 = vld [vmem:[#allocation2] ss:$2 sm:$0xf]
    %v4735 = vld [vmem:[%s1053] ss:$2 sm:$0xf]
    %v4736 = vmax.f32 %v4734, %v4735
    %v4737 = vld [vmem:[%s14] sm:$0xff]
    %v4738 = vld [vmem:[%s14 + $0x8] sm:$0xff]
    %v4739 = vld [vmem:[%s15] sm:$0xff]
    %v4741 = vsel %vm224, %v4736, 0
    %4743 = vmatprep.subr.mxu0 0.0
    %v4744 = vand.u32 %v4739, 4294901760
    %4745 = vmatpush1.msra.mxu0 %v4744
    %4746 = vmatprep.subr.mxu0 0.0
    %4747 = vmatpush1.msra.mxu0 0.0
    %4748 = vmatprep.subr.mxu0 0.0
    %4749 = vmatpush1.msra.mxu0 0.0
    %4750 = vmatprep.subr.mxu0 0.0
    %4751 = vmatpush1.msra.mxu0 0.0
    %4752 = vmatprep.subr.mxu0 0.0
    %4753 = vmatpush1.msra.mxu0 0.0
    %4754 = vmatprep.subr.mxu0 0.0
    %4755 = vmatpush1.msra.mxu0 0.0
    %4756 = vmatprep.subr.mxu0 0.0
    %4757 = vmatpush1.msra.mxu0 0.0
    %4758 = vmatprep.subr.mxu0 0.0
    %4759 = vmatpush1.msra.mxu0 0.0
    %4760 = vmatprep.subr.mxu0 0.0
    %4761 = vmatpush1.msra.mxu0 0.0
    %4762 = vmatprep.subr.mxu0 0.0
    %4763 = vmatpush1.msra.mxu0 0.0
    %4764 = vmatprep.subr.mxu0 0.0
    %4765 = vmatpush1.msra.mxu0 0.0
    %4766 = vmatprep.subr.mxu0 0.0
    %4767 = vmatpush1.msra.mxu0 0.0
    %4768 = vmatprep.subr.mxu0 0.0
    %4769 = vmatpush1.msra.mxu0 0.0
    %4770 = vmatprep.subr.mxu0 0.0
    %4771 = vmatpush1.msra.mxu0 0.0
    %4772 = vmatprep.subr.mxu0 0.0
    %4773 = vmatpush1.msra.mxu0 0.0
    %4774 = vmatprep.subr.mxu0 0.0
    %4775 = vmatpush1.msra.mxu0 0.0
    %4776 = vmatprep.subr.mxu0 0.0
    %4777 = vmatpush1.msra.mxu0 0.0
    %4778 = vmatprep.subr.mxu0 0.0
    %4779 = vmatpush1.msra.mxu0 0.0
    %4780 = vmatprep.subr.mxu0 0.0
    %4781 = vmatpush1.msra.mxu0 0.0
    %4782 = vmatprep.subr.mxu0 0.0
    %4783 = vmatpush1.msra.mxu0 0.0
    %4784 = vmatprep.subr.mxu0 0.0
    %4785 = vmatpush1.msra.mxu0 0.0
    %4786 = vmatprep.subr.mxu0 0.0
    %4787 = vmatpush1.msra.mxu0 0.0
    %4788 = vmatprep.subr.mxu0 0.0
    %4789 = vmatpush1.msra.mxu0 0.0
    %4790 = vmatprep.subr.mxu0 0.0
    %4791 = vmatpush1.msra.mxu0 0.0
    %4792 = vmatprep.subr.mxu0 0.0
    %4793 = vmatpush1.msra.mxu0 0.0
    %4794 = vmatprep.subr.mxu0 0.0
    %4795 = vmatpush1.msra.mxu0 0.0
    %4796 = vmatprep.subr.mxu0 0.0
    %4797 = vmatpush1.msra.mxu0 0.0
    %4798 = vmatprep.subr.mxu0 0.0
    %4799 = vmatpush1.msra.mxu0 0.0
    %4800 = vmatprep.subr.mxu0 0.0
    %4801 = vmatpush1.msra.mxu0 0.0
    %4802 = vmatprep.subr.mxu0 0.0
    %4803 = vmatpush1.msra.mxu0 0.0
    %4804 = vmatprep.subr.mxu0 0.0
    %4805 = vmatpush1.msra.mxu0 0.0
    %4806 = vmatprep.subr.mxu0 0.0
    %4807 = vmatpush1.msra.mxu0 0.0
    %4808 = vmatprep.mubr.f32.mxu0 0.0
    %v4809 = vand.u32 %v4741, 4294901760
    %v4810 = vsub.f32 %v4741, %v4809
    %v4811 = vand.u32 %v4810, 4294901760
    %v4812 = vsub.f32 %v4810, %v4811
    %v4813 = vand.u32 %v4812, 4294901760
    %4814 = vmatmul.mubr.f32.gmra.mrb[0].mxu0 %v4813
    %v4815 = vpop.f32.mrb[0].mxu0
    %v4816 = vadd.f32 0.0, %v4815
    %v4817 = vpop.f32.mrb[0].mxu0
    %4818 = vdwg.mxu0
    %4819 = vmatprep.subr.mxu0 0.0
    %v4820 = vand.u32 %v4739, 4294901760
    %v4821 = vsub.f32 %v4739, %v4820
    %v4822 = vand.u32 %v4821, 4294901760
    %v4823 = vsub.f32 %v4821, %v4822
    %v4824 = vand.u32 %v4823, 4294901760
    %4825 = vmatpush1.msra.mxu0 %v4824
    %4826 = vmatprep.subr.mxu0 0.0
    %4827 = vmatpush1.msra.mxu0 0.0
    %4828 = vmatprep.subr.mxu0 0.0
    %4829 = vmatpush1.msra.mxu0 0.0
    %4830 = vmatprep.subr.mxu0 0.0
    %4831 = vmatpush1.msra.mxu0 0.0
    %4832 = vmatprep.subr.mxu0 0.0
    %4833 = vmatpush1.msra.mxu0 0.0
    %4834 = vmatprep.subr.mxu0 0.0
    %4835 = vmatpush1.msra.mxu0 0.0
    %4836 = vmatprep.subr.mxu0 0.0
    %4837 = vmatpush1.msra.mxu0 0.0
    %4838 = vmatprep.subr.mxu0 0.0
    %4839 = vmatpush1.msra.mxu0 0.0
    %4840 = vmatprep.subr.mxu0 0.0
    %4841 = vmatpush1.msra.mxu0 0.0
    %4842 = vmatprep.subr.mxu0 0.0
    %4843 = vmatpush1.msra.mxu0 0.0
    %4844 = vmatprep.subr.mxu0 0.0
    %4845 = vmatpush1.msra.mxu0 0.0
    %4846 = vmatprep.subr.mxu0 0.0
    %4847 = vmatpush1.msra.mxu0 0.0
    %4848 = vmatprep.subr.mxu0 0.0
    %4849 = vmatpush1.msra.mxu0 0.0
    %4850 = vmatprep.subr.mxu0 0.0
    %4851 = vmatpush1.msra.mxu0 0.0
    %4852 = vmatprep.subr.mxu0 0.0
    %4853 = vmatpush1.msra.mxu0 0.0
    %4854 = vmatprep.subr.mxu0 0.0
    %4855 = vmatpush1.msra.mxu0 0.0
    %4856 = vmatprep.subr.mxu0 0.0
    %4857 = vmatpush1.msra.mxu0 0.0
    %4858 = vmatprep.subr.mxu0 0.0
    %4859 = vmatpush1.msra.mxu0 0.0
    %4860 = vmatprep.subr.mxu0 0.0
    %4861 = vmatpush1.msra.mxu0 0.0
    %4862 = vmatprep.subr.mxu0 0.0
    %4863 = vmatpush1.msra.mxu0 0.0
    %4864 = vmatprep.subr.mxu0 0.0
    %4865 = vmatpush1.msra.mxu0 0.0
    %4866 = vmatprep.subr.mxu0 0.0
    %4867 = vmatpush1.msra.mxu0 0.0
    %4868 = vmatprep.subr.mxu0 0.0
    %4869 = vmatpush1.msra.mxu0 0.0
    %4870 = vmatprep.subr.mxu0 0.0
    %4871 = vmatpush1.msra.mxu0 0.0
    %4872 = vmatprep.subr.mxu0 0.0
    %4873 = vmatpush1.msra.mxu0 0.0
    %4874 = vmatprep.subr.mxu0 0.0
    %4875 = vmatpush1.msra.mxu0 0.0
    %4876 = vmatprep.subr.mxu0 0.0
    %4877 = vmatpush1.msra.mxu0 0.0
    %4878 = vmatprep.subr.mxu0 0.0
    %4879 = vmatpush1.msra.mxu0 0.0
    %4880 = vmatprep.subr.mxu0 0.0
    %4881 = vmatpush1.msra.mxu0 0.0
    %4882 = vmatprep.subr.mxu0 0.0
    %4883 = vmatpush1.msra.mxu0 0.0
    %4884 = vmatprep.subr.mxu0 0.0
    %4885 = vmatpush1.msra.mxu0 0.0
    %4886 = vmatprep.subr.mxu0 0.0
    %4887 = vmatpush1.msra.mxu0 0.0
    %4888 = vmatprep.mubr.f32.mxu0 0.0
    %v4889 = vand.u32 %v4741, 4294901760
    %4890 = vmatmul.mubr.f32.gmra.mrb[0].mxu0 %v4889
    %v4891 = vpop.f32.mrb[0].mxu0
    %v4892 = vadd.f32 %v4816, %v4891
    %v4893 = vpop.f32.mrb[0].mxu0
    %4894 = vdwg.mxu0
    %4895 = vmatprep.subr.mxu0 0.0
    %v4896 = vand.u32 %v4739, 4294901760
    %v4897 = vsub.f32 %v4739, %v4896
    %4898 = vmatpush1.msra.mxu0 %v4897
    %4899 = vmatprep.subr.mxu0 0.0
    %4900 = vmatpush1.msra.mxu0 0.0
    %4901 = vmatprep.subr.mxu0 0.0
    %4902 = vmatpush1.msra.mxu0 0.0
    %4903 = vmatprep.subr.mxu0 0.0
    %4904 = vmatpush1.msra.mxu0 0.0
    %4905 = vmatprep.subr.mxu0 0.0
    %4906 = vmatpush1.msra.mxu0 0.0
    %4907 = vmatprep.subr.mxu0 0.0
    %4908 = vmatpush1.msra.mxu0 0.0
    %4909 = vmatprep.subr.mxu0 0.0
    %4910 = vmatpush1.msra.mxu0 0.0
    %4911 = vmatprep.subr.mxu0 0.0
    %4912 = vmatpush1.msra.mxu0 0.0
    %4913 = vmatprep.subr.mxu0 0.0
    %4914 = vmatpush1.msra.mxu0 0.0
    %4915 = vmatprep.subr.mxu0 0.0
    %4916 = vmatpush1.msra.mxu0 0.0
    %4917 = vmatprep.subr.mxu0 0.0
    %4918 = vmatpush1.msra.mxu0 0.0
    %4919 = vmatprep.subr.mxu0 0.0
    %4920 = vmatpush1.msra.mxu0 0.0
    %4921 = vmatprep.subr.mxu0 0.0
    %4922 = vmatpush1.msra.mxu0 0.0
    %4923 = vmatprep.subr.mxu0 0.0
    %4924 = vmatpush1.msra.mxu0 0.0
    %4925 = vmatprep.subr.mxu0 0.0
    %4926 = vmatpush1.msra.mxu0 0.0
    %4927 = vmatprep.subr.mxu0 0.0
    %4928 = vmatpush1.msra.mxu0 0.0
    %4929 = vmatprep.subr.mxu0 0.0
    %4930 = vmatpush1.msra.mxu0 0.0
    %4931 = vmatprep.subr.mxu0 0.0
    %4932 = vmatpush1.msra.mxu0 0.0
    %4933 = vmatprep.subr.mxu0 0.0
    %4934 = vmatpush1.msra.mxu0 0.0
    %4935 = vmatprep.subr.mxu0 0.0
    %4936 = vmatpush1.msra.mxu0 0.0
    %4937 = vmatprep.subr.mxu0 0.0
    %4938 = vmatpush1.msra.mxu0 0.0
    %4939 = vmatprep.subr.mxu0 0.0
    %4940 = vmatpush1.msra.mxu0 0.0
    %4941 = vmatprep.subr.mxu0 0.0
    %4942 = vmatpush1.msra.mxu0 0.0
    %4943 = vmatprep.subr.mxu0 0.0
    %4944 = vmatpush1.msra.mxu0 0.0
    %4945 = vmatprep.subr.mxu0 0.0
    %4946 = vmatpush1.msra.mxu0 0.0
    %4947 = vmatprep.subr.mxu0 0.0
    %4948 = vmatpush1.msra.mxu0 0.0
    %4949 = vmatprep.subr.mxu0 0.0
    %4950 = vmatpush1.msra.mxu0 0.0
    %4951 = vmatprep.subr.mxu0 0.0
    %4952 = vmatpush1.msra.mxu0 0.0
    %4953 = vmatprep.subr.mxu0 0.0
    %4954 = vmatpush1.msra.mxu0 0.0
    %4955 = vmatprep.subr.mxu0 0.0
    %4956 = vmatpush1.msra.mxu0 0.0
    %4957 = vmatprep.subr.mxu0 0.0
    %4958 = vmatpush1.msra.mxu0 0.0
    %4959 = vmatprep.subr.mxu0 0.0
    %4960 = vmatpush1.msra.mxu0 0.0
    %4961 = vmatprep.mubr.f32.mxu0 0.0
    %v4962 = vand.u32 %v4741, 4294901760
    %v4963 = vsub.f32 %v4741, %v4962
    %4964 = vmatmul.mubr.f32.gmra.mrb[0].mxu0 %v4963
    %v4965 = vpop.f32.mrb[0].mxu0
    %v4966 = vadd.f32 %v4892, %v4965
    %v4967 = vpop.f32.mrb[0].mxu0
    %4968 = vdwg.mxu0
    %4969 = vmatprep.subr.mxu0 0.0
    %v4970 = vand.u32 %v4739, 4294901760
    %4971 = vmatpush1.msra.mxu0 %v4970
    %4972 = vmatprep.subr.mxu0 0.0
    %4973 = vmatpush1.msra.mxu0 0.0
    %4974 = vmatprep.subr.mxu0 0.0
    %4975 = vmatpush1.msra.mxu0 0.0
    %4976 = vmatprep.subr.mxu0 0.0
    %4977 = vmatpush1.msra.mxu0 0.0
    %4978 = vmatprep.subr.mxu0 0.0
    %4979 = vmatpush1.msra.mxu0 0.0
    %4980 = vmatprep.subr.mxu0 0.0
    %4981 = vmatpush1.msra.mxu0 0.0
    %4982 = vmatprep.subr.mxu0 0.0
    %4983 = vmatpush1.msra.mxu0 0.0
    %4984 = vmatprep.subr.mxu0 0.0
    %4985 = vmatpush1.msra.mxu0 0.0
    %4986 = vmatprep.subr.mxu0 0.0
    %4987 = vmatpush1.msra.mxu0 0.0
    %4988 = vmatprep.subr.mxu0 0.0
    %4989 = vmatpush1.msra.mxu0 0.0
    %4990 = vmatprep.subr.mxu0 0.0
    %4991 = vmatpush1.msra.mxu0 0.0
    %4992 = vmatprep.subr.mxu0 0.0
    %4993 = vmatpush1.msra.mxu0 0.0
    %4994 = vmatprep.subr.mxu0 0.0
    %4995 = vmatpush1.msra.mxu0 0.0
    %4996 = vmatprep.subr.mxu0 0.0
    %4997 = vmatpush1.msra.mxu0 0.0
    %4998 = vmatprep.subr.mxu0 0.0
    %4999 = vmatpush1.msra.mxu0 0.0
    %5000 = vmatprep.subr.mxu0 0.0
    %5001 = vmatpush1.msra.mxu0 0.0
    %5002 = vmatprep.subr.mxu0 0.0
    %5003 = vmatpush1.msra.mxu0 0.0
    %5004 = vmatprep.subr.mxu0 0.0
    %5005 = vmatpush1.msra.mxu0 0.0
    %5006 = vmatprep.subr.mxu0 0.0
    %5007 = vmatpush1.msra.mxu0 0.0
    %5008 = vmatprep.subr.mxu0 0.0
    %5009 = vmatpush1.msra.mxu0 0.0
    %5010 = vmatprep.subr.mxu0 0.0
    %5011 = vmatpush1.msra.mxu0 0.0
    %5012 = vmatprep.subr.mxu0 0.0
    %5013 = vmatpush1.msra.mxu0 0.0
    %5014 = vmatprep.subr.mxu0 0.0
    %5015 = vmatpush1.msra.mxu0 0.0
    %5016 = vmatprep.subr.mxu0 0.0
    %5017 = vmatpush1.msra.mxu0 0.0
    %5018 = vmatprep.subr.mxu0 0.0
    %5019 = vmatpush1.msra.mxu0 0.0
    %5020 = vmatprep.subr.mxu0 0.0
    %5021 = vmatpush1.msra.mxu0 0.0
    %5022 = vmatprep.subr.mxu0 0.0
    %5023 = vmatpush1.msra.mxu0 0.0
    %5024 = vmatprep.subr.mxu0 0.0
    %5025 = vmatpush1.msra.mxu0 0.0
    %5026 = vmatprep.subr.mxu0 0.0
    %5027 = vmatpush1.msra.mxu0 0.0
    %5028 = vmatprep.subr.mxu0 0.0
    %5029 = vmatpush1.msra.mxu0 0.0
    %5030 = vmatprep.subr.mxu0 0.0
    %5031 = vmatpush1.msra.mxu0 0.0
    %5032 = vmatprep.subr.mxu0 0.0
    %5033 = vmatpush1.msra.mxu0 0.0
    %5034 = vmatprep.mubr.f32.mxu0 0.0
    %v5035 = vand.u32 %v4741, 4294901760
    %v5036 = vsub.f32 %v4741, %v5035
    %v5037 = vand.u32 %v5036, 4294901760
    %5038 = vmatmul.mubr.f32.gmra.mrb[0].mxu0 %v5037
    %v5039 = vpop.f32.mrb[0].mxu0
    %v5040 = vadd.f32 %v4966, %v5039
    %v5041 = vpop.f32.mrb[0].mxu0
    %5042 = vdwg.mxu0
    %5043 = vmatprep.subr.mxu0 0.0
    %v5044 = vand.u32 %v4739, 4294901760
    %v5045 = vsub.f32 %v4739, %v5044
    %v5046 = vand.u32 %v5045, 4294901760
    %5047 = vmatpush1.msra.mxu0 %v5046
    %5048 = vmatprep.subr.mxu0 0.0
    %5049 = vmatpush1.msra.mxu0 0.0
    %5050 = vmatprep.subr.mxu0 0.0
    %5051 = vmatpush1.msra.mxu0 0.0
    %5052 = vmatprep.subr.mxu0 0.0
    %5053 = vmatpush1.msra.mxu0 0.0
    %5054 = vmatprep.subr.mxu0 0.0
    %5055 = vmatpush1.msra.mxu0 0.0
    %5056 = vmatprep.subr.mxu0 0.0
    %5057 = vmatpush1.msra.mxu0 0.0
    %5058 = vmatprep.subr.mxu0 0.0
    %5059 = vmatpush1.msra.mxu0 0.0
    %5060 = vmatprep.subr.mxu0 0.0
    %5061 = vmatpush1.msra.mxu0 0.0
    %5062 = vmatprep.subr.mxu0 0.0
    %5063 = vmatpush1.msra.mxu0 0.0
    %5064 = vmatprep.subr.mxu0 0.0
    %5065 = vmatpush1.msra.mxu0 0.0
    %5066 = vmatprep.subr.mxu0 0.0
    %5067 = vmatpush1.msra.mxu0 0.0
    %5068 = vmatprep.subr.mxu0 0.0
    %5069 = vmatpush1.msra.mxu0 0.0
    %5070 = vmatprep.subr.mxu0 0.0
    %5071 = vmatpush1.msra.mxu0 0.0
    %5072 = vmatprep.subr.mxu0 0.0
    %5073 = vmatpush1.msra.mxu0 0.0
    %5074 = vmatprep.subr.mxu0 0.0
    %5075 = vmatpush1.msra.mxu0 0.0
    %5076 = vmatprep.subr.mxu0 0.0
    %5077 = vmatpush1.msra.mxu0 0.0
    %5078 = vmatprep.subr.mxu0 0.0
    %5079 = vmatpush1.msra.mxu0 0.0
    %5080 = vmatprep.subr.mxu0 0.0
    %5081 = vmatpush1.msra.mxu0 0.0
    %5082 = vmatprep.subr.mxu0 0.0
    %5083 = vmatpush1.msra.mxu0 0.0
    %5084 = vmatprep.subr.mxu0 0.0
    %5085 = vmatpush1.msra.mxu0 0.0
    %5086 = vmatprep.subr.mxu0 0.0
    %5087 = vmatpush1.msra.mxu0 0.0
    %5088 = vmatprep.subr.mxu0 0.0
    %5089 = vmatpush1.msra.mxu0 0.0
    %5090 = vmatprep.subr.mxu0 0.0
    %5091 = vmatpush1.msra.mxu0 0.0
    %5092 = vmatprep.subr.mxu0 0.0
    %5093 = vmatpush1.msra.mxu0 0.0
    %5094 = vmatprep.subr.mxu0 0.0
    %5095 = vmatpush1.msra.mxu0 0.0
    %5096 = vmatprep.subr.mxu0 0.0
    %5097 = vmatpush1.msra.mxu0 0.0
    %5098 = vmatprep.subr.mxu0 0.0
    %5099 = vmatpush1.msra.mxu0 0.0
    %5100 = vmatprep.subr.mxu0 0.0
    %5101 = vmatpush1.msra.mxu0 0.0
    %5102 = vmatprep.subr.mxu0 0.0
    %5103 = vmatpush1.msra.mxu0 0.0
    %5104 = vmatprep.subr.mxu0 0.0
    %5105 = vmatpush1.msra.mxu0 0.0
    %5106 = vmatprep.subr.mxu0 0.0
    %5107 = vmatpush1.msra.mxu0 0.0
    %5108 = vmatprep.subr.mxu0 0.0
    %5109 = vmatpush1.msra.mxu0 0.0
    %5110 = vmatprep.mubr.f32.mxu0 0.0
    %v5111 = vand.u32 %v4741, 4294901760
    %5112 = vmatmul.mubr.f32.gmra.mrb[0].mxu0 %v5111
    %v5113 = vpop.f32.mrb[0].mxu0
    %v5114 = vadd.f32 %v5040, %v5113
    %v5115 = vpop.f32.mrb[0].mxu0
    %5116 = vdwg.mxu0
    %5117 = vmatprep.subr.mxu0 0.0
    %v5118 = vand.u32 %v4739, 4294901760
    %5119 = vmatpush1.msra.mxu0 %v5118
    %5120 = vmatprep.subr.mxu0 0.0
    %5121 = vmatpush1.msra.mxu0 0.0
    %5122 = vmatprep.subr.mxu0 0.0
    %5123 = vmatpush1.msra.mxu0 0.0
    %5124 = vmatprep.subr.mxu0 0.0
    %5125 = vmatpush1.msra.mxu0 0.0
    %5126 = vmatprep.subr.mxu0 0.0
    %5127 = vmatpush1.msra.mxu0 0.0
    %5128 = vmatprep.subr.mxu0 0.0
    %5129 = vmatpush1.msra.mxu0 0.0
    %5130 = vmatprep.subr.mxu0 0.0
    %5131 = vmatpush1.msra.mxu0 0.0
    %5132 = vmatprep.subr.mxu0 0.0
    %5133 = vmatpush1.msra.mxu0 0.0
    %5134 = vmatprep.subr.mxu0 0.0
    %5135 = vmatpush1.msra.mxu0 0.0
    %5136 = vmatprep.subr.mxu0 0.0
    %5137 = vmatpush1.msra.mxu0 0.0
    %5138 = vmatprep.subr.mxu0 0.0
    %5139 = vmatpush1.msra.mxu0 0.0
    %5140 = vmatprep.subr.mxu0 0.0
    %5141 = vmatpush1.msra.mxu0 0.0
    %5142 = vmatprep.subr.mxu0 0.0
    %5143 = vmatpush1.msra.mxu0 0.0
    %5144 = vmatprep.subr.mxu0 0.0
    %5145 = vmatpush1.msra.mxu0 0.0
    %5146 = vmatprep.subr.mxu0 0.0
    %5147 = vmatpush1.msra.mxu0 0.0
    %5148 = vmatprep.subr.mxu0 0.0
    %5149 = vmatpush1.msra.mxu0 0.0
    %5150 = vmatprep.subr.mxu0 0.0
    %5151 = vmatpush1.msra.mxu0 0.0
    %5152 = vmatprep.subr.mxu0 0.0
    %5153 = vmatpush1.msra.mxu0 0.0
    %5154 = vmatprep.subr.mxu0 0.0
    %5155 = vmatpush1.msra.mxu0 0.0
    %5156 = vmatprep.subr.mxu0 0.0
    %5157 = vmatpush1.msra.mxu0 0.0
    %5158 = vmatprep.subr.mxu0 0.0
    %5159 = vmatpush1.msra.mxu0 0.0
    %5160 = vmatprep.subr.mxu0 0.0
    %5161 = vmatpush1.msra.mxu0 0.0
    %5162 = vmatprep.subr.mxu0 0.0
    %5163 = vmatpush1.msra.mxu0 0.0
    %5164 = vmatprep.subr.mxu0 0.0
    %5165 = vmatpush1.msra.mxu0 0.0
    %5166 = vmatprep.subr.mxu0 0.0
    %5167 = vmatpush1.msra.mxu0 0.0
    %5168 = vmatprep.subr.mxu0 0.0
    %5169 = vmatpush1.msra.mxu0 0.0
    %5170 = vmatprep.subr.mxu0 0.0
    %5171 = vmatpush1.msra.mxu0 0.0
    %5172 = vmatprep.subr.mxu0 0.0
    %5173 = vmatpush1.msra.mxu0 0.0
    %5174 = vmatprep.subr.mxu0 0.0
    %5175 = vmatpush1.msra.mxu0 0.0
    %5176 = vmatprep.subr.mxu0 0.0
    %5177 = vmatpush1.msra.mxu0 0.0
    %5178 = vmatprep.subr.mxu0 0.0
    %5179 = vmatpush1.msra.mxu0 0.0
    %5180 = vmatprep.subr.mxu0 0.0
    %5181 = vmatpush1.msra.mxu0 0.0
    %5182 = vmatprep.mubr.f32.mxu0 0.0
    %v5183 = vand.u32 %v4741, 4294901760
    %5184 = vmatmul.mubr.f32.gmra.mrb[0].mxu0 %v5183
    %v5185 = vpop.f32.mrb[0].mxu0
    %v5186 = vadd.f32 %v5114, %v5185
    %v5187 = vpop.f32.mrb[0].mxu0
    %5188 = vdwg.mxu0
    %v5190 = vsel %vm230, %v2583, 0
    %5192 = vmatprep.subr.mxu0 0.0
    %v5193 = vand.u32 %v4737, 4294901760
    %5194 = vmatpush1.msra.mxu0 %v5193
    %5195 = vmatprep.subr.mxu0 0.0
    %v5196 = vand.u32 %v4738, 4294901760
    %5197 = vmatpush1.msra.mxu0 %v5196
    %5198 = vmatprep.subr.mxu0 0.0
    %5199 = vmatpush1.msra.mxu0 0.0
    %5200 = vmatprep.subr.mxu0 0.0
    %5201 = vmatpush1.msra.mxu0 0.0
    %5202 = vmatprep.subr.mxu0 0.0
    %5203 = vmatpush1.msra.mxu0 0.0
    %5204 = vmatprep.subr.mxu0 0.0
    %5205 = vmatpush1.msra.mxu0 0.0
    %5206 = vmatprep.subr.mxu0 0.0
    %5207 = vmatpush1.msra.mxu0 0.0
    %5208 = vmatprep.subr.mxu0 0.0
    %5209 = vmatpush1.msra.mxu0 0.0
    %5210 = vmatprep.subr.mxu0 0.0
    %5211 = vmatpush1.msra.mxu0 0.0
    %5212 = vmatprep.subr.mxu0 0.0
    %5213 = vmatpush1.msra.mxu0 0.0
    %5214 = vmatprep.subr.mxu0 0.0
    %5215 = vmatpush1.msra.mxu0 0.0
    %5216 = vmatprep.subr.mxu0 0.0
    %5217 = vmatpush1.msra.mxu0 0.0
    %5218 = vmatprep.subr.mxu0 0.0
    %5219 = vmatpush1.msra.mxu0 0.0
    %5220 = vmatprep.subr.mxu0 0.0
    %5221 = vmatpush1.msra.mxu0 0.0
    %5222 = vmatprep.subr.mxu0 0.0
    %5223 = vmatpush1.msra.mxu0 0.0
    %5224 = vmatprep.subr.mxu0 0.0
    %5225 = vmatpush1.msra.mxu0 0.0
    %5226 = vmatprep.subr.mxu0 0.0
    %5227 = vmatpush1.msra.mxu0 0.0
    %5228 = vmatprep.subr.mxu0 0.0
    %5229 = vmatpush1.msra.mxu0 0.0
    %5230 = vmatprep.subr.mxu0 0.0
    %5231 = vmatpush1.msra.mxu0 0.0
    %5232 = vmatprep.subr.mxu0 0.0
    %5233 = vmatpush1.msra.mxu0 0.0
    %5234 = vmatprep.subr.mxu0 0.0
    %5235 = vmatpush1.msra.mxu0 0.0
    %5236 = vmatprep.subr.mxu0 0.0
    %5237 = vmatpush1.msra.mxu0 0.0
    %5238 = vmatprep.subr.mxu0 0.0
    %5239 = vmatpush1.msra.mxu0 0.0
    %5240 = vmatprep.subr.mxu0 0.0
    %5241 = vmatpush1.msra.mxu0 0.0
    %5242 = vmatprep.subr.mxu0 0.0
    %5243 = vmatpush1.msra.mxu0 0.0
    %5244 = vmatprep.subr.mxu0 0.0
    %5245 = vmatpush1.msra.mxu0 0.0
    %5246 = vmatprep.subr.mxu0 0.0
    %5247 = vmatpush1.msra.mxu0 0.0
    %5248 = vmatprep.subr.mxu0 0.0
    %5249 = vmatpush1.msra.mxu0 0.0
    %5250 = vmatprep.subr.mxu0 0.0
    %5251 = vmatpush1.msra.mxu0 0.0
    %5252 = vmatprep.subr.mxu0 0.0
    %5253 = vmatpush1.msra.mxu0 0.0
    %5254 = vmatprep.subr.mxu0 0.0
    %5255 = vmatpush1.msra.mxu0 0.0
    %5256 = vmatprep.subr.mxu0 0.0
    %5257 = vmatpush1.msra.mxu0 0.0
    %5258 = vmatprep.mubr.f32.mxu0 0.0
    %v5259 = vand.u32 %v5190, 4294901760
    %v5260 = vsub.f32 %v5190, %v5259
    %v5261 = vand.u32 %v5260, 4294901760
    %v5262 = vsub.f32 %v5260, %v5261
    %v5263 = vand.u32 %v5262, 4294901760
    %5264 = vmatmul.mubr.f32.gmra.mrb[0].mxu0 %v5263
    %v5265 = vpop.f32.mrb[0].mxu0
    %v5266 = vadd.f32 %v5186, %v5265
    %v5267 = vpop.f32.mrb[0].mxu0
    %5268 = vdwg.mxu0
    %5269 = vmatprep.subr.mxu0 0.0
    %v5270 = vand.u32 %v4737, 4294901760
    %v5271 = vsub.f32 %v4737, %v5270
    %v5272 = vand.u32 %v5271, 4294901760
    %v5273 = vsub.f32 %v5271, %v5272
    %v5274 = vand.u32 %v5273, 4294901760
    %5275 = vmatpush1.msra.mxu0 %v5274
    %5276 = vmatprep.subr.mxu0 0.0
    %v5277 = vand.u32 %v4738, 4294901760
    %v5278 = vsub.f32 %v4738, %v5277
    %v5279 = vand.u32 %v5278, 4294901760
    %v5280 = vsub.f32 %v5278, %v5279
    %v5281 = vand.u32 %v5280, 4294901760
    %5282 = vmatpush1.msra.mxu0 %v5281
    %5283 = vmatprep.subr.mxu0 0.0
    %5284 = vmatpush1.msra.mxu0 0.0
    %5285 = vmatprep.subr.mxu0 0.0
    %5286 = vmatpush1.msra.mxu0 0.0
    %5287 = vmatprep.subr.mxu0 0.0
    %5288 = vmatpush1.msra.mxu0 0.0
    %5289 = vmatprep.subr.mxu0 0.0
    %5290 = vmatpush1.msra.mxu0 0.0
    %5291 = vmatprep.subr.mxu0 0.0
    %5292 = vmatpush1.msra.mxu0 0.0
    %5293 = vmatprep.subr.mxu0 0.0
    %5294 = vmatpush1.msra.mxu0 0.0
    %5295 = vmatprep.subr.mxu0 0.0
    %5296 = vmatpush1.msra.mxu0 0.0
    %5297 = vmatprep.subr.mxu0 0.0
    %5298 = vmatpush1.msra.mxu0 0.0
    %5299 = vmatprep.subr.mxu0 0.0
    %5300 = vmatpush1.msra.mxu0 0.0
    %5301 = vmatprep.subr.mxu0 0.0
    %5302 = vmatpush1.msra.mxu0 0.0
    %5303 = vmatprep.subr.mxu0 0.0
    %5304 = vmatpush1.msra.mxu0 0.0
    %5305 = vmatprep.subr.mxu0 0.0
    %5306 = vmatpush1.msra.mxu0 0.0
    %5307 = vmatprep.subr.mxu0 0.0
    %5308 = vmatpush1.msra.mxu0 0.0
    %5309 = vmatprep.subr.mxu0 0.0
    %5310 = vmatpush1.msra.mxu0 0.0
    %5311 = vmatprep.subr.mxu0 0.0
    %5312 = vmatpush1.msra.mxu0 0.0
    %5313 = vmatprep.subr.mxu0 0.0
    %5314 = vmatpush1.msra.mxu0 0.0
    %5315 = vmatprep.subr.mxu0 0.0
    %5316 = vmatpush1.msra.mxu0 0.0
    %5317 = vmatprep.subr.mxu0 0.0
    %5318 = vmatpush1.msra.mxu0 0.0
    %5319 = vmatprep.subr.mxu0 0.0
    %5320 = vmatpush1.msra.mxu0 0.0
    %5321 = vmatprep.subr.mxu0 0.0
    %5322 = vmatpush1.msra.mxu0 0.0
    %5323 = vmatprep.subr.mxu0 0.0
    %5324 = vmatpush1.msra.mxu0 0.0
    %5325 = vmatprep.subr.mxu0 0.0
    %5326 = vmatpush1.msra.mxu0 0.0
    %5327 = vmatprep.subr.mxu0 0.0
    %5328 = vmatpush1.msra.mxu0 0.0
    %5329 = vmatprep.subr.mxu0 0.0
    %5330 = vmatpush1.msra.mxu0 0.0
    %5331 = vmatprep.subr.mxu0 0.0
    %5332 = vmatpush1.msra.mxu0 0.0
    %5333 = vmatprep.subr.mxu0 0.0
    %5334 = vmatpush1.msra.mxu0 0.0
    %5335 = vmatprep.subr.mxu0 0.0
    %5336 = vmatpush1.msra.mxu0 0.0
    %5337 = vmatprep.subr.mxu0 0.0
    %5338 = vmatpush1.msra.mxu0 0.0
    %5339 = vmatprep.subr.mxu0 0.0
    %5340 = vmatpush1.msra.mxu0 0.0
    %5341 = vmatprep.subr.mxu0 0.0
    %5342 = vmatpush1.msra.mxu0 0.0
    %5343 = vmatprep.mubr.f32.mxu0 0.0
    %v5344 = vand.u32 %v5190, 4294901760
    %5345 = vmatmul.mubr.f32.gmra.mrb[0].mxu0 %v5344
    %v5346 = vpop.f32.mrb[0].mxu0
    %v5347 = vadd.f32 %v5266, %v5346
    %v5348 = vpop.f32.mrb[0].mxu0
    %5349 = vdwg.mxu0
    %5350 = vmatprep.subr.mxu0 0.0
    %v5351 = vand.u32 %v4737, 4294901760
    %v5352 = vsub.f32 %v4737, %v5351
    %5353 = vmatpush1.msra.mxu0 %v5352
    %5354 = vmatprep.subr.mxu0 0.0
    %v5355 = vand.u32 %v4738, 4294901760
    %v5356 = vsub.f32 %v4738, %v5355
    %5357 = vmatpush1.msra.mxu0 %v5356
    %5358 = vmatprep.subr.mxu0 0.0
    %5359 = vmatpush1.msra.mxu0 0.0
    %5360 = vmatprep.subr.mxu0 0.0
    %5361 = vmatpush1.msra.mxu0 0.0
    %5362 = vmatprep.subr.mxu0 0.0
    %5363 = vmatpush1.msra.mxu0 0.0
    %5364 = vmatprep.subr.mxu0 0.0
    %5365 = vmatpush1.msra.mxu0 0.0
    %5366 = vmatprep.subr.mxu0 0.0
    %5367 = vmatpush1.msra.mxu0 0.0
    %5368 = vmatprep.subr.mxu0 0.0
    %5369 = vmatpush1.msra.mxu0 0.0
    %5370 = vmatprep.subr.mxu0 0.0
    %5371 = vmatpush1.msra.mxu0 0.0
    %5372 = vmatprep.subr.mxu0 0.0
    %5373 = vmatpush1.msra.mxu0 0.0
    %5374 = vmatprep.subr.mxu0 0.0
    %5375 = vmatpush1.msra.mxu0 0.0
    %5376 = vmatprep.subr.mxu0 0.0
    %5377 = vmatpush1.msra.mxu0 0.0
    %5378 = vmatprep.subr.mxu0 0.0
    %5379 = vmatpush1.msra.mxu0 0.0
    %5380 = vmatprep.subr.mxu0 0.0
    %5381 = vmatpush1.msra.mxu0 0.0
    %5382 = vmatprep.subr.mxu0 0.0
    %5383 = vmatpush1.msra.mxu0 0.0
    %5384 = vmatprep.subr.mxu0 0.0
    %5385 = vmatpush1.msra.mxu0 0.0
    %5386 = vmatprep.subr.mxu0 0.0
    %5387 = vmatpush1.msra.mxu0 0.0
    %5388 = vmatprep.subr.mxu0 0.0
    %5389 = vmatpush1.msra.mxu0 0.0
    %5390 = vmatprep.subr.mxu0 0.0
    %5391 = vmatpush1.msra.mxu0 0.0
    %5392 = vmatprep.subr.mxu0 0.0
    %5393 = vmatpush1.msra.mxu0 0.0
    %5394 = vmatprep.subr.mxu0 0.0
    %5395 = vmatpush1.msra.mxu0 0.0
    %5396 = vmatprep.subr.mxu0 0.0
    %5397 = vmatpush1.msra.mxu0 0.0
    %5398 = vmatprep.subr.mxu0 0.0
    %5399 = vmatpush1.msra.mxu0 0.0
    %5400 = vmatprep.subr.mxu0 0.0
    %5401 = vmatpush1.msra.mxu0 0.0
    %5402 = vmatprep.subr.mxu0 0.0
    %5403 = vmatpush1.msra.mxu0 0.0
    %5404 = vmatprep.subr.mxu0 0.0
    %5405 = vmatpush1.msra.mxu0 0.0
    %5406 = vmatprep.subr.mxu0 0.0
    %5407 = vmatpush1.msra.mxu0 0.0
    %5408 = vmatprep.subr.mxu0 0.0
    %5409 = vmatpush1.msra.mxu0 0.0
    %5410 = vmatprep.subr.mxu0 0.0
    %5411 = vmatpush1.msra.mxu0 0.0
    %5412 = vmatprep.subr.mxu0 0.0
    %5413 = vmatpush1.msra.mxu0 0.0
    %5414 = vmatprep.subr.mxu0 0.0
    %5415 = vmatpush1.msra.mxu0 0.0
    %5416 = vmatprep.subr.mxu0 0.0
    %5417 = vmatpush1.msra.mxu0 0.0
    %5418 = vmatprep.mubr.f32.mxu0 0.0
    %v5419 = vand.u32 %v5190, 4294901760
    %v5420 = vsub.f32 %v5190, %v5419
    %5421 = vmatmul.mubr.f32.gmra.mrb[0].mxu0 %v5420
    %v5422 = vpop.f32.mrb[0].mxu0
    %v5423 = vadd.f32 %v5347, %v5422
    %v5424 = vpop.f32.mrb[0].mxu0
    %5425 = vdwg.mxu0
    %5426 = vmatprep.subr.mxu0 0.0
    %v5427 = vand.u32 %v4737, 4294901760
    %5428 = vmatpush1.msra.mxu0 %v5427
    %5429 = vmatprep.subr.mxu0 0.0
    %v5430 = vand.u32 %v4738, 4294901760
    %5431 = vmatpush1.msra.mxu0 %v5430
    %5432 = vmatprep.subr.mxu0 0.0
    %5433 = vmatpush1.msra.mxu0 0.0
    %5434 = vmatprep.subr.mxu0 0.0
    %5435 = vmatpush1.msra.mxu0 0.0
    %5436 = vmatprep.subr.mxu0 0.0
    %5437 = vmatpush1.msra.mxu0 0.0
    %5438 = vmatprep.subr.mxu0 0.0
    %5439 = vmatpush1.msra.mxu0 0.0
    %5440 = vmatprep.subr.mxu0 0.0
    %5441 = vmatpush1.msra.mxu0 0.0
    %5442 = vmatprep.subr.mxu0 0.0
    %5443 = vmatpush1.msra.mxu0 0.0
    %5444 = vmatprep.subr.mxu0 0.0
    %5445 = vmatpush1.msra.mxu0 0.0
    %5446 = vmatprep.subr.mxu0 0.0
    %5447 = vmatpush1.msra.mxu0 0.0
    %5448 = vmatprep.subr.mxu0 0.0
    %5449 = vmatpush1.msra.mxu0 0.0
    %5450 = vmatprep.subr.mxu0 0.0
    %5451 = vmatpush1.msra.mxu0 0.0
    %5452 = vmatprep.subr.mxu0 0.0
    %5453 = vmatpush1.msra.mxu0 0.0
    %5454 = vmatprep.subr.mxu0 0.0
    %5455 = vmatpush1.msra.mxu0 0.0
    %5456 = vmatprep.subr.mxu0 0.0
    %5457 = vmatpush1.msra.mxu0 0.0
    %5458 = vmatprep.subr.mxu0 0.0
    %5459 = vmatpush1.msra.mxu0 0.0
    %5460 = vmatprep.subr.mxu0 0.0
    %5461 = vmatpush1.msra.mxu0 0.0
    %5462 = vmatprep.subr.mxu0 0.0
    %5463 = vmatpush1.msra.mxu0 0.0
    %5464 = vmatprep.subr.mxu0 0.0
    %5465 = vmatpush1.msra.mxu0 0.0
    %5466 = vmatprep.subr.mxu0 0.0
    %5467 = vmatpush1.msra.mxu0 0.0
    %5468 = vmatprep.subr.mxu0 0.0
    %5469 = vmatpush1.msra.mxu0 0.0
    %5470 = vmatprep.subr.mxu0 0.0
    %5471 = vmatpush1.msra.mxu0 0.0
    %5472 = vmatprep.subr.mxu0 0.0
    %5473 = vmatpush1.msra.mxu0 0.0
    %5474 = vmatprep.subr.mxu0 0.0
    %5475 = vmatpush1.msra.mxu0 0.0
    %5476 = vmatprep.subr.mxu0 0.0
    %5477 = vmatpush1.msra.mxu0 0.0
    %5478 = vmatprep.subr.mxu0 0.0
    %5479 = vmatpush1.msra.mxu0 0.0
    %5480 = vmatprep.subr.mxu0 0.0
    %5481 = vmatpush1.msra.mxu0 0.0
    %5482 = vmatprep.subr.mxu0 0.0
    %5483 = vmatpush1.msra.mxu0 0.0
    %5484 = vmatprep.subr.mxu0 0.0
    %5485 = vmatpush1.msra.mxu0 0.0
    %5486 = vmatprep.subr.mxu0 0.0
    %5487 = vmatpush1.msra.mxu0 0.0
    %5488 = vmatprep.subr.mxu0 0.0
    %5489 = vmatpush1.msra.mxu0 0.0
    %5490 = vmatprep.subr.mxu0 0.0
    %5491 = vmatpush1.msra.mxu0 0.0
    %5492 = vmatprep.mubr.f32.mxu0 0.0
    %v5493 = vand.u32 %v5190, 4294901760
    %v5494 = vsub.f32 %v5190, %v5493
    %v5495 = vand.u32 %v5494, 4294901760
    %5496 = vmatmul.mubr.f32.gmra.mrb[0].mxu0 %v5495
    %v5497 = vpop.f32.mrb[0].mxu0
    %v5498 = vadd.f32 %v5423, %v5497
    %v5499 = vpop.f32.mrb[0].mxu0
    %5500 = vdwg.mxu0
    %5501 = vmatprep.subr.mxu0 0.0
    %v5502 = vand.u32 %v4737, 4294901760
    %v5503 = vsub.f32 %v4737, %v5502
    %v5504 = vand.u32 %v5503, 4294901760
    %5505 = vmatpush1.msra.mxu0 %v5504
    %5506 = vmatprep.subr.mxu0 0.0
    %v5507 = vand.u32 %v4738, 4294901760
    %v5508 = vsub.f32 %v4738, %v5507
    %v5509 = vand.u32 %v5508, 4294901760
    %5510 = vmatpush1.msra.mxu0 %v5509
    %5511 = vmatprep.subr.mxu0 0.0
    %5512 = vmatpush1.msra.mxu0 0.0
    %5513 = vmatprep.subr.mxu0 0.0
    %5514 = vmatpush1.msra.mxu0 0.0
    %5515 = vmatprep.subr.mxu0 0.0
    %5516 = vmatpush1.msra.mxu0 0.0
    %5517 = vmatprep.subr.mxu0 0.0
    %5518 = vmatpush1.msra.mxu0 0.0
    %5519 = vmatprep.subr.mxu0 0.0
    %5520 = vmatpush1.msra.mxu0 0.0
    %5521 = vmatprep.subr.mxu0 0.0
    %5522 = vmatpush1.msra.mxu0 0.0
    %5523 = vmatprep.subr.mxu0 0.0
    %5524 = vmatpush1.msra.mxu0 0.0
    %5525 = vmatprep.subr.mxu0 0.0
    %5526 = vmatpush1.msra.mxu0 0.0
    %5527 = vmatprep.subr.mxu0 0.0
    %5528 = vmatpush1.msra.mxu0 0.0
    %5529 = vmatprep.subr.mxu0 0.0
    %5530 = vmatpush1.msra.mxu0 0.0
    %5531 = vmatprep.subr.mxu0 0.0
    %5532 = vmatpush1.msra.mxu0 0.0
    %5533 = vmatprep.subr.mxu0 0.0
    %5534 = vmatpush1.msra.mxu0 0.0
    %5535 = vmatprep.subr.mxu0 0.0
    %5536 = vmatpush1.msra.mxu0 0.0
    %5537 = vmatprep.subr.mxu0 0.0
    %5538 = vmatpush1.msra.mxu0 0.0
    %5539 = vmatprep.subr.mxu0 0.0
    %5540 = vmatpush1.msra.mxu0 0.0
    %5541 = vmatprep.subr.mxu0 0.0
    %5542 = vmatpush1.msra.mxu0 0.0
    %5543 = vmatprep.subr.mxu0 0.0
    %5544 = vmatpush1.msra.mxu0 0.0
    %5545 = vmatprep.subr.mxu0 0.0
    %5546 = vmatpush1.msra.mxu0 0.0
    %5547 = vmatprep.subr.mxu0 0.0
    %5548 = vmatpush1.msra.mxu0 0.0
    %5549 = vmatprep.subr.mxu0 0.0
    %5550 = vmatpush1.msra.mxu0 0.0
    %5551 = vmatprep.subr.mxu0 0.0
    %5552 = vmatpush1.msra.mxu0 0.0
    %5553 = vmatprep.subr.mxu0 0.0
    %5554 = vmatpush1.msra.mxu0 0.0
    %5555 = vmatprep.subr.mxu0 0.0
    %5556 = vmatpush1.msra.mxu0 0.0
    %5557 = vmatprep.subr.mxu0 0.0
    %5558 = vmatpush1.msra.mxu0 0.0
    %5559 = vmatprep.subr.mxu0 0.0
    %5560 = vmatpush1.msra.mxu0 0.0
    %5561 = vmatprep.subr.mxu0 0.0
    %5562 = vmatpush1.msra.mxu0 0.0
    %5563 = vmatprep.subr.mxu0 0.0
    %5564 = vmatpush1.msra.mxu0 0.0
    %5565 = vmatprep.subr.mxu0 0.0
    %5566 = vmatpush1.msra.mxu0 0.0
    %5567 = vmatprep.subr.mxu0 0.0
    %5568 = vmatpush1.msra.mxu0 0.0
    %5569 = vmatprep.subr.mxu0 0.0
    %5570 = vmatpush1.msra.mxu0 0.0
    %5571 = vmatprep.mubr.f32.mxu0 0.0
    %v5572 = vand.u32 %v5190, 4294901760
    %5573 = vmatmul.mubr.f32.gmra.mrb[0].mxu0 %v5572
    %v5574 = vpop.f32.mrb[0].mxu0
    %v5575 = vadd.f32 %v5498, %v5574
    %v5576 = vpop.f32.mrb[0].mxu0
    %5577 = vdwg.mxu0
    %5578 = vmatprep.subr.mxu0 0.0
    %v5579 = vand.u32 %v4737, 4294901760
    %5580 = vmatpush1.msra.mxu0 %v5579
    %5581 = vmatprep.subr.mxu0 0.0
    %v5582 = vand.u32 %v4738, 4294901760
    %5583 = vmatpush1.msra.mxu0 %v5582
    %5584 = vmatprep.subr.mxu0 0.0
    %5585 = vmatpush1.msra.mxu0 0.0
    %5586 = vmatprep.subr.mxu0 0.0
    %5587 = vmatpush1.msra.mxu0 0.0
    %5588 = vmatprep.subr.mxu0 0.0
    %5589 = vmatpush1.msra.mxu0 0.0
    %5590 = vmatprep.subr.mxu0 0.0
    %5591 = vmatpush1.msra.mxu0 0.0
    %5592 = vmatprep.subr.mxu0 0.0
    %5593 = vmatpush1.msra.mxu0 0.0
    %5594 = vmatprep.subr.mxu0 0.0
    %5595 = vmatpush1.msra.mxu0 0.0
    %5596 = vmatprep.subr.mxu0 0.0
    %5597 = vmatpush1.msra.mxu0 0.0
    %5598 = vmatprep.subr.mxu0 0.0
    %5599 = vmatpush1.msra.mxu0 0.0
    %5600 = vmatprep.subr.mxu0 0.0
    %5601 = vmatpush1.msra.mxu0 0.0
    %5602 = vmatprep.subr.mxu0 0.0
    %5603 = vmatpush1.msra.mxu0 0.0
    %5604 = vmatprep.subr.mxu0 0.0
    %5605 = vmatpush1.msra.mxu0 0.0
    %5606 = vmatprep.subr.mxu0 0.0
    %5607 = vmatpush1.msra.mxu0 0.0
    %5608 = vmatprep.subr.mxu0 0.0
    %5609 = vmatpush1.msra.mxu0 0.0
    %5610 = vmatprep.subr.mxu0 0.0
    %5611 = vmatpush1.msra.mxu0 0.0
    %5612 = vmatprep.subr.mxu0 0.0
    %5613 = vmatpush1.msra.mxu0 0.0
    %5614 = vmatprep.subr.mxu0 0.0
    %5615 = vmatpush1.msra.mxu0 0.0
    %5616 = vmatprep.subr.mxu0 0.0
    %5617 = vmatpush1.msra.mxu0 0.0
    %5618 = vmatprep.subr.mxu0 0.0
    %5619 = vmatpush1.msra.mxu0 0.0
    %5620 = vmatprep.subr.mxu0 0.0
    %5621 = vmatpush1.msra.mxu0 0.0
    %5622 = vmatprep.subr.mxu0 0.0
    %5623 = vmatpush1.msra.mxu0 0.0
    %5624 = vmatprep.subr.mxu0 0.0
    %5625 = vmatpush1.msra.mxu0 0.0
    %5626 = vmatprep.subr.mxu0 0.0
    %5627 = vmatpush1.msra.mxu0 0.0
    %5628 = vmatprep.subr.mxu0 0.0
    %5629 = vmatpush1.msra.mxu0 0.0
    %5630 = vmatprep.subr.mxu0 0.0
    %5631 = vmatpush1.msra.mxu0 0.0
    %5632 = vmatprep.subr.mxu0 0.0
    %5633 = vmatpush1.msra.mxu0 0.0
    %5634 = vmatprep.subr.mxu0 0.0
    %5635 = vmatpush1.msra.mxu0 0.0
    %5636 = vmatprep.subr.mxu0 0.0
    %5637 = vmatpush1.msra.mxu0 0.0
    %5638 = vmatprep.subr.mxu0 0.0
    %5639 = vmatpush1.msra.mxu0 0.0
    %5640 = vmatprep.subr.mxu0 0.0
    %5641 = vmatpush1.msra.mxu0 0.0
    %5642 = vmatprep.subr.mxu0 0.0
    %5643 = vmatpush1.msra.mxu0 0.0
    %5644 = vmatprep.mubr.f32.mxu0 0.0
    %v5645 = vand.u32 %v5190, 4294901760
    %5646 = vmatmul.mubr.f32.gmra.mrb[0].mxu0 %v5645
    %v5647 = vpop.f32.mrb[0].mxu0
    %v5648 = vadd.f32 %v5575, %v5647
    %v5649 = vpop.f32.mrb[0].mxu0
    %5650 = vdwg.mxu0
    %v5651 = vld [vmem:[%s16] sm:$0x1]
    %v5653 = vlaneseq
    %v5654 = vshrl.u32 %v5653, 7
    %v5655 = vsub.s32 0, %v5654
    %v5656 = vrot.slane %v5651, %v5655
    %v5658 = vadd.f32 %v5648, %v5656
    %v5660 = vrot.slane %v5658, 1
    %5661 = vrot.lane.b32.xlu0 %v5660, 16
    %v5662 = vpop.permute.xlu0 %5661
    %v5664 = vsel %vm230, %v5658, %v5662
    %v5666 = vrot.slane %v5664, 1
    %v5668 = vsel %vm186, %v5664, %v5666
    %v5669 = vld [vmem:[%s17] sm:$0xff]
    %v5670 = vld [vmem:[%s17 + $0x8] sm:$0xff]
    %v5671 = vld [vmem:[%s17 + $0x10] sm:$0xff]
    %v5672 = vld [vmem:[%s17 + $0x18] sm:$0xff]
    %v5673 = vld [vmem:[%s18] sm:$0x1]
    %v5675 = vlaneseq
    %v5676 = vshrl.u32 %v5675, 7
    %v5677 = vsub.s32 0, %v5676
    %v5678 = vrot.slane %v5673, %v5677
    %v5681 = vsel %vm242, %v5668, 0
    %5683 = vmatprep.subr.mxu0 0.0
    %v5684 = vand.u32 %v5669, 4294901760
    %5685 = vmatpush1.msra.mxu0 %v5684
    %5686 = vmatprep.subr.mxu0 0.0
    %v5687 = vand.u32 %v5670, 4294901760
    %5688 = vmatpush1.msra.mxu0 %v5687
    %5689 = vmatprep.subr.mxu0 0.0
    %v5690 = vand.u32 %v5671, 4294901760
    %5691 = vmatpush1.msra.mxu0 %v5690
    %5692 = vmatprep.subr.mxu0 0.0
    %v5693 = vand.u32 %v5672, 4294901760
    %5694 = vmatpush1.msra.mxu0 %v5693
    %5695 = vmatprep.subr.mxu0 0.0
    %5696 = vmatpush1.msra.mxu0 0.0
    %5697 = vmatprep.subr.mxu0 0.0
    %5698 = vmatpush1.msra.mxu0 0.0
    %5699 = vmatprep.subr.mxu0 0.0
    %5700 = vmatpush1.msra.mxu0 0.0
    %5701 = vmatprep.subr.mxu0 0.0
    %5702 = vmatpush1.msra.mxu0 0.0
    %5703 = vmatprep.subr.mxu0 0.0
    %5704 = vmatpush1.msra.mxu0 0.0
    %5705 = vmatprep.subr.mxu0 0.0
    %5706 = vmatpush1.msra.mxu0 0.0
    %5707 = vmatprep.subr.mxu0 0.0
    %5708 = vmatpush1.msra.mxu0 0.0
    %5709 = vmatprep.subr.mxu0 0.0
    %5710 = vmatpush1.msra.mxu0 0.0
    %5711 = vmatprep.subr.mxu0 0.0
    %5712 = vmatpush1.msra.mxu0 0.0
    %5713 = vmatprep.subr.mxu0 0.0
    %5714 = vmatpush1.msra.mxu0 0.0
    %5715 = vmatprep.subr.mxu0 0.0
    %5716 = vmatpush1.msra.mxu0 0.0
    %5717 = vmatprep.subr.mxu0 0.0
    %5718 = vmatpush1.msra.mxu0 0.0
    %5719 = vmatprep.subr.mxu0 0.0
    %5720 = vmatpush1.msra.mxu0 0.0
    %5721 = vmatprep.subr.mxu0 0.0
    %5722 = vmatpush1.msra.mxu0 0.0
    %5723 = vmatprep.subr.mxu0 0.0
    %5724 = vmatpush1.msra.mxu0 0.0
    %5725 = vmatprep.subr.mxu0 0.0
    %5726 = vmatpush1.msra.mxu0 0.0
    %5727 = vmatprep.subr.mxu0 0.0
    %5728 = vmatpush1.msra.mxu0 0.0
    %5729 = vmatprep.subr.mxu0 0.0
    %5730 = vmatpush1.msra.mxu0 0.0
    %5731 = vmatprep.subr.mxu0 0.0
    %5732 = vmatpush1.msra.mxu0 0.0
    %5733 = vmatprep.subr.mxu0 0.0
    %5734 = vmatpush1.msra.mxu0 0.0
    %5735 = vmatprep.subr.mxu0 0.0
    %5736 = vmatpush1.msra.mxu0 0.0
    %5737 = vmatprep.subr.mxu0 0.0
    %5738 = vmatpush1.msra.mxu0 0.0
    %5739 = vmatprep.subr.mxu0 0.0
    %5740 = vmatpush1.msra.mxu0 0.0
    %5741 = vmatprep.subr.mxu0 0.0
    %5742 = vmatpush1.msra.mxu0 0.0
    %5743 = vmatprep.subr.mxu0 0.0
    %5744 = vmatpush1.msra.mxu0 0.0
    %5745 = vmatprep.subr.mxu0 0.0
    %5746 = vmatpush1.msra.mxu0 0.0
    %5747 = vmatprep.subr.mxu0 0.0
    %5748 = vmatpush1.msra.mxu0 0.0
    %5749 = vmatprep.subr.mxu0 0.0
    %5750 = vmatpush1.msra.mxu0 0.0
    %5751 = vmatprep.mubr.f32.mxu0 0.0
    %v5752 = vand.u32 %v5681, 4294901760
    %v5753 = vsub.f32 %v5681, %v5752
    %v5754 = vand.u32 %v5753, 4294901760
    %v5755 = vsub.f32 %v5753, %v5754
    %v5756 = vand.u32 %v5755, 4294901760
    %5757 = vmatmul.mubr.f32.gmra.mrb[0].mxu0 %v5756
    %v5758 = vpop.f32.mrb[0].mxu0
    %v5759 = vadd.f32 %v5678, %v5758
    %v5760 = vpop.f32.mrb[0].mxu0
    %5761 = vdwg.mxu0
    %5762 = vmatprep.subr.mxu0 0.0
    %v5763 = vand.u32 %v5669, 4294901760
    %v5764 = vsub.f32 %v5669, %v5763
    %v5765 = vand.u32 %v5764, 4294901760
    %v5766 = vsub.f32 %v5764, %v5765
    %v5767 = vand.u32 %v5766, 4294901760
    %5768 = vmatpush1.msra.mxu0 %v5767
    %5769 = vmatprep.subr.mxu0 0.0
    %v5770 = vand.u32 %v5670, 4294901760
    %v5771 = vsub.f32 %v5670, %v5770
    %v5772 = vand.u32 %v5771, 4294901760
    %v5773 = vsub.f32 %v5771, %v5772
    %v5774 = vand.u32 %v5773, 4294901760
    %5775 = vmatpush1.msra.mxu0 %v5774
    %5776 = vmatprep.subr.mxu0 0.0
    %v5777 = vand.u32 %v5671, 4294901760
    %v5778 = vsub.f32 %v5671, %v5777
    %v5779 = vand.u32 %v5778, 4294901760
    %v5780 = vsub.f32 %v5778, %v5779
    %v5781 = vand.u32 %v5780, 4294901760
    %5782 = vmatpush1.msra.mxu0 %v5781
    %5783 = vmatprep.subr.mxu0 0.0
    %v5784 = vand.u32 %v5672, 4294901760
    %v5785 = vsub.f32 %v5672, %v5784
    %v5786 = vand.u32 %v5785, 4294901760
    %v5787 = vsub.f32 %v5785, %v5786
    %v5788 = vand.u32 %v5787, 4294901760
    %5789 = vmatpush1.msra.mxu0 %v5788
    %5790 = vmatprep.subr.mxu0 0.0
    %5791 = vmatpush1.msra.mxu0 0.0
    %5792 = vmatprep.subr.mxu0 0.0
    %5793 = vmatpush1.msra.mxu0 0.0
    %5794 = vmatprep.subr.mxu0 0.0
    %5795 = vmatpush1.msra.mxu0 0.0
    %5796 = vmatprep.subr.mxu0 0.0
    %5797 = vmatpush1.msra.mxu0 0.0
    %5798 = vmatprep.subr.mxu0 0.0
    %5799 = vmatpush1.msra.mxu0 0.0
    %5800 = vmatprep.subr.mxu0 0.0
    %5801 = vmatpush1.msra.mxu0 0.0
    %5802 = vmatprep.subr.mxu0 0.0
    %5803 = vmatpush1.msra.mxu0 0.0
    %5804 = vmatprep.subr.mxu0 0.0
    %5805 = vmatpush1.msra.mxu0 0.0
    %5806 = vmatprep.subr.mxu0 0.0
    %5807 = vmatpush1.msra.mxu0 0.0
    %5808 = vmatprep.subr.mxu0 0.0
    %5809 = vmatpush1.msra.mxu0 0.0
    %5810 = vmatprep.subr.mxu0 0.0
    %5811 = vmatpush1.msra.mxu0 0.0
    %5812 = vmatprep.subr.mxu0 0.0
    %5813 = vmatpush1.msra.mxu0 0.0
    %5814 = vmatprep.subr.mxu0 0.0
    %5815 = vmatpush1.msra.mxu0 0.0
    %5816 = vmatprep.subr.mxu0 0.0
    %5817 = vmatpush1.msra.mxu0 0.0
    %5818 = vmatprep.subr.mxu0 0.0
    %5819 = vmatpush1.msra.mxu0 0.0
    %5820 = vmatprep.subr.mxu0 0.0
    %5821 = vmatpush1.msra.mxu0 0.0
    %5822 = vmatprep.subr.mxu0 0.0
    %5823 = vmatpush1.msra.mxu0 0.0
    %5824 = vmatprep.subr.mxu0 0.0
    %5825 = vmatpush1.msra.mxu0 0.0
    %5826 = vmatprep.subr.mxu0 0.0
    %5827 = vmatpush1.msra.mxu0 0.0
    %5828 = vmatprep.subr.mxu0 0.0
    %5829 = vmatpush1.msra.mxu0 0.0
    %5830 = vmatprep.subr.mxu0 0.0
    %5831 = vmatpush1.msra.mxu0 0.0
    %5832 = vmatprep.subr.mxu0 0.0
    %5833 = vmatpush1.msra.mxu0 0.0
    %5834 = vmatprep.subr.mxu0 0.0
    %5835 = vmatpush1.msra.mxu0 0.0
    %5836 = vmatprep.subr.mxu0 0.0
    %5837 = vmatpush1.msra.mxu0 0.0
    %5838 = vmatprep.subr.mxu0 0.0
    %5839 = vmatpush1.msra.mxu0 0.0
    %5840 = vmatprep.subr.mxu0 0.0
    %5841 = vmatpush1.msra.mxu0 0.0
    %5842 = vmatprep.subr.mxu0 0.0
    %5843 = vmatpush1.msra.mxu0 0.0
    %5844 = vmatprep.subr.mxu0 0.0
    %5845 = vmatpush1.msra.mxu0 0.0
    %5846 = vmatprep.mubr.f32.mxu0 0.0
    %v5847 = vand.u32 %v5681, 4294901760
    %5848 = vmatmul.mubr.f32.gmra.mrb[0].mxu0 %v5847
    %v5849 = vpop.f32.mrb[0].mxu0
    %v5850 = vadd.f32 %v5759, %v5849
    %v5851 = vpop.f32.mrb[0].mxu0
    %5852 = vdwg.mxu0
    %5853 = vmatprep.subr.mxu0 0.0
    %v5854 = vand.u32 %v5669, 4294901760
    %v5855 = vsub.f32 %v5669, %v5854
    %5856 = vmatpush1.msra.mxu0 %v5855
    %5857 = vmatprep.subr.mxu0 0.0
    %v5858 = vand.u32 %v5670, 4294901760
    %v5859 = vsub.f32 %v5670, %v5858
    %5860 = vmatpush1.msra.mxu0 %v5859
    %5861 = vmatprep.subr.mxu0 0.0
    %v5862 = vand.u32 %v5671, 4294901760
    %v5863 = vsub.f32 %v5671, %v5862
    %5864 = vmatpush1.msra.mxu0 %v5863
    %5865 = vmatprep.subr.mxu0 0.0
    %v5866 = vand.u32 %v5672, 4294901760
    %v5867 = vsub.f32 %v5672, %v5866
    %5868 = vmatpush1.msra.mxu0 %v5867
    %5869 = vmatprep.subr.mxu0 0.0
    %5870 = vmatpush1.msra.mxu0 0.0
    %5871 = vmatprep.subr.mxu0 0.0
    %5872 = vmatpush1.msra.mxu0 0.0
    %5873 = vmatprep.subr.mxu0 0.0
    %5874 = vmatpush1.msra.mxu0 0.0
    %5875 = vmatprep.subr.mxu0 0.0
    %5876 = vmatpush1.msra.mxu0 0.0
    %5877 = vmatprep.subr.mxu0 0.0
    %5878 = vmatpush1.msra.mxu0 0.0
    %5879 = vmatprep.subr.mxu0 0.0
    %5880 = vmatpush1.msra.mxu0 0.0
    %5881 = vmatprep.subr.mxu0 0.0
    %5882 = vmatpush1.msra.mxu0 0.0
    %5883 = vmatprep.subr.mxu0 0.0
    %5884 = vmatpush1.msra.mxu0 0.0
    %5885 = vmatprep.subr.mxu0 0.0
    %5886 = vmatpush1.msra.mxu0 0.0
    %5887 = vmatprep.subr.mxu0 0.0
    %5888 = vmatpush1.msra.mxu0 0.0
    %5889 = vmatprep.subr.mxu0 0.0
    %5890 = vmatpush1.msra.mxu0 0.0
    %5891 = vmatprep.subr.mxu0 0.0
    %5892 = vmatpush1.msra.mxu0 0.0
    %5893 = vmatprep.subr.mxu0 0.0
    %5894 = vmatpush1.msra.mxu0 0.0
    %5895 = vmatprep.subr.mxu0 0.0
    %5896 = vmatpush1.msra.mxu0 0.0
    %5897 = vmatprep.subr.mxu0 0.0
    %5898 = vmatpush1.msra.mxu0 0.0
    %5899 = vmatprep.subr.mxu0 0.0
    %5900 = vmatpush1.msra.mxu0 0.0
    %5901 = vmatprep.subr.mxu0 0.0
    %5902 = vmatpush1.msra.mxu0 0.0
    %5903 = vmatprep.subr.mxu0 0.0
    %5904 = vmatpush1.msra.mxu0 0.0
    %5905 = vmatprep.subr.mxu0 0.0
    %5906 = vmatpush1.msra.mxu0 0.0
    %5907 = vmatprep.subr.mxu0 0.0
    %5908 = vmatpush1.msra.mxu0 0.0
    %5909 = vmatprep.subr.mxu0 0.0
    %5910 = vmatpush1.msra.mxu0 0.0
    %5911 = vmatprep.subr.mxu0 0.0
    %5912 = vmatpush1.msra.mxu0 0.0
    %5913 = vmatprep.subr.mxu0 0.0
    %5914 = vmatpush1.msra.mxu0 0.0
    %5915 = vmatprep.subr.mxu0 0.0
    %5916 = vmatpush1.msra.mxu0 0.0
    %5917 = vmatprep.subr.mxu0 0.0
    %5918 = vmatpush1.msra.mxu0 0.0
    %5919 = vmatprep.subr.mxu0 0.0
    %5920 = vmatpush1.msra.mxu0 0.0
    %5921 = vmatprep.subr.mxu0 0.0
    %5922 = vmatpush1.msra.mxu0 0.0
    %5923 = vmatprep.subr.mxu0 0.0
    %5924 = vmatpush1.msra.mxu0 0.0
    %5925 = vmatprep.mubr.f32.mxu0 0.0
    %v5926 = vand.u32 %v5681, 4294901760
    %v5927 = vsub.f32 %v5681, %v5926
    %5928 = vmatmul.mubr.f32.gmra.mrb[0].mxu0 %v5927
    %v5929 = vpop.f32.mrb[0].mxu0
    %v5930 = vadd.f32 %v5850, %v5929
    %v5931 = vpop.f32.mrb[0].mxu0
    %5932 = vdwg.mxu0
    %5933 = vmatprep.subr.mxu0 0.0
    %v5934 = vand.u32 %v5669, 4294901760
    %5935 = vmatpush1.msra.mxu0 %v5934
    %5936 = vmatprep.subr.mxu0 0.0
    %v5937 = vand.u32 %v5670, 4294901760
    %5938 = vmatpush1.msra.mxu0 %v5937
    %5939 = vmatprep.subr.mxu0 0.0
    %v5940 = vand.u32 %v5671, 4294901760
    %5941 = vmatpush1.msra.mxu0 %v5940
    %5942 = vmatprep.subr.mxu0 0.0
    %v5943 = vand.u32 %v5672, 4294901760
    %5944 = vmatpush1.msra.mxu0 %v5943
    %5945 = vmatprep.subr.mxu0 0.0
    %5946 = vmatpush1.msra.mxu0 0.0
    %5947 = vmatprep.subr.mxu0 0.0
    %5948 = vmatpush1.msra.mxu0 0.0
    %5949 = vmatprep.subr.mxu0 0.0
    %5950 = vmatpush1.msra.mxu0 0.0
    %5951 = vmatprep.subr.mxu0 0.0
    %5952 = vmatpush1.msra.mxu0 0.0
    %5953 = vmatprep.subr.mxu0 0.0
    %5954 = vmatpush1.msra.mxu0 0.0
    %5955 = vmatprep.subr.mxu0 0.0
    %5956 = vmatpush1.msra.mxu0 0.0
    %5957 = vmatprep.subr.mxu0 0.0
    %5958 = vmatpush1.msra.mxu0 0.0
    %5959 = vmatprep.subr.mxu0 0.0
    %5960 = vmatpush1.msra.mxu0 0.0
    %5961 = vmatprep.subr.mxu0 0.0
    %5962 = vmatpush1.msra.mxu0 0.0
    %5963 = vmatprep.subr.mxu0 0.0
    %5964 = vmatpush1.msra.mxu0 0.0
    %5965 = vmatprep.subr.mxu0 0.0
    %5966 = vmatpush1.msra.mxu0 0.0
    %5967 = vmatprep.subr.mxu0 0.0
    %5968 = vmatpush1.msra.mxu0 0.0
    %5969 = vmatprep.subr.mxu0 0.0
    %5970 = vmatpush1.msra.mxu0 0.0
    %5971 = vmatprep.subr.mxu0 0.0
    %5972 = vmatpush1.msra.mxu0 0.0
    %5973 = vmatprep.subr.mxu0 0.0
    %5974 = vmatpush1.msra.mxu0 0.0
    %5975 = vmatprep.subr.mxu0 0.0
    %5976 = vmatpush1.msra.mxu0 0.0
    %5977 = vmatprep.subr.mxu0 0.0
    %5978 = vmatpush1.msra.mxu0 0.0
    %5979 = vmatprep.subr.mxu0 0.0
    %5980 = vmatpush1.msra.mxu0 0.0
    %5981 = vmatprep.subr.mxu0 0.0
    %5982 = vmatpush1.msra.mxu0 0.0
    %5983 = vmatprep.subr.mxu0 0.0
    %5984 = vmatpush1.msra.mxu0 0.0
    %5985 = vmatprep.subr.mxu0 0.0
    %5986 = vmatpush1.msra.mxu0 0.0
    %5987 = vmatprep.subr.mxu0 0.0
    %5988 = vmatpush1.msra.mxu0 0.0
    %5989 = vmatprep.subr.mxu0 0.0
    %5990 = vmatpush1.msra.mxu0 0.0
    %5991 = vmatprep.subr.mxu0 0.0
    %5992 = vmatpush1.msra.mxu0 0.0
    %5993 = vmatprep.subr.mxu0 0.0
    %5994 = vmatpush1.msra.mxu0 0.0
    %5995 = vmatprep.subr.mxu0 0.0
    %5996 = vmatpush1.msra.mxu0 0.0
    %5997 = vmatprep.subr.mxu0 0.0
    %5998 = vmatpush1.msra.mxu0 0.0
    %5999 = vmatprep.subr.mxu0 0.0
    %6000 = vmatpush1.msra.mxu0 0.0
    %6001 = vmatprep.mubr.f32.mxu0 0.0
    %v6002 = vand.u32 %v5681, 4294901760
    %v6003 = vsub.f32 %v5681, %v6002
    %v6004 = vand.u32 %v6003, 4294901760
    %6005 = vmatmul.mubr.f32.gmra.mrb[0].mxu0 %v6004
    %v6006 = vpop.f32.mrb[0].mxu0
    %v6007 = vadd.f32 %v5930, %v6006
    %v6008 = vpop.f32.mrb[0].mxu0
    %6009 = vdwg.mxu0
    %6010 = vmatprep.subr.mxu0 0.0
    %v6011 = vand.u32 %v5669, 4294901760
    %v6012 = vsub.f32 %v5669, %v6011
    %v6013 = vand.u32 %v6012, 4294901760
    %6014 = vmatpush1.msra.mxu0 %v6013
    %6015 = vmatprep.subr.mxu0 0.0
    %v6016 = vand.u32 %v5670, 4294901760
    %v6017 = vsub.f32 %v5670, %v6016
    %v6018 = vand.u32 %v6017, 4294901760
    %6019 = vmatpush1.msra.mxu0 %v6018
    %6020 = vmatprep.subr.mxu0 0.0
    %v6021 = vand.u32 %v5671, 4294901760
    %v6022 = vsub.f32 %v5671, %v6021
    %v6023 = vand.u32 %v6022, 4294901760
    %6024 = vmatpush1.msra.mxu0 %v6023
    %6025 = vmatprep.subr.mxu0 0.0
    %v6026 = vand.u32 %v5672, 4294901760
    %v6027 = vsub.f32 %v5672, %v6026
    %v6028 = vand.u32 %v6027, 4294901760
    %6029 = vmatpush1.msra.mxu0 %v6028
    %6030 = vmatprep.subr.mxu0 0.0
    %6031 = vmatpush1.msra.mxu0 0.0
    %6032 = vmatprep.subr.mxu0 0.0
    %6033 = vmatpush1.msra.mxu0 0.0
    %6034 = vmatprep.subr.mxu0 0.0
    %6035 = vmatpush1.msra.mxu0 0.0
    %6036 = vmatprep.subr.mxu0 0.0
    %6037 = vmatpush1.msra.mxu0 0.0
    %6038 = vmatprep.subr.mxu0 0.0
    %6039 = vmatpush1.msra.mxu0 0.0
    %6040 = vmatprep.subr.mxu0 0.0
    %6041 = vmatpush1.msra.mxu0 0.0
    %6042 = vmatprep.subr.mxu0 0.0
    %6043 = vmatpush1.msra.mxu0 0.0
    %6044 = vmatprep.subr.mxu0 0.0
    %6045 = vmatpush1.msra.mxu0 0.0
    %6046 = vmatprep.subr.mxu0 0.0
    %6047 = vmatpush1.msra.mxu0 0.0
    %6048 = vmatprep.subr.mxu0 0.0
    %6049 = vmatpush1.msra.mxu0 0.0
    %6050 = vmatprep.subr.mxu0 0.0
    %6051 = vmatpush1.msra.mxu0 0.0
    %6052 = vmatprep.subr.mxu0 0.0
    %6053 = vmatpush1.msra.mxu0 0.0
    %6054 = vmatprep.subr.mxu0 0.0
    %6055 = vmatpush1.msra.mxu0 0.0
    %6056 = vmatprep.subr.mxu0 0.0
    %6057 = vmatpush1.msra.mxu0 0.0
    %6058 = vmatprep.subr.mxu0 0.0
    %6059 = vmatpush1.msra.mxu0 0.0
    %6060 = vmatprep.subr.mxu0 0.0
    %6061 = vmatpush1.msra.mxu0 0.0
    %6062 = vmatprep.subr.mxu0 0.0
    %6063 = vmatpush1.msra.mxu0 0.0
    %6064 = vmatprep.subr.mxu0 0.0
    %6065 = vmatpush1.msra.mxu0 0.0
    %6066 = vmatprep.subr.mxu0 0.0
    %6067 = vmatpush1.msra.mxu0 0.0
    %6068 = vmatprep.subr.mxu0 0.0
    %6069 = vmatpush1.msra.mxu0 0.0
    %6070 = vmatprep.subr.mxu0 0.0
    %6071 = vmatpush1.msra.mxu0 0.0
    %6072 = vmatprep.subr.mxu0 0.0
    %6073 = vmatpush1.msra.mxu0 0.0
    %6074 = vmatprep.subr.mxu0 0.0
    %6075 = vmatpush1.msra.mxu0 0.0
    %6076 = vmatprep.subr.mxu0 0.0
    %6077 = vmatpush1.msra.mxu0 0.0
    %6078 = vmatprep.subr.mxu0 0.0
    %6079 = vmatpush1.msra.mxu0 0.0
    %6080 = vmatprep.subr.mxu0 0.0
    %6081 = vmatpush1.msra.mxu0 0.0
    %6082 = vmatprep.subr.mxu0 0.0
    %6083 = vmatpush1.msra.mxu0 0.0
    %6084 = vmatprep.subr.mxu0 0.0
    %6085 = vmatpush1.msra.mxu0 0.0
    %6086 = vmatprep.mubr.f32.mxu0 0.0
    %v6087 = vand.u32 %v5681, 4294901760
    %6088 = vmatmul.mubr.f32.gmra.mrb[0].mxu0 %v6087
    %v6089 = vpop.f32.mrb[0].mxu0
    %v6090 = vadd.f32 %v6007, %v6089
    %v6091 = vpop.f32.mrb[0].mxu0
    %6092 = vdwg.mxu0
    %6093 = vmatprep.subr.mxu0 0.0
    %v6094 = vand.u32 %v5669, 4294901760
    %6095 = vmatpush1.msra.mxu0 %v6094
    %6096 = vmatprep.subr.mxu0 0.0
    %v6097 = vand.u32 %v5670, 4294901760
    %6098 = vmatpush1.msra.mxu0 %v6097
    %6099 = vmatprep.subr.mxu0 0.0
    %v6100 = vand.u32 %v5671, 4294901760
    %6101 = vmatpush1.msra.mxu0 %v6100
    %6102 = vmatprep.subr.mxu0 0.0
    %v6103 = vand.u32 %v5672, 4294901760
    %6104 = vmatpush1.msra.mxu0 %v6103
    %6105 = vmatprep.subr.mxu0 0.0
    %6106 = vmatpush1.msra.mxu0 0.0
    %6107 = vmatprep.subr.mxu0 0.0
    %6108 = vmatpush1.msra.mxu0 0.0
    %6109 = vmatprep.subr.mxu0 0.0
    %6110 = vmatpush1.msra.mxu0 0.0
    %6111 = vmatprep.subr.mxu0 0.0
    %6112 = vmatpush1.msra.mxu0 0.0
    %6113 = vmatprep.subr.mxu0 0.0
    %6114 = vmatpush1.msra.mxu0 0.0
    %6115 = vmatprep.subr.mxu0 0.0
    %6116 = vmatpush1.msra.mxu0 0.0
    %6117 = vmatprep.subr.mxu0 0.0
    %6118 = vmatpush1.msra.mxu0 0.0
    %6119 = vmatprep.subr.mxu0 0.0
    %6120 = vmatpush1.msra.mxu0 0.0
    %6121 = vmatprep.subr.mxu0 0.0
    %6122 = vmatpush1.msra.mxu0 0.0
    %6123 = vmatprep.subr.mxu0 0.0
    %6124 = vmatpush1.msra.mxu0 0.0
    %6125 = vmatprep.subr.mxu0 0.0
    %6126 = vmatpush1.msra.mxu0 0.0
    %6127 = vmatprep.subr.mxu0 0.0
    %6128 = vmatpush1.msra.mxu0 0.0
    %6129 = vmatprep.subr.mxu0 0.0
    %6130 = vmatpush1.msra.mxu0 0.0
    %6131 = vmatprep.subr.mxu0 0.0
    %6132 = vmatpush1.msra.mxu0 0.0
    %6133 = vmatprep.subr.mxu0 0.0
    %6134 = vmatpush1.msra.mxu0 0.0
    %6135 = vmatprep.subr.mxu0 0.0
    %6136 = vmatpush1.msra.mxu0 0.0
    %6137 = vmatprep.subr.mxu0 0.0
    %6138 = vmatpush1.msra.mxu0 0.0
    %6139 = vmatprep.subr.mxu0 0.0
    %6140 = vmatpush1.msra.mxu0 0.0
    %6141 = vmatprep.subr.mxu0 0.0
    %6142 = vmatpush1.msra.mxu0 0.0
    %6143 = vmatprep.subr.mxu0 0.0
    %6144 = vmatpush1.msra.mxu0 0.0
    %6145 = vmatprep.subr.mxu0 0.0
    %6146 = vmatpush1.msra.mxu0 0.0
    %6147 = vmatprep.subr.mxu0 0.0
    %6148 = vmatpush1.msra.mxu0 0.0
    %6149 = vmatprep.subr.mxu0 0.0
    %6150 = vmatpush1.msra.mxu0 0.0
    %6151 = vmatprep.subr.mxu0 0.0
    %6152 = vmatpush1.msra.mxu0 0.0
    %6153 = vmatprep.subr.mxu0 0.0
    %6154 = vmatpush1.msra.mxu0 0.0
    %6155 = vmatprep.subr.mxu0 0.0
    %6156 = vmatpush1.msra.mxu0 0.0
    %6157 = vmatprep.subr.mxu0 0.0
    %6158 = vmatpush1.msra.mxu0 0.0
    %6159 = vmatprep.subr.mxu0 0.0
    %6160 = vmatpush1.msra.mxu0 0.0
    %6161 = vmatprep.mubr.f32.mxu0 0.0
    %v6162 = vand.u32 %v5681, 4294901760
    %6163 = vmatmul.mubr.f32.gmra.mrb[0].mxu0 %v6162
    %v6164 = vpop.f32.mrb[0].mxu0
    %v6165 = vadd.f32 %v6090, %v6164
    %v6166 = vpop.f32.mrb[0].mxu0
    %6167 = vdwg.mxu0
    %v6168 = vmax.f32 %v6165, 0.0
    %v6169 = vld [vmem:[%s19] sm:$0xff]
    %v6170 = vld [vmem:[%s19 + $0x8] sm:$0xff]
    %v6171 = vld [vmem:[%s19 + $0x10] sm:$0xff]
    %v6172 = vld [vmem:[%s19 + $0x18] sm:$0xff]
    %v6173 = vld [vmem:[%s20] sm:$0x1]
    %v6175 = vlaneseq
    %v6176 = vshrl.u32 %v6175, 7
    %v6177 = vsub.s32 0, %v6176
    %v6178 = vrot.slane %v6173, %v6177
    %v6181 = vsel %vm242, %v6168, 0
    %6183 = vmatprep.subr.mxu0 0.0
    %v6184 = vand.u32 %v6169, 4294901760
    %6185 = vmatpush1.msra.mxu0 %v6184
    %6186 = vmatprep.subr.mxu0 0.0
    %v6187 = vand.u32 %v6170, 4294901760
    %6188 = vmatpush1.msra.mxu0 %v6187
    %6189 = vmatprep.subr.mxu0 0.0
    %v6190 = vand.u32 %v6171, 4294901760
    %6191 = vmatpush1.msra.mxu0 %v6190
    %6192 = vmatprep.subr.mxu0 0.0
    %v6193 = vand.u32 %v6172, 4294901760
    %6194 = vmatpush1.msra.mxu0 %v6193
    %6195 = vmatprep.subr.mxu0 0.0
    %6196 = vmatpush1.msra.mxu0 0.0
    %6197 = vmatprep.subr.mxu0 0.0
    %6198 = vmatpush1.msra.mxu0 0.0
    %6199 = vmatprep.subr.mxu0 0.0
    %6200 = vmatpush1.msra.mxu0 0.0
    %6201 = vmatprep.subr.mxu0 0.0
    %6202 = vmatpush1.msra.mxu0 0.0
    %6203 = vmatprep.subr.mxu0 0.0
    %6204 = vmatpush1.msra.mxu0 0.0
    %6205 = vmatprep.subr.mxu0 0.0
    %6206 = vmatpush1.msra.mxu0 0.0
    %6207 = vmatprep.subr.mxu0 0.0
    %6208 = vmatpush1.msra.mxu0 0.0
    %6209 = vmatprep.subr.mxu0 0.0
    %6210 = vmatpush1.msra.mxu0 0.0
    %6211 = vmatprep.subr.mxu0 0.0
    %6212 = vmatpush1.msra.mxu0 0.0
    %6213 = vmatprep.subr.mxu0 0.0
    %6214 = vmatpush1.msra.mxu0 0.0
    %6215 = vmatprep.subr.mxu0 0.0
    %6216 = vmatpush1.msra.mxu0 0.0
    %6217 = vmatprep.subr.mxu0 0.0
    %6218 = vmatpush1.msra.mxu0 0.0
    %6219 = vmatprep.subr.mxu0 0.0
    %6220 = vmatpush1.msra.mxu0 0.0
    %6221 = vmatprep.subr.mxu0 0.0
    %6222 = vmatpush1.msra.mxu0 0.0
    %6223 = vmatprep.subr.mxu0 0.0
    %6224 = vmatpush1.msra.mxu0 0.0
    %6225 = vmatprep.subr.mxu0 0.0
    %6226 = vmatpush1.msra.mxu0 0.0
    %6227 = vmatprep.subr.mxu0 0.0
    %6228 = vmatpush1.msra.mxu0 0.0
    %6229 = vmatprep.subr.mxu0 0.0
    %6230 = vmatpush1.msra.mxu0 0.0
    %6231 = vmatprep.subr.mxu0 0.0
    %6232 = vmatpush1.msra.mxu0 0.0
    %6233 = vmatprep.subr.mxu0 0.0
    %6234 = vmatpush1.msra.mxu0 0.0
    %6235 = vmatprep.subr.mxu0 0.0
    %6236 = vmatpush1.msra.mxu0 0.0
    %6237 = vmatprep.subr.mxu0 0.0
    %6238 = vmatpush1.msra.mxu0 0.0
    %6239 = vmatprep.subr.mxu0 0.0
    %6240 = vmatpush1.msra.mxu0 0.0
    %6241 = vmatprep.subr.mxu0 0.0
    %6242 = vmatpush1.msra.mxu0 0.0
    %6243 = vmatprep.subr.mxu0 0.0
    %6244 = vmatpush1.msra.mxu0 0.0
    %6245 = vmatprep.subr.mxu0 0.0
    %6246 = vmatpush1.msra.mxu0 0.0
    %6247 = vmatprep.subr.mxu0 0.0
    %6248 = vmatpush1.msra.mxu0 0.0
    %6249 = vmatprep.subr.mxu0 0.0
    %6250 = vmatpush1.msra.mxu0 0.0
    %6251 = vmatprep.mubr.f32.mxu0 0.0
    %v6252 = vand.u32 %v6181, 4294901760
    %v6253 = vsub.f32 %v6181, %v6252
    %v6254 = vand.u32 %v6253, 4294901760
    %v6255 = vsub.f32 %v6253, %v6254
    %v6256 = vand.u32 %v6255, 4294901760
    %6257 = vmatmul.mubr.f32.gmra.mrb[0].mxu0 %v6256
    %v6258 = vpop.f32.mrb[0].mxu0
    %v6259 = vadd.f32 %v6178, %v6258
    %v6260 = vpop.f32.mrb[0].mxu0
    %6261 = vdwg.mxu0
    %6262 = vmatprep.subr.mxu0 0.0
    %v6263 = vand.u32 %v6169, 4294901760
    %v6264 = vsub.f32 %v6169, %v6263
    %v6265 = vand.u32 %v6264, 4294901760
    %v6266 = vsub.f32 %v6264, %v6265
    %v6267 = vand.u32 %v6266, 4294901760
    %6268 = vmatpush1.msra.mxu0 %v6267
    %6269 = vmatprep.subr.mxu0 0.0
    %v6270 = vand.u32 %v6170, 4294901760
    %v6271 = vsub.f32 %v6170, %v6270
    %v6272 = vand.u32 %v6271, 4294901760
    %v6273 = vsub.f32 %v6271, %v6272
    %v6274 = vand.u32 %v6273, 4294901760
    %6275 = vmatpush1.msra.mxu0 %v6274
    %6276 = vmatprep.subr.mxu0 0.0
    %v6277 = vand.u32 %v6171, 4294901760
    %v6278 = vsub.f32 %v6171, %v6277
    %v6279 = vand.u32 %v6278, 4294901760
    %v6280 = vsub.f32 %v6278, %v6279
    %v6281 = vand.u32 %v6280, 4294901760
    %6282 = vmatpush1.msra.mxu0 %v6281
    %6283 = vmatprep.subr.mxu0 0.0
    %v6284 = vand.u32 %v6172, 4294901760
    %v6285 = vsub.f32 %v6172, %v6284
    %v6286 = vand.u32 %v6285, 4294901760
    %v6287 = vsub.f32 %v6285, %v6286
    %v6288 = vand.u32 %v6287, 4294901760
    %6289 = vmatpush1.msra.mxu0 %v6288
    %6290 = vmatprep.subr.mxu0 0.0
    %6291 = vmatpush1.msra.mxu0 0.0
    %6292 = vmatprep.subr.mxu0 0.0
    %6293 = vmatpush1.msra.mxu0 0.0
    %6294 = vmatprep.subr.mxu0 0.0
    %6295 = vmatpush1.msra.mxu0 0.0
    %6296 = vmatprep.subr.mxu0 0.0
    %6297 = vmatpush1.msra.mxu0 0.0
    %6298 = vmatprep.subr.mxu0 0.0
    %6299 = vmatpush1.msra.mxu0 0.0
    %6300 = vmatprep.subr.mxu0 0.0
    %6301 = vmatpush1.msra.mxu0 0.0
    %6302 = vmatprep.subr.mxu0 0.0
    %6303 = vmatpush1.msra.mxu0 0.0
    %6304 = vmatprep.subr.mxu0 0.0
    %6305 = vmatpush1.msra.mxu0 0.0
    %6306 = vmatprep.subr.mxu0 0.0
    %6307 = vmatpush1.msra.mxu0 0.0
    %6308 = vmatprep.subr.mxu0 0.0
    %6309 = vmatpush1.msra.mxu0 0.0
    %6310 = vmatprep.subr.mxu0 0.0
    %6311 = vmatpush1.msra.mxu0 0.0
    %6312 = vmatprep.subr.mxu0 0.0
    %6313 = vmatpush1.msra.mxu0 0.0
    %6314 = vmatprep.subr.mxu0 0.0
    %6315 = vmatpush1.msra.mxu0 0.0
    %6316 = vmatprep.subr.mxu0 0.0
    %6317 = vmatpush1.msra.mxu0 0.0
    %6318 = vmatprep.subr.mxu0 0.0
    %6319 = vmatpush1.msra.mxu0 0.0
    %6320 = vmatprep.subr.mxu0 0.0
    %6321 = vmatpush1.msra.mxu0 0.0
    %6322 = vmatprep.subr.mxu0 0.0
    %6323 = vmatpush1.msra.mxu0 0.0
    %6324 = vmatprep.subr.mxu0 0.0
    %6325 = vmatpush1.msra.mxu0 0.0
    %6326 = vmatprep.subr.mxu0 0.0
    %6327 = vmatpush1.msra.mxu0 0.0
    %6328 = vmatprep.subr.mxu0 0.0
    %6329 = vmatpush1.msra.mxu0 0.0
    %6330 = vmatprep.subr.mxu0 0.0
    %6331 = vmatpush1.msra.mxu0 0.0
    %6332 = vmatprep.subr.mxu0 0.0
    %6333 = vmatpush1.msra.mxu0 0.0
    %6334 = vmatprep.subr.mxu0 0.0
    %6335 = vmatpush1.msra.mxu0 0.0
    %6336 = vmatprep.subr.mxu0 0.0
    %6337 = vmatpush1.msra.mxu0 0.0
    %6338 = vmatprep.subr.mxu0 0.0
    %6339 = vmatpush1.msra.mxu0 0.0
    %6340 = vmatprep.subr.mxu0 0.0
    %6341 = vmatpush1.msra.mxu0 0.0
    %6342 = vmatprep.subr.mxu0 0.0
    %6343 = vmatpush1.msra.mxu0 0.0
    %6344 = vmatprep.subr.mxu0 0.0
    %6345 = vmatpush1.msra.mxu0 0.0
    %6346 = vmatprep.mubr.f32.mxu0 0.0
    %v6347 = vand.u32 %v6181, 4294901760
    %6348 = vmatmul.mubr.f32.gmra.mrb[0].mxu0 %v6347
    %v6349 = vpop.f32.mrb[0].mxu0
    %v6350 = vadd.f32 %v6259, %v6349
    %v6351 = vpop.f32.mrb[0].mxu0
    %6352 = vdwg.mxu0
    %6353 = vmatprep.subr.mxu0 0.0
    %v6354 = vand.u32 %v6169, 4294901760
    %v6355 = vsub.f32 %v6169, %v6354
    %6356 = vmatpush1.msra.mxu0 %v6355
    %6357 = vmatprep.subr.mxu0 0.0
    %v6358 = vand.u32 %v6170, 4294901760
    %v6359 = vsub.f32 %v6170, %v6358
    %6360 = vmatpush1.msra.mxu0 %v6359
    %6361 = vmatprep.subr.mxu0 0.0
    %v6362 = vand.u32 %v6171, 4294901760
    %v6363 = vsub.f32 %v6171, %v6362
    %6364 = vmatpush1.msra.mxu0 %v6363
    %6365 = vmatprep.subr.mxu0 0.0
    %v6366 = vand.u32 %v6172, 4294901760
    %v6367 = vsub.f32 %v6172, %v6366
    %6368 = vmatpush1.msra.mxu0 %v6367
    %6369 = vmatprep.subr.mxu0 0.0
    %6370 = vmatpush1.msra.mxu0 0.0
    %6371 = vmatprep.subr.mxu0 0.0
    %6372 = vmatpush1.msra.mxu0 0.0
    %6373 = vmatprep.subr.mxu0 0.0
    %6374 = vmatpush1.msra.mxu0 0.0
    %6375 = vmatprep.subr.mxu0 0.0
    %6376 = vmatpush1.msra.mxu0 0.0
    %6377 = vmatprep.subr.mxu0 0.0
    %6378 = vmatpush1.msra.mxu0 0.0
    %6379 = vmatprep.subr.mxu0 0.0
    %6380 = vmatpush1.msra.mxu0 0.0
    %6381 = vmatprep.subr.mxu0 0.0
    %6382 = vmatpush1.msra.mxu0 0.0
    %6383 = vmatprep.subr.mxu0 0.0
    %6384 = vmatpush1.msra.mxu0 0.0
    %6385 = vmatprep.subr.mxu0 0.0
    %6386 = vmatpush1.msra.mxu0 0.0
    %6387 = vmatprep.subr.mxu0 0.0
    %6388 = vmatpush1.msra.mxu0 0.0
    %6389 = vmatprep.subr.mxu0 0.0
    %6390 = vmatpush1.msra.mxu0 0.0
    %6391 = vmatprep.subr.mxu0 0.0
    %6392 = vmatpush1.msra.mxu0 0.0
    %6393 = vmatprep.subr.mxu0 0.0
    %6394 = vmatpush1.msra.mxu0 0.0
    %6395 = vmatprep.subr.mxu0 0.0
    %6396 = vmatpush1.msra.mxu0 0.0
    %6397 = vmatprep.subr.mxu0 0.0
    %6398 = vmatpush1.msra.mxu0 0.0
    %6399 = vmatprep.subr.mxu0 0.0
    %6400 = vmatpush1.msra.mxu0 0.0
    %6401 = vmatprep.subr.mxu0 0.0
    %6402 = vmatpush1.msra.mxu0 0.0
    %6403 = vmatprep.subr.mxu0 0.0
    %6404 = vmatpush1.msra.mxu0 0.0
    %6405 = vmatprep.subr.mxu0 0.0
    %6406 = vmatpush1.msra.mxu0 0.0
    %6407 = vmatprep.subr.mxu0 0.0
    %6408 = vmatpush1.msra.mxu0 0.0
    %6409 = vmatprep.subr.mxu0 0.0
    %6410 = vmatpush1.msra.mxu0 0.0
    %6411 = vmatprep.subr.mxu0 0.0
    %6412 = vmatpush1.msra.mxu0 0.0
    %6413 = vmatprep.subr.mxu0 0.0
    %6414 = vmatpush1.msra.mxu0 0.0
    %6415 = vmatprep.subr.mxu0 0.0
    %6416 = vmatpush1.msra.mxu0 0.0
    %6417 = vmatprep.subr.mxu0 0.0
    %6418 = vmatpush1.msra.mxu0 0.0
    %6419 = vmatprep.subr.mxu0 0.0
    %6420 = vmatpush1.msra.mxu0 0.0
    %6421 = vmatprep.subr.mxu0 0.0
    %6422 = vmatpush1.msra.mxu0 0.0
    %6423 = vmatprep.subr.mxu0 0.0
    %6424 = vmatpush1.msra.mxu0 0.0
    %6425 = vmatprep.mubr.f32.mxu0 0.0
    %v6426 = vand.u32 %v6181, 4294901760
    %v6427 = vsub.f32 %v6181, %v6426
    %6428 = vmatmul.mubr.f32.gmra.mrb[0].mxu0 %v6427
    %v6429 = vpop.f32.mrb[0].mxu0
    %v6430 = vadd.f32 %v6350, %v6429
    %v6431 = vpop.f32.mrb[0].mxu0
    %6432 = vdwg.mxu0
    %6433 = vmatprep.subr.mxu0 0.0
    %v6434 = vand.u32 %v6169, 4294901760
    %6435 = vmatpush1.msra.mxu0 %v6434
    %6436 = vmatprep.subr.mxu0 0.0
    %v6437 = vand.u32 %v6170, 4294901760
    %6438 = vmatpush1.msra.mxu0 %v6437
    %6439 = vmatprep.subr.mxu0 0.0
    %v6440 = vand.u32 %v6171, 4294901760
    %6441 = vmatpush1.msra.mxu0 %v6440
    %6442 = vmatprep.subr.mxu0 0.0
    %v6443 = vand.u32 %v6172, 4294901760
    %6444 = vmatpush1.msra.mxu0 %v6443
    %6445 = vmatprep.subr.mxu0 0.0
    %6446 = vmatpush1.msra.mxu0 0.0
    %6447 = vmatprep.subr.mxu0 0.0
    %6448 = vmatpush1.msra.mxu0 0.0
    %6449 = vmatprep.subr.mxu0 0.0
    %6450 = vmatpush1.msra.mxu0 0.0
    %6451 = vmatprep.subr.mxu0 0.0
    %6452 = vmatpush1.msra.mxu0 0.0
    %6453 = vmatprep.subr.mxu0 0.0
    %6454 = vmatpush1.msra.mxu0 0.0
    %6455 = vmatprep.subr.mxu0 0.0
    %6456 = vmatpush1.msra.mxu0 0.0
    %6457 = vmatprep.subr.mxu0 0.0
    %6458 = vmatpush1.msra.mxu0 0.0
    %6459 = vmatprep.subr.mxu0 0.0
    %6460 = vmatpush1.msra.mxu0 0.0
    %6461 = vmatprep.subr.mxu0 0.0
    %6462 = vmatpush1.msra.mxu0 0.0
    %6463 = vmatprep.subr.mxu0 0.0
    %6464 = vmatpush1.msra.mxu0 0.0
    %6465 = vmatprep.subr.mxu0 0.0
    %6466 = vmatpush1.msra.mxu0 0.0
    %6467 = vmatprep.subr.mxu0 0.0
    %6468 = vmatpush1.msra.mxu0 0.0
    %6469 = vmatprep.subr.mxu0 0.0
    %6470 = vmatpush1.msra.mxu0 0.0
    %6471 = vmatprep.subr.mxu0 0.0
    %6472 = vmatpush1.msra.mxu0 0.0
    %6473 = vmatprep.subr.mxu0 0.0
    %6474 = vmatpush1.msra.mxu0 0.0
    %6475 = vmatprep.subr.mxu0 0.0
    %6476 = vmatpush1.msra.mxu0 0.0
    %6477 = vmatprep.subr.mxu0 0.0
    %6478 = vmatpush1.msra.mxu0 0.0
    %6479 = vmatprep.subr.mxu0 0.0
    %6480 = vmatpush1.msra.mxu0 0.0
    %6481 = vmatprep.subr.mxu0 0.0
    %6482 = vmatpush1.msra.mxu0 0.0
    %6483 = vmatprep.subr.mxu0 0.0
    %6484 = vmatpush1.msra.mxu0 0.0
    %6485 = vmatprep.subr.mxu0 0.0
    %6486 = vmatpush1.msra.mxu0 0.0
    %6487 = vmatprep.subr.mxu0 0.0
    %6488 = vmatpush1.msra.mxu0 0.0
    %6489 = vmatprep.subr.mxu0 0.0
    %6490 = vmatpush1.msra.mxu0 0.0
    %6491 = vmatprep.subr.mxu0 0.0
    %6492 = vmatpush1.msra.mxu0 0.0
    %6493 = vmatprep.subr.mxu0 0.0
    %6494 = vmatpush1.msra.mxu0 0.0
    %6495 = vmatprep.subr.mxu0 0.0
    %6496 = vmatpush1.msra.mxu0 0.0
    %6497 = vmatprep.subr.mxu0 0.0
    %6498 = vmatpush1.msra.mxu0 0.0
    %6499 = vmatprep.subr.mxu0 0.0
    %6500 = vmatpush1.msra.mxu0 0.0
    %6501 = vmatprep.mubr.f32.mxu0 0.0
    %v6502 = vand.u32 %v6181, 4294901760
    %v6503 = vsub.f32 %v6181, %v6502
    %v6504 = vand.u32 %v6503, 4294901760
    %6505 = vmatmul.mubr.f32.gmra.mrb[0].mxu0 %v6504
    %v6506 = vpop.f32.mrb[0].mxu0
    %v6507 = vadd.f32 %v6430, %v6506
    %v6508 = vpop.f32.mrb[0].mxu0
    %6509 = vdwg.mxu0
    %6510 = vmatprep.subr.mxu0 0.0
    %v6511 = vand.u32 %v6169, 4294901760
    %v6512 = vsub.f32 %v6169, %v6511
    %v6513 = vand.u32 %v6512, 4294901760
    %6514 = vmatpush1.msra.mxu0 %v6513
    %6515 = vmatprep.subr.mxu0 0.0
    %v6516 = vand.u32 %v6170, 4294901760
    %v6517 = vsub.f32 %v6170, %v6516
    %v6518 = vand.u32 %v6517, 4294901760
    %6519 = vmatpush1.msra.mxu0 %v6518
    %6520 = vmatprep.subr.mxu0 0.0
    %v6521 = vand.u32 %v6171, 4294901760
    %v6522 = vsub.f32 %v6171, %v6521
    %v6523 = vand.u32 %v6522, 4294901760
    %6524 = vmatpush1.msra.mxu0 %v6523
    %6525 = vmatprep.subr.mxu0 0.0
    %v6526 = vand.u32 %v6172, 4294901760
    %v6527 = vsub.f32 %v6172, %v6526
    %v6528 = vand.u32 %v6527, 4294901760
    %6529 = vmatpush1.msra.mxu0 %v6528
    %6530 = vmatprep.subr.mxu0 0.0
    %6531 = vmatpush1.msra.mxu0 0.0
    %6532 = vmatprep.subr.mxu0 0.0
    %6533 = vmatpush1.msra.mxu0 0.0
    %6534 = vmatprep.subr.mxu0 0.0
    %6535 = vmatpush1.msra.mxu0 0.0
    %6536 = vmatprep.subr.mxu0 0.0
    %6537 = vmatpush1.msra.mxu0 0.0
    %6538 = vmatprep.subr.mxu0 0.0
    %6539 = vmatpush1.msra.mxu0 0.0
    %6540 = vmatprep.subr.mxu0 0.0
    %6541 = vmatpush1.msra.mxu0 0.0
    %6542 = vmatprep.subr.mxu0 0.0
    %6543 = vmatpush1.msra.mxu0 0.0
    %6544 = vmatprep.subr.mxu0 0.0
    %6545 = vmatpush1.msra.mxu0 0.0
    %6546 = vmatprep.subr.mxu0 0.0
    %6547 = vmatpush1.msra.mxu0 0.0
    %6548 = vmatprep.subr.mxu0 0.0
    %6549 = vmatpush1.msra.mxu0 0.0
    %6550 = vmatprep.subr.mxu0 0.0
    %6551 = vmatpush1.msra.mxu0 0.0
    %6552 = vmatprep.subr.mxu0 0.0
    %6553 = vmatpush1.msra.mxu0 0.0
    %6554 = vmatprep.subr.mxu0 0.0
    %6555 = vmatpush1.msra.mxu0 0.0
    %6556 = vmatprep.subr.mxu0 0.0
    %6557 = vmatpush1.msra.mxu0 0.0
    %6558 = vmatprep.subr.mxu0 0.0
    %6559 = vmatpush1.msra.mxu0 0.0
    %6560 = vmatprep.subr.mxu0 0.0
    %6561 = vmatpush1.msra.mxu0 0.0
    %6562 = vmatprep.subr.mxu0 0.0
    %6563 = vmatpush1.msra.mxu0 0.0
    %6564 = vmatprep.subr.mxu0 0.0
    %6565 = vmatpush1.msra.mxu0 0.0
    %6566 = vmatprep.subr.mxu0 0.0
    %6567 = vmatpush1.msra.mxu0 0.0
    %6568 = vmatprep.subr.mxu0 0.0
    %6569 = vmatpush1.msra.mxu0 0.0
    %6570 = vmatprep.subr.mxu0 0.0
    %6571 = vmatpush1.msra.mxu0 0.0
    %6572 = vmatprep.subr.mxu0 0.0
    %6573 = vmatpush1.msra.mxu0 0.0
    %6574 = vmatprep.subr.mxu0 0.0
    %6575 = vmatpush1.msra.mxu0 0.0
    %6576 = vmatprep.subr.mxu0 0.0
    %6577 = vmatpush1.msra.mxu0 0.0
    %6578 = vmatprep.subr.mxu0 0.0
    %6579 = vmatpush1.msra.mxu0 0.0
    %6580 = vmatprep.subr.mxu0 0.0
    %6581 = vmatpush1.msra.mxu0 0.0
    %6582 = vmatprep.subr.mxu0 0.0
    %6583 = vmatpush1.msra.mxu0 0.0
    %6584 = vmatprep.subr.mxu0 0.0
    %6585 = vmatpush1.msra.mxu0 0.0
    %6586 = vmatprep.mubr.f32.mxu0 0.0
    %v6587 = vand.u32 %v6181, 4294901760
    %6588 = vmatmul.mubr.f32.gmra.mrb[0].mxu0 %v6587
    %v6589 = vpop.f32.mrb[0].mxu0
    %v6590 = vadd.f32 %v6507, %v6589
    %v6591 = vpop.f32.mrb[0].mxu0
    %6592 = vdwg.mxu0
    %6593 = vmatprep.subr.mxu0 0.0
    %v6594 = vand.u32 %v6169, 4294901760
    %6595 = vmatpush1.msra.mxu0 %v6594
    %6596 = vmatprep.subr.mxu0 0.0
    %v6597 = vand.u32 %v6170, 4294901760
    %6598 = vmatpush1.msra.mxu0 %v6597
    %6599 = vmatprep.subr.mxu0 0.0
    %v6600 = vand.u32 %v6171, 4294901760
    %6601 = vmatpush1.msra.mxu0 %v6600
    %6602 = vmatprep.subr.mxu0 0.0
    %v6603 = vand.u32 %v6172, 4294901760
    %6604 = vmatpush1.msra.mxu0 %v6603
    %6605 = vmatprep.subr.mxu0 0.0
    %6606 = vmatpush1.msra.mxu0 0.0
    %6607 = vmatprep.subr.mxu0 0.0
    %6608 = vmatpush1.msra.mxu0 0.0
    %6609 = vmatprep.subr.mxu0 0.0
    %6610 = vmatpush1.msra.mxu0 0.0
    %6611 = vmatprep.subr.mxu0 0.0
    %6612 = vmatpush1.msra.mxu0 0.0
    %6613 = vmatprep.subr.mxu0 0.0
    %6614 = vmatpush1.msra.mxu0 0.0
    %6615 = vmatprep.subr.mxu0 0.0
    %6616 = vmatpush1.msra.mxu0 0.0
    %6617 = vmatprep.subr.mxu0 0.0
    %6618 = vmatpush1.msra.mxu0 0.0
    %6619 = vmatprep.subr.mxu0 0.0
    %6620 = vmatpush1.msra.mxu0 0.0
    %6621 = vmatprep.subr.mxu0 0.0
    %6622 = vmatpush1.msra.mxu0 0.0
    %6623 = vmatprep.subr.mxu0 0.0
    %6624 = vmatpush1.msra.mxu0 0.0
    %6625 = vmatprep.subr.mxu0 0.0
    %6626 = vmatpush1.msra.mxu0 0.0
    %6627 = vmatprep.subr.mxu0 0.0
    %6628 = vmatpush1.msra.mxu0 0.0
    %6629 = vmatprep.subr.mxu0 0.0
    %6630 = vmatpush1.msra.mxu0 0.0
    %6631 = vmatprep.subr.mxu0 0.0
    %6632 = vmatpush1.msra.mxu0 0.0
    %6633 = vmatprep.subr.mxu0 0.0
    %6634 = vmatpush1.msra.mxu0 0.0
    %6635 = vmatprep.subr.mxu0 0.0
    %6636 = vmatpush1.msra.mxu0 0.0
    %6637 = vmatprep.subr.mxu0 0.0
    %6638 = vmatpush1.msra.mxu0 0.0
    %6639 = vmatprep.subr.mxu0 0.0
    %6640 = vmatpush1.msra.mxu0 0.0
    %6641 = vmatprep.subr.mxu0 0.0
    %6642 = vmatpush1.msra.mxu0 0.0
    %6643 = vmatprep.subr.mxu0 0.0
    %6644 = vmatpush1.msra.mxu0 0.0
    %6645 = vmatprep.subr.mxu0 0.0
    %6646 = vmatpush1.msra.mxu0 0.0
    %6647 = vmatprep.subr.mxu0 0.0
    %6648 = vmatpush1.msra.mxu0 0.0
    %6649 = vmatprep.subr.mxu0 0.0
    %6650 = vmatpush1.msra.mxu0 0.0
    %6651 = vmatprep.subr.mxu0 0.0
    %6652 = vmatpush1.msra.mxu0 0.0
    %6653 = vmatprep.subr.mxu0 0.0
    %6654 = vmatpush1.msra.mxu0 0.0
    %6655 = vmatprep.subr.mxu0 0.0
    %6656 = vmatpush1.msra.mxu0 0.0
    %6657 = vmatprep.subr.mxu0 0.0
    %6658 = vmatpush1.msra.mxu0 0.0
    %6659 = vmatprep.subr.mxu0 0.0
    %6660 = vmatpush1.msra.mxu0 0.0
    %6661 = vmatprep.mubr.f32.mxu0 0.0
    %v6662 = vand.u32 %v6181, 4294901760
    %6663 = vmatmul.mubr.f32.gmra.mrb[0].mxu0 %v6662
    %v6664 = vpop.f32.mrb[0].mxu0
    %v6665 = vadd.f32 %v6590, %v6664
    %v6666 = vpop.f32.mrb[0].mxu0
    %6667 = vdwg.mxu0
    %v6668 = vmax.f32 %v6665, 0.0
    %v6669 = vld [vmem:[%s21] sm:$0xff]
    %v6670 = vld [vmem:[%s21 + $0x8] sm:$0xff]
    %v6671 = vld [vmem:[%s22] sm:$0x1]
    %v6673 = vlaneseq
    %v6674 = vshrl.u32 %v6673, 7
    %v6675 = vsub.s32 0, %v6674
    %v6676 = vrot.slane %v6671, %v6675
    %v6679 = vsel %vm230, %v6668, 0
    %6681 = vmatprep.subr.mxu0 0.0
    %v6682 = vand.u32 %v6669, 4294901760
    %6683 = vmatpush1.msra.mxu0 %v6682
    %6684 = vmatprep.subr.mxu0 0.0
    %v6685 = vand.u32 %v6670, 4294901760
    %6686 = vmatpush1.msra.mxu0 %v6685
    %6687 = vmatprep.subr.mxu0 0.0
    %6688 = vmatpush1.msra.mxu0 0.0
    %6689 = vmatprep.subr.mxu0 0.0
    %6690 = vmatpush1.msra.mxu0 0.0
    %6691 = vmatprep.subr.mxu0 0.0
    %6692 = vmatpush1.msra.mxu0 0.0
    %6693 = vmatprep.subr.mxu0 0.0
    %6694 = vmatpush1.msra.mxu0 0.0
    %6695 = vmatprep.subr.mxu0 0.0
    %6696 = vmatpush1.msra.mxu0 0.0
    %6697 = vmatprep.subr.mxu0 0.0
    %6698 = vmatpush1.msra.mxu0 0.0
    %6699 = vmatprep.subr.mxu0 0.0
    %6700 = vmatpush1.msra.mxu0 0.0
    %6701 = vmatprep.subr.mxu0 0.0
    %6702 = vmatpush1.msra.mxu0 0.0
    %6703 = vmatprep.subr.mxu0 0.0
    %6704 = vmatpush1.msra.mxu0 0.0
    %6705 = vmatprep.subr.mxu0 0.0
    %6706 = vmatpush1.msra.mxu0 0.0
    %6707 = vmatprep.subr.mxu0 0.0
    %6708 = vmatpush1.msra.mxu0 0.0
    %6709 = vmatprep.subr.mxu0 0.0
    %6710 = vmatpush1.msra.mxu0 0.0
    %6711 = vmatprep.subr.mxu0 0.0
    %6712 = vmatpush1.msra.mxu0 0.0
    %6713 = vmatprep.subr.mxu0 0.0
    %6714 = vmatpush1.msra.mxu0 0.0
    %6715 = vmatprep.subr.mxu0 0.0
    %6716 = vmatpush1.msra.mxu0 0.0
    %6717 = vmatprep.subr.mxu0 0.0
    %6718 = vmatpush1.msra.mxu0 0.0
    %6719 = vmatprep.subr.mxu0 0.0
    %6720 = vmatpush1.msra.mxu0 0.0
    %6721 = vmatprep.subr.mxu0 0.0
    %6722 = vmatpush1.msra.mxu0 0.0
    %6723 = vmatprep.subr.mxu0 0.0
    %6724 = vmatpush1.msra.mxu0 0.0
    %6725 = vmatprep.subr.mxu0 0.0
    %6726 = vmatpush1.msra.mxu0 0.0
    %6727 = vmatprep.subr.mxu0 0.0
    %6728 = vmatpush1.msra.mxu0 0.0
    %6729 = vmatprep.subr.mxu0 0.0
    %6730 = vmatpush1.msra.mxu0 0.0
    %6731 = vmatprep.subr.mxu0 0.0
    %6732 = vmatpush1.msra.mxu0 0.0
    %6733 = vmatprep.subr.mxu0 0.0
    %6734 = vmatpush1.msra.mxu0 0.0
    %6735 = vmatprep.subr.mxu0 0.0
    %6736 = vmatpush1.msra.mxu0 0.0
    %6737 = vmatprep.subr.mxu0 0.0
    %6738 = vmatpush1.msra.mxu0 0.0
    %6739 = vmatprep.subr.mxu0 0.0
    %6740 = vmatpush1.msra.mxu0 0.0
    %6741 = vmatprep.subr.mxu0 0.0
    %6742 = vmatpush1.msra.mxu0 0.0
    %6743 = vmatprep.subr.mxu0 0.0
    %6744 = vmatpush1.msra.mxu0 0.0
    %6745 = vmatprep.subr.mxu0 0.0
    %6746 = vmatpush1.msra.mxu0 0.0
    %6747 = vmatprep.mubr.f32.mxu0 0.0
    %v6748 = vand.u32 %v6679, 4294901760
    %v6749 = vsub.f32 %v6679, %v6748
    %v6750 = vand.u32 %v6749, 4294901760
    %v6751 = vsub.f32 %v6749, %v6750
    %v6752 = vand.u32 %v6751, 4294901760
    %6753 = vmatmul.mubr.f32.gmra.mrb[0].mxu0 %v6752
    %v6754 = vpop.f32.mrb[0].mxu0
    %v6755 = vadd.f32 %v6676, %v6754
    %v6756 = vpop.f32.mrb[0].mxu0
    %6757 = vdwg.mxu0
    %6758 = vmatprep.subr.mxu0 0.0
    %v6759 = vand.u32 %v6669, 4294901760
    %v6760 = vsub.f32 %v6669, %v6759
    %v6761 = vand.u32 %v6760, 4294901760
    %v6762 = vsub.f32 %v6760, %v6761
    %v6763 = vand.u32 %v6762, 4294901760
    %6764 = vmatpush1.msra.mxu0 %v6763
    %6765 = vmatprep.subr.mxu0 0.0
    %v6766 = vand.u32 %v6670, 4294901760
    %v6767 = vsub.f32 %v6670, %v6766
    %v6768 = vand.u32 %v6767, 4294901760
    %v6769 = vsub.f32 %v6767, %v6768
    %v6770 = vand.u32 %v6769, 4294901760
    %6771 = vmatpush1.msra.mxu0 %v6770
    %6772 = vmatprep.subr.mxu0 0.0
    %6773 = vmatpush1.msra.mxu0 0.0
    %6774 = vmatprep.subr.mxu0 0.0
    %6775 = vmatpush1.msra.mxu0 0.0
    %6776 = vmatprep.subr.mxu0 0.0
    %6777 = vmatpush1.msra.mxu0 0.0
    %6778 = vmatprep.subr.mxu0 0.0
    %6779 = vmatpush1.msra.mxu0 0.0
    %6780 = vmatprep.subr.mxu0 0.0
    %6781 = vmatpush1.msra.mxu0 0.0
    %6782 = vmatprep.subr.mxu0 0.0
    %6783 = vmatpush1.msra.mxu0 0.0
    %6784 = vmatprep.subr.mxu0 0.0
    %6785 = vmatpush1.msra.mxu0 0.0
    %6786 = vmatprep.subr.mxu0 0.0
    %6787 = vmatpush1.msra.mxu0 0.0
    %6788 = vmatprep.subr.mxu0 0.0
    %6789 = vmatpush1.msra.mxu0 0.0
    %6790 = vmatprep.subr.mxu0 0.0
    %6791 = vmatpush1.msra.mxu0 0.0
    %6792 = vmatprep.subr.mxu0 0.0
    %6793 = vmatpush1.msra.mxu0 0.0
    %6794 = vmatprep.subr.mxu0 0.0
    %6795 = vmatpush1.msra.mxu0 0.0
    %6796 = vmatprep.subr.mxu0 0.0
    %6797 = vmatpush1.msra.mxu0 0.0
    %6798 = vmatprep.subr.mxu0 0.0
    %6799 = vmatpush1.msra.mxu0 0.0
    %6800 = vmatprep.subr.mxu0 0.0
    %6801 = vmatpush1.msra.mxu0 0.0
    %6802 = vmatprep.subr.mxu0 0.0
    %6803 = vmatpush1.msra.mxu0 0.0
    %6804 = vmatprep.subr.mxu0 0.0
    %6805 = vmatpush1.msra.mxu0 0.0
    %6806 = vmatprep.subr.mxu0 0.0
    %6807 = vmatpush1.msra.mxu0 0.0
    %6808 = vmatprep.subr.mxu0 0.0
    %6809 = vmatpush1.msra.mxu0 0.0
    %6810 = vmatprep.subr.mxu0 0.0
    %6811 = vmatpush1.msra.mxu0 0.0
    %6812 = vmatprep.subr.mxu0 0.0
    %6813 = vmatpush1.msra.mxu0 0.0
    %6814 = vmatprep.subr.mxu0 0.0
    %6815 = vmatpush1.msra.mxu0 0.0
    %6816 = vmatprep.subr.mxu0 0.0
    %6817 = vmatpush1.msra.mxu0 0.0
    %6818 = vmatprep.subr.mxu0 0.0
    %6819 = vmatpush1.msra.mxu0 0.0
    %6820 = vmatprep.subr.mxu0 0.0
    %6821 = vmatpush1.msra.mxu0 0.0
    %6822 = vmatprep.subr.mxu0 0.0
    %6823 = vmatpush1.msra.mxu0 0.0
    %6824 = vmatprep.subr.mxu0 0.0
    %6825 = vmatpush1.msra.mxu0 0.0
    %6826 = vmatprep.subr.mxu0 0.0
    %6827 = vmatpush1.msra.mxu0 0.0
    %6828 = vmatprep.subr.mxu0 0.0
    %6829 = vmatpush1.msra.mxu0 0.0
    %6830 = vmatprep.subr.mxu0 0.0
    %6831 = vmatpush1.msra.mxu0 0.0
    %6832 = vmatprep.mubr.f32.mxu0 0.0
    %v6833 = vand.u32 %v6679, 4294901760
    %6834 = vmatmul.mubr.f32.gmra.mrb[0].mxu0 %v6833
    %v6835 = vpop.f32.mrb[0].mxu0
    %v6836 = vadd.f32 %v6755, %v6835
    %v6837 = vpop.f32.mrb[0].mxu0
    %6838 = vdwg.mxu0
    %6839 = vmatprep.subr.mxu0 0.0
    %v6840 = vand.u32 %v6669, 4294901760
    %v6841 = vsub.f32 %v6669, %v6840
    %6842 = vmatpush1.msra.mxu0 %v6841
    %6843 = vmatprep.subr.mxu0 0.0
    %v6844 = vand.u32 %v6670, 4294901760
    %v6845 = vsub.f32 %v6670, %v6844
    %6846 = vmatpush1.msra.mxu0 %v6845
    %6847 = vmatprep.subr.mxu0 0.0
    %6848 = vmatpush1.msra.mxu0 0.0
    %6849 = vmatprep.subr.mxu0 0.0
    %6850 = vmatpush1.msra.mxu0 0.0
    %6851 = vmatprep.subr.mxu0 0.0
    %6852 = vmatpush1.msra.mxu0 0.0
    %6853 = vmatprep.subr.mxu0 0.0
    %6854 = vmatpush1.msra.mxu0 0.0
    %6855 = vmatprep.subr.mxu0 0.0
    %6856 = vmatpush1.msra.mxu0 0.0
    %6857 = vmatprep.subr.mxu0 0.0
    %6858 = vmatpush1.msra.mxu0 0.0
    %6859 = vmatprep.subr.mxu0 0.0
    %6860 = vmatpush1.msra.mxu0 0.0
    %6861 = vmatprep.subr.mxu0 0.0
    %6862 = vmatpush1.msra.mxu0 0.0
    %6863 = vmatprep.subr.mxu0 0.0
    %6864 = vmatpush1.msra.mxu0 0.0
    %6865 = vmatprep.subr.mxu0 0.0
    %6866 = vmatpush1.msra.mxu0 0.0
    %6867 = vmatprep.subr.mxu0 0.0
    %6868 = vmatpush1.msra.mxu0 0.0
    %6869 = vmatprep.subr.mxu0 0.0
    %6870 = vmatpush1.msra.mxu0 0.0
    %6871 = vmatprep.subr.mxu0 0.0
    %6872 = vmatpush1.msra.mxu0 0.0
    %6873 = vmatprep.subr.mxu0 0.0
    %6874 = vmatpush1.msra.mxu0 0.0
    %6875 = vmatprep.subr.mxu0 0.0
    %6876 = vmatpush1.msra.mxu0 0.0
    %6877 = vmatprep.subr.mxu0 0.0
    %6878 = vmatpush1.msra.mxu0 0.0
    %6879 = vmatprep.subr.mxu0 0.0
    %6880 = vmatpush1.msra.mxu0 0.0
    %6881 = vmatprep.subr.mxu0 0.0
    %6882 = vmatpush1.msra.mxu0 0.0
    %6883 = vmatprep.subr.mxu0 0.0
    %6884 = vmatpush1.msra.mxu0 0.0
    %6885 = vmatprep.subr.mxu0 0.0
    %6886 = vmatpush1.msra.mxu0 0.0
    %6887 = vmatprep.subr.mxu0 0.0
    %6888 = vmatpush1.msra.mxu0 0.0
    %6889 = vmatprep.subr.mxu0 0.0
    %6890 = vmatpush1.msra.mxu0 0.0
    %6891 = vmatprep.subr.mxu0 0.0
    %6892 = vmatpush1.msra.mxu0 0.0
    %6893 = vmatprep.subr.mxu0 0.0
    %6894 = vmatpush1.msra.mxu0 0.0
    %6895 = vmatprep.subr.mxu0 0.0
    %6896 = vmatpush1.msra.mxu0 0.0
    %6897 = vmatprep.subr.mxu0 0.0
    %6898 = vmatpush1.msra.mxu0 0.0
    %6899 = vmatprep.subr.mxu0 0.0
    %6900 = vmatpush1.msra.mxu0 0.0
    %6901 = vmatprep.subr.mxu0 0.0
    %6902 = vmatpush1.msra.mxu0 0.0
    %6903 = vmatprep.subr.mxu0 0.0
    %6904 = vmatpush1.msra.mxu0 0.0
    %6905 = vmatprep.subr.mxu0 0.0
    %6906 = vmatpush1.msra.mxu0 0.0
    %6907 = vmatprep.mubr.f32.mxu0 0.0
    %v6908 = vand.u32 %v6679, 4294901760
    %v6909 = vsub.f32 %v6679, %v6908
    %6910 = vmatmul.mubr.f32.gmra.mrb[0].mxu0 %v6909
    %v6911 = vpop.f32.mrb[0].mxu0
    %v6912 = vadd.f32 %v6836, %v6911
    %v6913 = vpop.f32.mrb[0].mxu0
    %6914 = vdwg.mxu0
    %6915 = vmatprep.subr.mxu0 0.0
    %v6916 = vand.u32 %v6669, 4294901760
    %6917 = vmatpush1.msra.mxu0 %v6916
    %6918 = vmatprep.subr.mxu0 0.0
    %v6919 = vand.u32 %v6670, 4294901760
    %6920 = vmatpush1.msra.mxu0 %v6919
    %6921 = vmatprep.subr.mxu0 0.0
    %6922 = vmatpush1.msra.mxu0 0.0
    %6923 = vmatprep.subr.mxu0 0.0
    %6924 = vmatpush1.msra.mxu0 0.0
    %6925 = vmatprep.subr.mxu0 0.0
    %6926 = vmatpush1.msra.mxu0 0.0
    %6927 = vmatprep.subr.mxu0 0.0
    %6928 = vmatpush1.msra.mxu0 0.0
    %6929 = vmatprep.subr.mxu0 0.0
    %6930 = vmatpush1.msra.mxu0 0.0
    %6931 = vmatprep.subr.mxu0 0.0
    %6932 = vmatpush1.msra.mxu0 0.0
    %6933 = vmatprep.subr.mxu0 0.0
    %6934 = vmatpush1.msra.mxu0 0.0
    %6935 = vmatprep.subr.mxu0 0.0
    %6936 = vmatpush1.msra.mxu0 0.0
    %6937 = vmatprep.subr.mxu0 0.0
    %6938 = vmatpush1.msra.mxu0 0.0
    %6939 = vmatprep.subr.mxu0 0.0
    %6940 = vmatpush1.msra.mxu0 0.0
    %6941 = vmatprep.subr.mxu0 0.0
    %6942 = vmatpush1.msra.mxu0 0.0
    %6943 = vmatprep.subr.mxu0 0.0
    %6944 = vmatpush1.msra.mxu0 0.0
    %6945 = vmatprep.subr.mxu0 0.0
    %6946 = vmatpush1.msra.mxu0 0.0
    %6947 = vmatprep.subr.mxu0 0.0
    %6948 = vmatpush1.msra.mxu0 0.0
    %6949 = vmatprep.subr.mxu0 0.0
    %6950 = vmatpush1.msra.mxu0 0.0
    %6951 = vmatprep.subr.mxu0 0.0
    %6952 = vmatpush1.msra.mxu0 0.0
    %6953 = vmatprep.subr.mxu0 0.0
    %6954 = vmatpush1.msra.mxu0 0.0
    %6955 = vmatprep.subr.mxu0 0.0
    %6956 = vmatpush1.msra.mxu0 0.0
    %6957 = vmatprep.subr.mxu0 0.0
    %6958 = vmatpush1.msra.mxu0 0.0
    %6959 = vmatprep.subr.mxu0 0.0
    %6960 = vmatpush1.msra.mxu0 0.0
    %6961 = vmatprep.subr.mxu0 0.0
    %6962 = vmatpush1.msra.mxu0 0.0
    %6963 = vmatprep.subr.mxu0 0.0
    %6964 = vmatpush1.msra.mxu0 0.0
    %6965 = vmatprep.subr.mxu0 0.0
    %6966 = vmatpush1.msra.mxu0 0.0
    %6967 = vmatprep.subr.mxu0 0.0
    %6968 = vmatpush1.msra.mxu0 0.0
    %6969 = vmatprep.subr.mxu0 0.0
    %6970 = vmatpush1.msra.mxu0 0.0
    %6971 = vmatprep.subr.mxu0 0.0
    %6972 = vmatpush1.msra.mxu0 0.0
    %6973 = vmatprep.subr.mxu0 0.0
    %6974 = vmatpush1.msra.mxu0 0.0
    %6975 = vmatprep.subr.mxu0 0.0
    %6976 = vmatpush1.msra.mxu0 0.0
    %6977 = vmatprep.subr.mxu0 0.0
    %6978 = vmatpush1.msra.mxu0 0.0
    %6979 = vmatprep.subr.mxu0 0.0
    %6980 = vmatpush1.msra.mxu0 0.0
    %6981 = vmatprep.mubr.f32.mxu0 0.0
    %v6982 = vand.u32 %v6679, 4294901760
    %v6983 = vsub.f32 %v6679, %v6982
    %v6984 = vand.u32 %v6983, 4294901760
    %6985 = vmatmul.mubr.f32.gmra.mrb[0].mxu0 %v6984
    %v6986 = vpop.f32.mrb[0].mxu0
    %v6987 = vadd.f32 %v6912, %v6986
    %v6988 = vpop.f32.mrb[0].mxu0
    %6989 = vdwg.mxu0
    %6990 = vmatprep.subr.mxu0 0.0
    %v6991 = vand.u32 %v6669, 4294901760
    %v6992 = vsub.f32 %v6669, %v6991
    %v6993 = vand.u32 %v6992, 4294901760
    %6994 = vmatpush1.msra.mxu0 %v6993
    %6995 = vmatprep.subr.mxu0 0.0
    %v6996 = vand.u32 %v6670, 4294901760
    %v6997 = vsub.f32 %v6670, %v6996
    %v6998 = vand.u32 %v6997, 4294901760
    %6999 = vmatpush1.msra.mxu0 %v6998
    %7000 = vmatprep.subr.mxu0 0.0
    %7001 = vmatpush1.msra.mxu0 0.0
    %7002 = vmatprep.subr.mxu0 0.0
    %7003 = vmatpush1.msra.mxu0 0.0
    %7004 = vmatprep.subr.mxu0 0.0
    %7005 = vmatpush1.msra.mxu0 0.0
    %7006 = vmatprep.subr.mxu0 0.0
    %7007 = vmatpush1.msra.mxu0 0.0
    %7008 = vmatprep.subr.mxu0 0.0
    %7009 = vmatpush1.msra.mxu0 0.0
    %7010 = vmatprep.subr.mxu0 0.0
    %7011 = vmatpush1.msra.mxu0 0.0
    %7012 = vmatprep.subr.mxu0 0.0
    %7013 = vmatpush1.msra.mxu0 0.0
    %7014 = vmatprep.subr.mxu0 0.0
    %7015 = vmatpush1.msra.mxu0 0.0
    %7016 = vmatprep.subr.mxu0 0.0
    %7017 = vmatpush1.msra.mxu0 0.0
    %7018 = vmatprep.subr.mxu0 0.0
    %7019 = vmatpush1.msra.mxu0 0.0
    %7020 = vmatprep.subr.mxu0 0.0
    %7021 = vmatpush1.msra.mxu0 0.0
    %7022 = vmatprep.subr.mxu0 0.0
    %7023 = vmatpush1.msra.mxu0 0.0
    %7024 = vmatprep.subr.mxu0 0.0
    %7025 = vmatpush1.msra.mxu0 0.0
    %7026 = vmatprep.subr.mxu0 0.0
    %7027 = vmatpush1.msra.mxu0 0.0
    %7028 = vmatprep.subr.mxu0 0.0
    %7029 = vmatpush1.msra.mxu0 0.0
    %7030 = vmatprep.subr.mxu0 0.0
    %7031 = vmatpush1.msra.mxu0 0.0
    %7032 = vmatprep.subr.mxu0 0.0
    %7033 = vmatpush1.msra.mxu0 0.0
    %7034 = vmatprep.subr.mxu0 0.0
    %7035 = vmatpush1.msra.mxu0 0.0
    %7036 = vmatprep.subr.mxu0 0.0
    %7037 = vmatpush1.msra.mxu0 0.0
    %7038 = vmatprep.subr.mxu0 0.0
    %7039 = vmatpush1.msra.mxu0 0.0
    %7040 = vmatprep.subr.mxu0 0.0
    %7041 = vmatpush1.msra.mxu0 0.0
    %7042 = vmatprep.subr.mxu0 0.0
    %7043 = vmatpush1.msra.mxu0 0.0
    %7044 = vmatprep.subr.mxu0 0.0
    %7045 = vmatpush1.msra.mxu0 0.0
    %7046 = vmatprep.subr.mxu0 0.0
    %7047 = vmatpush1.msra.mxu0 0.0
    %7048 = vmatprep.subr.mxu0 0.0
    %7049 = vmatpush1.msra.mxu0 0.0
    %7050 = vmatprep.subr.mxu0 0.0
    %7051 = vmatpush1.msra.mxu0 0.0
    %7052 = vmatprep.subr.mxu0 0.0
    %7053 = vmatpush1.msra.mxu0 0.0
    %7054 = vmatprep.subr.mxu0 0.0
    %7055 = vmatpush1.msra.mxu0 0.0
    %7056 = vmatprep.subr.mxu0 0.0
    %7057 = vmatpush1.msra.mxu0 0.0
    %7058 = vmatprep.subr.mxu0 0.0
    %7059 = vmatpush1.msra.mxu0 0.0
    %7060 = vmatprep.mubr.f32.mxu0 0.0
    %v7061 = vand.u32 %v6679, 4294901760
    %7062 = vmatmul.mubr.f32.gmra.mrb[0].mxu0 %v7061
    %v7063 = vpop.f32.mrb[0].mxu0
    %v7064 = vadd.f32 %v6987, %v7063
    %v7065 = vpop.f32.mrb[0].mxu0
    %7066 = vdwg.mxu0
    %7067 = vmatprep.subr.mxu0 0.0
    %v7068 = vand.u32 %v6669, 4294901760
    %7069 = vmatpush1.msra.mxu0 %v7068
    %7070 = vmatprep.subr.mxu0 0.0
    %v7071 = vand.u32 %v6670, 4294901760
    %7072 = vmatpush1.msra.mxu0 %v7071
    %7073 = vmatprep.subr.mxu0 0.0
    %7074 = vmatpush1.msra.mxu0 0.0
    %7075 = vmatprep.subr.mxu0 0.0
    %7076 = vmatpush1.msra.mxu0 0.0
    %7077 = vmatprep.subr.mxu0 0.0
    %7078 = vmatpush1.msra.mxu0 0.0
    %7079 = vmatprep.subr.mxu0 0.0
    %7080 = vmatpush1.msra.mxu0 0.0
    %7081 = vmatprep.subr.mxu0 0.0
    %7082 = vmatpush1.msra.mxu0 0.0
    %7083 = vmatprep.subr.mxu0 0.0
    %7084 = vmatpush1.msra.mxu0 0.0
    %7085 = vmatprep.subr.mxu0 0.0
    %7086 = vmatpush1.msra.mxu0 0.0
    %7087 = vmatprep.subr.mxu0 0.0
    %7088 = vmatpush1.msra.mxu0 0.0
    %7089 = vmatprep.subr.mxu0 0.0
    %7090 = vmatpush1.msra.mxu0 0.0
    %7091 = vmatprep.subr.mxu0 0.0
    %7092 = vmatpush1.msra.mxu0 0.0
    %7093 = vmatprep.subr.mxu0 0.0
    %7094 = vmatpush1.msra.mxu0 0.0
    %7095 = vmatprep.subr.mxu0 0.0
    %7096 = vmatpush1.msra.mxu0 0.0
    %7097 = vmatprep.subr.mxu0 0.0
    %7098 = vmatpush1.msra.mxu0 0.0
    %7099 = vmatprep.subr.mxu0 0.0
    %7100 = vmatpush1.msra.mxu0 0.0
    %7101 = vmatprep.subr.mxu0 0.0
    %7102 = vmatpush1.msra.mxu0 0.0
    %7103 = vmatprep.subr.mxu0 0.0
    %7104 = vmatpush1.msra.mxu0 0.0
    %7105 = vmatprep.subr.mxu0 0.0
    %7106 = vmatpush1.msra.mxu0 0.0
    %7107 = vmatprep.subr.mxu0 0.0
    %7108 = vmatpush1.msra.mxu0 0.0
    %7109 = vmatprep.subr.mxu0 0.0
    %7110 = vmatpush1.msra.mxu0 0.0
    %7111 = vmatprep.subr.mxu0 0.0
    %7112 = vmatpush1.msra.mxu0 0.0
    %7113 = vmatprep.subr.mxu0 0.0
    %7114 = vmatpush1.msra.mxu0 0.0
    %7115 = vmatprep.subr.mxu0 0.0
    %7116 = vmatpush1.msra.mxu0 0.0
    %7117 = vmatprep.subr.mxu0 0.0
    %7118 = vmatpush1.msra.mxu0 0.0
    %7119 = vmatprep.subr.mxu0 0.0
    %7120 = vmatpush1.msra.mxu0 0.0
    %7121 = vmatprep.subr.mxu0 0.0
    %7122 = vmatpush1.msra.mxu0 0.0
    %7123 = vmatprep.subr.mxu0 0.0
    %7124 = vmatpush1.msra.mxu0 0.0
    %7125 = vmatprep.subr.mxu0 0.0
    %7126 = vmatpush1.msra.mxu0 0.0
    %7127 = vmatprep.subr.mxu0 0.0
    %7128 = vmatpush1.msra.mxu0 0.0
    %7129 = vmatprep.subr.mxu0 0.0
    %7130 = vmatpush1.msra.mxu0 0.0
    %7131 = vmatprep.subr.mxu0 0.0
    %7132 = vmatpush1.msra.mxu0 0.0
    %7133 = vmatprep.mubr.f32.mxu0 0.0
    %v7134 = vand.u32 %v6679, 4294901760
    %7135 = vmatmul.mubr.f32.gmra.mrb[0].mxu0 %v7134
    %v7136 = vpop.f32.mrb[0].mxu0
    %v7137 = vadd.f32 %v7064, %v7136
    %v7138 = vpop.f32.mrb[0].mxu0
    %7139 = vdwg.mxu0
    %vm7140 = vcmask 17408
    %7141 = vst.msk [vmem:[#allocation3] sm:$0x3] %vm7140, %v7137
    // Predicated region
    $region94: #{tpu_custom_call.1} parent=1 // pred_check
      _
    $region95: #{tpu_custom_call.1} parent=1 // pred_check_branch
      %7143 = sbr.rel (0) target = $region97
    $region96: #{tpu_custom_call.1} parent=1 // pred_region
      %s7145 = ssub.s32 32, 32
      %7146 = vsyncadd [#allocation4], %s7145
      %s7148 = sshll.u32 [#allocation3], 4
      %s7149 = int_to_ptr.vmem [resolvable:$true] %s7148
      %7151 = dma.vmem_to_hbm [thread:$0]  %s7149, 32, %s23, [#allocation4]
    $region97: #{tpu_custom_call.1} parent=1 // pred_fallthru
      _
    // Predicated region
    $region98: #{tpu_custom_call.1} parent=1 // pred_check
      _
    $region99: #{tpu_custom_call.1} parent=1 // pred_check_branch
      %7153 = sbr.rel (0) target = $region101
    $region100: #{tpu_custom_call.1} parent=1 // pred_region
      %7154 = dma.done [#allocation4], 32
    $region101: #{tpu_custom_call.1} parent=1 // pred_fallthru
      _
    %7155 = vsyncpa [#allocation4], 1

</llo_original>
